<compile_context>
chip_gen: v6e
topology: v6e:2x2x1
jax: 0.10.0
libtpu: 0.0.40
codegen_flags: <defaults>
</compile_context>

<pallas_src>
import math

import jax
import jax.numpy as jnp
from jax.experimental import pallas as pl
from jax.experimental.pallas import tpu as pltpu

E = 768                    # transformer hidden size (pooler_output dim)
NUM_HEADS = 6
HEAD_DIM = E // NUM_HEADS  # 128
EMB_DIM = 128              # emb_dim of the projection heads


def _fused_kernel(attr_ref, ctx_ref,
                  wq_ref, wkv_ref, wl_ref, wog_ref,
                  bq_ref, bkv_ref, bog_ref,
                  gout_ref, lattr_ref, lctx_ref):
    """Fused MHA + mean-over-ctx + global head + local heads.

    attr_ref : (Lk*N, 768) f32   attr field embeddings, field-major (row = f*N + n)
    ctx_ref  : (Lq*N, 768) f32   ctx field embeddings, field-major
    wq_ref   : (768, 768)  bf16  q projection (transposed: y = x @ W)
    wkv_ref  : (768, 1536) bf16  [k | v] projections concatenated
    wl_ref   : (768, 128)  bf16  local proj head (bias-free)
    wog_ref  : (768, 128)  bf16  fused wo_t @ wg_t
    bq_ref   : (1, 768)    f32
    bkv_ref  : (1, 1536)   f32   [bk | bv]
    bog_ref  : (1, 128)    f32   bo @ wg_t
    gout_ref : (N, 128)    f32   global trial embeddings
    lattr_ref: (Lk*N, 128) f32   local embeddings of attr fields
    lctx_ref : (Lq*N, 128) f32   local embeddings of ctx fields
    """
    Mq = ctx_ref.shape[0]
    Mk = attr_ref.shape[0]
    N = gout_ref.shape[0]
    Lq = Mq // N
    scale = 1.0 / math.sqrt(HEAD_DIM)

    # bf16 activations feed the MXU-native bf16-weight matmuls; f32 accumulation.
    attr = attr_ref[...].astype(jnp.bfloat16)
    ctx = ctx_ref[...].astype(jnp.bfloat16)

    # Local projection head (bias-free), fused into the same launch.
    wl = wl_ref[...]
    lattr_ref[...] = jnp.dot(attr, wl, preferred_element_type=jnp.float32)
    lctx_ref[...] = jnp.dot(ctx, wl, preferred_element_type=jnp.float32)

    # Batched Q and K|V projections: one matmul each over the whole flat batch.
    q_all = jnp.dot(ctx, wq_ref[...], preferred_element_type=jnp.float32) + bq_ref[...]
    kv_all = jnp.dot(attr, wkv_ref[...], preferred_element_type=jnp.float32) + bkv_ref[...]

    # Same-batch attention mask over the joint (Lq*N, Lk*N) score matrix.
    q_b = jax.lax.broadcasted_iota(jnp.int32, (Mq, Mk), 0) % N
    k_b = jax.lax.broadcasted_iota(jnp.int32, (Mq, Mk), 1) % N
    same_batch = q_b == k_b

    # Per-batch mean-over-ctx-fields matrix: m_avg[n, i] = (i % N == n) / Lq.
    row_n = jax.lax.broadcasted_iota(jnp.int32, (N, Mq), 0)
    col_b = jax.lax.broadcasted_iota(jnp.int32, (N, Mq), 1) % N
    m_avg = jnp.where(row_n == col_b, 1.0 / Lq, 0.0).astype(jnp.float32)

    wog = wog_ref[...]
    g_acc = jnp.zeros((N, EMB_DIM), jnp.float32) + bog_ref[...]
    for h in range(NUM_HEADS):  # static 6-way unroll; 128-lane-aligned slices
        lo = h * HEAD_DIM
        qh = q_all[:, lo:lo + HEAD_DIM]                      # (Lq*N, 128)
        kh = kv_all[:, lo:lo + HEAD_DIM]                     # (Lk*N, 128)
        vh = kv_all[:, E + lo:E + lo + HEAD_DIM]             # (Lk*N, 128)
        s = jnp.dot(qh, kh.T, preferred_element_type=jnp.float32) * scale
        s = jnp.where(same_batch, s, -1e30)
        s = s - jnp.max(s, axis=-1, keepdims=True)
        p = jnp.exp(s)
        p = p * pl.reciprocal(jnp.sum(p, axis=-1, keepdims=True), approx=True)
        out_h = jnp.dot(p, vh, preferred_element_type=jnp.float32)           # (Lq*N, 128)
        mean_h = jnp.dot(m_avg, out_h, preferred_element_type=jnp.float32)   # (N, 128)
        g_acc = g_acc + jnp.dot(mean_h.astype(jnp.bfloat16),
                                wog[lo:lo + HEAD_DIM, :],
                                preferred_element_type=jnp.float32)
    gout_ref[...] = g_acc  # single lane-dense (N, 128) store


def _vmem():
    return pl.BlockSpec(memory_space=pltpu.MemorySpace.VMEM)


def fused_forward(attr_flat, ctx_flat, kparams, n_batch):
    mk = attr_flat.shape[0]
    mq = ctx_flat.shape[0]
    return pl.pallas_call(
        _fused_kernel,
        out_shape=(jax.ShapeDtypeStruct((n_batch, EMB_DIM), jnp.float32),
                   jax.ShapeDtypeStruct((mk, EMB_DIM), jnp.float32),
                   jax.ShapeDtypeStruct((mq, EMB_DIM), jnp.float32)),
        in_specs=[_vmem() for _ in range(9)],
        out_specs=(_vmem(), _vmem(), _vmem()),
    )(attr_flat, ctx_flat,
      kparams['wq'], kparams['wkv'], kparams['wl'], kparams['wog'],
      kparams['bq'], kparams['bkv'], kparams['bog'])


def prepare_params(raw):
    """Fold / cast the nn.Module parameters for the fused Pallas kernel.

    - wo_g = wo_t @ wg_t and bo_g = bo @ wg_t fuse the MHA output projection,
      the mean over ctx fields, and the bias-free global head (exact: all linear).
    - k and v weights are concatenated so the attr side is a single matmul.
    - Big weights stored in bf16 (halves HBM bytes); accumulation stays f32.
    """
    return {
        'wq': raw['wq_t'].astype(jnp.bfloat16),
        'wkv': jnp.concatenate([raw['wk_t'], raw['wv_t']], axis=1).astype(jnp.bfloat16),
        'wl': raw['wl_t'].astype(jnp.bfloat16),
        'wog': (raw['wo_t'] @ raw['wg_t']).astype(jnp.bfloat16),
        'bq': raw['bq'].astype(jnp.float32),
        'bkv': jnp.concatenate([raw['bk'], raw['bv']], axis=1).astype(jnp.float32),
        'bog': (raw['bo'] @ raw['wg_t']).astype(jnp.float32),
        # f32 copies kept only for the ctx-less fallback path
        'wg_t': raw['wg_t'],
        'wl_t': raw['wl_t'],
    }


def build_model_forward(inputs, kparams, fields, ctx_fields, return_local_emb=True):
    """Mirrors BuildModel.forward.

    inputs[field] holds the (batch, 768) pooler_output for that field
    (base_encoder is not re-implemented; see TODO(synk) at the top).
    """
    attr_pool = jnp.stack([inputs[fd] for fd in fields])        # (Lk, N, E)
    n_batch = attr_pool.shape[1]
    has_ctx = len(ctx_fields) > 0

    if has_ctx:
        ctx_pool = jnp.stack([inputs[fd] for fd in ctx_fields])  # (Lq, N, E)
        g, lattr, lctx = fused_forward(attr_pool.reshape(-1, E),
                                       ctx_pool.reshape(-1, E),
                                       kparams, n_batch)
        local_embs = {fd: lattr[i * n_batch:(i + 1) * n_batch]
                      for i, fd in enumerate(fields)}
        local_embs.update({fd: lctx[i * n_batch:(i + 1) * n_batch]
                           for i, fd in enumerate(ctx_fields)})
        global_embs = g
    else:
        # ctx-less fallback (not exercised here): mean(attr) -> global head, plain JAX
        global_embs = jnp.mean(attr_pool, axis=0) @ kparams['wg_t']
        lattr = attr_pool.reshape(-1, E) @ kparams['wl_t']
        local_embs = {fd: lattr[i * n_batch:(i + 1) * n_batch]
                      for i, fd in enumerate(fields)}

    ret = {'global_embs': global_embs}
    if return_local_emb:
        ret['local_embs'] = local_embs
    return ret


def _reference(inputs, params, fields, ctx_fields):
    """Pure-JAX f32 reference matching PyTorch nn.MultiheadAttention semantics."""
    attr = jnp.stack([inputs[fd] for fd in fields])      # (Lk, N, E)
    ctx = jnp.stack([inputs[fd] for fd in ctx_fields])   # (Lq, N, E)
    q = ctx @ params['wq_t'] + params['bq']
    k = attr @ params['wk_t'] + params['bk']
    v = attr @ params['wv_t'] + params['bv']
    Lq, N, _ = q.shape
    Lk = k.shape[0]
    qh = q.reshape(Lq, N, NUM_HEADS, HEAD_DIM).transpose(1, 2, 0, 3)
    kh = k.reshape(Lk, N, NUM_HEADS, HEAD_DIM).transpose(1, 2, 0, 3)
    vh = v.reshape(Lk, N, NUM_HEADS, HEAD_DIM).transpose(1, 2, 0, 3)
    s = jnp.einsum('nhqd,nhkd->nhqk', qh, kh) / math.sqrt(HEAD_DIM)
    p = jax.nn.softmax(s, axis=-1)
    o = jnp.einsum('nhqk,nhkd->nhqd', p, vh)
    o = o.transpose(2, 0, 1, 3).reshape(Lq, N, E)
    o = o @ params['wo_t'] + params['bo']
    temp = jnp.mean(o, axis=0)
    return temp @ params['wg_t']


if __name__ == "__main__":
    batch = 2
    fields = ['title', 'intervention', 'condition']   # attr fields
    ctx_fields = ['disease', 'drug']                  # ctx fields

    key = jax.random.PRNGKey(0)
    kp = jax.random.split(key, 16)

    # deterministic synthetic parameters (shapes from nn.MultiheadAttention(768, 6)
    # and nn.Linear(768, emb_dim, bias=False)); weights already transposed (y = x @ W)
    raw_params = {
        'wq_t': 0.02 * jax.random.normal(kp[0], (E, E), jnp.float32),
        'wk_t': 0.02 * jax.random.normal(kp[1], (E, E), jnp.float32),
        'wv_t': 0.02 * jax.random.normal(kp[2], (E, E), jnp.float32),
        'bq':   0.02 * jax.random.normal(kp[3], (1, E), jnp.float32),
        'bk':   0.02 * jax.random.normal(kp[4], (1, E), jnp.float32),
        'bv':   0.02 * jax.random.normal(kp[5], (1, E), jnp.float32),
        'wo_t': 0.02 * jax.random.normal(kp[6], (E, E), jnp.float32),
        'bo':   0.02 * jax.random.normal(kp[7], (1, E), jnp.float32),
        'wg_t': 0.02 * jax.random.normal(kp[8], (E, EMB_DIM), jnp.float32),
        'wl_t': 0.02 * jax.random.normal(kp[9], (E, EMB_DIM), jnp.float32),
    }
    kparams = prepare_params(raw_params)

    # synthetic per-field pooler_output embeddings: (batch, 768)
    all_fields = fields + ctx_fields
    inputs = {
        fd: jax.random.normal(kp[10 + i], (batch, E), jnp.float32)
        for i, fd in enumerate(all_fields)
    }

    out = build_model_forward(inputs, kparams, fields, ctx_fields)
    jax.block_until_ready(out['global_embs'])
    for v in out['local_embs'].values():
        jax.block_until_ready(v)

    # sanity check against pure-JAX f32 reference
    ref_global = _reference(inputs, raw_params, fields, ctx_fields)
    assert out['global_embs'].shape == (batch, EMB_DIM)
    assert jnp.allclose(out['global_embs'], ref_global, atol=1e-2, rtol=1e-2)
    ref_local_title = inputs['title'] @ raw_params['wl_t']
    assert out['local_embs']['title'].shape == (batch, EMB_DIM)
    assert jnp.allclose(out['local_embs']['title'], ref_local_title, atol=1e-2, rtol=1e-2)
    ref_local_drug = inputs['drug'] @ raw_params['wl_t']
    assert jnp.allclose(out['local_embs']['drug'], ref_local_drug, atol=1e-2, rtol=1e-2)

    print("KERNEL_OK")
</pallas_src>

<mosaic_0001>
module attributes {stable_mosaic.version = 11 : i64} {
  func.func @_fused_kernel(%arg0: memref<6x768xf32, #tpu.memory_space<vmem>>, %arg1: memref<4x768xf32, #tpu.memory_space<vmem>>, %arg2: memref<768x768xbf16, #tpu.memory_space<vmem>>, %arg3: memref<768x1536xbf16, #tpu.memory_space<vmem>>, %arg4: memref<768x128xbf16, #tpu.memory_space<vmem>>, %arg5: memref<768x128xbf16, #tpu.memory_space<vmem>>, %arg6: memref<1x768xf32, #tpu.memory_space<vmem>>, %arg7: memref<1x1536xf32, #tpu.memory_space<vmem>>, %arg8: memref<1x128xf32, #tpu.memory_space<vmem>>, %arg9: memref<2x128xf32, #tpu.memory_space<vmem>>, %arg10: memref<6x128xf32, #tpu.memory_space<vmem>>, %arg11: memref<4x128xf32, #tpu.memory_space<vmem>>) attributes {dimension_semantics = [], scalar_prefetch = 0 : i64, scratch_operands = 0 : i64, tpu.core_type = #tpu.core_type<tc>} {
    %c0 = arith.constant 0 : index
    %c0_0 = arith.constant 0 : index
    %0 = vector.load %arg0[%c0, %c0_0] : memref<6x768xf32, #tpu.memory_space<vmem>>, vector<6x768xf32>
    %1 = arith.truncf %0 : vector<6x768xf32> to vector<6x768xbf16>
    %c0_1 = arith.constant 0 : index
    %c0_2 = arith.constant 0 : index
    %2 = vector.load %arg1[%c0_1, %c0_2] : memref<4x768xf32, #tpu.memory_space<vmem>>, vector<4x768xf32>
    %3 = arith.truncf %2 : vector<4x768xf32> to vector<4x768xbf16>
    %c0_3 = arith.constant 0 : index
    %c0_4 = arith.constant 0 : index
    %4 = vector.load %arg4[%c0_3, %c0_4] : memref<768x128xbf16, #tpu.memory_space<vmem>>, vector<768x128xbf16>
    %cst = arith.constant dense<0.000000e+00> : vector<6x128xf32>
    %5 = tpu.matmul %1, %4, %cst {dimension_numbers = #tpu.dot_dimension_numbers<[1], [0], [0], [1], [0, 0, 1, 1], [], []>} : vector<6x768xbf16>, vector<768x128xbf16>, vector<6x128xf32> -> vector<6x128xf32>
    %c0_5 = arith.constant 0 : index
    %c0_6 = arith.constant 0 : index
    %6 = vector.load %arg10[%c0_5, %c0_6] : memref<6x128xf32, #tpu.memory_space<vmem>>, vector<6x128xf32>
    tpu.vector_store %arg10[%c0_5, %c0_6], %5 {strides = array<i32>} : memref<6x128xf32, #tpu.memory_space<vmem>>, vector<6x128xf32>,
    %cst_7 = arith.constant dense<0.000000e+00> : vector<4x128xf32>
    %7 = tpu.matmul %3, %4, %cst_7 {dimension_numbers = #tpu.dot_dimension_numbers<[1], [0], [0], [1], [0, 0, 1, 1], [], []>} : vector<4x768xbf16>, vector<768x128xbf16>, vector<4x128xf32> -> vector<4x128xf32>
    %c0_8 = arith.constant 0 : index
    %c0_9 = arith.constant 0 : index
    %8 = vector.load %arg11[%c0_8, %c0_9] : memref<4x128xf32, #tpu.memory_space<vmem>>, vector<4x128xf32>
    tpu.vector_store %arg11[%c0_8, %c0_9], %7 {strides = array<i32>} : memref<4x128xf32, #tpu.memory_space<vmem>>, vector<4x128xf32>,
    %c0_10 = arith.constant 0 : index
    %c0_11 = arith.constant 0 : index
    %9 = vector.load %arg2[%c0_10, %c0_11] : memref<768x768xbf16, #tpu.memory_space<vmem>>, vector<768x768xbf16>
    %cst_12 = arith.constant dense<0.000000e+00> : vector<4x768xf32>
    %10 = tpu.matmul %3, %9, %cst_12 {dimension_numbers = #tpu.dot_dimension_numbers<[1], [0], [0], [1], [0, 0, 1, 1], [], []>} : vector<4x768xbf16>, vector<768x768xbf16>, vector<4x768xf32> -> vector<4x768xf32>
    %c0_13 = arith.constant 0 : index
    %c0_14 = arith.constant 0 : index
    %11 = vector.load %arg6[%c0_13, %c0_14] : memref<1x768xf32, #tpu.memory_space<vmem>>, vector<1x768xf32>
    %12 = vector.broadcast %11 : vector<1x768xf32> to vector<4x768xf32>
    %13 = arith.addf %10, %12 : vector<4x768xf32>
    %c0_15 = arith.constant 0 : index
    %c0_16 = arith.constant 0 : index
    %14 = vector.load %arg3[%c0_15, %c0_16] : memref<768x1536xbf16, #tpu.memory_space<vmem>>, vector<768x1536xbf16>
    %cst_17 = arith.constant dense<0.000000e+00> : vector<6x1536xf32>
    %15 = tpu.matmul %1, %14, %cst_17 {dimension_numbers = #tpu.dot_dimension_numbers<[1], [0], [0], [1], [0, 0, 1, 1], [], []>} : vector<6x768xbf16>, vector<768x1536xbf16>, vector<6x1536xf32> -> vector<6x1536xf32>
    %c0_18 = arith.constant 0 : index
    %c0_19 = arith.constant 0 : index
    %16 = vector.load %arg7[%c0_18, %c0_19] : memref<1x1536xf32, #tpu.memory_space<vmem>>, vector<1x1536xf32>
    %17 = vector.broadcast %16 : vector<1x1536xf32> to vector<6x1536xf32>
    %18 = arith.addf %15, %17 : vector<6x1536xf32>
    %19 = tpu.iota {dimensions = array<i32: 0>} : vector<4x6xi32>
    %c2_i32 = arith.constant 2 : i32
    %c0_i32 = arith.constant 0 : i32
    %20 = arith.cmpi eq, %c2_i32, %c0_i32 : i32
    %c1_i32 = arith.constant 1 : i32
    %21 = arith.select %20, %c1_i32, %c2_i32 : i32
    %22 = vector.broadcast %21 : i32 to vector<4x6xi32>
    %23 = arith.remsi %19, %22 : vector<4x6xi32>
    %c0_i32_20 = arith.constant 0 : i32
    %24 = vector.broadcast %c0_i32_20 : i32 to vector<4x6xi32>
    %25 = arith.cmpi ne, %23, %24 : vector<4x6xi32>
    %c0_i32_21 = arith.constant 0 : i32
    %26 = vector.broadcast %c0_i32_21 : i32 to vector<4x6xi32>
    %27 = arith.cmpi slt, %23, %26 : vector<4x6xi32>
    %c0_i32_22 = arith.constant 0 : i32
    %28 = arith.cmpi slt, %21, %c0_i32_22 : i32
    %29 = vector.broadcast %28 : i1 to vector<4x6xi1>
    %30 = vector.broadcast %29 : vector<4x6xi1> to vector<4x6xi1>
    %31 = arith.xori %27, %30 : vector<4x6xi1>
    %32 = arith.andi %31, %25 : vector<4x6xi1>
    %33 = vector.broadcast %21 : i32 to vector<4x6xi32>
    %34 = arith.addi %23, %33 : vector<4x6xi32>
    %35 = arith.select %32, %34, %23 : vector<4x6xi1>, vector<4x6xi32>
    %36 = tpu.iota {dimensions = array<i32: 1>} : vector<4x6xi32>
    %c2_i32_23 = arith.constant 2 : i32
    %c0_i32_24 = arith.constant 0 : i32
    %37 = arith.cmpi eq, %c2_i32_23, %c0_i32_24 : i32
    %c1_i32_25 = arith.constant 1 : i32
    %38 = arith.select %37, %c1_i32_25, %c2_i32_23 : i32
    %39 = vector.broadcast %38 : i32 to vector<4x6xi32>
    %40 = arith.remsi %36, %39 : vector<4x6xi32>
    %c0_i32_26 = arith.constant 0 : i32
    %41 = vector.broadcast %c0_i32_26 : i32 to vector<4x6xi32>
    %42 = arith.cmpi ne, %40, %41 : vector<4x6xi32>
    %c0_i32_27 = arith.constant 0 : i32
    %43 = vector.broadcast %c0_i32_27 : i32 to vector<4x6xi32>
    %44 = arith.cmpi slt, %40, %43 : vector<4x6xi32>
    %c0_i32_28 = arith.constant 0 : i32
    %45 = arith.cmpi slt, %38, %c0_i32_28 : i32
    %46 = vector.broadcast %45 : i1 to vector<4x6xi1>
    %47 = vector.broadcast %46 : vector<4x6xi1> to vector<4x6xi1>
    %48 = arith.xori %44, %47 : vector<4x6xi1>
    %49 = arith.andi %48, %42 : vector<4x6xi1>
    %50 = vector.broadcast %38 : i32 to vector<4x6xi32>
    %51 = arith.addi %40, %50 : vector<4x6xi32>
    %52 = arith.select %49, %51, %40 : vector<4x6xi1>, vector<4x6xi32>
    %53 = arith.cmpi eq, %35, %52 : vector<4x6xi32>
    %54 = tpu.iota {dimensions = array<i32: 0>} : vector<2x4xi32>
    %55 = tpu.iota {dimensions = array<i32: 1>} : vector<2x4xi32>
    %c2_i32_29 = arith.constant 2 : i32
    %c0_i32_30 = arith.constant 0 : i32
    %56 = arith.cmpi eq, %c2_i32_29, %c0_i32_30 : i32
    %c1_i32_31 = arith.constant 1 : i32
    %57 = arith.select %56, %c1_i32_31, %c2_i32_29 : i32
    %58 = vector.broadcast %57 : i32 to vector<2x4xi32>
    %59 = arith.remsi %55, %58 : vector<2x4xi32>
    %c0_i32_32 = arith.constant 0 : i32
    %60 = vector.broadcast %c0_i32_32 : i32 to vector<2x4xi32>
    %61 = arith.cmpi ne, %59, %60 : vector<2x4xi32>
    %c0_i32_33 = arith.constant 0 : i32
    %62 = vector.broadcast %c0_i32_33 : i32 to vector<2x4xi32>
    %63 = arith.cmpi slt, %59, %62 : vector<2x4xi32>
    %c0_i32_34 = arith.constant 0 : i32
    %64 = arith.cmpi slt, %57, %c0_i32_34 : i32
    %65 = vector.broadcast %64 : i1 to vector<2x4xi1>
    %66 = vector.broadcast %65 : vector<2x4xi1> to vector<2x4xi1>
    %67 = arith.xori %63, %66 : vector<2x4xi1>
    %68 = arith.andi %67, %61 : vector<2x4xi1>
    %69 = vector.broadcast %57 : i32 to vector<2x4xi32>
    %70 = arith.addi %59, %69 : vector<2x4xi32>
    %71 = arith.select %68, %70, %59 : vector<2x4xi1>, vector<2x4xi32>
    %72 = arith.cmpi eq, %54, %71 : vector<2x4xi32>
    %cst_35 = arith.constant 5.000000e-01 : f32
    %cst_36 = arith.constant 0.000000e+00 : f32
    %73 = vector.broadcast %cst_35 : f32 to vector<2x4xf32>
    %74 = vector.broadcast %cst_36 : f32 to vector<2x4xf32>
    %75 = arith.select %72, %73, %74 : vector<2x4xi1>, vector<2x4xf32>
    %c0_37 = arith.constant 0 : index
    %c0_38 = arith.constant 0 : index
    %76 = vector.load %arg5[%c0_37, %c0_38] : memref<768x128xbf16, #tpu.memory_space<vmem>>, vector<768x128xbf16>
    %cst_39 = arith.constant 0.000000e+00 : f32
    %77 = vector.broadcast %cst_39 : f32 to vector<2x128xf32>
    %c0_40 = arith.constant 0 : index
    %c0_41 = arith.constant 0 : index
    %78 = vector.load %arg8[%c0_40, %c0_41] : memref<1x128xf32, #tpu.memory_space<vmem>>, vector<1x128xf32>
    %79 = vector.broadcast %78 : vector<1x128xf32> to vector<2x128xf32>
    %80 = arith.addf %77, %79 : vector<2x128xf32>
    %81 = vector.extract_strided_slice %13 {offsets = [0, 0], sizes = [4, 128], strides = [1, 1]} : vector<4x768xf32> to vector<4x128xf32>
    %82 = vector.extract_strided_slice %18 {offsets = [0, 0], sizes = [6, 128], strides = [1, 1]} : vector<6x1536xf32> to vector<6x128xf32>
    %83 = vector.extract_strided_slice %18 {offsets = [0, 768], sizes = [6, 128], strides = [1, 1]} : vector<6x1536xf32> to vector<6x128xf32>
    %84 = tpu.transpose %82, [1, 0] : vector<6x128xf32> -> vector<128x6xf32>
    %cst_42 = arith.constant dense<0.000000e+00> : vector<4x6xf32>
    %85 = tpu.matmul %81, %84, %cst_42 {dimension_numbers = #tpu.dot_dimension_numbers<[1], [0], [0], [1], [0, 0, 1, 1], [], []>} : vector<4x128xf32>, vector<128x6xf32>, vector<4x6xf32> -> vector<4x6xf32>
    %cst_43 = arith.constant 0.0883883461 : f32
    %86 = vector.broadcast %cst_43 : f32 to vector<4x6xf32>
    %87 = arith.mulf %85, %86 : vector<4x6xf32>
    %cst_44 = arith.constant -1.000000e+30 : f32
    %88 = vector.broadcast %cst_44 : f32 to vector<4x6xf32>
    %89 = arith.select %53, %87, %88 : vector<4x6xi1>, vector<4x6xf32>
    %cst_45 = arith.constant dense<0xFF800000> : vector<4xf32>
    %90 = vector.multi_reduction <maximumf>, %89, %cst_45 [1] : vector<4x6xf32> to vector<4xf32>
    %91 = vector.shape_cast %90 : vector<4xf32> to vector<4x1xf32>
    %92 = vector.broadcast %91 : vector<4x1xf32> to vector<4x6xf32>
    %93 = arith.subf %89, %92 : vector<4x6xf32>
    %94 = math.exp %93 : vector<4x6xf32>
    %cst_46 = arith.constant dense<0.000000e+00> : vector<4xf32>
    %95 = vector.multi_reduction <add>, %94, %cst_46 [1] : vector<4x6xf32> to vector<4xf32>
    %96 = vector.shape_cast %95 : vector<4xf32> to vector<4x1xf32>
    %97 = tpu.reciprocal %96 {approx = true} : vector<4x1xf32> -> vector<4x1xf32>
    %98 = vector.broadcast %97 : vector<4x1xf32> to vector<4x6xf32>
    %99 = arith.mulf %94, %98 : vector<4x6xf32>
    %cst_47 = arith.constant dense<0.000000e+00> : vector<4x128xf32>
    %100 = tpu.matmul %99, %83, %cst_47 {dimension_numbers = #tpu.dot_dimension_numbers<[1], [0], [0], [1], [0, 0, 1, 1], [], []>} : vector<4x6xf32>, vector<6x128xf32>, vector<4x128xf32> -> vector<4x128xf32>
    %cst_48 = arith.constant dense<0.000000e+00> : vector<2x128xf32>
    %101 = tpu.matmul %75, %100, %cst_48 {dimension_numbers = #tpu.dot_dimension_numbers<[1], [0], [0], [1], [0, 0, 1, 1], [], []>} : vector<2x4xf32>, vector<4x128xf32>, vector<2x128xf32> -> vector<2x128xf32>
    %102 = arith.truncf %101 : vector<2x128xf32> to vector<2x128xbf16>
    %103 = vector.extract_strided_slice %76 {offsets = [0, 0], sizes = [128, 128], strides = [1, 1]} : vector<768x128xbf16> to vector<128x128xbf16>
    %cst_49 = arith.constant dense<0.000000e+00> : vector<2x128xf32>
    %104 = tpu.matmul %102, %103, %cst_49 {dimension_numbers = #tpu.dot_dimension_numbers<[1], [0], [0], [1], [0, 0, 1, 1], [], []>} : vector<2x128xbf16>, vector<128x128xbf16>, vector<2x128xf32> -> vector<2x128xf32>
    %105 = arith.addf %80, %104 : vector<2x128xf32>
    %106 = vector.extract_strided_slice %13 {offsets = [0, 128], sizes = [4, 128], strides = [1, 1]} : vector<4x768xf32> to vector<4x128xf32>
    %107 = vector.extract_strided_slice %18 {offsets = [0, 128], sizes = [6, 128], strides = [1, 1]} : vector<6x1536xf32> to vector<6x128xf32>
    %108 = vector.extract_strided_slice %18 {offsets = [0, 896], sizes = [6, 128], strides = [1, 1]} : vector<6x1536xf32> to vector<6x128xf32>
    %109 = tpu.transpose %107, [1, 0] : vector<6x128xf32> -> vector<128x6xf32>
    %cst_50 = arith.constant dense<0.000000e+00> : vector<4x6xf32>
    %110 = tpu.matmul %106, %109, %cst_50 {dimension_numbers = #tpu.dot_dimension_numbers<[1], [0], [0], [1], [0, 0, 1, 1], [], []>} : vector<4x128xf32>, vector<128x6xf32>, vector<4x6xf32> -> vector<4x6xf32>
    %cst_51 = arith.constant 0.0883883461 : f32
    %111 = vector.broadcast %cst_51 : f32 to vector<4x6xf32>
    %112 = arith.mulf %110, %111 : vector<4x6xf32>
    %cst_52 = arith.constant -1.000000e+30 : f32
    %113 = vector.broadcast %cst_52 : f32 to vector<4x6xf32>
    %114 = arith.select %53, %112, %113 : vector<4x6xi1>, vector<4x6xf32>
    %cst_53 = arith.constant dense<0xFF800000> : vector<4xf32>
    %115 = vector.multi_reduction <maximumf>, %114, %cst_53 [1] : vector<4x6xf32> to vector<4xf32>
    %116 = vector.shape_cast %115 : vector<4xf32> to vector<4x1xf32>
    %117 = vector.broadcast %116 : vector<4x1xf32> to vector<4x6xf32>
    %118 = arith.subf %114, %117 : vector<4x6xf32>
    %119 = math.exp %118 : vector<4x6xf32>
    %cst_54 = arith.constant dense<0.000000e+00> : vector<4xf32>
    %120 = vector.multi_reduction <add>, %119, %cst_54 [1] : vector<4x6xf32> to vector<4xf32>
    %121 = vector.shape_cast %120 : vector<4xf32> to vector<4x1xf32>
    %122 = tpu.reciprocal %121 {approx = true} : vector<4x1xf32> -> vector<4x1xf32>
    %123 = vector.broadcast %122 : vector<4x1xf32> to vector<4x6xf32>
    %124 = arith.mulf %119, %123 : vector<4x6xf32>
    %cst_55 = arith.constant dense<0.000000e+00> : vector<4x128xf32>
    %125 = tpu.matmul %124, %108, %cst_55 {dimension_numbers = #tpu.dot_dimension_numbers<[1], [0], [0], [1], [0, 0, 1, 1], [], []>} : vector<4x6xf32>, vector<6x128xf32>, vector<4x128xf32> -> vector<4x128xf32>
    %cst_56 = arith.constant dense<0.000000e+00> : vector<2x128xf32>
    %126 = tpu.matmul %75, %125, %cst_56 {dimension_numbers = #tpu.dot_dimension_numbers<[1], [0], [0], [1], [0, 0, 1, 1], [], []>} : vector<2x4xf32>, vector<4x128xf32>, vector<2x128xf32> -> vector<2x128xf32>
    %127 = arith.truncf %126 : vector<2x128xf32> to vector<2x128xbf16>
    %128 = vector.extract_strided_slice %76 {offsets = [128, 0], sizes = [128, 128], strides = [1, 1]} : vector<768x128xbf16> to vector<128x128xbf16>
    %cst_57 = arith.constant dense<0.000000e+00> : vector<2x128xf32>
    %129 = tpu.matmul %127, %128, %cst_57 {dimension_numbers = #tpu.dot_dimension_numbers<[1], [0], [0], [1], [0, 0, 1, 1], [], []>} : vector<2x128xbf16>, vector<128x128xbf16>, vector<2x128xf32> -> vector<2x128xf32>
    %130 = arith.addf %105, %129 : vector<2x128xf32>
    %131 = vector.extract_strided_slice %13 {offsets = [0, 256], sizes = [4, 128], strides = [1, 1]} : vector<4x768xf32> to vector<4x128xf32>
    %132 = vector.extract_strided_slice %18 {offsets = [0, 256], sizes = [6, 128], strides = [1, 1]} : vector<6x1536xf32> to vector<6x128xf32>
    %133 = vector.extract_strided_slice %18 {offsets = [0, 1024], sizes = [6, 128], strides = [1, 1]} : vector<6x1536xf32> to vector<6x128xf32>
    %134 = tpu.transpose %132, [1, 0] : vector<6x128xf32> -> vector<128x6xf32>
    %cst_58 = arith.constant dense<0.000000e+00> : vector<4x6xf32>
    %135 = tpu.matmul %131, %134, %cst_58 {dimension_numbers = #tpu.dot_dimension_numbers<[1], [0], [0], [1], [0, 0, 1, 1], [], []>} : vector<4x128xf32>, vector<128x6xf32>, vector<4x6xf32> -> vector<4x6xf32>
    %cst_59 = arith.constant 0.0883883461 : f32
    %136 = vector.broadcast %cst_59 : f32 to vector<4x6xf32>
    %137 = arith.mulf %135, %136 : vector<4x6xf32>
    %cst_60 = arith.constant -1.000000e+30 : f32
    %138 = vector.broadcast %cst_60 : f32 to vector<4x6xf32>
    %139 = arith.select %53, %137, %138 : vector<4x6xi1>, vector<4x6xf32>
    %cst_61 = arith.constant dense<0xFF800000> : vector<4xf32>
    %140 = vector.multi_reduction <maximumf>, %139, %cst_61 [1] : vector<4x6xf32> to vector<4xf32>
    %141 = vector.shape_cast %140 : vector<4xf32> to vector<4x1xf32>
    %142 = vector.broadcast %141 : vector<4x1xf32> to vector<4x6xf32>
    %143 = arith.subf %139, %142 : vector<4x6xf32>
    %144 = math.exp %143 : vector<4x6xf32>
    %cst_62 = arith.constant dense<0.000000e+00> : vector<4xf32>
    %145 = vector.multi_reduction <add>, %144, %cst_62 [1] : vector<4x6xf32> to vector<4xf32>
    %146 = vector.shape_cast %145 : vector<4xf32> to vector<4x1xf32>
    %147 = tpu.reciprocal %146 {approx = true} : vector<4x1xf32> -> vector<4x1xf32>
    %148 = vector.broadcast %147 : vector<4x1xf32> to vector<4x6xf32>
    %149 = arith.mulf %144, %148 : vector<4x6xf32>
    %cst_63 = arith.constant dense<0.000000e+00> : vector<4x128xf32>
    %150 = tpu.matmul %149, %133, %cst_63 {dimension_numbers = #tpu.dot_dimension_numbers<[1], [0], [0], [1], [0, 0, 1, 1], [], []>} : vector<4x6xf32>, vector<6x128xf32>, vector<4x128xf32> -> vector<4x128xf32>
    %cst_64 = arith.constant dense<0.000000e+00> : vector<2x128xf32>
    %151 = tpu.matmul %75, %150, %cst_64 {dimension_numbers = #tpu.dot_dimension_numbers<[1], [0], [0], [1], [0, 0, 1, 1], [], []>} : vector<2x4xf32>, vector<4x128xf32>, vector<2x128xf32> -> vector<2x128xf32>
    %152 = arith.truncf %151 : vector<2x128xf32> to vector<2x128xbf16>
    %153 = vector.extract_strided_slice %76 {offsets = [256, 0], sizes = [128, 128], strides = [1, 1]} : vector<768x128xbf16> to vector<128x128xbf16>
    %cst_65 = arith.constant dense<0.000000e+00> : vector<2x128xf32>
    %154 = tpu.matmul %152, %153, %cst_65 {dimension_numbers = #tpu.dot_dimension_numbers<[1], [0], [0], [1], [0, 0, 1, 1], [], []>} : vector<2x128xbf16>, vector<128x128xbf16>, vector<2x128xf32> -> vector<2x128xf32>
    %155 = arith.addf %130, %154 : vector<2x128xf32>
    %156 = vector.extract_strided_slice %13 {offsets = [0, 384], sizes = [4, 128], strides = [1, 1]} : vector<4x768xf32> to vector<4x128xf32>
    %157 = vector.extract_strided_slice %18 {offsets = [0, 384], sizes = [6, 128], strides = [1, 1]} : vector<6x1536xf32> to vector<6x128xf32>
    %158 = vector.extract_strided_slice %18 {offsets = [0, 1152], sizes = [6, 128], strides = [1, 1]} : vector<6x1536xf32> to vector<6x128xf32>
    %159 = tpu.transpose %157, [1, 0] : vector<6x128xf32> -> vector<128x6xf32>
    %cst_66 = arith.constant dense<0.000000e+00> : vector<4x6xf32>
    %160 = tpu.matmul %156, %159, %cst_66 {dimension_numbers = #tpu.dot_dimension_numbers<[1], [0], [0], [1], [0, 0, 1, 1], [], []>} : vector<4x128xf32>, vector<128x6xf32>, vector<4x6xf32> -> vector<4x6xf32>
    %cst_67 = arith.constant 0.0883883461 : f32
    %161 = vector.broadcast %cst_67 : f32 to vector<4x6xf32>
    %162 = arith.mulf %160, %161 : vector<4x6xf32>
    %cst_68 = arith.constant -1.000000e+30 : f32
    %163 = vector.broadcast %cst_68 : f32 to vector<4x6xf32>
    %164 = arith.select %53, %162, %163 : vector<4x6xi1>, vector<4x6xf32>
    %cst_69 = arith.constant dense<0xFF800000> : vector<4xf32>
    %165 = vector.multi_reduction <maximumf>, %164, %cst_69 [1] : vector<4x6xf32> to vector<4xf32>
    %166 = vector.shape_cast %165 : vector<4xf32> to vector<4x1xf32>
    %167 = vector.broadcast %166 : vector<4x1xf32> to vector<4x6xf32>
    %168 = arith.subf %164, %167 : vector<4x6xf32>
    %169 = math.exp %168 : vector<4x6xf32>
    %cst_70 = arith.constant dense<0.000000e+00> : vector<4xf32>
    %170 = vector.multi_reduction <add>, %169, %cst_70 [1] : vector<4x6xf32> to vector<4xf32>
    %171 = vector.shape_cast %170 : vector<4xf32> to vector<4x1xf32>
    %172 = tpu.reciprocal %171 {approx = true} : vector<4x1xf32> -> vector<4x1xf32>
    %173 = vector.broadcast %172 : vector<4x1xf32> to vector<4x6xf32>
    %174 = arith.mulf %169, %173 : vector<4x6xf32>
    %cst_71 = arith.constant dense<0.000000e+00> : vector<4x128xf32>
    %175 = tpu.matmul %174, %158, %cst_71 {dimension_numbers = #tpu.dot_dimension_numbers<[1], [0], [0], [1], [0, 0, 1, 1], [], []>} : vector<4x6xf32>, vector<6x128xf32>, vector<4x128xf32> -> vector<4x128xf32>
    %cst_72 = arith.constant dense<0.000000e+00> : vector<2x128xf32>
    %176 = tpu.matmul %75, %175, %cst_72 {dimension_numbers = #tpu.dot_dimension_numbers<[1], [0], [0], [1], [0, 0, 1, 1], [], []>} : vector<2x4xf32>, vector<4x128xf32>, vector<2x128xf32> -> vector<2x128xf32>
    %177 = arith.truncf %176 : vector<2x128xf32> to vector<2x128xbf16>
    %178 = vector.extract_strided_slice %76 {offsets = [384, 0], sizes = [128, 128], strides = [1, 1]} : vector<768x128xbf16> to vector<128x128xbf16>
    %cst_73 = arith.constant dense<0.000000e+00> : vector<2x128xf32>
    %179 = tpu.matmul %177, %178, %cst_73 {dimension_numbers = #tpu.dot_dimension_numbers<[1], [0], [0], [1], [0, 0, 1, 1], [], []>} : vector<2x128xbf16>, vector<128x128xbf16>, vector<2x128xf32> -> vector<2x128xf32>
    %180 = arith.addf %155, %179 : vector<2x128xf32>
    %181 = vector.extract_strided_slice %13 {offsets = [0, 512], sizes = [4, 128], strides = [1, 1]} : vector<4x768xf32> to vector<4x128xf32>
    %182 = vector.extract_strided_slice %18 {offsets = [0, 512], sizes = [6, 128], strides = [1, 1]} : vector<6x1536xf32> to vector<6x128xf32>
    %183 = vector.extract_strided_slice %18 {offsets = [0, 1280], sizes = [6, 128], strides = [1, 1]} : vector<6x1536xf32> to vector<6x128xf32>
    %184 = tpu.transpose %182, [1, 0] : vector<6x128xf32> -> vector<128x6xf32>
    %cst_74 = arith.constant dense<0.000000e+00> : vector<4x6xf32>
    %185 = tpu.matmul %181, %184, %cst_74 {dimension_numbers = #tpu.dot_dimension_numbers<[1], [0], [0], [1], [0, 0, 1, 1], [], []>} : vector<4x128xf32>, vector<128x6xf32>, vector<4x6xf32> -> vector<4x6xf32>
    %cst_75 = arith.constant 0.0883883461 : f32
    %186 = vector.broadcast %cst_75 : f32 to vector<4x6xf32>
    %187 = arith.mulf %185, %186 : vector<4x6xf32>
    %cst_76 = arith.constant -1.000000e+30 : f32
    %188 = vector.broadcast %cst_76 : f32 to vector<4x6xf32>
    %189 = arith.select %53, %187, %188 : vector<4x6xi1>, vector<4x6xf32>
    %cst_77 = arith.constant dense<0xFF800000> : vector<4xf32>
    %190 = vector.multi_reduction <maximumf>, %189, %cst_77 [1] : vector<4x6xf32> to vector<4xf32>
    %191 = vector.shape_cast %190 : vector<4xf32> to vector<4x1xf32>
    %192 = vector.broadcast %191 : vector<4x1xf32> to vector<4x6xf32>
    %193 = arith.subf %189, %192 : vector<4x6xf32>
    %194 = math.exp %193 : vector<4x6xf32>
    %cst_78 = arith.constant dense<0.000000e+00> : vector<4xf32>
    %195 = vector.multi_reduction <add>, %194, %cst_78 [1] : vector<4x6xf32> to vector<4xf32>
    %196 = vector.shape_cast %195 : vector<4xf32> to vector<4x1xf32>
    %197 = tpu.reciprocal %196 {approx = true} : vector<4x1xf32> -> vector<4x1xf32>
    %198 = vector.broadcast %197 : vector<4x1xf32> to vector<4x6xf32>
    %199 = arith.mulf %194, %198 : vector<4x6xf32>
    %cst_79 = arith.constant dense<0.000000e+00> : vector<4x128xf32>
    %200 = tpu.matmul %199, %183, %cst_79 {dimension_numbers = #tpu.dot_dimension_numbers<[1], [0], [0], [1], [0, 0, 1, 1], [], []>} : vector<4x6xf32>, vector<6x128xf32>, vector<4x128xf32> -> vector<4x128xf32>
    %cst_80 = arith.constant dense<0.000000e+00> : vector<2x128xf32>
    %201 = tpu.matmul %75, %200, %cst_80 {dimension_numbers = #tpu.dot_dimension_numbers<[1], [0], [0], [1], [0, 0, 1, 1], [], []>} : vector<2x4xf32>, vector<4x128xf32>, vector<2x128xf32> -> vector<2x128xf32>
    %202 = arith.truncf %201 : vector<2x128xf32> to vector<2x128xbf16>
    %203 = vector.extract_strided_slice %76 {offsets = [512, 0], sizes = [128, 128], strides = [1, 1]} : vector<768x128xbf16> to vector<128x128xbf16>
    %cst_81 = arith.constant dense<0.000000e+00> : vector<2x128xf32>
    %204 = tpu.matmul %202, %203, %cst_81 {dimension_numbers = #tpu.dot_dimension_numbers<[1], [0], [0], [1], [0, 0, 1, 1], [], []>} : vector<2x128xbf16>, vector<128x128xbf16>, vector<2x128xf32> -> vector<2x128xf32>
    %205 = arith.addf %180, %204 : vector<2x128xf32>
    %206 = vector.extract_strided_slice %13 {offsets = [0, 640], sizes = [4, 128], strides = [1, 1]} : vector<4x768xf32> to vector<4x128xf32>
    %207 = vector.extract_strided_slice %18 {offsets = [0, 640], sizes = [6, 128], strides = [1, 1]} : vector<6x1536xf32> to vector<6x128xf32>
    %208 = vector.extract_strided_slice %18 {offsets = [0, 1408], sizes = [6, 128], strides = [1, 1]} : vector<6x1536xf32> to vector<6x128xf32>
    %209 = tpu.transpose %207, [1, 0] : vector<6x128xf32> -> vector<128x6xf32>
    %cst_82 = arith.constant dense<0.000000e+00> : vector<4x6xf32>
    %210 = tpu.matmul %206, %209, %cst_82 {dimension_numbers = #tpu.dot_dimension_numbers<[1], [0], [0], [1], [0, 0, 1, 1], [], []>} : vector<4x128xf32>, vector<128x6xf32>, vector<4x6xf32> -> vector<4x6xf32>
    %cst_83 = arith.constant 0.0883883461 : f32
    %211 = vector.broadcast %cst_83 : f32 to vector<4x6xf32>
    %212 = arith.mulf %210, %211 : vector<4x6xf32>
    %cst_84 = arith.constant -1.000000e+30 : f32
    %213 = vector.broadcast %cst_84 : f32 to vector<4x6xf32>
    %214 = arith.select %53, %212, %213 : vector<4x6xi1>, vector<4x6xf32>
    %cst_85 = arith.constant dense<0xFF800000> : vector<4xf32>
    %215 = vector.multi_reduction <maximumf>, %214, %cst_85 [1] : vector<4x6xf32> to vector<4xf32>
    %216 = vector.shape_cast %215 : vector<4xf32> to vector<4x1xf32>
    %217 = vector.broadcast %216 : vector<4x1xf32> to vector<4x6xf32>
    %218 = arith.subf %214, %217 : vector<4x6xf32>
    %219 = math.exp %218 : vector<4x6xf32>
    %cst_86 = arith.constant dense<0.000000e+00> : vector<4xf32>
    %220 = vector.multi_reduction <add>, %219, %cst_86 [1] : vector<4x6xf32> to vector<4xf32>
    %221 = vector.shape_cast %220 : vector<4xf32> to vector<4x1xf32>
    %222 = tpu.reciprocal %221 {approx = true} : vector<4x1xf32> -> vector<4x1xf32>
    %223 = vector.broadcast %222 : vector<4x1xf32> to vector<4x6xf32>
    %224 = arith.mulf %219, %223 : vector<4x6xf32>
    %cst_87 = arith.constant dense<0.000000e+00> : vector<4x128xf32>
    %225 = tpu.matmul %224, %208, %cst_87 {dimension_numbers = #tpu.dot_dimension_numbers<[1], [0], [0], [1], [0, 0, 1, 1], [], []>} : vector<4x6xf32>, vector<6x128xf32>, vector<4x128xf32> -> vector<4x128xf32>
    %cst_88 = arith.constant dense<0.000000e+00> : vector<2x128xf32>
    %226 = tpu.matmul %75, %225, %cst_88 {dimension_numbers = #tpu.dot_dimension_numbers<[1], [0], [0], [1], [0, 0, 1, 1], [], []>} : vector<2x4xf32>, vector<4x128xf32>, vector<2x128xf32> -> vector<2x128xf32>
    %227 = arith.truncf %226 : vector<2x128xf32> to vector<2x128xbf16>
    %228 = vector.extract_strided_slice %76 {offsets = [640, 0], sizes = [128, 128], strides = [1, 1]} : vector<768x128xbf16> to vector<128x128xbf16>
    %cst_89 = arith.constant dense<0.000000e+00> : vector<2x128xf32>
    %229 = tpu.matmul %227, %228, %cst_89 {dimension_numbers = #tpu.dot_dimension_numbers<[1], [0], [0], [1], [0, 0, 1, 1], [], []>} : vector<2x128xbf16>, vector<128x128xbf16>, vector<2x128xf32> -> vector<2x128xf32>
    %230 = arith.addf %205, %229 : vector<2x128xf32>
    %c0_90 = arith.constant 0 : index
    %c0_91 = arith.constant 0 : index
    %231 = vector.load %arg9[%c0_90, %c0_91] : memref<2x128xf32, #tpu.memory_space<vmem>>, vector<2x128xf32>
    tpu.vector_store %arg9[%c0_90, %c0_91], %230 {strides = array<i32>} : memref<2x128xf32, #tpu.memory_space<vmem>>, vector<2x128xf32>,
    return
  }
}

</mosaic_0001>

<llo_original>
// kernel: tpu_custom_call.1
$region0: #{tpu_custom_call.1}
  #allocation0 [shape = 'u32[]', space=smem, size = 0x4, offset = 0x4, fixed_abs, tag = 'smem constant byte address 0x4 - core index']
  #allocation1 [shape = 'u32[144,128]{1,0:T(1,128)}', space=vmem, size = 0x12000, scoped, tag = 'internal scratch']
  %s0 = inlined_call_operand.hbm [shape: f32[6,768], index: 0, kind: input, shape index: {}]
  %s1 = inlined_call_operand.hbm [shape: f32[4,768], index: 1, kind: input, shape index: {}]
  %s2 = inlined_call_operand.hbm [shape: bf16[768,768], index: 2, kind: input, shape index: {}]
  %s3 = inlined_call_operand.hbm [shape: bf16[768,1536], index: 3, kind: input, shape index: {}]
  %s4 = inlined_call_operand.hbm [shape: bf16[768,128], index: 4, kind: input, shape index: {}]
  %s5 = inlined_call_operand.hbm [shape: bf16[768,128], index: 5, kind: input, shape index: {}]
  %s6 = inlined_call_operand.hbm [shape: f32[1,768], index: 6, kind: input, shape index: {}]
  %s7 = inlined_call_operand.hbm [shape: f32[1,1536], index: 7, kind: input, shape index: {}]
  %s8 = inlined_call_operand.hbm [shape: f32[1,128], index: 8, kind: input, shape index: {}]
  %s9 = inlined_call_operand.hbm [shape: f32[2,128], index: 9, kind: output, shape index: {0}]
  %s10 = inlined_call_operand.hbm [shape: f32[6,128], index: 10, kind: output, shape index: {1}]
  %s11 = inlined_call_operand.hbm [shape: f32[4,128], index: 11, kind: output, shape index: {2}]
  %12 = xla_tuple %s9, %s10, %s11
  %s13 = sld [smem:[#allocation0]]
  $region98: #{tpu_custom_call.1} parent=0
    _
  %s15 = ssub.s32 1, %s13
  %s16 = scalar_select 0, %s15, %s13
  $region1: #{tpu_custom_call.1} parent=0
    #allocation2 [shape = 'u8[24576]{0}', space=vmem, size = 0x6000, scoped, tag = 'input window, operand 0, single buffered']
    #allocation3 [shape = 's32[1]{0}', space=sflag, size = 0x4, scoped, tag = 'scoped memory for tpu_custom_call.1']
    #allocation4 [shape = 's32[1]{0}', space=sflag, size = 0x4, scoped, tag = 'scoped memory for tpu_custom_call.1']
    #allocation5 [shape = 'u8[12288]{0}', space=vmem, size = 0x3000, scoped, tag = 'input window, operand 1, single buffered']
    #allocation6 [shape = 's32[1]{0}', space=sflag, size = 0x4, scoped, tag = 'scoped memory for tpu_custom_call.1']
    #allocation7 [shape = 'u8[1179648]{0}', space=vmem, size = 0x120000, scoped, tag = 'input window, operand 2, single buffered']
    #allocation8 [shape = 'u8[2359296]{0}', space=vmem, size = 0x240000, scoped, tag = 'input window, operand 3, single buffered']
    #allocation9 [shape = 's32[1]{0}', space=sflag, size = 0x4, scoped, tag = 'scoped memory for tpu_custom_call.1']
    #allocation10 [shape = 'u8[196608]{0}', space=vmem, size = 0x30000, scoped, tag = 'input window, operand 4, single buffered']
    #allocation11 [shape = 'u8[196608]{0}', space=vmem, size = 0x30000, scoped, tag = 'input window, operand 5, single buffered']
    #allocation12 [shape = 's32[1]{0}', space=sflag, size = 0x4, scoped, tag = 'scoped memory for tpu_custom_call.1']
    #allocation13 [shape = 'u8[3072]{0}', space=vmem, size = 0xc00, scoped, tag = 'input window, operand 6, single buffered']
    #allocation14 [shape = 'u8[6144]{0}', space=vmem, size = 0x1800, scoped, tag = 'input window, operand 7, single buffered']
    #allocation15 [shape = 's32[1]{0}', space=sflag, size = 0x4, scoped, tag = 'scoped memory for tpu_custom_call.1']
    #allocation16 [shape = 'u8[512]{0}', space=vmem, size = 0x400, scoped, tag = 'input window, operand 8, single buffered']
    #allocation17 [shape = 'u8[1024]{0}', space=vmem, size = 0x400, scoped, tag = 'output window, operand 0, single buffered']
    #allocation18 [shape = 'u8[4096]{0}', space=vmem, size = 0x1000, scoped, tag = 'output window, operand 1, single buffered']
    #allocation19 [shape = 's32[1]{0}', space=sflag, size = 0x4, scoped, tag = 'scoped memory for tpu_custom_call.1']
    #allocation20 [shape = 'u8[2048]{0}', space=vmem, size = 0x800, scoped, tag = 'output window, operand 2, single buffered']
    %17 = vsyncpa [#allocation3], 0
    %18 = vsyncpa [#allocation6], 0
    %19 = vsyncpa [#allocation9], 0
    %20 = vsyncpa [#allocation12], 0
    %21 = vsyncpa [#allocation15], 0
    %22 = vsyncpa [#allocation4], 0
    %23 = vsyncpa [#allocation19], 0
    // Predicated region
    $region2: #{tpu_custom_call.1} parent=1 // pred_check
      _
    $region3: #{tpu_custom_call.1} parent=1 // pred_check_branch
      %25 = sbr.rel (0) target = $region5
    $region4: #{tpu_custom_call.1} parent=1 // pred_region
      %s27 = ssub.s32 768, 768
      %28 = vsyncadd [#allocation3], %s27
      %s30 = sshll.u32 [#allocation2], 4
      %s31 = int_to_ptr.vmem [resolvable:$true] %s30
      %33 = dma.hbm_to_vmem [thread:$0]  %s0, 768, %s31, [#allocation3]
    $region5: #{tpu_custom_call.1} parent=1 // pred_fallthru
      _
    // Predicated region
    $region6: #{tpu_custom_call.1} parent=1 // pred_check
      _
    $region7: #{tpu_custom_call.1} parent=1 // pred_check_branch
      %35 = sbr.rel (0) target = $region9
    $region8: #{tpu_custom_call.1} parent=1 // pred_region
      %s37 = ssub.s32 384, 384
      %38 = vsyncadd [#allocation6], %s37
      %s40 = sshll.u32 [#allocation5], 4
      %s41 = int_to_ptr.vmem [resolvable:$true] %s40
      %43 = dma.hbm_to_vmem [thread:$0]  %s1, 384, %s41, [#allocation6]
    $region9: #{tpu_custom_call.1} parent=1 // pred_fallthru
      _
    // Predicated region
    $region10: #{tpu_custom_call.1} parent=1 // pred_check
      _
    $region11: #{tpu_custom_call.1} parent=1 // pred_check_branch
      %45 = sbr.rel (0) target = $region13
    $region12: #{tpu_custom_call.1} parent=1 // pred_region
      %s47 = ssub.s32 36864, 36864
      %48 = vsyncadd [#allocation6], %s47
      %s49 = sshll.u32 [#allocation7], 4
      %s50 = int_to_ptr.vmem [resolvable:$true] %s49
      %55 = dma.hbm_to_vmem [thread:$0]  %s2, 36864, %s50, [#allocation6], 384, 384, 24
    $region13: #{tpu_custom_call.1} parent=1 // pred_fallthru
      _
    // Predicated region
    $region14: #{tpu_custom_call.1} parent=1 // pred_check
      _
    $region15: #{tpu_custom_call.1} parent=1 // pred_check_branch
      %57 = sbr.rel (0) target = $region17
    $region16: #{tpu_custom_call.1} parent=1 // pred_region
      %s59 = ssub.s32 73728, 73728
      %60 = vsyncadd [#allocation9], %s59
      %s61 = sshll.u32 [#allocation8], 4
      %s62 = int_to_ptr.vmem [resolvable:$true] %s61
      %67 = dma.hbm_to_vmem [thread:$0]  %s3, 73728, %s62, [#allocation9], 768, 768, 48
    $region17: #{tpu_custom_call.1} parent=1 // pred_fallthru
      _
    // Predicated region
    $region18: #{tpu_custom_call.1} parent=1 // pred_check
      _
    $region19: #{tpu_custom_call.1} parent=1 // pred_check_branch
      %69 = sbr.rel (0) target = $region21
    $region20: #{tpu_custom_call.1} parent=1 // pred_region
      %s71 = ssub.s32 6144, 6144
      %72 = vsyncadd [#allocation9], %s71
      %s73 = sshll.u32 [#allocation10], 4
      %s74 = int_to_ptr.vmem [resolvable:$true] %s73
      %79 = dma.hbm_to_vmem [thread:$0]  %s4, 6144, %s74, [#allocation9], 64, 64, 4
    $region21: #{tpu_custom_call.1} parent=1 // pred_fallthru
      _
    // Predicated region
    $region22: #{tpu_custom_call.1} parent=1 // pred_check
      _
    $region23: #{tpu_custom_call.1} parent=1 // pred_check_branch
      %81 = sbr.rel (0) target = $region25
    $region24: #{tpu_custom_call.1} parent=1 // pred_region
      %s83 = ssub.s32 6144, 6144
      %84 = vsyncadd [#allocation12], %s83
      %s85 = sshll.u32 [#allocation11], 4
      %s86 = int_to_ptr.vmem [resolvable:$true] %s85
      %91 = dma.hbm_to_vmem [thread:$0]  %s5, 6144, %s86, [#allocation12], 64, 64, 4
    $region25: #{tpu_custom_call.1} parent=1 // pred_fallthru
      _
    // Predicated region
    $region26: #{tpu_custom_call.1} parent=1 // pred_check
      _
    $region27: #{tpu_custom_call.1} parent=1 // pred_check_branch
      %93 = sbr.rel (0) target = $region29
    $region28: #{tpu_custom_call.1} parent=1 // pred_region
      %s95 = ssub.s32 96, 96
      %96 = vsyncadd [#allocation12], %s95
      %s98 = sshll.u32 [#allocation13], 4
      %s99 = int_to_ptr.vmem [resolvable:$true] %s98
      %101 = dma.hbm_to_vmem [thread:$0]  %s6, 96, %s99, [#allocation12]
    $region29: #{tpu_custom_call.1} parent=1 // pred_fallthru
      _
    // Predicated region
    $region30: #{tpu_custom_call.1} parent=1 // pred_check
      _
    $region31: #{tpu_custom_call.1} parent=1 // pred_check_branch
      %103 = sbr.rel (0) target = $region33
    $region32: #{tpu_custom_call.1} parent=1 // pred_region
      %s105 = ssub.s32 192, 192
      %106 = vsyncadd [#allocation15], %s105
      %s108 = sshll.u32 [#allocation14], 4
      %s109 = int_to_ptr.vmem [resolvable:$true] %s108
      %111 = dma.hbm_to_vmem [thread:$0]  %s7, 192, %s109, [#allocation15]
    $region33: #{tpu_custom_call.1} parent=1 // pred_fallthru
      _
    // Predicated region
    $region34: #{tpu_custom_call.1} parent=1 // pred_check
      _
    $region35: #{tpu_custom_call.1} parent=1 // pred_check_branch
      %113 = sbr.rel (0) target = $region37
    $region36: #{tpu_custom_call.1} parent=1 // pred_region
      %s115 = ssub.s32 16, 16
      %116 = vsyncadd [#allocation15], %s115
      %s118 = sshll.u32 [#allocation16], 4
      %s119 = int_to_ptr.vmem [resolvable:$true] %s118
      %121 = dma.hbm_to_vmem [thread:$0]  %s8, 16, %s119, [#allocation15]
    $region37: #{tpu_custom_call.1} parent=1 // pred_fallthru
      _
    // Predicated region
    $region38: #{tpu_custom_call.1} parent=1 // pred_check
      _
    $region39: #{tpu_custom_call.1} parent=1 // pred_check_branch
      %123 = sbr.rel (0) target = $region41
    $region40: #{tpu_custom_call.1} parent=1 // pred_region
      %124 = dma.done [#allocation3], 768
    $region41: #{tpu_custom_call.1} parent=1 // pred_fallthru
      _
    // Predicated region
    $region42: #{tpu_custom_call.1} parent=1 // pred_check
      _
    $region43: #{tpu_custom_call.1} parent=1 // pred_check_branch
      %126 = sbr.rel (0) target = $region45
    $region44: #{tpu_custom_call.1} parent=1 // pred_region
      %127 = dma.done [#allocation6], 384
    $region45: #{tpu_custom_call.1} parent=1 // pred_fallthru
      _
    // Predicated region
    $region46: #{tpu_custom_call.1} parent=1 // pred_check
      _
    $region47: #{tpu_custom_call.1} parent=1 // pred_check_branch
      %129 = sbr.rel (0) target = $region49
    $region48: #{tpu_custom_call.1} parent=1 // pred_region
      %130 = dma.done [#allocation6], 36864
    $region49: #{tpu_custom_call.1} parent=1 // pred_fallthru
      _
    // Predicated region
    $region50: #{tpu_custom_call.1} parent=1 // pred_check
      _
    $region51: #{tpu_custom_call.1} parent=1 // pred_check_branch
      %132 = sbr.rel (0) target = $region53
    $region52: #{tpu_custom_call.1} parent=1 // pred_region
      %133 = dma.done [#allocation9], 73728
    $region53: #{tpu_custom_call.1} parent=1 // pred_fallthru
      _
    // Predicated region
    $region54: #{tpu_custom_call.1} parent=1 // pred_check
      _
    $region55: #{tpu_custom_call.1} parent=1 // pred_check_branch
      %135 = sbr.rel (0) target = $region57
    $region56: #{tpu_custom_call.1} parent=1 // pred_region
      %136 = dma.done [#allocation9], 6144
    $region57: #{tpu_custom_call.1} parent=1 // pred_fallthru
      _
    // Predicated region
    $region58: #{tpu_custom_call.1} parent=1 // pred_check
      _
    $region59: #{tpu_custom_call.1} parent=1 // pred_check_branch
      %138 = sbr.rel (0) target = $region61
    $region60: #{tpu_custom_call.1} parent=1 // pred_region
      %139 = dma.done [#allocation12], 6144
    $region61: #{tpu_custom_call.1} parent=1 // pred_fallthru
      _
    // Predicated region
    $region62: #{tpu_custom_call.1} parent=1 // pred_check
      _
    $region63: #{tpu_custom_call.1} parent=1 // pred_check_branch
      %141 = sbr.rel (0) target = $region65
    $region64: #{tpu_custom_call.1} parent=1 // pred_region
      %142 = dma.done [#allocation12], 96
    $region65: #{tpu_custom_call.1} parent=1 // pred_fallthru
      _
    // Predicated region
    $region66: #{tpu_custom_call.1} parent=1 // pred_check
      _
    $region67: #{tpu_custom_call.1} parent=1 // pred_check_branch
      %144 = sbr.rel (0) target = $region69
    $region68: #{tpu_custom_call.1} parent=1 // pred_region
      %145 = dma.done [#allocation15], 192
    $region69: #{tpu_custom_call.1} parent=1 // pred_fallthru
      _
    // Predicated region
    $region70: #{tpu_custom_call.1} parent=1 // pred_check
      _
    $region71: #{tpu_custom_call.1} parent=1 // pred_check_branch
      %147 = sbr.rel (0) target = $region73
    $region72: #{tpu_custom_call.1} parent=1 // pred_region
      %148 = dma.done [#allocation15], 16
    $region73: #{tpu_custom_call.1} parent=1 // pred_fallthru
      _
    %v150 = vld [vmem:[#allocation2] sm:$0x3f]
    %v151 = vld [vmem:[#allocation2 + $0x8] sm:$0x3f]
    %v152 = vld [vmem:[#allocation2 + $0x10] sm:$0x3f]
    %v153 = vld [vmem:[#allocation2 + $0x18] sm:$0x3f]
    %v154 = vld [vmem:[#allocation2 + $0x20] sm:$0x3f]
    %v155 = vld [vmem:[#allocation2 + $0x28] sm:$0x3f]
    %v156 = vpack.c.bf16 %v150, %v150
    %v157 = vpack.c.bf16 %v151, %v151
    %v158 = vpack.c.bf16 %v152, %v152
    %v159 = vpack.c.bf16 %v153, %v153
    %v160 = vpack.c.bf16 %v154, %v154
    %v161 = vpack.c.bf16 %v155, %v155
    %v162 = vld [vmem:[#allocation5] sm:$0xff]
    %v163 = vld [vmem:[#allocation5 + $0x8] sm:$0xff]
    %v164 = vld [vmem:[#allocation5 + $0x10] sm:$0xff]
    %v168 = vcombine.high %v162, %v162
    %v169 = vcombine.high %v163, %v163
    %v170 = vcombine.high %v164, %v164
    %v174 = vpack.c.bf16 %v162, %v162
    %v175 = vpack.c.bf16 %v168, %v168
    %v176 = vpack.c.bf16 %v163, %v163
    %v177 = vpack.c.bf16 %v169, %v169
    %v178 = vpack.c.bf16 %v164, %v164
    %v179 = vpack.c.bf16 %v170, %v170
    %v180 = vld [vmem:[#allocation10] sm:$0xf]
    %v181 = vld [vmem:[#allocation10 + $0x4] sm:$0xf]
    %v182 = vld [vmem:[#allocation10 + $0x8] sm:$0xf]
    %v183 = vld [vmem:[#allocation10 + $0xc] sm:$0xf]
    %v184 = vld [vmem:[#allocation10 + $0x10] sm:$0xf]
    %v185 = vld [vmem:[#allocation10 + $0x14] sm:$0xf]
    %v186 = vld [vmem:[#allocation10 + $0x18] sm:$0xf]
    %v187 = vld [vmem:[#allocation10 + $0x1c] sm:$0xf]
    %v188 = vld [vmem:[#allocation10 + $0x20] sm:$0xf]
    %v189 = vld [vmem:[#allocation10 + $0x24] sm:$0xf]
    %v190 = vld [vmem:[#allocation10 + $0x28] sm:$0xf]
    %v191 = vld [vmem:[#allocation10 + $0x2c] sm:$0xf]
    %v192 = vld [vmem:[#allocation10 + $0x30] sm:$0xf]
    %v193 = vld [vmem:[#allocation10 + $0x34] sm:$0xf]
    %v194 = vld [vmem:[#allocation10 + $0x38] sm:$0xf]
    %v195 = vld [vmem:[#allocation10 + $0x3c] sm:$0xf]
    %v196 = vld [vmem:[#allocation10 + $0x40] sm:$0xf]
    %v197 = vld [vmem:[#allocation10 + $0x44] sm:$0xf]
    %v198 = vld [vmem:[#allocation10 + $0x48] sm:$0xf]
    %v199 = vld [vmem:[#allocation10 + $0x4c] sm:$0xf]
    %v200 = vld [vmem:[#allocation10 + $0x50] sm:$0xf]
    %v201 = vld [vmem:[#allocation10 + $0x54] sm:$0xf]
    %v202 = vld [vmem:[#allocation10 + $0x58] sm:$0xf]
    %v203 = vld [vmem:[#allocation10 + $0x5c] sm:$0xf]
    %v204 = vld [vmem:[#allocation10 + $0x60] sm:$0xf]
    %v205 = vld [vmem:[#allocation10 + $0x64] sm:$0xf]
    %v206 = vld [vmem:[#allocation10 + $0x68] sm:$0xf]
    %v207 = vld [vmem:[#allocation10 + $0x6c] sm:$0xf]
    %v208 = vld [vmem:[#allocation10 + $0x70] sm:$0xf]
    %v209 = vld [vmem:[#allocation10 + $0x74] sm:$0xf]
    %v210 = vld [vmem:[#allocation10 + $0x78] sm:$0xf]
    %v211 = vld [vmem:[#allocation10 + $0x7c] sm:$0xf]
    %v212 = vld [vmem:[#allocation10 + $0x80] sm:$0xf]
    %v213 = vld [vmem:[#allocation10 + $0x84] sm:$0xf]
    %v214 = vld [vmem:[#allocation10 + $0x88] sm:$0xf]
    %v215 = vld [vmem:[#allocation10 + $0x8c] sm:$0xf]
    %v216 = vld [vmem:[#allocation10 + $0x90] sm:$0xf]
    %v217 = vld [vmem:[#allocation10 + $0x94] sm:$0xf]
    %v218 = vld [vmem:[#allocation10 + $0x98] sm:$0xf]
    %v219 = vld [vmem:[#allocation10 + $0x9c] sm:$0xf]
    %v220 = vld [vmem:[#allocation10 + $0xa0] sm:$0xf]
    %v221 = vld [vmem:[#allocation10 + $0xa4] sm:$0xf]
    %v222 = vld [vmem:[#allocation10 + $0xa8] sm:$0xf]
    %v223 = vld [vmem:[#allocation10 + $0xac] sm:$0xf]
    %v224 = vld [vmem:[#allocation10 + $0xb0] sm:$0xf]
    %v225 = vld [vmem:[#allocation10 + $0xb4] sm:$0xf]
    %v226 = vld [vmem:[#allocation10 + $0xb8] sm:$0xf]
    %v227 = vld [vmem:[#allocation10 + $0xbc] sm:$0xf]
    %v228 = vld [vmem:[#allocation10 + $0xc0] sm:$0xf]
    %v229 = vld [vmem:[#allocation10 + $0xc4] sm:$0xf]
    %v230 = vld [vmem:[#allocation10 + $0xc8] sm:$0xf]
    %v231 = vld [vmem:[#allocation10 + $0xcc] sm:$0xf]
    %v232 = vld [vmem:[#allocation10 + $0xd0] sm:$0xf]
    %v233 = vld [vmem:[#allocation10 + $0xd4] sm:$0xf]
    %v234 = vld [vmem:[#allocation10 + $0xd8] sm:$0xf]
    %v235 = vld [vmem:[#allocation10 + $0xdc] sm:$0xf]
    %v236 = vld [vmem:[#allocation10 + $0xe0] sm:$0xf]
    %v237 = vld [vmem:[#allocation10 + $0xe4] sm:$0xf]
    %v238 = vld [vmem:[#allocation10 + $0xe8] sm:$0xf]
    %v239 = vld [vmem:[#allocation10 + $0xec] sm:$0xf]
    %v240 = vld [vmem:[#allocation10 + $0xf0] sm:$0xf]
    %v241 = vld [vmem:[#allocation10 + $0xf4] sm:$0xf]
    %v242 = vld [vmem:[#allocation10 + $0xf8] sm:$0xf]
    %v243 = vld [vmem:[#allocation10 + $0xfc] sm:$0xf]
    %v244 = vld [vmem:[#allocation10 + $0x100] sm:$0xf]
    %v245 = vld [vmem:[#allocation10 + $0x104] sm:$0xf]
    %v246 = vld [vmem:[#allocation10 + $0x108] sm:$0xf]
    %v247 = vld [vmem:[#allocation10 + $0x10c] sm:$0xf]
    %v248 = vld [vmem:[#allocation10 + $0x110] sm:$0xf]
    %v249 = vld [vmem:[#allocation10 + $0x114] sm:$0xf]
    %v250 = vld [vmem:[#allocation10 + $0x118] sm:$0xf]
    %v251 = vld [vmem:[#allocation10 + $0x11c] sm:$0xf]
    %v252 = vld [vmem:[#allocation10 + $0x120] sm:$0xf]
    %v253 = vld [vmem:[#allocation10 + $0x124] sm:$0xf]
    %v254 = vld [vmem:[#allocation10 + $0x128] sm:$0xf]
    %v255 = vld [vmem:[#allocation10 + $0x12c] sm:$0xf]
    %v256 = vld [vmem:[#allocation10 + $0x130] sm:$0xf]
    %v257 = vld [vmem:[#allocation10 + $0x134] sm:$0xf]
    %v258 = vld [vmem:[#allocation10 + $0x138] sm:$0xf]
    %v259 = vld [vmem:[#allocation10 + $0x13c] sm:$0xf]
    %v260 = vld [vmem:[#allocation10 + $0x140] sm:$0xf]
    %v261 = vld [vmem:[#allocation10 + $0x144] sm:$0xf]
    %v262 = vld [vmem:[#allocation10 + $0x148] sm:$0xf]
    %v263 = vld [vmem:[#allocation10 + $0x14c] sm:$0xf]
    %v264 = vld [vmem:[#allocation10 + $0x150] sm:$0xf]
    %v265 = vld [vmem:[#allocation10 + $0x154] sm:$0xf]
    %v266 = vld [vmem:[#allocation10 + $0x158] sm:$0xf]
    %v267 = vld [vmem:[#allocation10 + $0x15c] sm:$0xf]
    %v268 = vld [vmem:[#allocation10 + $0x160] sm:$0xf]
    %v269 = vld [vmem:[#allocation10 + $0x164] sm:$0xf]
    %v270 = vld [vmem:[#allocation10 + $0x168] sm:$0xf]
    %v271 = vld [vmem:[#allocation10 + $0x16c] sm:$0xf]
    %v272 = vld [vmem:[#allocation10 + $0x170] sm:$0xf]
    %v273 = vld [vmem:[#allocation10 + $0x174] sm:$0xf]
    %v274 = vld [vmem:[#allocation10 + $0x178] sm:$0xf]
    %v275 = vld [vmem:[#allocation10 + $0x17c] sm:$0xf]
    %v372 = vunpack.c.l.b16 %v180
    %v373 = vunpack.c.l.b16 %v181
    %v374 = vunpack.c.l.b16 %v182
    %v375 = vunpack.c.l.b16 %v183
    %v376 = vunpack.c.l.b16 %v184
    %v377 = vunpack.c.l.b16 %v185
    %v378 = vunpack.c.l.b16 %v186
    %v379 = vunpack.c.l.b16 %v187
    %v380 = vunpack.c.l.b16 %v188
    %v381 = vunpack.c.l.b16 %v189
    %v382 = vunpack.c.l.b16 %v190
    %v383 = vunpack.c.l.b16 %v191
    %v384 = vunpack.c.l.b16 %v192
    %v385 = vunpack.c.l.b16 %v193
    %v386 = vunpack.c.l.b16 %v194
    %v387 = vunpack.c.l.b16 %v195
    %v388 = vunpack.c.l.b16 %v196
    %v389 = vunpack.c.l.b16 %v197
    %v390 = vunpack.c.l.b16 %v198
    %v391 = vunpack.c.l.b16 %v199
    %v392 = vunpack.c.l.b16 %v200
    %v393 = vunpack.c.l.b16 %v201
    %v394 = vunpack.c.l.b16 %v202
    %v395 = vunpack.c.l.b16 %v203
    %v396 = vunpack.c.l.b16 %v204
    %v397 = vunpack.c.l.b16 %v205
    %v398 = vunpack.c.l.b16 %v206
    %v399 = vunpack.c.l.b16 %v207
    %v400 = vunpack.c.l.b16 %v208
    %v401 = vunpack.c.l.b16 %v209
    %v402 = vunpack.c.l.b16 %v210
    %v403 = vunpack.c.l.b16 %v211
    %v404 = vunpack.c.l.b16 %v212
    %v405 = vunpack.c.l.b16 %v213
    %v406 = vunpack.c.l.b16 %v214
    %v407 = vunpack.c.l.b16 %v215
    %v408 = vunpack.c.l.b16 %v216
    %v409 = vunpack.c.l.b16 %v217
    %v410 = vunpack.c.l.b16 %v218
    %v411 = vunpack.c.l.b16 %v219
    %v412 = vunpack.c.l.b16 %v220
    %v413 = vunpack.c.l.b16 %v221
    %v414 = vunpack.c.l.b16 %v222
    %v415 = vunpack.c.l.b16 %v223
    %v416 = vunpack.c.l.b16 %v224
    %v417 = vunpack.c.l.b16 %v225
    %v418 = vunpack.c.l.b16 %v226
    %v419 = vunpack.c.l.b16 %v227
    %v420 = vunpack.c.l.b16 %v228
    %v421 = vunpack.c.l.b16 %v229
    %v422 = vunpack.c.l.b16 %v230
    %v423 = vunpack.c.l.b16 %v231
    %v424 = vunpack.c.l.b16 %v232
    %v425 = vunpack.c.l.b16 %v233
    %v426 = vunpack.c.l.b16 %v234
    %v427 = vunpack.c.l.b16 %v235
    %v428 = vunpack.c.l.b16 %v236
    %v429 = vunpack.c.l.b16 %v237
    %v430 = vunpack.c.l.b16 %v238
    %v431 = vunpack.c.l.b16 %v239
    %v432 = vunpack.c.l.b16 %v240
    %v433 = vunpack.c.l.b16 %v241
    %v434 = vunpack.c.l.b16 %v242
    %v435 = vunpack.c.l.b16 %v243
    %v436 = vunpack.c.l.b16 %v244
    %v437 = vunpack.c.l.b16 %v245
    %v438 = vunpack.c.l.b16 %v246
    %v439 = vunpack.c.l.b16 %v247
    %v440 = vunpack.c.l.b16 %v248
    %v441 = vunpack.c.l.b16 %v249
    %v442 = vunpack.c.l.b16 %v250
    %v443 = vunpack.c.l.b16 %v251
    %v444 = vunpack.c.l.b16 %v252
    %v445 = vunpack.c.l.b16 %v253
    %v446 = vunpack.c.l.b16 %v254
    %v447 = vunpack.c.l.b16 %v255
    %v448 = vunpack.c.l.b16 %v256
    %v449 = vunpack.c.l.b16 %v257
    %v450 = vunpack.c.l.b16 %v258
    %v451 = vunpack.c.l.b16 %v259
    %v452 = vunpack.c.l.b16 %v260
    %v453 = vunpack.c.l.b16 %v261
    %v454 = vunpack.c.l.b16 %v262
    %v455 = vunpack.c.l.b16 %v263
    %v456 = vunpack.c.l.b16 %v264
    %v457 = vunpack.c.l.b16 %v265
    %v458 = vunpack.c.l.b16 %v266
    %v459 = vunpack.c.l.b16 %v267
    %v460 = vunpack.c.l.b16 %v268
    %v461 = vunpack.c.l.b16 %v269
    %v462 = vunpack.c.l.b16 %v270
    %v463 = vunpack.c.l.b16 %v271
    %v464 = vunpack.c.l.b16 %v272
    %v465 = vunpack.c.l.b16 %v273
    %v466 = vunpack.c.l.b16 %v274
    %v467 = vunpack.c.l.b16 %v275
    %v468 = vpack.c.b16 %v373, %v372
    %v469 = vpack.c.b16 %v375, %v374
    %v470 = vpack.c.b16 %v377, %v376
    %v471 = vpack.c.b16 %v379, %v378
    %v472 = vpack.c.b16 %v381, %v380
    %v473 = vpack.c.b16 %v383, %v382
    %v474 = vpack.c.b16 %v385, %v384
    %v475 = vpack.c.b16 %v387, %v386
    %v476 = vpack.c.b16 %v389, %v388
    %v477 = vpack.c.b16 %v391, %v390
    %v478 = vpack.c.b16 %v393, %v392
    %v479 = vpack.c.b16 %v395, %v394
    %v480 = vpack.c.b16 %v397, %v396
    %v481 = vpack.c.b16 %v399, %v398
    %v482 = vpack.c.b16 %v401, %v400
    %v483 = vpack.c.b16 %v403, %v402
    %v484 = vpack.c.b16 %v405, %v404
    %v485 = vpack.c.b16 %v407, %v406
    %v486 = vpack.c.b16 %v409, %v408
    %v487 = vpack.c.b16 %v411, %v410
    %v488 = vpack.c.b16 %v413, %v412
    %v489 = vpack.c.b16 %v415, %v414
    %v490 = vpack.c.b16 %v417, %v416
    %v491 = vpack.c.b16 %v419, %v418
    %v492 = vpack.c.b16 %v421, %v420
    %v493 = vpack.c.b16 %v423, %v422
    %v494 = vpack.c.b16 %v425, %v424
    %v495 = vpack.c.b16 %v427, %v426
    %v496 = vpack.c.b16 %v429, %v428
    %v497 = vpack.c.b16 %v431, %v430
    %v498 = vpack.c.b16 %v433, %v432
    %v499 = vpack.c.b16 %v435, %v434
    %v500 = vpack.c.b16 %v437, %v436
    %v501 = vpack.c.b16 %v439, %v438
    %v502 = vpack.c.b16 %v441, %v440
    %v503 = vpack.c.b16 %v443, %v442
    %v504 = vpack.c.b16 %v445, %v444
    %v505 = vpack.c.b16 %v447, %v446
    %v506 = vpack.c.b16 %v449, %v448
    %v507 = vpack.c.b16 %v451, %v450
    %v508 = vpack.c.b16 %v453, %v452
    %v509 = vpack.c.b16 %v455, %v454
    %v510 = vpack.c.b16 %v457, %v456
    %v511 = vpack.c.b16 %v459, %v458
    %v512 = vpack.c.b16 %v461, %v460
    %v513 = vpack.c.b16 %v463, %v462
    %v514 = vpack.c.b16 %v465, %v464
    %v515 = vpack.c.b16 %v467, %v466
    %564 = vmatprep.subr.bf16.mxu0 0
    %565 = vmatpush1.bf16.msra.mxu0 %v475
    %566 = vmatprep.subr.bf16.mxu0 0
    %567 = vmatpush1.bf16.msra.mxu0 %v474
    %568 = vmatprep.subr.bf16.mxu0 0
    %569 = vmatpush1.bf16.msra.mxu0 %v473
    %570 = vmatprep.subr.bf16.mxu0 0
    %571 = vmatpush1.bf16.msra.mxu0 %v472
    %572 = vmatprep.subr.bf16.mxu0 0
    %573 = vmatpush1.bf16.msra.mxu0 %v471
    %574 = vmatprep.subr.bf16.mxu0 0
    %575 = vmatpush1.bf16.msra.mxu0 %v470
    %576 = vmatprep.subr.bf16.mxu0 0
    %577 = vmatpush1.bf16.msra.mxu0 %v469
    %578 = vmatprep.subr.bf16.mxu0 0
    %579 = vmatpush1.bf16.msra.mxu0 %v468
    %580 = vmatprep.subr.bf16.mxu0 0
    %581 = vmatpush2.bf16.msra.mxu0 %v483
    %582 = vmatprep.subr.bf16.mxu0 0
    %583 = vmatpush2.bf16.msra.mxu0 %v482
    %584 = vmatprep.subr.bf16.mxu0 0
    %585 = vmatpush2.bf16.msra.mxu0 %v481
    %586 = vmatprep.subr.bf16.mxu0 0
    %587 = vmatpush2.bf16.msra.mxu0 %v480
    %588 = vmatprep.subr.bf16.mxu0 0
    %589 = vmatpush2.bf16.msra.mxu0 %v479
    %590 = vmatprep.subr.bf16.mxu0 0
    %591 = vmatpush2.bf16.msra.mxu0 %v478
    %592 = vmatprep.subr.bf16.mxu0 0
    %593 = vmatpush2.bf16.msra.mxu0 %v477
    %594 = vmatprep.subr.bf16.mxu0 0
    %595 = vmatpush2.bf16.msra.mxu0 %v476
    %596 = vmatprep.mubr.bf16.mxu0 %v157
    %597 = vmatmul.mubr.bf16.gmra.mxu0 %v156
    %v598 = vpop.f32.mrf.mxu0
    %v599 = vadd.f32 0.0, %v598
    %v600 = vpop.f32.mrf.mxu0
    %v601 = vpop.f32.mrf.mxu0
    %v602 = vpop.f32.mrf.mxu0
    %603 = vdwg.mxu0
    %604 = vmatprep.subr.bf16.mxu0 0
    %605 = vmatpush1.bf16.msra.mxu0 %v491
    %606 = vmatprep.subr.bf16.mxu0 0
    %607 = vmatpush1.bf16.msra.mxu0 %v490
    %608 = vmatprep.subr.bf16.mxu0 0
    %609 = vmatpush1.bf16.msra.mxu0 %v489
    %610 = vmatprep.subr.bf16.mxu0 0
    %611 = vmatpush1.bf16.msra.mxu0 %v488
    %612 = vmatprep.subr.bf16.mxu0 0
    %613 = vmatpush1.bf16.msra.mxu0 %v487
    %614 = vmatprep.subr.bf16.mxu0 0
    %615 = vmatpush1.bf16.msra.mxu0 %v486
    %616 = vmatprep.subr.bf16.mxu0 0
    %617 = vmatpush1.bf16.msra.mxu0 %v485
    %618 = vmatprep.subr.bf16.mxu0 0
    %619 = vmatpush1.bf16.msra.mxu0 %v484
    %620 = vmatprep.subr.bf16.mxu0 0
    %621 = vmatpush2.bf16.msra.mxu0 %v499
    %622 = vmatprep.subr.bf16.mxu0 0
    %623 = vmatpush2.bf16.msra.mxu0 %v498
    %624 = vmatprep.subr.bf16.mxu0 0
    %625 = vmatpush2.bf16.msra.mxu0 %v497
    %626 = vmatprep.subr.bf16.mxu0 0
    %627 = vmatpush2.bf16.msra.mxu0 %v496
    %628 = vmatprep.subr.bf16.mxu0 0
    %629 = vmatpush2.bf16.msra.mxu0 %v495
    %630 = vmatprep.subr.bf16.mxu0 0
    %631 = vmatpush2.bf16.msra.mxu0 %v494
    %632 = vmatprep.subr.bf16.mxu0 0
    %633 = vmatpush2.bf16.msra.mxu0 %v493
    %634 = vmatprep.subr.bf16.mxu0 0
    %635 = vmatpush2.bf16.msra.mxu0 %v492
    %636 = vmatprep.mubr.bf16.mxu0 %v159
    %637 = vmatmul.mubr.bf16.gmra.mxu0 %v158
    %v638 = vpop.f32.mrf.mxu0
    %v639 = vadd.f32 %v599, %v638
    %v640 = vpop.f32.mrf.mxu0
    %v641 = vpop.f32.mrf.mxu0
    %v642 = vpop.f32.mrf.mxu0
    %643 = vdwg.mxu0
    %644 = vmatprep.subr.bf16.mxu0 0
    %645 = vmatpush1.bf16.msra.mxu0 %v507
    %646 = vmatprep.subr.bf16.mxu0 0
    %647 = vmatpush1.bf16.msra.mxu0 %v506
    %648 = vmatprep.subr.bf16.mxu0 0
    %649 = vmatpush1.bf16.msra.mxu0 %v505
    %650 = vmatprep.subr.bf16.mxu0 0
    %651 = vmatpush1.bf16.msra.mxu0 %v504
    %652 = vmatprep.subr.bf16.mxu0 0
    %653 = vmatpush1.bf16.msra.mxu0 %v503
    %654 = vmatprep.subr.bf16.mxu0 0
    %655 = vmatpush1.bf16.msra.mxu0 %v502
    %656 = vmatprep.subr.bf16.mxu0 0
    %657 = vmatpush1.bf16.msra.mxu0 %v501
    %658 = vmatprep.subr.bf16.mxu0 0
    %659 = vmatpush1.bf16.msra.mxu0 %v500
    %660 = vmatprep.subr.bf16.mxu0 0
    %661 = vmatpush2.bf16.msra.mxu0 %v515
    %662 = vmatprep.subr.bf16.mxu0 0
    %663 = vmatpush2.bf16.msra.mxu0 %v514
    %664 = vmatprep.subr.bf16.mxu0 0
    %665 = vmatpush2.bf16.msra.mxu0 %v513
    %666 = vmatprep.subr.bf16.mxu0 0
    %667 = vmatpush2.bf16.msra.mxu0 %v512
    %668 = vmatprep.subr.bf16.mxu0 0
    %669 = vmatpush2.bf16.msra.mxu0 %v511
    %670 = vmatprep.subr.bf16.mxu0 0
    %671 = vmatpush2.bf16.msra.mxu0 %v510
    %672 = vmatprep.subr.bf16.mxu0 0
    %673 = vmatpush2.bf16.msra.mxu0 %v509
    %674 = vmatprep.subr.bf16.mxu0 0
    %675 = vmatpush2.bf16.msra.mxu0 %v508
    %676 = vmatprep.mubr.bf16.mxu0 %v161
    %677 = vmatmul.mubr.bf16.gmra.mxu0 %v160
    %v678 = vpop.f32.mrf.mxu0
    %v679 = vadd.f32 %v639, %v678
    %v680 = vpop.f32.mrf.mxu0
    %v681 = vpop.f32.mrf.mxu0
    %v682 = vpop.f32.mrf.mxu0
    %683 = vdwg.mxu0
    %684 = vst [vmem:[#allocation18] sm:$0x3f] %v679
    %685 = vmatprep.subr.bf16.mxu0 0
    %686 = vmatpush1.bf16.msra.mxu0 %v475
    %687 = vmatprep.subr.bf16.mxu0 0
    %688 = vmatpush1.bf16.msra.mxu0 %v474
    %689 = vmatprep.subr.bf16.mxu0 0
    %690 = vmatpush1.bf16.msra.mxu0 %v473
    %691 = vmatprep.subr.bf16.mxu0 0
    %692 = vmatpush1.bf16.msra.mxu0 %v472
    %693 = vmatprep.subr.bf16.mxu0 0
    %694 = vmatpush1.bf16.msra.mxu0 %v471
    %695 = vmatprep.subr.bf16.mxu0 0
    %696 = vmatpush1.bf16.msra.mxu0 %v470
    %697 = vmatprep.subr.bf16.mxu0 0
    %698 = vmatpush1.bf16.msra.mxu0 %v469
    %699 = vmatprep.subr.bf16.mxu0 0
    %700 = vmatpush1.bf16.msra.mxu0 %v468
    %701 = vmatprep.subr.bf16.mxu0 0
    %702 = vmatpush2.bf16.msra.mxu0 %v483
    %703 = vmatprep.subr.bf16.mxu0 0
    %704 = vmatpush2.bf16.msra.mxu0 %v482
    %705 = vmatprep.subr.bf16.mxu0 0
    %706 = vmatpush2.bf16.msra.mxu0 %v481
    %707 = vmatprep.subr.bf16.mxu0 0
    %708 = vmatpush2.bf16.msra.mxu0 %v480
    %709 = vmatprep.subr.bf16.mxu0 0
    %710 = vmatpush2.bf16.msra.mxu0 %v479
    %711 = vmatprep.subr.bf16.mxu0 0
    %712 = vmatpush2.bf16.msra.mxu0 %v478
    %713 = vmatprep.subr.bf16.mxu0 0
    %714 = vmatpush2.bf16.msra.mxu0 %v477
    %715 = vmatprep.subr.bf16.mxu0 0
    %716 = vmatpush2.bf16.msra.mxu0 %v476
    %717 = vmatprep.mubr.bf16.mxu0 %v175
    %718 = vmatmul.mubr.bf16.gmra.mxu0 %v174
    %v719 = vpop.f32.mrf.mxu0
    %v720 = vadd.f32 0.0, %v719
    %v721 = vpop.f32.mrf.mxu0
    %v722 = vpop.f32.mrf.mxu0
    %v723 = vpop.f32.mrf.mxu0
    %724 = vdwg.mxu0
    %725 = vmatprep.subr.bf16.mxu0 0
    %726 = vmatpush1.bf16.msra.mxu0 %v491
    %727 = vmatprep.subr.bf16.mxu0 0
    %728 = vmatpush1.bf16.msra.mxu0 %v490
    %729 = vmatprep.subr.bf16.mxu0 0
    %730 = vmatpush1.bf16.msra.mxu0 %v489
    %731 = vmatprep.subr.bf16.mxu0 0
    %732 = vmatpush1.bf16.msra.mxu0 %v488
    %733 = vmatprep.subr.bf16.mxu0 0
    %734 = vmatpush1.bf16.msra.mxu0 %v487
    %735 = vmatprep.subr.bf16.mxu0 0
    %736 = vmatpush1.bf16.msra.mxu0 %v486
    %737 = vmatprep.subr.bf16.mxu0 0
    %738 = vmatpush1.bf16.msra.mxu0 %v485
    %739 = vmatprep.subr.bf16.mxu0 0
    %740 = vmatpush1.bf16.msra.mxu0 %v484
    %741 = vmatprep.subr.bf16.mxu0 0
    %742 = vmatpush2.bf16.msra.mxu0 %v499
    %743 = vmatprep.subr.bf16.mxu0 0
    %744 = vmatpush2.bf16.msra.mxu0 %v498
    %745 = vmatprep.subr.bf16.mxu0 0
    %746 = vmatpush2.bf16.msra.mxu0 %v497
    %747 = vmatprep.subr.bf16.mxu0 0
    %748 = vmatpush2.bf16.msra.mxu0 %v496
    %749 = vmatprep.subr.bf16.mxu0 0
    %750 = vmatpush2.bf16.msra.mxu0 %v495
    %751 = vmatprep.subr.bf16.mxu0 0
    %752 = vmatpush2.bf16.msra.mxu0 %v494
    %753 = vmatprep.subr.bf16.mxu0 0
    %754 = vmatpush2.bf16.msra.mxu0 %v493
    %755 = vmatprep.subr.bf16.mxu0 0
    %756 = vmatpush2.bf16.msra.mxu0 %v492
    %757 = vmatprep.mubr.bf16.mxu0 %v177
    %758 = vmatmul.mubr.bf16.gmra.mxu0 %v176
    %v759 = vpop.f32.mrf.mxu0
    %v760 = vadd.f32 %v720, %v759
    %v761 = vpop.f32.mrf.mxu0
    %v762 = vpop.f32.mrf.mxu0
    %v763 = vpop.f32.mrf.mxu0
    %764 = vdwg.mxu0
    %765 = vmatprep.subr.bf16.mxu0 0
    %766 = vmatpush1.bf16.msra.mxu0 %v507
    %767 = vmatprep.subr.bf16.mxu0 0
    %768 = vmatpush1.bf16.msra.mxu0 %v506
    %769 = vmatprep.subr.bf16.mxu0 0
    %770 = vmatpush1.bf16.msra.mxu0 %v505
    %771 = vmatprep.subr.bf16.mxu0 0
    %772 = vmatpush1.bf16.msra.mxu0 %v504
    %773 = vmatprep.subr.bf16.mxu0 0
    %774 = vmatpush1.bf16.msra.mxu0 %v503
    %775 = vmatprep.subr.bf16.mxu0 0
    %776 = vmatpush1.bf16.msra.mxu0 %v502
    %777 = vmatprep.subr.bf16.mxu0 0
    %778 = vmatpush1.bf16.msra.mxu0 %v501
    %779 = vmatprep.subr.bf16.mxu0 0
    %780 = vmatpush1.bf16.msra.mxu0 %v500
    %781 = vmatprep.subr.bf16.mxu0 0
    %782 = vmatpush2.bf16.msra.mxu0 %v515
    %783 = vmatprep.subr.bf16.mxu0 0
    %784 = vmatpush2.bf16.msra.mxu0 %v514
    %785 = vmatprep.subr.bf16.mxu0 0
    %786 = vmatpush2.bf16.msra.mxu0 %v513
    %787 = vmatprep.subr.bf16.mxu0 0
    %788 = vmatpush2.bf16.msra.mxu0 %v512
    %789 = vmatprep.subr.bf16.mxu0 0
    %790 = vmatpush2.bf16.msra.mxu0 %v511
    %791 = vmatprep.subr.bf16.mxu0 0
    %792 = vmatpush2.bf16.msra.mxu0 %v510
    %793 = vmatprep.subr.bf16.mxu0 0
    %794 = vmatpush2.bf16.msra.mxu0 %v509
    %795 = vmatprep.subr.bf16.mxu0 0
    %796 = vmatpush2.bf16.msra.mxu0 %v508
    %797 = vmatprep.mubr.bf16.mxu0 %v179
    %798 = vmatmul.mubr.bf16.gmra.mxu0 %v178
    %v799 = vpop.f32.mrf.mxu0
    %v800 = vadd.f32 %v760, %v799
    %v801 = vpop.f32.mrf.mxu0
    %v802 = vpop.f32.mrf.mxu0
    %v803 = vpop.f32.mrf.mxu0
    %804 = vdwg.mxu0
    %805 = vst [vmem:[#allocation20] sm:$0xf] %v800
    %v806 = vld [vmem:[#allocation7] sm:$0xff]
    %v807 = vld [vmem:[#allocation7 + $0x8] sm:$0xff]
    %v808 = vld [vmem:[#allocation7 + $0x10] sm:$0xff]
    %v809 = vld [vmem:[#allocation7 + $0x18] sm:$0xff]
    %v810 = vld [vmem:[#allocation7 + $0x20] sm:$0xff]
    %v811 = vld [vmem:[#allocation7 + $0x28] sm:$0xff]
    %v812 = vld [vmem:[#allocation7 + $0x30] sm:$0xff]
    %v813 = vld [vmem:[#allocation7 + $0x38] sm:$0xff]
    %v814 = vld [vmem:[#allocation7 + $0x40] sm:$0xff]
    %v815 = vld [vmem:[#allocation7 + $0x48] sm:$0xff]
    %v816 = vld [vmem:[#allocation7 + $0x50] sm:$0xff]
    %v817 = vld [vmem:[#allocation7 + $0x58] sm:$0xff]
    %v818 = vld [vmem:[#allocation7 + $0x60] sm:$0xff]
    %v819 = vld [vmem:[#allocation7 + $0x68] sm:$0xff]
    %v820 = vld [vmem:[#allocation7 + $0x70] sm:$0xff]
    %v821 = vld [vmem:[#allocation7 + $0x78] sm:$0xff]
    %v822 = vld [vmem:[#allocation7 + $0x80] sm:$0xff]
    %v823 = vld [vmem:[#allocation7 + $0x88] sm:$0xff]
    %v824 = vld [vmem:[#allocation7 + $0x90] sm:$0xff]
    %v825 = vld [vmem:[#allocation7 + $0x98] sm:$0xff]
    %v826 = vld [vmem:[#allocation7 + $0xa0] sm:$0xff]
    %v827 = vld [vmem:[#allocation7 + $0xa8] sm:$0xff]
    %v828 = vld [vmem:[#allocation7 + $0xb0] sm:$0xff]
    %v829 = vld [vmem:[#allocation7 + $0xb8] sm:$0xff]
    %v830 = vld [vmem:[#allocation7 + $0xc0] sm:$0xff]
    %v831 = vld [vmem:[#allocation7 + $0xc8] sm:$0xff]
    %v832 = vld [vmem:[#allocation7 + $0xd0] sm:$0xff]
    %v833 = vld [vmem:[#allocation7 + $0xd8] sm:$0xff]
    %v834 = vld [vmem:[#allocation7 + $0xe0] sm:$0xff]
    %v835 = vld [vmem:[#allocation7 + $0xe8] sm:$0xff]
    %v836 = vld [vmem:[#allocation7 + $0xf0] sm:$0xff]
    %v837 = vld [vmem:[#allocation7 + $0xf8] sm:$0xff]
    %v838 = vld [vmem:[#allocation7 + $0x100] sm:$0xff]
    %v839 = vld [vmem:[#allocation7 + $0x108] sm:$0xff]
    %v840 = vld [vmem:[#allocation7 + $0x110] sm:$0xff]
    %v841 = vld [vmem:[#allocation7 + $0x118] sm:$0xff]
    %v842 = vld [vmem:[#allocation7 + $0x120] sm:$0xff]
    %v843 = vld [vmem:[#allocation7 + $0x128] sm:$0xff]
    %v844 = vld [vmem:[#allocation7 + $0x130] sm:$0xff]
    %v845 = vld [vmem:[#allocation7 + $0x138] sm:$0xff]
    %v846 = vld [vmem:[#allocation7 + $0x140] sm:$0xff]
    %v847 = vld [vmem:[#allocation7 + $0x148] sm:$0xff]
    %v848 = vld [vmem:[#allocation7 + $0x150] sm:$0xff]
    %v849 = vld [vmem:[#allocation7 + $0x158] sm:$0xff]
    %v850 = vld [vmem:[#allocation7 + $0x160] sm:$0xff]
    %v851 = vld [vmem:[#allocation7 + $0x168] sm:$0xff]
    %v852 = vld [vmem:[#allocation7 + $0x170] sm:$0xff]
    %v853 = vld [vmem:[#allocation7 + $0x178] sm:$0xff]
    %v854 = vld [vmem:[#allocation7 + $0x180] sm:$0xff]
    %v855 = vld [vmem:[#allocation7 + $0x188] sm:$0xff]
    %v856 = vld [vmem:[#allocation7 + $0x190] sm:$0xff]
    %v857 = vld [vmem:[#allocation7 + $0x198] sm:$0xff]
    %v858 = vld [vmem:[#allocation7 + $0x1a0] sm:$0xff]
    %v859 = vld [vmem:[#allocation7 + $0x1a8] sm:$0xff]
    %v860 = vld [vmem:[#allocation7 + $0x1b0] sm:$0xff]
    %v861 = vld [vmem:[#allocation7 + $0x1b8] sm:$0xff]
    %v862 = vld [vmem:[#allocation7 + $0x1c0] sm:$0xff]
    %v863 = vld [vmem:[#allocation7 + $0x1c8] sm:$0xff]
    %v864 = vld [vmem:[#allocation7 + $0x1d0] sm:$0xff]
    %v865 = vld [vmem:[#allocation7 + $0x1d8] sm:$0xff]
    %v866 = vld [vmem:[#allocation7 + $0x1e0] sm:$0xff]
    %v867 = vld [vmem:[#allocation7 + $0x1e8] sm:$0xff]
    %v868 = vld [vmem:[#allocation7 + $0x1f0] sm:$0xff]
    %v869 = vld [vmem:[#allocation7 + $0x1f8] sm:$0xff]
    %v870 = vld [vmem:[#allocation7 + $0x200] sm:$0xff]
    %v871 = vld [vmem:[#allocation7 + $0x208] sm:$0xff]
    %v872 = vld [vmem:[#allocation7 + $0x210] sm:$0xff]
    %v873 = vld [vmem:[#allocation7 + $0x218] sm:$0xff]
    %v874 = vld [vmem:[#allocation7 + $0x220] sm:$0xff]
    %v875 = vld [vmem:[#allocation7 + $0x228] sm:$0xff]
    %v876 = vld [vmem:[#allocation7 + $0x230] sm:$0xff]
    %v877 = vld [vmem:[#allocation7 + $0x238] sm:$0xff]
    %v878 = vld [vmem:[#allocation7 + $0x240] sm:$0xff]
    %v879 = vld [vmem:[#allocation7 + $0x248] sm:$0xff]
    %v880 = vld [vmem:[#allocation7 + $0x250] sm:$0xff]
    %v881 = vld [vmem:[#allocation7 + $0x258] sm:$0xff]
    %v882 = vld [vmem:[#allocation7 + $0x260] sm:$0xff]
    %v883 = vld [vmem:[#allocation7 + $0x268] sm:$0xff]
    %v884 = vld [vmem:[#allocation7 + $0x270] sm:$0xff]
    %v885 = vld [vmem:[#allocation7 + $0x278] sm:$0xff]
    %v886 = vld [vmem:[#allocation7 + $0x280] sm:$0xff]
    %v887 = vld [vmem:[#allocation7 + $0x288] sm:$0xff]
    %v888 = vld [vmem:[#allocation7 + $0x290] sm:$0xff]
    %v889 = vld [vmem:[#allocation7 + $0x298] sm:$0xff]
    %v890 = vld [vmem:[#allocation7 + $0x2a0] sm:$0xff]
    %v891 = vld [vmem:[#allocation7 + $0x2a8] sm:$0xff]
    %v892 = vld [vmem:[#allocation7 + $0x2b0] sm:$0xff]
    %v893 = vld [vmem:[#allocation7 + $0x2b8] sm:$0xff]
    %v894 = vld [vmem:[#allocation7 + $0x2c0] sm:$0xff]
    %v895 = vld [vmem:[#allocation7 + $0x2c8] sm:$0xff]
    %v896 = vld [vmem:[#allocation7 + $0x2d0] sm:$0xff]
    %v897 = vld [vmem:[#allocation7 + $0x2d8] sm:$0xff]
    %v898 = vld [vmem:[#allocation7 + $0x2e0] sm:$0xff]
    %v899 = vld [vmem:[#allocation7 + $0x2e8] sm:$0xff]
    %v900 = vld [vmem:[#allocation7 + $0x2f0] sm:$0xff]
    %v901 = vld [vmem:[#allocation7 + $0x2f8] sm:$0xff]
    %v902 = vld [vmem:[#allocation7 + $0x300] sm:$0xff]
    %v903 = vld [vmem:[#allocation7 + $0x308] sm:$0xff]
    %v904 = vld [vmem:[#allocation7 + $0x310] sm:$0xff]
    %v905 = vld [vmem:[#allocation7 + $0x318] sm:$0xff]
    %v906 = vld [vmem:[#allocation7 + $0x320] sm:$0xff]
    %v907 = vld [vmem:[#allocation7 + $0x328] sm:$0xff]
    %v908 = vld [vmem:[#allocation7 + $0x330] sm:$0xff]
    %v909 = vld [vmem:[#allocation7 + $0x338] sm:$0xff]
    %v910 = vld [vmem:[#allocation7 + $0x340] sm:$0xff]
    %v911 = vld [vmem:[#allocation7 + $0x348] sm:$0xff]
    %v912 = vld [vmem:[#allocation7 + $0x350] sm:$0xff]
    %v913 = vld [vmem:[#allocation7 + $0x358] sm:$0xff]
    %v914 = vld [vmem:[#allocation7 + $0x360] sm:$0xff]
    %v915 = vld [vmem:[#allocation7 + $0x368] sm:$0xff]
    %v916 = vld [vmem:[#allocation7 + $0x370] sm:$0xff]
    %v917 = vld [vmem:[#allocation7 + $0x378] sm:$0xff]
    %v918 = vld [vmem:[#allocation7 + $0x380] sm:$0xff]
    %v919 = vld [vmem:[#allocation7 + $0x388] sm:$0xff]
    %v920 = vld [vmem:[#allocation7 + $0x390] sm:$0xff]
    %v921 = vld [vmem:[#allocation7 + $0x398] sm:$0xff]
    %v922 = vld [vmem:[#allocation7 + $0x3a0] sm:$0xff]
    %v923 = vld [vmem:[#allocation7 + $0x3a8] sm:$0xff]
    %v924 = vld [vmem:[#allocation7 + $0x3b0] sm:$0xff]
    %v925 = vld [vmem:[#allocation7 + $0x3b8] sm:$0xff]
    %v926 = vld [vmem:[#allocation7 + $0x3c0] sm:$0xff]
    %v927 = vld [vmem:[#allocation7 + $0x3c8] sm:$0xff]
    %v928 = vld [vmem:[#allocation7 + $0x3d0] sm:$0xff]
    %v929 = vld [vmem:[#allocation7 + $0x3d8] sm:$0xff]
    %v930 = vld [vmem:[#allocation7 + $0x3e0] sm:$0xff]
    %v931 = vld [vmem:[#allocation7 + $0x3e8] sm:$0xff]
    %v932 = vld [vmem:[#allocation7 + $0x3f0] sm:$0xff]
    %v933 = vld [vmem:[#allocation7 + $0x3f8] sm:$0xff]
    %v934 = vld [vmem:[#allocation7 + $0x400] sm:$0xff]
    %v935 = vld [vmem:[#allocation7 + $0x408] sm:$0xff]
    %v936 = vld [vmem:[#allocation7 + $0x410] sm:$0xff]
    %v937 = vld [vmem:[#allocation7 + $0x418] sm:$0xff]
    %v938 = vld [vmem:[#allocation7 + $0x420] sm:$0xff]
    %v939 = vld [vmem:[#allocation7 + $0x428] sm:$0xff]
    %v940 = vld [vmem:[#allocation7 + $0x430] sm:$0xff]
    %v941 = vld [vmem:[#allocation7 + $0x438] sm:$0xff]
    %v942 = vld [vmem:[#allocation7 + $0x440] sm:$0xff]
    %v943 = vld [vmem:[#allocation7 + $0x448] sm:$0xff]
    %v944 = vld [vmem:[#allocation7 + $0x450] sm:$0xff]
    %v945 = vld [vmem:[#allocation7 + $0x458] sm:$0xff]
    %v946 = vld [vmem:[#allocation7 + $0x460] sm:$0xff]
    %v947 = vld [vmem:[#allocation7 + $0x468] sm:$0xff]
    %v948 = vld [vmem:[#allocation7 + $0x470] sm:$0xff]
    %v949 = vld [vmem:[#allocation7 + $0x478] sm:$0xff]
    %v950 = vld [vmem:[#allocation7 + $0x480] sm:$0xff]
    %v951 = vld [vmem:[#allocation7 + $0x488] sm:$0xff]
    %v952 = vld [vmem:[#allocation7 + $0x490] sm:$0xff]
    %v953 = vld [vmem:[#allocation7 + $0x498] sm:$0xff]
    %v954 = vld [vmem:[#allocation7 + $0x4a0] sm:$0xff]
    %v955 = vld [vmem:[#allocation7 + $0x4a8] sm:$0xff]
    %v956 = vld [vmem:[#allocation7 + $0x4b0] sm:$0xff]
    %v957 = vld [vmem:[#allocation7 + $0x4b8] sm:$0xff]
    %v958 = vld [vmem:[#allocation7 + $0x4c0] sm:$0xff]
    %v959 = vld [vmem:[#allocation7 + $0x4c8] sm:$0xff]
    %v960 = vld [vmem:[#allocation7 + $0x4d0] sm:$0xff]
    %v961 = vld [vmem:[#allocation7 + $0x4d8] sm:$0xff]
    %v962 = vld [vmem:[#allocation7 + $0x4e0] sm:$0xff]
    %v963 = vld [vmem:[#allocation7 + $0x4e8] sm:$0xff]
    %v964 = vld [vmem:[#allocation7 + $0x4f0] sm:$0xff]
    %v965 = vld [vmem:[#allocation7 + $0x4f8] sm:$0xff]
    %v966 = vld [vmem:[#allocation7 + $0x500] sm:$0xff]
    %v967 = vld [vmem:[#allocation7 + $0x508] sm:$0xff]
    %v968 = vld [vmem:[#allocation7 + $0x510] sm:$0xff]
    %v969 = vld [vmem:[#allocation7 + $0x518] sm:$0xff]
    %v970 = vld [vmem:[#allocation7 + $0x520] sm:$0xff]
    %v971 = vld [vmem:[#allocation7 + $0x528] sm:$0xff]
    %v972 = vld [vmem:[#allocation7 + $0x530] sm:$0xff]
    %v973 = vld [vmem:[#allocation7 + $0x538] sm:$0xff]
    %v974 = vld [vmem:[#allocation7 + $0x540] sm:$0xff]
    %v975 = vld [vmem:[#allocation7 + $0x548] sm:$0xff]
    %v976 = vld [vmem:[#allocation7 + $0x550] sm:$0xff]
    %v977 = vld [vmem:[#allocation7 + $0x558] sm:$0xff]
    %v978 = vld [vmem:[#allocation7 + $0x560] sm:$0xff]
    %v979 = vld [vmem:[#allocation7 + $0x568] sm:$0xff]
    %v980 = vld [vmem:[#allocation7 + $0x570] sm:$0xff]
    %v981 = vld [vmem:[#allocation7 + $0x578] sm:$0xff]
    %v982 = vld [vmem:[#allocation7 + $0x580] sm:$0xff]
    %v983 = vld [vmem:[#allocation7 + $0x588] sm:$0xff]
    %v984 = vld [vmem:[#allocation7 + $0x590] sm:$0xff]
    %v985 = vld [vmem:[#allocation7 + $0x598] sm:$0xff]
    %v986 = vld [vmem:[#allocation7 + $0x5a0] sm:$0xff]
    %v987 = vld [vmem:[#allocation7 + $0x5a8] sm:$0xff]
    %v988 = vld [vmem:[#allocation7 + $0x5b0] sm:$0xff]
    %v989 = vld [vmem:[#allocation7 + $0x5b8] sm:$0xff]
    %v990 = vld [vmem:[#allocation7 + $0x5c0] sm:$0xff]
    %v991 = vld [vmem:[#allocation7 + $0x5c8] sm:$0xff]
    %v992 = vld [vmem:[#allocation7 + $0x5d0] sm:$0xff]
    %v993 = vld [vmem:[#allocation7 + $0x5d8] sm:$0xff]
    %v994 = vld [vmem:[#allocation7 + $0x5e0] sm:$0xff]
    %v995 = vld [vmem:[#allocation7 + $0x5e8] sm:$0xff]
    %v996 = vld [vmem:[#allocation7 + $0x5f0] sm:$0xff]
    %v997 = vld [vmem:[#allocation7 + $0x5f8] sm:$0xff]
    %v998 = vld [vmem:[#allocation7 + $0x600] sm:$0xff]
    %v999 = vld [vmem:[#allocation7 + $0x608] sm:$0xff]
    %v1000 = vld [vmem:[#allocation7 + $0x610] sm:$0xff]
    %v1001 = vld [vmem:[#allocation7 + $0x618] sm:$0xff]
    %v1002 = vld [vmem:[#allocation7 + $0x620] sm:$0xff]
    %v1003 = vld [vmem:[#allocation7 + $0x628] sm:$0xff]
    %v1004 = vld [vmem:[#allocation7 + $0x630] sm:$0xff]
    %v1005 = vld [vmem:[#allocation7 + $0x638] sm:$0xff]
    %v1006 = vld [vmem:[#allocation7 + $0x640] sm:$0xff]
    %v1007 = vld [vmem:[#allocation7 + $0x648] sm:$0xff]
    %v1008 = vld [vmem:[#allocation7 + $0x650] sm:$0xff]
    %v1009 = vld [vmem:[#allocation7 + $0x658] sm:$0xff]
    %v1010 = vld [vmem:[#allocation7 + $0x660] sm:$0xff]
    %v1011 = vld [vmem:[#allocation7 + $0x668] sm:$0xff]
    %v1012 = vld [vmem:[#allocation7 + $0x670] sm:$0xff]
    %v1013 = vld [vmem:[#allocation7 + $0x678] sm:$0xff]
    %v1014 = vld [vmem:[#allocation7 + $0x680] sm:$0xff]
    %v1015 = vld [vmem:[#allocation7 + $0x688] sm:$0xff]
    %v1016 = vld [vmem:[#allocation7 + $0x690] sm:$0xff]
    %v1017 = vld [vmem:[#allocation7 + $0x698] sm:$0xff]
    %v1018 = vld [vmem:[#allocation7 + $0x6a0] sm:$0xff]
    %v1019 = vld [vmem:[#allocation7 + $0x6a8] sm:$0xff]
    %v1020 = vld [vmem:[#allocation7 + $0x6b0] sm:$0xff]
    %v1021 = vld [vmem:[#allocation7 + $0x6b8] sm:$0xff]
    %v1022 = vld [vmem:[#allocation7 + $0x6c0] sm:$0xff]
    %v1023 = vld [vmem:[#allocation7 + $0x6c8] sm:$0xff]
    %v1024 = vld [vmem:[#allocation7 + $0x6d0] sm:$0xff]
    %v1025 = vld [vmem:[#allocation7 + $0x6d8] sm:$0xff]
    %v1026 = vld [vmem:[#allocation7 + $0x6e0] sm:$0xff]
    %v1027 = vld [vmem:[#allocation7 + $0x6e8] sm:$0xff]
    %v1028 = vld [vmem:[#allocation7 + $0x6f0] sm:$0xff]
    %v1029 = vld [vmem:[#allocation7 + $0x6f8] sm:$0xff]
    %v1030 = vld [vmem:[#allocation7 + $0x700] sm:$0xff]
    %v1031 = vld [vmem:[#allocation7 + $0x708] sm:$0xff]
    %v1032 = vld [vmem:[#allocation7 + $0x710] sm:$0xff]
    %v1033 = vld [vmem:[#allocation7 + $0x718] sm:$0xff]
    %v1034 = vld [vmem:[#allocation7 + $0x720] sm:$0xff]
    %v1035 = vld [vmem:[#allocation7 + $0x728] sm:$0xff]
    %v1036 = vld [vmem:[#allocation7 + $0x730] sm:$0xff]
    %v1037 = vld [vmem:[#allocation7 + $0x738] sm:$0xff]
    %v1038 = vld [vmem:[#allocation7 + $0x740] sm:$0xff]
    %v1039 = vld [vmem:[#allocation7 + $0x748] sm:$0xff]
    %v1040 = vld [vmem:[#allocation7 + $0x750] sm:$0xff]
    %v1041 = vld [vmem:[#allocation7 + $0x758] sm:$0xff]
    %v1042 = vld [vmem:[#allocation7 + $0x760] sm:$0xff]
    %v1043 = vld [vmem:[#allocation7 + $0x768] sm:$0xff]
    %v1044 = vld [vmem:[#allocation7 + $0x770] sm:$0xff]
    %v1045 = vld [vmem:[#allocation7 + $0x778] sm:$0xff]
    %v1046 = vld [vmem:[#allocation7 + $0x780] sm:$0xff]
    %v1047 = vld [vmem:[#allocation7 + $0x788] sm:$0xff]
    %v1048 = vld [vmem:[#allocation7 + $0x790] sm:$0xff]
    %v1049 = vld [vmem:[#allocation7 + $0x798] sm:$0xff]
    %v1050 = vld [vmem:[#allocation7 + $0x7a0] sm:$0xff]
    %v1051 = vld [vmem:[#allocation7 + $0x7a8] sm:$0xff]
    %v1052 = vld [vmem:[#allocation7 + $0x7b0] sm:$0xff]
    %v1053 = vld [vmem:[#allocation7 + $0x7b8] sm:$0xff]
    %v1054 = vld [vmem:[#allocation7 + $0x7c0] sm:$0xff]
    %v1055 = vld [vmem:[#allocation7 + $0x7c8] sm:$0xff]
    %v1056 = vld [vmem:[#allocation7 + $0x7d0] sm:$0xff]
    %v1057 = vld [vmem:[#allocation7 + $0x7d8] sm:$0xff]
    %v1058 = vld [vmem:[#allocation7 + $0x7e0] sm:$0xff]
    %v1059 = vld [vmem:[#allocation7 + $0x7e8] sm:$0xff]
    %v1060 = vld [vmem:[#allocation7 + $0x7f0] sm:$0xff]
    %v1061 = vld [vmem:[#allocation7 + $0x7f8] sm:$0xff]
    %v1062 = vld [vmem:[#allocation7 + $0x800] sm:$0xff]
    %v1063 = vld [vmem:[#allocation7 + $0x808] sm:$0xff]
    %v1064 = vld [vmem:[#allocation7 + $0x810] sm:$0xff]
    %v1065 = vld [vmem:[#allocation7 + $0x818] sm:$0xff]
    %v1066 = vld [vmem:[#allocation7 + $0x820] sm:$0xff]
    %v1067 = vld [vmem:[#allocation7 + $0x828] sm:$0xff]
    %v1068 = vld [vmem:[#allocation7 + $0x830] sm:$0xff]
    %v1069 = vld [vmem:[#allocation7 + $0x838] sm:$0xff]
    %v1070 = vld [vmem:[#allocation7 + $0x840] sm:$0xff]
    %v1071 = vld [vmem:[#allocation7 + $0x848] sm:$0xff]
    %v1072 = vld [vmem:[#allocation7 + $0x850] sm:$0xff]
    %v1073 = vld [vmem:[#allocation7 + $0x858] sm:$0xff]
    %v1074 = vld [vmem:[#allocation7 + $0x860] sm:$0xff]
    %v1075 = vld [vmem:[#allocation7 + $0x868] sm:$0xff]
    %v1076 = vld [vmem:[#allocation7 + $0x870] sm:$0xff]
    %v1077 = vld [vmem:[#allocation7 + $0x878] sm:$0xff]
    %v1078 = vld [vmem:[#allocation7 + $0x880] sm:$0xff]
    %v1079 = vld [vmem:[#allocation7 + $0x888] sm:$0xff]
    %v1080 = vld [vmem:[#allocation7 + $0x890] sm:$0xff]
    %v1081 = vld [vmem:[#allocation7 + $0x898] sm:$0xff]
    %v1082 = vld [vmem:[#allocation7 + $0x8a0] sm:$0xff]
    %v1083 = vld [vmem:[#allocation7 + $0x8a8] sm:$0xff]
    %v1084 = vld [vmem:[#allocation7 + $0x8b0] sm:$0xff]
    %v1085 = vld [vmem:[#allocation7 + $0x8b8] sm:$0xff]
    %v1086 = vld [vmem:[#allocation7 + $0x8c0] sm:$0xff]
    %v1087 = vld [vmem:[#allocation7 + $0x8c8] sm:$0xff]
    %v1088 = vld [vmem:[#allocation7 + $0x8d0] sm:$0xff]
    %v1089 = vld [vmem:[#allocation7 + $0x8d8] sm:$0xff]
    %v1090 = vld [vmem:[#allocation7 + $0x8e0] sm:$0xff]
    %v1091 = vld [vmem:[#allocation7 + $0x8e8] sm:$0xff]
    %v1092 = vld [vmem:[#allocation7 + $0x8f0] sm:$0xff]
    %v1093 = vld [vmem:[#allocation7 + $0x8f8] sm:$0xff]
    %v1094 = vld [vmem:[#allocation13] sm:$0x3f]
    %v1096 = vlaneseq
    %v1097 = vshrl.u32 %v1096, 7
    %v1098 = vsub.s32 0, %v1097
    %v1099 = vrot.slane %v1094, %v1098
    %v1100 = vlaneseq
    %v1101 = vshrl.u32 %v1100, 7
    %v1102 = vsub.s32 1, %v1101
    %v1103 = vrot.slane %v1094, %v1102
    %v1104 = vlaneseq
    %v1105 = vshrl.u32 %v1104, 7
    %v1106 = vsub.s32 2, %v1105
    %v1107 = vrot.slane %v1094, %v1106
    %v1108 = vlaneseq
    %v1109 = vshrl.u32 %v1108, 7
    %v1110 = vsub.s32 3, %v1109
    %v1111 = vrot.slane %v1094, %v1110
    %v1112 = vlaneseq
    %v1113 = vshrl.u32 %v1112, 7
    %v1114 = vsub.s32 4, %v1113
    %v1115 = vrot.slane %v1094, %v1114
    %v1116 = vlaneseq
    %v1117 = vshrl.u32 %v1116, 7
    %v1118 = vsub.s32 5, %v1117
    %v1119 = vrot.slane %v1094, %v1118
    %v1414 = vunpack.c.l.b16 %v806
    %v1415 = vunpack.c.h.b16 %v806
    %v1416 = vunpack.c.l.b16 %v807
    %v1417 = vunpack.c.h.b16 %v807
    %v1418 = vunpack.c.l.b16 %v808
    %v1419 = vunpack.c.h.b16 %v808
    %v1420 = vunpack.c.l.b16 %v809
    %v1421 = vunpack.c.h.b16 %v809
    %v1422 = vunpack.c.l.b16 %v810
    %v1423 = vunpack.c.h.b16 %v810
    %v1424 = vunpack.c.l.b16 %v811
    %v1425 = vunpack.c.h.b16 %v811
    %v1426 = vunpack.c.l.b16 %v812
    %v1427 = vunpack.c.h.b16 %v812
    %v1428 = vunpack.c.l.b16 %v813
    %v1429 = vunpack.c.h.b16 %v813
    %v1430 = vunpack.c.l.b16 %v814
    %v1431 = vunpack.c.h.b16 %v814
    %v1432 = vunpack.c.l.b16 %v815
    %v1433 = vunpack.c.h.b16 %v815
    %v1434 = vunpack.c.l.b16 %v816
    %v1435 = vunpack.c.h.b16 %v816
    %v1436 = vunpack.c.l.b16 %v817
    %v1437 = vunpack.c.h.b16 %v817
    %v1438 = vunpack.c.l.b16 %v818
    %v1439 = vunpack.c.h.b16 %v818
    %v1440 = vunpack.c.l.b16 %v819
    %v1441 = vunpack.c.h.b16 %v819
    %v1442 = vunpack.c.l.b16 %v820
    %v1443 = vunpack.c.h.b16 %v820
    %v1444 = vunpack.c.l.b16 %v821
    %v1445 = vunpack.c.h.b16 %v821
    %v1446 = vunpack.c.l.b16 %v822
    %v1447 = vunpack.c.h.b16 %v822
    %v1448 = vunpack.c.l.b16 %v823
    %v1449 = vunpack.c.h.b16 %v823
    %v1450 = vunpack.c.l.b16 %v824
    %v1451 = vunpack.c.h.b16 %v824
    %v1452 = vunpack.c.l.b16 %v825
    %v1453 = vunpack.c.h.b16 %v825
    %v1454 = vunpack.c.l.b16 %v826
    %v1455 = vunpack.c.h.b16 %v826
    %v1456 = vunpack.c.l.b16 %v827
    %v1457 = vunpack.c.h.b16 %v827
    %v1458 = vunpack.c.l.b16 %v828
    %v1459 = vunpack.c.h.b16 %v828
    %v1460 = vunpack.c.l.b16 %v829
    %v1461 = vunpack.c.h.b16 %v829
    %v1462 = vunpack.c.l.b16 %v830
    %v1463 = vunpack.c.h.b16 %v830
    %v1464 = vunpack.c.l.b16 %v831
    %v1465 = vunpack.c.h.b16 %v831
    %v1466 = vunpack.c.l.b16 %v832
    %v1467 = vunpack.c.h.b16 %v832
    %v1468 = vunpack.c.l.b16 %v833
    %v1469 = vunpack.c.h.b16 %v833
    %v1470 = vunpack.c.l.b16 %v834
    %v1471 = vunpack.c.h.b16 %v834
    %v1472 = vunpack.c.l.b16 %v835
    %v1473 = vunpack.c.h.b16 %v835
    %v1474 = vunpack.c.l.b16 %v836
    %v1475 = vunpack.c.h.b16 %v836
    %v1476 = vunpack.c.l.b16 %v837
    %v1477 = vunpack.c.h.b16 %v837
    %v1478 = vunpack.c.l.b16 %v838
    %v1479 = vunpack.c.h.b16 %v838
    %v1480 = vunpack.c.l.b16 %v839
    %v1481 = vunpack.c.h.b16 %v839
    %v1482 = vunpack.c.l.b16 %v840
    %v1483 = vunpack.c.h.b16 %v840
    %v1484 = vunpack.c.l.b16 %v841
    %v1485 = vunpack.c.h.b16 %v841
    %v1486 = vunpack.c.l.b16 %v842
    %v1487 = vunpack.c.h.b16 %v842
    %v1488 = vunpack.c.l.b16 %v843
    %v1489 = vunpack.c.h.b16 %v843
    %v1490 = vunpack.c.l.b16 %v844
    %v1491 = vunpack.c.h.b16 %v844
    %v1492 = vunpack.c.l.b16 %v845
    %v1493 = vunpack.c.h.b16 %v845
    %v1494 = vunpack.c.l.b16 %v846
    %v1495 = vunpack.c.h.b16 %v846
    %v1496 = vunpack.c.l.b16 %v847
    %v1497 = vunpack.c.h.b16 %v847
    %v1498 = vunpack.c.l.b16 %v848
    %v1499 = vunpack.c.h.b16 %v848
    %v1500 = vunpack.c.l.b16 %v849
    %v1501 = vunpack.c.h.b16 %v849
    %v1502 = vunpack.c.l.b16 %v850
    %v1503 = vunpack.c.h.b16 %v850
    %v1504 = vunpack.c.l.b16 %v851
    %v1505 = vunpack.c.h.b16 %v851
    %v1506 = vunpack.c.l.b16 %v852
    %v1507 = vunpack.c.h.b16 %v852
    %v1508 = vunpack.c.l.b16 %v853
    %v1509 = vunpack.c.h.b16 %v853
    %v1510 = vunpack.c.l.b16 %v854
    %v1511 = vunpack.c.h.b16 %v854
    %v1512 = vunpack.c.l.b16 %v855
    %v1513 = vunpack.c.h.b16 %v855
    %v1514 = vunpack.c.l.b16 %v856
    %v1515 = vunpack.c.h.b16 %v856
    %v1516 = vunpack.c.l.b16 %v857
    %v1517 = vunpack.c.h.b16 %v857
    %v1518 = vunpack.c.l.b16 %v858
    %v1519 = vunpack.c.h.b16 %v858
    %v1520 = vunpack.c.l.b16 %v859
    %v1521 = vunpack.c.h.b16 %v859
    %v1522 = vunpack.c.l.b16 %v860
    %v1523 = vunpack.c.h.b16 %v860
    %v1524 = vunpack.c.l.b16 %v861
    %v1525 = vunpack.c.h.b16 %v861
    %v1526 = vunpack.c.l.b16 %v862
    %v1527 = vunpack.c.h.b16 %v862
    %v1528 = vunpack.c.l.b16 %v863
    %v1529 = vunpack.c.h.b16 %v863
    %v1530 = vunpack.c.l.b16 %v864
    %v1531 = vunpack.c.h.b16 %v864
    %v1532 = vunpack.c.l.b16 %v865
    %v1533 = vunpack.c.h.b16 %v865
    %v1534 = vunpack.c.l.b16 %v866
    %v1535 = vunpack.c.h.b16 %v866
    %v1536 = vunpack.c.l.b16 %v867
    %v1537 = vunpack.c.h.b16 %v867
    %v1538 = vunpack.c.l.b16 %v868
    %v1539 = vunpack.c.h.b16 %v868
    %v1540 = vunpack.c.l.b16 %v869
    %v1541 = vunpack.c.h.b16 %v869
    %v1542 = vunpack.c.l.b16 %v870
    %v1543 = vunpack.c.h.b16 %v870
    %v1544 = vunpack.c.l.b16 %v871
    %v1545 = vunpack.c.h.b16 %v871
    %v1546 = vunpack.c.l.b16 %v872
    %v1547 = vunpack.c.h.b16 %v872
    %v1548 = vunpack.c.l.b16 %v873
    %v1549 = vunpack.c.h.b16 %v873
    %v1550 = vunpack.c.l.b16 %v874
    %v1551 = vunpack.c.h.b16 %v874
    %v1552 = vunpack.c.l.b16 %v875
    %v1553 = vunpack.c.h.b16 %v875
    %v1554 = vunpack.c.l.b16 %v876
    %v1555 = vunpack.c.h.b16 %v876
    %v1556 = vunpack.c.l.b16 %v877
    %v1557 = vunpack.c.h.b16 %v877
    %v1558 = vunpack.c.l.b16 %v878
    %v1559 = vunpack.c.h.b16 %v878
    %v1560 = vunpack.c.l.b16 %v879
    %v1561 = vunpack.c.h.b16 %v879
    %v1562 = vunpack.c.l.b16 %v880
    %v1563 = vunpack.c.h.b16 %v880
    %v1564 = vunpack.c.l.b16 %v881
    %v1565 = vunpack.c.h.b16 %v881
    %v1566 = vunpack.c.l.b16 %v882
    %v1567 = vunpack.c.h.b16 %v882
    %v1568 = vunpack.c.l.b16 %v883
    %v1569 = vunpack.c.h.b16 %v883
    %v1570 = vunpack.c.l.b16 %v884
    %v1571 = vunpack.c.h.b16 %v884
    %v1572 = vunpack.c.l.b16 %v885
    %v1573 = vunpack.c.h.b16 %v885
    %v1574 = vunpack.c.l.b16 %v886
    %v1575 = vunpack.c.h.b16 %v886
    %v1576 = vunpack.c.l.b16 %v887
    %v1577 = vunpack.c.h.b16 %v887
    %v1578 = vunpack.c.l.b16 %v888
    %v1579 = vunpack.c.h.b16 %v888
    %v1580 = vunpack.c.l.b16 %v889
    %v1581 = vunpack.c.h.b16 %v889
    %v1582 = vunpack.c.l.b16 %v890
    %v1583 = vunpack.c.h.b16 %v890
    %v1584 = vunpack.c.l.b16 %v891
    %v1585 = vunpack.c.h.b16 %v891
    %v1586 = vunpack.c.l.b16 %v892
    %v1587 = vunpack.c.h.b16 %v892
    %v1588 = vunpack.c.l.b16 %v893
    %v1589 = vunpack.c.h.b16 %v893
    %v1590 = vunpack.c.l.b16 %v894
    %v1591 = vunpack.c.h.b16 %v894
    %v1592 = vunpack.c.l.b16 %v895
    %v1593 = vunpack.c.h.b16 %v895
    %v1594 = vunpack.c.l.b16 %v896
    %v1595 = vunpack.c.h.b16 %v896
    %v1596 = vunpack.c.l.b16 %v897
    %v1597 = vunpack.c.h.b16 %v897
    %v1598 = vunpack.c.l.b16 %v898
    %v1599 = vunpack.c.h.b16 %v898
    %v1600 = vunpack.c.l.b16 %v899
    %v1601 = vunpack.c.h.b16 %v899
    %v1602 = vunpack.c.l.b16 %v900
    %v1603 = vunpack.c.h.b16 %v900
    %v1604 = vunpack.c.l.b16 %v901
    %v1605 = vunpack.c.h.b16 %v901
    %v1606 = vunpack.c.l.b16 %v902
    %v1607 = vunpack.c.h.b16 %v902
    %v1608 = vunpack.c.l.b16 %v903
    %v1609 = vunpack.c.h.b16 %v903
    %v1610 = vunpack.c.l.b16 %v904
    %v1611 = vunpack.c.h.b16 %v904
    %v1612 = vunpack.c.l.b16 %v905
    %v1613 = vunpack.c.h.b16 %v905
    %v1614 = vunpack.c.l.b16 %v906
    %v1615 = vunpack.c.h.b16 %v906
    %v1616 = vunpack.c.l.b16 %v907
    %v1617 = vunpack.c.h.b16 %v907
    %v1618 = vunpack.c.l.b16 %v908
    %v1619 = vunpack.c.h.b16 %v908
    %v1620 = vunpack.c.l.b16 %v909
    %v1621 = vunpack.c.h.b16 %v909
    %v1622 = vunpack.c.l.b16 %v910
    %v1623 = vunpack.c.h.b16 %v910
    %v1624 = vunpack.c.l.b16 %v911
    %v1625 = vunpack.c.h.b16 %v911
    %v1626 = vunpack.c.l.b16 %v912
    %v1627 = vunpack.c.h.b16 %v912
    %v1628 = vunpack.c.l.b16 %v913
    %v1629 = vunpack.c.h.b16 %v913
    %v1630 = vunpack.c.l.b16 %v914
    %v1631 = vunpack.c.h.b16 %v914
    %v1632 = vunpack.c.l.b16 %v915
    %v1633 = vunpack.c.h.b16 %v915
    %v1634 = vunpack.c.l.b16 %v916
    %v1635 = vunpack.c.h.b16 %v916
    %v1636 = vunpack.c.l.b16 %v917
    %v1637 = vunpack.c.h.b16 %v917
    %v1638 = vunpack.c.l.b16 %v918
    %v1639 = vunpack.c.h.b16 %v918
    %v1640 = vunpack.c.l.b16 %v919
    %v1641 = vunpack.c.h.b16 %v919
    %v1642 = vunpack.c.l.b16 %v920
    %v1643 = vunpack.c.h.b16 %v920
    %v1644 = vunpack.c.l.b16 %v921
    %v1645 = vunpack.c.h.b16 %v921
    %v1646 = vunpack.c.l.b16 %v922
    %v1647 = vunpack.c.h.b16 %v922
    %v1648 = vunpack.c.l.b16 %v923
    %v1649 = vunpack.c.h.b16 %v923
    %v1650 = vunpack.c.l.b16 %v924
    %v1651 = vunpack.c.h.b16 %v924
    %v1652 = vunpack.c.l.b16 %v925
    %v1653 = vunpack.c.h.b16 %v925
    %v1654 = vunpack.c.l.b16 %v926
    %v1655 = vunpack.c.h.b16 %v926
    %v1656 = vunpack.c.l.b16 %v927
    %v1657 = vunpack.c.h.b16 %v927
    %v1658 = vunpack.c.l.b16 %v928
    %v1659 = vunpack.c.h.b16 %v928
    %v1660 = vunpack.c.l.b16 %v929
    %v1661 = vunpack.c.h.b16 %v929
    %v1662 = vunpack.c.l.b16 %v930
    %v1663 = vunpack.c.h.b16 %v930
    %v1664 = vunpack.c.l.b16 %v931
    %v1665 = vunpack.c.h.b16 %v931
    %v1666 = vunpack.c.l.b16 %v932
    %v1667 = vunpack.c.h.b16 %v932
    %v1668 = vunpack.c.l.b16 %v933
    %v1669 = vunpack.c.h.b16 %v933
    %v1670 = vunpack.c.l.b16 %v934
    %v1671 = vunpack.c.h.b16 %v934
    %v1672 = vunpack.c.l.b16 %v935
    %v1673 = vunpack.c.h.b16 %v935
    %v1674 = vunpack.c.l.b16 %v936
    %v1675 = vunpack.c.h.b16 %v936
    %v1676 = vunpack.c.l.b16 %v937
    %v1677 = vunpack.c.h.b16 %v937
    %v1678 = vunpack.c.l.b16 %v938
    %v1679 = vunpack.c.h.b16 %v938
    %v1680 = vunpack.c.l.b16 %v939
    %v1681 = vunpack.c.h.b16 %v939
    %v1682 = vunpack.c.l.b16 %v940
    %v1683 = vunpack.c.h.b16 %v940
    %v1684 = vunpack.c.l.b16 %v941
    %v1685 = vunpack.c.h.b16 %v941
    %v1686 = vunpack.c.l.b16 %v942
    %v1687 = vunpack.c.h.b16 %v942
    %v1688 = vunpack.c.l.b16 %v943
    %v1689 = vunpack.c.h.b16 %v943
    %v1690 = vunpack.c.l.b16 %v944
    %v1691 = vunpack.c.h.b16 %v944
    %v1692 = vunpack.c.l.b16 %v945
    %v1693 = vunpack.c.h.b16 %v945
    %v1694 = vunpack.c.l.b16 %v946
    %v1695 = vunpack.c.h.b16 %v946
    %v1696 = vunpack.c.l.b16 %v947
    %v1697 = vunpack.c.h.b16 %v947
    %v1698 = vunpack.c.l.b16 %v948
    %v1699 = vunpack.c.h.b16 %v948
    %v1700 = vunpack.c.l.b16 %v949
    %v1701 = vunpack.c.h.b16 %v949
    %v1702 = vunpack.c.l.b16 %v950
    %v1703 = vunpack.c.h.b16 %v950
    %v1704 = vunpack.c.l.b16 %v951
    %v1705 = vunpack.c.h.b16 %v951
    %v1706 = vunpack.c.l.b16 %v952
    %v1707 = vunpack.c.h.b16 %v952
    %v1708 = vunpack.c.l.b16 %v953
    %v1709 = vunpack.c.h.b16 %v953
    %v1710 = vunpack.c.l.b16 %v954
    %v1711 = vunpack.c.h.b16 %v954
    %v1712 = vunpack.c.l.b16 %v955
    %v1713 = vunpack.c.h.b16 %v955
    %v1714 = vunpack.c.l.b16 %v956
    %v1715 = vunpack.c.h.b16 %v956
    %v1716 = vunpack.c.l.b16 %v957
    %v1717 = vunpack.c.h.b16 %v957
    %v1718 = vunpack.c.l.b16 %v958
    %v1719 = vunpack.c.h.b16 %v958
    %v1720 = vunpack.c.l.b16 %v959
    %v1721 = vunpack.c.h.b16 %v959
    %v1722 = vunpack.c.l.b16 %v960
    %v1723 = vunpack.c.h.b16 %v960
    %v1724 = vunpack.c.l.b16 %v961
    %v1725 = vunpack.c.h.b16 %v961
    %v1726 = vunpack.c.l.b16 %v962
    %v1727 = vunpack.c.h.b16 %v962
    %v1728 = vunpack.c.l.b16 %v963
    %v1729 = vunpack.c.h.b16 %v963
    %v1730 = vunpack.c.l.b16 %v964
    %v1731 = vunpack.c.h.b16 %v964
    %v1732 = vunpack.c.l.b16 %v965
    %v1733 = vunpack.c.h.b16 %v965
    %v1734 = vunpack.c.l.b16 %v966
    %v1735 = vunpack.c.h.b16 %v966
    %v1736 = vunpack.c.l.b16 %v967
    %v1737 = vunpack.c.h.b16 %v967
    %v1738 = vunpack.c.l.b16 %v968
    %v1739 = vunpack.c.h.b16 %v968
    %v1740 = vunpack.c.l.b16 %v969
    %v1741 = vunpack.c.h.b16 %v969
    %v1742 = vunpack.c.l.b16 %v970
    %v1743 = vunpack.c.h.b16 %v970
    %v1744 = vunpack.c.l.b16 %v971
    %v1745 = vunpack.c.h.b16 %v971
    %v1746 = vunpack.c.l.b16 %v972
    %v1747 = vunpack.c.h.b16 %v972
    %v1748 = vunpack.c.l.b16 %v973
    %v1749 = vunpack.c.h.b16 %v973
    %v1750 = vunpack.c.l.b16 %v974
    %v1751 = vunpack.c.h.b16 %v974
    %v1752 = vunpack.c.l.b16 %v975
    %v1753 = vunpack.c.h.b16 %v975
    %v1754 = vunpack.c.l.b16 %v976
    %v1755 = vunpack.c.h.b16 %v976
    %v1756 = vunpack.c.l.b16 %v977
    %v1757 = vunpack.c.h.b16 %v977
    %v1758 = vunpack.c.l.b16 %v978
    %v1759 = vunpack.c.h.b16 %v978
    %v1760 = vunpack.c.l.b16 %v979
    %v1761 = vunpack.c.h.b16 %v979
    %v1762 = vunpack.c.l.b16 %v980
    %v1763 = vunpack.c.h.b16 %v980
    %v1764 = vunpack.c.l.b16 %v981
    %v1765 = vunpack.c.h.b16 %v981
    %v1766 = vunpack.c.l.b16 %v982
    %v1767 = vunpack.c.h.b16 %v982
    %v1768 = vunpack.c.l.b16 %v983
    %v1769 = vunpack.c.h.b16 %v983
    %v1770 = vunpack.c.l.b16 %v984
    %v1771 = vunpack.c.h.b16 %v984
    %v1772 = vunpack.c.l.b16 %v985
    %v1773 = vunpack.c.h.b16 %v985
    %v1774 = vunpack.c.l.b16 %v986
    %v1775 = vunpack.c.h.b16 %v986
    %v1776 = vunpack.c.l.b16 %v987
    %v1777 = vunpack.c.h.b16 %v987
    %v1778 = vunpack.c.l.b16 %v988
    %v1779 = vunpack.c.h.b16 %v988
    %v1780 = vunpack.c.l.b16 %v989
    %v1781 = vunpack.c.h.b16 %v989
    %v1782 = vunpack.c.l.b16 %v990
    %v1783 = vunpack.c.h.b16 %v990
    %v1784 = vunpack.c.l.b16 %v991
    %v1785 = vunpack.c.h.b16 %v991
    %v1786 = vunpack.c.l.b16 %v992
    %v1787 = vunpack.c.h.b16 %v992
    %v1788 = vunpack.c.l.b16 %v993
    %v1789 = vunpack.c.h.b16 %v993
    %v1790 = vunpack.c.l.b16 %v994
    %v1791 = vunpack.c.h.b16 %v994
    %v1792 = vunpack.c.l.b16 %v995
    %v1793 = vunpack.c.h.b16 %v995
    %v1794 = vunpack.c.l.b16 %v996
    %v1795 = vunpack.c.h.b16 %v996
    %v1796 = vunpack.c.l.b16 %v997
    %v1797 = vunpack.c.h.b16 %v997
    %v1798 = vunpack.c.l.b16 %v998
    %v1799 = vunpack.c.h.b16 %v998
    %v1800 = vunpack.c.l.b16 %v999
    %v1801 = vunpack.c.h.b16 %v999
    %v1802 = vunpack.c.l.b16 %v1000
    %v1803 = vunpack.c.h.b16 %v1000
    %v1804 = vunpack.c.l.b16 %v1001
    %v1805 = vunpack.c.h.b16 %v1001
    %v1806 = vunpack.c.l.b16 %v1002
    %v1807 = vunpack.c.h.b16 %v1002
    %v1808 = vunpack.c.l.b16 %v1003
    %v1809 = vunpack.c.h.b16 %v1003
    %v1810 = vunpack.c.l.b16 %v1004
    %v1811 = vunpack.c.h.b16 %v1004
    %v1812 = vunpack.c.l.b16 %v1005
    %v1813 = vunpack.c.h.b16 %v1005
    %v1814 = vunpack.c.l.b16 %v1006
    %v1815 = vunpack.c.h.b16 %v1006
    %v1816 = vunpack.c.l.b16 %v1007
    %v1817 = vunpack.c.h.b16 %v1007
    %v1818 = vunpack.c.l.b16 %v1008
    %v1819 = vunpack.c.h.b16 %v1008
    %v1820 = vunpack.c.l.b16 %v1009
    %v1821 = vunpack.c.h.b16 %v1009
    %v1822 = vunpack.c.l.b16 %v1010
    %v1823 = vunpack.c.h.b16 %v1010
    %v1824 = vunpack.c.l.b16 %v1011
    %v1825 = vunpack.c.h.b16 %v1011
    %v1826 = vunpack.c.l.b16 %v1012
    %v1827 = vunpack.c.h.b16 %v1012
    %v1828 = vunpack.c.l.b16 %v1013
    %v1829 = vunpack.c.h.b16 %v1013
    %v1830 = vunpack.c.l.b16 %v1014
    %v1831 = vunpack.c.h.b16 %v1014
    %v1832 = vunpack.c.l.b16 %v1015
    %v1833 = vunpack.c.h.b16 %v1015
    %v1834 = vunpack.c.l.b16 %v1016
    %v1835 = vunpack.c.h.b16 %v1016
    %v1836 = vunpack.c.l.b16 %v1017
    %v1837 = vunpack.c.h.b16 %v1017
    %v1838 = vunpack.c.l.b16 %v1018
    %v1839 = vunpack.c.h.b16 %v1018
    %v1840 = vunpack.c.l.b16 %v1019
    %v1841 = vunpack.c.h.b16 %v1019
    %v1842 = vunpack.c.l.b16 %v1020
    %v1843 = vunpack.c.h.b16 %v1020
    %v1844 = vunpack.c.l.b16 %v1021
    %v1845 = vunpack.c.h.b16 %v1021
    %v1846 = vunpack.c.l.b16 %v1022
    %v1847 = vunpack.c.h.b16 %v1022
    %v1848 = vunpack.c.l.b16 %v1023
    %v1849 = vunpack.c.h.b16 %v1023
    %v1850 = vunpack.c.l.b16 %v1024
    %v1851 = vunpack.c.h.b16 %v1024
    %v1852 = vunpack.c.l.b16 %v1025
    %v1853 = vunpack.c.h.b16 %v1025
    %v1854 = vunpack.c.l.b16 %v1026
    %v1855 = vunpack.c.h.b16 %v1026
    %v1856 = vunpack.c.l.b16 %v1027
    %v1857 = vunpack.c.h.b16 %v1027
    %v1858 = vunpack.c.l.b16 %v1028
    %v1859 = vunpack.c.h.b16 %v1028
    %v1860 = vunpack.c.l.b16 %v1029
    %v1861 = vunpack.c.h.b16 %v1029
    %v1862 = vunpack.c.l.b16 %v1030
    %v1863 = vunpack.c.h.b16 %v1030
    %v1864 = vunpack.c.l.b16 %v1031
    %v1865 = vunpack.c.h.b16 %v1031
    %v1866 = vunpack.c.l.b16 %v1032
    %v1867 = vunpack.c.h.b16 %v1032
    %v1868 = vunpack.c.l.b16 %v1033
    %v1869 = vunpack.c.h.b16 %v1033
    %v1870 = vunpack.c.l.b16 %v1034
    %v1871 = vunpack.c.h.b16 %v1034
    %v1872 = vunpack.c.l.b16 %v1035
    %v1873 = vunpack.c.h.b16 %v1035
    %v1874 = vunpack.c.l.b16 %v1036
    %v1875 = vunpack.c.h.b16 %v1036
    %v1876 = vunpack.c.l.b16 %v1037
    %v1877 = vunpack.c.h.b16 %v1037
    %v1878 = vunpack.c.l.b16 %v1038
    %v1879 = vunpack.c.h.b16 %v1038
    %v1880 = vunpack.c.l.b16 %v1039
    %v1881 = vunpack.c.h.b16 %v1039
    %v1882 = vunpack.c.l.b16 %v1040
    %v1883 = vunpack.c.h.b16 %v1040
    %v1884 = vunpack.c.l.b16 %v1041
    %v1885 = vunpack.c.h.b16 %v1041
    %v1886 = vunpack.c.l.b16 %v1042
    %v1887 = vunpack.c.h.b16 %v1042
    %v1888 = vunpack.c.l.b16 %v1043
    %v1889 = vunpack.c.h.b16 %v1043
    %v1890 = vunpack.c.l.b16 %v1044
    %v1891 = vunpack.c.h.b16 %v1044
    %v1892 = vunpack.c.l.b16 %v1045
    %v1893 = vunpack.c.h.b16 %v1045
    %v1894 = vunpack.c.l.b16 %v1046
    %v1895 = vunpack.c.h.b16 %v1046
    %v1896 = vunpack.c.l.b16 %v1047
    %v1897 = vunpack.c.h.b16 %v1047
    %v1898 = vunpack.c.l.b16 %v1048
    %v1899 = vunpack.c.h.b16 %v1048
    %v1900 = vunpack.c.l.b16 %v1049
    %v1901 = vunpack.c.h.b16 %v1049
    %v1902 = vunpack.c.l.b16 %v1050
    %v1903 = vunpack.c.h.b16 %v1050
    %v1904 = vunpack.c.l.b16 %v1051
    %v1905 = vunpack.c.h.b16 %v1051
    %v1906 = vunpack.c.l.b16 %v1052
    %v1907 = vunpack.c.h.b16 %v1052
    %v1908 = vunpack.c.l.b16 %v1053
    %v1909 = vunpack.c.h.b16 %v1053
    %v1910 = vunpack.c.l.b16 %v1054
    %v1911 = vunpack.c.h.b16 %v1054
    %v1912 = vunpack.c.l.b16 %v1055
    %v1913 = vunpack.c.h.b16 %v1055
    %v1914 = vunpack.c.l.b16 %v1056
    %v1915 = vunpack.c.h.b16 %v1056
    %v1916 = vunpack.c.l.b16 %v1057
    %v1917 = vunpack.c.h.b16 %v1057
    %v1918 = vunpack.c.l.b16 %v1058
    %v1919 = vunpack.c.h.b16 %v1058
    %v1920 = vunpack.c.l.b16 %v1059
    %v1921 = vunpack.c.h.b16 %v1059
    %v1922 = vunpack.c.l.b16 %v1060
    %v1923 = vunpack.c.h.b16 %v1060
    %v1924 = vunpack.c.l.b16 %v1061
    %v1925 = vunpack.c.h.b16 %v1061
    %v1926 = vunpack.c.l.b16 %v1062
    %v1927 = vunpack.c.h.b16 %v1062
    %v1928 = vunpack.c.l.b16 %v1063
    %v1929 = vunpack.c.h.b16 %v1063
    %v1930 = vunpack.c.l.b16 %v1064
    %v1931 = vunpack.c.h.b16 %v1064
    %v1932 = vunpack.c.l.b16 %v1065
    %v1933 = vunpack.c.h.b16 %v1065
    %v1934 = vunpack.c.l.b16 %v1066
    %v1935 = vunpack.c.h.b16 %v1066
    %v1936 = vunpack.c.l.b16 %v1067
    %v1937 = vunpack.c.h.b16 %v1067
    %v1938 = vunpack.c.l.b16 %v1068
    %v1939 = vunpack.c.h.b16 %v1068
    %v1940 = vunpack.c.l.b16 %v1069
    %v1941 = vunpack.c.h.b16 %v1069
    %v1942 = vunpack.c.l.b16 %v1070
    %v1943 = vunpack.c.h.b16 %v1070
    %v1944 = vunpack.c.l.b16 %v1071
    %v1945 = vunpack.c.h.b16 %v1071
    %v1946 = vunpack.c.l.b16 %v1072
    %v1947 = vunpack.c.h.b16 %v1072
    %v1948 = vunpack.c.l.b16 %v1073
    %v1949 = vunpack.c.h.b16 %v1073
    %v1950 = vunpack.c.l.b16 %v1074
    %v1951 = vunpack.c.h.b16 %v1074
    %v1952 = vunpack.c.l.b16 %v1075
    %v1953 = vunpack.c.h.b16 %v1075
    %v1954 = vunpack.c.l.b16 %v1076
    %v1955 = vunpack.c.h.b16 %v1076
    %v1956 = vunpack.c.l.b16 %v1077
    %v1957 = vunpack.c.h.b16 %v1077
    %v1958 = vunpack.c.l.b16 %v1078
    %v1959 = vunpack.c.h.b16 %v1078
    %v1960 = vunpack.c.l.b16 %v1079
    %v1961 = vunpack.c.h.b16 %v1079
    %v1962 = vunpack.c.l.b16 %v1080
    %v1963 = vunpack.c.h.b16 %v1080
    %v1964 = vunpack.c.l.b16 %v1081
    %v1965 = vunpack.c.h.b16 %v1081
    %v1966 = vunpack.c.l.b16 %v1082
    %v1967 = vunpack.c.h.b16 %v1082
    %v1968 = vunpack.c.l.b16 %v1083
    %v1969 = vunpack.c.h.b16 %v1083
    %v1970 = vunpack.c.l.b16 %v1084
    %v1971 = vunpack.c.h.b16 %v1084
    %v1972 = vunpack.c.l.b16 %v1085
    %v1973 = vunpack.c.h.b16 %v1085
    %v1974 = vunpack.c.l.b16 %v1086
    %v1975 = vunpack.c.h.b16 %v1086
    %v1976 = vunpack.c.l.b16 %v1087
    %v1977 = vunpack.c.h.b16 %v1087
    %v1978 = vunpack.c.l.b16 %v1088
    %v1979 = vunpack.c.h.b16 %v1088
    %v1980 = vunpack.c.l.b16 %v1089
    %v1981 = vunpack.c.h.b16 %v1089
    %v1982 = vunpack.c.l.b16 %v1090
    %v1983 = vunpack.c.h.b16 %v1090
    %v1984 = vunpack.c.l.b16 %v1091
    %v1985 = vunpack.c.h.b16 %v1091
    %v1986 = vunpack.c.l.b16 %v1092
    %v1987 = vunpack.c.h.b16 %v1092
    %v1988 = vunpack.c.l.b16 %v1093
    %v1989 = vunpack.c.h.b16 %v1093
    %v1990 = vpack.c.b16 %v1420, %v1414
    %v1991 = vpack.c.b16 %v1421, %v1415
    %v1992 = vpack.c.b16 %v1422, %v1416
    %v1993 = vpack.c.b16 %v1423, %v1417
    %v1994 = vpack.c.b16 %v1424, %v1418
    %v1995 = vpack.c.b16 %v1425, %v1419
    %v1996 = vpack.c.b16 %v1432, %v1426
    %v1997 = vpack.c.b16 %v1433, %v1427
    %v1998 = vpack.c.b16 %v1434, %v1428
    %v1999 = vpack.c.b16 %v1435, %v1429
    %v2000 = vpack.c.b16 %v1436, %v1430
    %v2001 = vpack.c.b16 %v1437, %v1431
    %v2002 = vpack.c.b16 %v1444, %v1438
    %v2003 = vpack.c.b16 %v1445, %v1439
    %v2004 = vpack.c.b16 %v1446, %v1440
    %v2005 = vpack.c.b16 %v1447, %v1441
    %v2006 = vpack.c.b16 %v1448, %v1442
    %v2007 = vpack.c.b16 %v1449, %v1443
    %v2008 = vpack.c.b16 %v1456, %v1450
    %v2009 = vpack.c.b16 %v1457, %v1451
    %v2010 = vpack.c.b16 %v1458, %v1452
    %v2011 = vpack.c.b16 %v1459, %v1453
    %v2012 = vpack.c.b16 %v1460, %v1454
    %v2013 = vpack.c.b16 %v1461, %v1455
    %v2014 = vpack.c.b16 %v1468, %v1462
    %v2015 = vpack.c.b16 %v1469, %v1463
    %v2016 = vpack.c.b16 %v1470, %v1464
    %v2017 = vpack.c.b16 %v1471, %v1465
    %v2018 = vpack.c.b16 %v1472, %v1466
    %v2019 = vpack.c.b16 %v1473, %v1467
    %v2020 = vpack.c.b16 %v1480, %v1474
    %v2021 = vpack.c.b16 %v1481, %v1475
    %v2022 = vpack.c.b16 %v1482, %v1476
    %v2023 = vpack.c.b16 %v1483, %v1477
    %v2024 = vpack.c.b16 %v1484, %v1478
    %v2025 = vpack.c.b16 %v1485, %v1479
    %v2026 = vpack.c.b16 %v1492, %v1486
    %v2027 = vpack.c.b16 %v1493, %v1487
    %v2028 = vpack.c.b16 %v1494, %v1488
    %v2029 = vpack.c.b16 %v1495, %v1489
    %v2030 = vpack.c.b16 %v1496, %v1490
    %v2031 = vpack.c.b16 %v1497, %v1491
    %v2032 = vpack.c.b16 %v1504, %v1498
    %v2033 = vpack.c.b16 %v1505, %v1499
    %v2034 = vpack.c.b16 %v1506, %v1500
    %v2035 = vpack.c.b16 %v1507, %v1501
    %v2036 = vpack.c.b16 %v1508, %v1502
    %v2037 = vpack.c.b16 %v1509, %v1503
    %v2038 = vpack.c.b16 %v1516, %v1510
    %v2039 = vpack.c.b16 %v1517, %v1511
    %v2040 = vpack.c.b16 %v1518, %v1512
    %v2041 = vpack.c.b16 %v1519, %v1513
    %v2042 = vpack.c.b16 %v1520, %v1514
    %v2043 = vpack.c.b16 %v1521, %v1515
    %v2044 = vpack.c.b16 %v1528, %v1522
    %v2045 = vpack.c.b16 %v1529, %v1523
    %v2046 = vpack.c.b16 %v1530, %v1524
    %v2047 = vpack.c.b16 %v1531, %v1525
    %v2048 = vpack.c.b16 %v1532, %v1526
    %v2049 = vpack.c.b16 %v1533, %v1527
    %v2050 = vpack.c.b16 %v1540, %v1534
    %v2051 = vpack.c.b16 %v1541, %v1535
    %v2052 = vpack.c.b16 %v1542, %v1536
    %v2053 = vpack.c.b16 %v1543, %v1537
    %v2054 = vpack.c.b16 %v1544, %v1538
    %v2055 = vpack.c.b16 %v1545, %v1539
    %v2056 = vpack.c.b16 %v1552, %v1546
    %v2057 = vpack.c.b16 %v1553, %v1547
    %v2058 = vpack.c.b16 %v1554, %v1548
    %v2059 = vpack.c.b16 %v1555, %v1549
    %v2060 = vpack.c.b16 %v1556, %v1550
    %v2061 = vpack.c.b16 %v1557, %v1551
    %v2062 = vpack.c.b16 %v1564, %v1558
    %v2063 = vpack.c.b16 %v1565, %v1559
    %v2064 = vpack.c.b16 %v1566, %v1560
    %v2065 = vpack.c.b16 %v1567, %v1561
    %v2066 = vpack.c.b16 %v1568, %v1562
    %v2067 = vpack.c.b16 %v1569, %v1563
    %v2068 = vpack.c.b16 %v1576, %v1570
    %v2069 = vpack.c.b16 %v1577, %v1571
    %v2070 = vpack.c.b16 %v1578, %v1572
    %v2071 = vpack.c.b16 %v1579, %v1573
    %v2072 = vpack.c.b16 %v1580, %v1574
    %v2073 = vpack.c.b16 %v1581, %v1575
    %v2074 = vpack.c.b16 %v1588, %v1582
    %v2075 = vpack.c.b16 %v1589, %v1583
    %v2076 = vpack.c.b16 %v1590, %v1584
    %v2077 = vpack.c.b16 %v1591, %v1585
    %v2078 = vpack.c.b16 %v1592, %v1586
    %v2079 = vpack.c.b16 %v1593, %v1587
    %v2080 = vpack.c.b16 %v1600, %v1594
    %v2081 = vpack.c.b16 %v1601, %v1595
    %v2082 = vpack.c.b16 %v1602, %v1596
    %v2083 = vpack.c.b16 %v1603, %v1597
    %v2084 = vpack.c.b16 %v1604, %v1598
    %v2085 = vpack.c.b16 %v1605, %v1599
    %v2086 = vpack.c.b16 %v1612, %v1606
    %v2087 = vpack.c.b16 %v1613, %v1607
    %v2088 = vpack.c.b16 %v1614, %v1608
    %v2089 = vpack.c.b16 %v1615, %v1609
    %v2090 = vpack.c.b16 %v1616, %v1610
    %v2091 = vpack.c.b16 %v1617, %v1611
    %v2092 = vpack.c.b16 %v1624, %v1618
    %v2093 = vpack.c.b16 %v1625, %v1619
    %v2094 = vpack.c.b16 %v1626, %v1620
    %v2095 = vpack.c.b16 %v1627, %v1621
    %v2096 = vpack.c.b16 %v1628, %v1622
    %v2097 = vpack.c.b16 %v1629, %v1623
    %v2098 = vpack.c.b16 %v1636, %v1630
    %v2099 = vpack.c.b16 %v1637, %v1631
    %v2100 = vpack.c.b16 %v1638, %v1632
    %v2101 = vpack.c.b16 %v1639, %v1633
    %v2102 = vpack.c.b16 %v1640, %v1634
    %v2103 = vpack.c.b16 %v1641, %v1635
    %v2104 = vpack.c.b16 %v1648, %v1642
    %v2105 = vpack.c.b16 %v1649, %v1643
    %v2106 = vpack.c.b16 %v1650, %v1644
    %v2107 = vpack.c.b16 %v1651, %v1645
    %v2108 = vpack.c.b16 %v1652, %v1646
    %v2109 = vpack.c.b16 %v1653, %v1647
    %v2110 = vpack.c.b16 %v1660, %v1654
    %v2111 = vpack.c.b16 %v1661, %v1655
    %v2112 = vpack.c.b16 %v1662, %v1656
    %v2113 = vpack.c.b16 %v1663, %v1657
    %v2114 = vpack.c.b16 %v1664, %v1658
    %v2115 = vpack.c.b16 %v1665, %v1659
    %v2116 = vpack.c.b16 %v1672, %v1666
    %v2117 = vpack.c.b16 %v1673, %v1667
    %v2118 = vpack.c.b16 %v1674, %v1668
    %v2119 = vpack.c.b16 %v1675, %v1669
    %v2120 = vpack.c.b16 %v1676, %v1670
    %v2121 = vpack.c.b16 %v1677, %v1671
    %v2122 = vpack.c.b16 %v1684, %v1678
    %v2123 = vpack.c.b16 %v1685, %v1679
    %v2124 = vpack.c.b16 %v1686, %v1680
    %v2125 = vpack.c.b16 %v1687, %v1681
    %v2126 = vpack.c.b16 %v1688, %v1682
    %v2127 = vpack.c.b16 %v1689, %v1683
    %v2128 = vpack.c.b16 %v1696, %v1690
    %v2129 = vpack.c.b16 %v1697, %v1691
    %v2130 = vpack.c.b16 %v1698, %v1692
    %v2131 = vpack.c.b16 %v1699, %v1693
    %v2132 = vpack.c.b16 %v1700, %v1694
    %v2133 = vpack.c.b16 %v1701, %v1695
    %v2134 = vpack.c.b16 %v1708, %v1702
    %v2135 = vpack.c.b16 %v1709, %v1703
    %v2136 = vpack.c.b16 %v1710, %v1704
    %v2137 = vpack.c.b16 %v1711, %v1705
    %v2138 = vpack.c.b16 %v1712, %v1706
    %v2139 = vpack.c.b16 %v1713, %v1707
    %v2140 = vpack.c.b16 %v1720, %v1714
    %v2141 = vpack.c.b16 %v1721, %v1715
    %v2142 = vpack.c.b16 %v1722, %v1716
    %v2143 = vpack.c.b16 %v1723, %v1717
    %v2144 = vpack.c.b16 %v1724, %v1718
    %v2145 = vpack.c.b16 %v1725, %v1719
    %v2146 = vpack.c.b16 %v1732, %v1726
    %v2147 = vpack.c.b16 %v1733, %v1727
    %v2148 = vpack.c.b16 %v1734, %v1728
    %v2149 = vpack.c.b16 %v1735, %v1729
    %v2150 = vpack.c.b16 %v1736, %v1730
    %v2151 = vpack.c.b16 %v1737, %v1731
    %v2152 = vpack.c.b16 %v1744, %v1738
    %v2153 = vpack.c.b16 %v1745, %v1739
    %v2154 = vpack.c.b16 %v1746, %v1740
    %v2155 = vpack.c.b16 %v1747, %v1741
    %v2156 = vpack.c.b16 %v1748, %v1742
    %v2157 = vpack.c.b16 %v1749, %v1743
    %v2158 = vpack.c.b16 %v1756, %v1750
    %v2159 = vpack.c.b16 %v1757, %v1751
    %v2160 = vpack.c.b16 %v1758, %v1752
    %v2161 = vpack.c.b16 %v1759, %v1753
    %v2162 = vpack.c.b16 %v1760, %v1754
    %v2163 = vpack.c.b16 %v1761, %v1755
    %v2164 = vpack.c.b16 %v1768, %v1762
    %v2165 = vpack.c.b16 %v1769, %v1763
    %v2166 = vpack.c.b16 %v1770, %v1764
    %v2167 = vpack.c.b16 %v1771, %v1765
    %v2168 = vpack.c.b16 %v1772, %v1766
    %v2169 = vpack.c.b16 %v1773, %v1767
    %v2170 = vpack.c.b16 %v1780, %v1774
    %v2171 = vpack.c.b16 %v1781, %v1775
    %v2172 = vpack.c.b16 %v1782, %v1776
    %v2173 = vpack.c.b16 %v1783, %v1777
    %v2174 = vpack.c.b16 %v1784, %v1778
    %v2175 = vpack.c.b16 %v1785, %v1779
    %v2176 = vpack.c.b16 %v1792, %v1786
    %v2177 = vpack.c.b16 %v1793, %v1787
    %v2178 = vpack.c.b16 %v1794, %v1788
    %v2179 = vpack.c.b16 %v1795, %v1789
    %v2180 = vpack.c.b16 %v1796, %v1790
    %v2181 = vpack.c.b16 %v1797, %v1791
    %v2182 = vpack.c.b16 %v1804, %v1798
    %v2183 = vpack.c.b16 %v1805, %v1799
    %v2184 = vpack.c.b16 %v1806, %v1800
    %v2185 = vpack.c.b16 %v1807, %v1801
    %v2186 = vpack.c.b16 %v1808, %v1802
    %v2187 = vpack.c.b16 %v1809, %v1803
    %v2188 = vpack.c.b16 %v1816, %v1810
    %v2189 = vpack.c.b16 %v1817, %v1811
    %v2190 = vpack.c.b16 %v1818, %v1812
    %v2191 = vpack.c.b16 %v1819, %v1813
    %v2192 = vpack.c.b16 %v1820, %v1814
    %v2193 = vpack.c.b16 %v1821, %v1815
    %v2194 = vpack.c.b16 %v1828, %v1822
    %v2195 = vpack.c.b16 %v1829, %v1823
    %v2196 = vpack.c.b16 %v1830, %v1824
    %v2197 = vpack.c.b16 %v1831, %v1825
    %v2198 = vpack.c.b16 %v1832, %v1826
    %v2199 = vpack.c.b16 %v1833, %v1827
    %v2200 = vpack.c.b16 %v1840, %v1834
    %v2201 = vpack.c.b16 %v1841, %v1835
    %v2202 = vpack.c.b16 %v1842, %v1836
    %v2203 = vpack.c.b16 %v1843, %v1837
    %v2204 = vpack.c.b16 %v1844, %v1838
    %v2205 = vpack.c.b16 %v1845, %v1839
    %v2206 = vpack.c.b16 %v1852, %v1846
    %v2207 = vpack.c.b16 %v1853, %v1847
    %v2208 = vpack.c.b16 %v1854, %v1848
    %v2209 = vpack.c.b16 %v1855, %v1849
    %v2210 = vpack.c.b16 %v1856, %v1850
    %v2211 = vpack.c.b16 %v1857, %v1851
    %v2212 = vpack.c.b16 %v1864, %v1858
    %v2213 = vpack.c.b16 %v1865, %v1859
    %v2214 = vpack.c.b16 %v1866, %v1860
    %v2215 = vpack.c.b16 %v1867, %v1861
    %v2216 = vpack.c.b16 %v1868, %v1862
    %v2217 = vpack.c.b16 %v1869, %v1863
    %v2218 = vpack.c.b16 %v1876, %v1870
    %v2219 = vpack.c.b16 %v1877, %v1871
    %v2220 = vpack.c.b16 %v1878, %v1872
    %v2221 = vpack.c.b16 %v1879, %v1873
    %v2222 = vpack.c.b16 %v1880, %v1874
    %v2223 = vpack.c.b16 %v1881, %v1875
    %v2224 = vpack.c.b16 %v1888, %v1882
    %v2225 = vpack.c.b16 %v1889, %v1883
    %v2226 = vpack.c.b16 %v1890, %v1884
    %v2227 = vpack.c.b16 %v1891, %v1885
    %v2228 = vpack.c.b16 %v1892, %v1886
    %v2229 = vpack.c.b16 %v1893, %v1887
    %v2230 = vpack.c.b16 %v1900, %v1894
    %v2231 = vpack.c.b16 %v1901, %v1895
    %v2232 = vpack.c.b16 %v1902, %v1896
    %v2233 = vpack.c.b16 %v1903, %v1897
    %v2234 = vpack.c.b16 %v1904, %v1898
    %v2235 = vpack.c.b16 %v1905, %v1899
    %v2236 = vpack.c.b16 %v1912, %v1906
    %v2237 = vpack.c.b16 %v1913, %v1907
    %v2238 = vpack.c.b16 %v1914, %v1908
    %v2239 = vpack.c.b16 %v1915, %v1909
    %v2240 = vpack.c.b16 %v1916, %v1910
    %v2241 = vpack.c.b16 %v1917, %v1911
    %v2242 = vpack.c.b16 %v1924, %v1918
    %v2243 = vpack.c.b16 %v1925, %v1919
    %v2244 = vpack.c.b16 %v1926, %v1920
    %v2245 = vpack.c.b16 %v1927, %v1921
    %v2246 = vpack.c.b16 %v1928, %v1922
    %v2247 = vpack.c.b16 %v1929, %v1923
    %v2248 = vpack.c.b16 %v1936, %v1930
    %v2249 = vpack.c.b16 %v1937, %v1931
    %v2250 = vpack.c.b16 %v1938, %v1932
    %v2251 = vpack.c.b16 %v1939, %v1933
    %v2252 = vpack.c.b16 %v1940, %v1934
    %v2253 = vpack.c.b16 %v1941, %v1935
    %v2254 = vpack.c.b16 %v1948, %v1942
    %v2255 = vpack.c.b16 %v1949, %v1943
    %v2256 = vpack.c.b16 %v1950, %v1944
    %v2257 = vpack.c.b16 %v1951, %v1945
    %v2258 = vpack.c.b16 %v1952, %v1946
    %v2259 = vpack.c.b16 %v1953, %v1947
    %v2260 = vpack.c.b16 %v1960, %v1954
    %v2261 = vpack.c.b16 %v1961, %v1955
    %v2262 = vpack.c.b16 %v1962, %v1956
    %v2263 = vpack.c.b16 %v1963, %v1957
    %v2264 = vpack.c.b16 %v1964, %v1958
    %v2265 = vpack.c.b16 %v1965, %v1959
    %v2266 = vpack.c.b16 %v1972, %v1966
    %v2267 = vpack.c.b16 %v1973, %v1967
    %v2268 = vpack.c.b16 %v1974, %v1968
    %v2269 = vpack.c.b16 %v1975, %v1969
    %v2270 = vpack.c.b16 %v1976, %v1970
    %v2271 = vpack.c.b16 %v1977, %v1971
    %v2272 = vpack.c.b16 %v1984, %v1978
    %v2273 = vpack.c.b16 %v1985, %v1979
    %v2274 = vpack.c.b16 %v1986, %v1980
    %v2275 = vpack.c.b16 %v1987, %v1981
    %v2276 = vpack.c.b16 %v1988, %v1982
    %v2277 = vpack.c.b16 %v1989, %v1983
    %2566 = vmatprep.subr.bf16.mxu0 %v2033
    %2567 = vmatpush1.bf16.msra.mxu0 %v2032
    %2568 = vmatprep.subr.bf16.mxu0 %v2027
    %2569 = vmatpush1.bf16.msra.mxu0 %v2026
    %2570 = vmatprep.subr.bf16.mxu0 %v2021
    %2571 = vmatpush1.bf16.msra.mxu0 %v2020
    %2572 = vmatprep.subr.bf16.mxu0 %v2015
    %2573 = vmatpush1.bf16.msra.mxu0 %v2014
    %2574 = vmatprep.subr.bf16.mxu0 %v2009
    %2575 = vmatpush1.bf16.msra.mxu0 %v2008
    %2576 = vmatprep.subr.bf16.mxu0 %v2003
    %2577 = vmatpush1.bf16.msra.mxu0 %v2002
    %2578 = vmatprep.subr.bf16.mxu0 %v1997
    %2579 = vmatpush1.bf16.msra.mxu0 %v1996
    %2580 = vmatprep.subr.bf16.mxu0 %v1991
    %2581 = vmatpush1.bf16.msra.mxu0 %v1990
    %2582 = vmatprep.subr.bf16.mxu0 %v2081
    %2583 = vmatpush2.bf16.msra.mxu0 %v2080
    %2584 = vmatprep.subr.bf16.mxu0 %v2075
    %2585 = vmatpush2.bf16.msra.mxu0 %v2074
    %2586 = vmatprep.subr.bf16.mxu0 %v2069
    %2587 = vmatpush2.bf16.msra.mxu0 %v2068
    %2588 = vmatprep.subr.bf16.mxu0 %v2063
    %2589 = vmatpush2.bf16.msra.mxu0 %v2062
    %2590 = vmatprep.subr.bf16.mxu0 %v2057
    %2591 = vmatpush2.bf16.msra.mxu0 %v2056
    %2592 = vmatprep.subr.bf16.mxu0 %v2051
    %2593 = vmatpush2.bf16.msra.mxu0 %v2050
    %2594 = vmatprep.subr.bf16.mxu0 %v2045
    %2595 = vmatpush2.bf16.msra.mxu0 %v2044
    %2596 = vmatprep.subr.bf16.mxu0 %v2039
    %2597 = vmatpush2.bf16.msra.mxu0 %v2038
    %2598 = vmatprep.mubr.bf16.mxu0 %v175
    %2599 = vmatmul.mubr.bf16.gmra.mxu0 %v174
    %v2600 = vpop.f32.mrf.mxu0
    %v2601 = vadd.f32 %v1099, %v2600
    %v2602 = vpop.f32.mrf.mxu0
    %v2603 = vadd.f32 %v1103, %v2602
    %v2604 = vpop.f32.mrf.mxu0
    %v2605 = vpop.f32.mrf.mxu0
    %2606 = vdwg.mxu0
    %2607 = vmatprep.subr.bf16.mxu0 %v2129
    %2608 = vmatpush1.bf16.msra.mxu0 %v2128
    %2609 = vmatprep.subr.bf16.mxu0 %v2123
    %2610 = vmatpush1.bf16.msra.mxu0 %v2122
    %2611 = vmatprep.subr.bf16.mxu0 %v2117
    %2612 = vmatpush1.bf16.msra.mxu0 %v2116
    %2613 = vmatprep.subr.bf16.mxu0 %v2111
    %2614 = vmatpush1.bf16.msra.mxu0 %v2110
    %2615 = vmatprep.subr.bf16.mxu0 %v2105
    %2616 = vmatpush1.bf16.msra.mxu0 %v2104
    %2617 = vmatprep.subr.bf16.mxu0 %v2099
    %2618 = vmatpush1.bf16.msra.mxu0 %v2098
    %2619 = vmatprep.subr.bf16.mxu0 %v2093
    %2620 = vmatpush1.bf16.msra.mxu0 %v2092
    %2621 = vmatprep.subr.bf16.mxu0 %v2087
    %2622 = vmatpush1.bf16.msra.mxu0 %v2086
    %2623 = vmatprep.subr.bf16.mxu0 %v2177
    %2624 = vmatpush2.bf16.msra.mxu0 %v2176
    %2625 = vmatprep.subr.bf16.mxu0 %v2171
    %2626 = vmatpush2.bf16.msra.mxu0 %v2170
    %2627 = vmatprep.subr.bf16.mxu0 %v2165
    %2628 = vmatpush2.bf16.msra.mxu0 %v2164
    %2629 = vmatprep.subr.bf16.mxu0 %v2159
    %2630 = vmatpush2.bf16.msra.mxu0 %v2158
    %2631 = vmatprep.subr.bf16.mxu0 %v2153
    %2632 = vmatpush2.bf16.msra.mxu0 %v2152
    %2633 = vmatprep.subr.bf16.mxu0 %v2147
    %2634 = vmatpush2.bf16.msra.mxu0 %v2146
    %2635 = vmatprep.subr.bf16.mxu0 %v2141
    %2636 = vmatpush2.bf16.msra.mxu0 %v2140
    %2637 = vmatprep.subr.bf16.mxu0 %v2135
    %2638 = vmatpush2.bf16.msra.mxu0 %v2134
    %2639 = vmatprep.mubr.bf16.mxu0 %v177
    %2640 = vmatmul.mubr.bf16.gmra.mxu0 %v176
    %v2641 = vpop.f32.mrf.mxu0
    %v2642 = vadd.f32 %v2601, %v2641
    %v2643 = vpop.f32.mrf.mxu0
    %v2644 = vadd.f32 %v2603, %v2643
    %v2645 = vpop.f32.mrf.mxu0
    %v2646 = vpop.f32.mrf.mxu0
    %2647 = vdwg.mxu0
    %2648 = vmatprep.subr.bf16.mxu0 %v2225
    %2649 = vmatpush1.bf16.msra.mxu0 %v2224
    %2650 = vmatprep.subr.bf16.mxu0 %v2219
    %2651 = vmatpush1.bf16.msra.mxu0 %v2218
    %2652 = vmatprep.subr.bf16.mxu0 %v2213
    %2653 = vmatpush1.bf16.msra.mxu0 %v2212
    %2654 = vmatprep.subr.bf16.mxu0 %v2207
    %2655 = vmatpush1.bf16.msra.mxu0 %v2206
    %2656 = vmatprep.subr.bf16.mxu0 %v2201
    %2657 = vmatpush1.bf16.msra.mxu0 %v2200
    %2658 = vmatprep.subr.bf16.mxu0 %v2195
    %2659 = vmatpush1.bf16.msra.mxu0 %v2194
    %2660 = vmatprep.subr.bf16.mxu0 %v2189
    %2661 = vmatpush1.bf16.msra.mxu0 %v2188
    %2662 = vmatprep.subr.bf16.mxu0 %v2183
    %2663 = vmatpush1.bf16.msra.mxu0 %v2182
    %2664 = vmatprep.subr.bf16.mxu0 %v2273
    %2665 = vmatpush2.bf16.msra.mxu0 %v2272
    %2666 = vmatprep.subr.bf16.mxu0 %v2267
    %2667 = vmatpush2.bf16.msra.mxu0 %v2266
    %2668 = vmatprep.subr.bf16.mxu0 %v2261
    %2669 = vmatpush2.bf16.msra.mxu0 %v2260
    %2670 = vmatprep.subr.bf16.mxu0 %v2255
    %2671 = vmatpush2.bf16.msra.mxu0 %v2254
    %2672 = vmatprep.subr.bf16.mxu0 %v2249
    %2673 = vmatpush2.bf16.msra.mxu0 %v2248
    %2674 = vmatprep.subr.bf16.mxu0 %v2243
    %2675 = vmatpush2.bf16.msra.mxu0 %v2242
    %2676 = vmatprep.subr.bf16.mxu0 %v2237
    %2677 = vmatpush2.bf16.msra.mxu0 %v2236
    %2678 = vmatprep.subr.bf16.mxu0 %v2231
    %2679 = vmatpush2.bf16.msra.mxu0 %v2230
    %2680 = vmatprep.mubr.bf16.mxu0 %v179
    %2681 = vmatmul.mubr.bf16.gmra.mxu0 %v178
    %v2682 = vpop.f32.mrf.mxu0
    %v2683 = vadd.f32 %v2642, %v2682
    %v2684 = vpop.f32.mrf.mxu0
    %v2685 = vadd.f32 %v2644, %v2684
    %v2686 = vpop.f32.mrf.mxu0
    %v2687 = vpop.f32.mrf.mxu0
    %2688 = vdwg.mxu0
    %2689 = vmatprep.subr.bf16.mxu0 %v2035
    %2690 = vmatpush1.bf16.msra.mxu0 %v2034
    %2691 = vmatprep.subr.bf16.mxu0 %v2029
    %2692 = vmatpush1.bf16.msra.mxu0 %v2028
    %2693 = vmatprep.subr.bf16.mxu0 %v2023
    %2694 = vmatpush1.bf16.msra.mxu0 %v2022
    %2695 = vmatprep.subr.bf16.mxu0 %v2017
    %2696 = vmatpush1.bf16.msra.mxu0 %v2016
    %2697 = vmatprep.subr.bf16.mxu0 %v2011
    %2698 = vmatpush1.bf16.msra.mxu0 %v2010
    %2699 = vmatprep.subr.bf16.mxu0 %v2005
    %2700 = vmatpush1.bf16.msra.mxu0 %v2004
    %2701 = vmatprep.subr.bf16.mxu0 %v1999
    %2702 = vmatpush1.bf16.msra.mxu0 %v1998
    %2703 = vmatprep.subr.bf16.mxu0 %v1993
    %2704 = vmatpush1.bf16.msra.mxu0 %v1992
    %2705 = vmatprep.subr.bf16.mxu0 %v2083
    %2706 = vmatpush2.bf16.msra.mxu0 %v2082
    %2707 = vmatprep.subr.bf16.mxu0 %v2077
    %2708 = vmatpush2.bf16.msra.mxu0 %v2076
    %2709 = vmatprep.subr.bf16.mxu0 %v2071
    %2710 = vmatpush2.bf16.msra.mxu0 %v2070
    %2711 = vmatprep.subr.bf16.mxu0 %v2065
    %2712 = vmatpush2.bf16.msra.mxu0 %v2064
    %2713 = vmatprep.subr.bf16.mxu0 %v2059
    %2714 = vmatpush2.bf16.msra.mxu0 %v2058
    %2715 = vmatprep.subr.bf16.mxu0 %v2053
    %2716 = vmatpush2.bf16.msra.mxu0 %v2052
    %2717 = vmatprep.subr.bf16.mxu0 %v2047
    %2718 = vmatpush2.bf16.msra.mxu0 %v2046
    %2719 = vmatprep.subr.bf16.mxu0 %v2041
    %2720 = vmatpush2.bf16.msra.mxu0 %v2040
    %2721 = vmatprep.mubr.bf16.mxu0 %v175
    %2722 = vmatmul.mubr.bf16.gmra.mxu0 %v174
    %v2723 = vpop.f32.mrf.mxu0
    %v2724 = vadd.f32 %v1107, %v2723
    %v2725 = vpop.f32.mrf.mxu0
    %v2726 = vadd.f32 %v1111, %v2725
    %v2727 = vpop.f32.mrf.mxu0
    %v2728 = vpop.f32.mrf.mxu0
    %2729 = vdwg.mxu0
    %2730 = vmatprep.subr.bf16.mxu0 %v2131
    %2731 = vmatpush1.bf16.msra.mxu0 %v2130
    %2732 = vmatprep.subr.bf16.mxu0 %v2125
    %2733 = vmatpush1.bf16.msra.mxu0 %v2124
    %2734 = vmatprep.subr.bf16.mxu0 %v2119
    %2735 = vmatpush1.bf16.msra.mxu0 %v2118
    %2736 = vmatprep.subr.bf16.mxu0 %v2113
    %2737 = vmatpush1.bf16.msra.mxu0 %v2112
    %2738 = vmatprep.subr.bf16.mxu0 %v2107
    %2739 = vmatpush1.bf16.msra.mxu0 %v2106
    %2740 = vmatprep.subr.bf16.mxu0 %v2101
    %2741 = vmatpush1.bf16.msra.mxu0 %v2100
    %2742 = vmatprep.subr.bf16.mxu0 %v2095
    %2743 = vmatpush1.bf16.msra.mxu0 %v2094
    %2744 = vmatprep.subr.bf16.mxu0 %v2089
    %2745 = vmatpush1.bf16.msra.mxu0 %v2088
    %2746 = vmatprep.subr.bf16.mxu0 %v2179
    %2747 = vmatpush2.bf16.msra.mxu0 %v2178
    %2748 = vmatprep.subr.bf16.mxu0 %v2173
    %2749 = vmatpush2.bf16.msra.mxu0 %v2172
    %2750 = vmatprep.subr.bf16.mxu0 %v2167
    %2751 = vmatpush2.bf16.msra.mxu0 %v2166
    %2752 = vmatprep.subr.bf16.mxu0 %v2161
    %2753 = vmatpush2.bf16.msra.mxu0 %v2160
    %2754 = vmatprep.subr.bf16.mxu0 %v2155
    %2755 = vmatpush2.bf16.msra.mxu0 %v2154
    %2756 = vmatprep.subr.bf16.mxu0 %v2149
    %2757 = vmatpush2.bf16.msra.mxu0 %v2148
    %2758 = vmatprep.subr.bf16.mxu0 %v2143
    %2759 = vmatpush2.bf16.msra.mxu0 %v2142
    %2760 = vmatprep.subr.bf16.mxu0 %v2137
    %2761 = vmatpush2.bf16.msra.mxu0 %v2136
    %2762 = vmatprep.mubr.bf16.mxu0 %v177
    %2763 = vmatmul.mubr.bf16.gmra.mxu0 %v176
    %v2764 = vpop.f32.mrf.mxu0
    %v2765 = vadd.f32 %v2724, %v2764
    %v2766 = vpop.f32.mrf.mxu0
    %v2767 = vadd.f32 %v2726, %v2766
    %v2768 = vpop.f32.mrf.mxu0
    %v2769 = vpop.f32.mrf.mxu0
    %2770 = vdwg.mxu0
    %2771 = vmatprep.subr.bf16.mxu0 %v2227
    %2772 = vmatpush1.bf16.msra.mxu0 %v2226
    %2773 = vmatprep.subr.bf16.mxu0 %v2221
    %2774 = vmatpush1.bf16.msra.mxu0 %v2220
    %2775 = vmatprep.subr.bf16.mxu0 %v2215
    %2776 = vmatpush1.bf16.msra.mxu0 %v2214
    %2777 = vmatprep.subr.bf16.mxu0 %v2209
    %2778 = vmatpush1.bf16.msra.mxu0 %v2208
    %2779 = vmatprep.subr.bf16.mxu0 %v2203
    %2780 = vmatpush1.bf16.msra.mxu0 %v2202
    %2781 = vmatprep.subr.bf16.mxu0 %v2197
    %2782 = vmatpush1.bf16.msra.mxu0 %v2196
    %2783 = vmatprep.subr.bf16.mxu0 %v2191
    %2784 = vmatpush1.bf16.msra.mxu0 %v2190
    %2785 = vmatprep.subr.bf16.mxu0 %v2185
    %2786 = vmatpush1.bf16.msra.mxu0 %v2184
    %2787 = vmatprep.subr.bf16.mxu0 %v2275
    %2788 = vmatpush2.bf16.msra.mxu0 %v2274
    %2789 = vmatprep.subr.bf16.mxu0 %v2269
    %2790 = vmatpush2.bf16.msra.mxu0 %v2268
    %2791 = vmatprep.subr.bf16.mxu0 %v2263
    %2792 = vmatpush2.bf16.msra.mxu0 %v2262
    %2793 = vmatprep.subr.bf16.mxu0 %v2257
    %2794 = vmatpush2.bf16.msra.mxu0 %v2256
    %2795 = vmatprep.subr.bf16.mxu0 %v2251
    %2796 = vmatpush2.bf16.msra.mxu0 %v2250
    %2797 = vmatprep.subr.bf16.mxu0 %v2245
    %2798 = vmatpush2.bf16.msra.mxu0 %v2244
    %2799 = vmatprep.subr.bf16.mxu0 %v2239
    %2800 = vmatpush2.bf16.msra.mxu0 %v2238
    %2801 = vmatprep.subr.bf16.mxu0 %v2233
    %2802 = vmatpush2.bf16.msra.mxu0 %v2232
    %2803 = vmatprep.mubr.bf16.mxu0 %v179
    %2804 = vmatmul.mubr.bf16.gmra.mxu0 %v178
    %v2805 = vpop.f32.mrf.mxu0
    %v2806 = vadd.f32 %v2765, %v2805
    %v2807 = vpop.f32.mrf.mxu0
    %v2808 = vadd.f32 %v2767, %v2807
    %v2809 = vpop.f32.mrf.mxu0
    %v2810 = vpop.f32.mrf.mxu0
    %2811 = vdwg.mxu0
    %2812 = vmatprep.subr.bf16.mxu0 %v2037
    %2813 = vmatpush1.bf16.msra.mxu0 %v2036
    %2814 = vmatprep.subr.bf16.mxu0 %v2031
    %2815 = vmatpush1.bf16.msra.mxu0 %v2030
    %2816 = vmatprep.subr.bf16.mxu0 %v2025
    %2817 = vmatpush1.bf16.msra.mxu0 %v2024
    %2818 = vmatprep.subr.bf16.mxu0 %v2019
    %2819 = vmatpush1.bf16.msra.mxu0 %v2018
    %2820 = vmatprep.subr.bf16.mxu0 %v2013
    %2821 = vmatpush1.bf16.msra.mxu0 %v2012
    %2822 = vmatprep.subr.bf16.mxu0 %v2007
    %2823 = vmatpush1.bf16.msra.mxu0 %v2006
    %2824 = vmatprep.subr.bf16.mxu0 %v2001
    %2825 = vmatpush1.bf16.msra.mxu0 %v2000
    %2826 = vmatprep.subr.bf16.mxu0 %v1995
    %2827 = vmatpush1.bf16.msra.mxu0 %v1994
    %2828 = vmatprep.subr.bf16.mxu0 %v2085
    %2829 = vmatpush2.bf16.msra.mxu0 %v2084
    %2830 = vmatprep.subr.bf16.mxu0 %v2079
    %2831 = vmatpush2.bf16.msra.mxu0 %v2078
    %2832 = vmatprep.subr.bf16.mxu0 %v2073
    %2833 = vmatpush2.bf16.msra.mxu0 %v2072
    %2834 = vmatprep.subr.bf16.mxu0 %v2067
    %2835 = vmatpush2.bf16.msra.mxu0 %v2066
    %2836 = vmatprep.subr.bf16.mxu0 %v2061
    %2837 = vmatpush2.bf16.msra.mxu0 %v2060
    %2838 = vmatprep.subr.bf16.mxu0 %v2055
    %2839 = vmatpush2.bf16.msra.mxu0 %v2054
    %2840 = vmatprep.subr.bf16.mxu0 %v2049
    %2841 = vmatpush2.bf16.msra.mxu0 %v2048
    %2842 = vmatprep.subr.bf16.mxu0 %v2043
    %2843 = vmatpush2.bf16.msra.mxu0 %v2042
    %2844 = vmatprep.mubr.bf16.mxu0 %v175
    %2845 = vmatmul.mubr.bf16.gmra.mxu0 %v174
    %v2846 = vpop.f32.mrf.mxu0
    %v2847 = vadd.f32 %v1115, %v2846
    %v2848 = vpop.f32.mrf.mxu0
    %v2849 = vadd.f32 %v1119, %v2848
    %v2850 = vpop.f32.mrf.mxu0
    %v2851 = vpop.f32.mrf.mxu0
    %2852 = vdwg.mxu0
    %2853 = vmatprep.subr.bf16.mxu0 %v2133
    %2854 = vmatpush1.bf16.msra.mxu0 %v2132
    %2855 = vmatprep.subr.bf16.mxu0 %v2127
    %2856 = vmatpush1.bf16.msra.mxu0 %v2126
    %2857 = vmatprep.subr.bf16.mxu0 %v2121
    %2858 = vmatpush1.bf16.msra.mxu0 %v2120
    %2859 = vmatprep.subr.bf16.mxu0 %v2115
    %2860 = vmatpush1.bf16.msra.mxu0 %v2114
    %2861 = vmatprep.subr.bf16.mxu0 %v2109
    %2862 = vmatpush1.bf16.msra.mxu0 %v2108
    %2863 = vmatprep.subr.bf16.mxu0 %v2103
    %2864 = vmatpush1.bf16.msra.mxu0 %v2102
    %2865 = vmatprep.subr.bf16.mxu0 %v2097
    %2866 = vmatpush1.bf16.msra.mxu0 %v2096
    %2867 = vmatprep.subr.bf16.mxu0 %v2091
    %2868 = vmatpush1.bf16.msra.mxu0 %v2090
    %2869 = vmatprep.subr.bf16.mxu0 %v2181
    %2870 = vmatpush2.bf16.msra.mxu0 %v2180
    %2871 = vmatprep.subr.bf16.mxu0 %v2175
    %2872 = vmatpush2.bf16.msra.mxu0 %v2174
    %2873 = vmatprep.subr.bf16.mxu0 %v2169
    %2874 = vmatpush2.bf16.msra.mxu0 %v2168
    %2875 = vmatprep.subr.bf16.mxu0 %v2163
    %2876 = vmatpush2.bf16.msra.mxu0 %v2162
    %2877 = vmatprep.subr.bf16.mxu0 %v2157
    %2878 = vmatpush2.bf16.msra.mxu0 %v2156
    %2879 = vmatprep.subr.bf16.mxu0 %v2151
    %2880 = vmatpush2.bf16.msra.mxu0 %v2150
    %2881 = vmatprep.subr.bf16.mxu0 %v2145
    %2882 = vmatpush2.bf16.msra.mxu0 %v2144
    %2883 = vmatprep.subr.bf16.mxu0 %v2139
    %2884 = vmatpush2.bf16.msra.mxu0 %v2138
    %2885 = vmatprep.mubr.bf16.mxu0 %v177
    %2886 = vmatmul.mubr.bf16.gmra.mxu0 %v176
    %v2887 = vpop.f32.mrf.mxu0
    %v2888 = vadd.f32 %v2847, %v2887
    %v2889 = vpop.f32.mrf.mxu0
    %v2890 = vadd.f32 %v2849, %v2889
    %v2891 = vpop.f32.mrf.mxu0
    %v2892 = vpop.f32.mrf.mxu0
    %2893 = vdwg.mxu0
    %2894 = vmatprep.subr.bf16.mxu0 %v2229
    %2895 = vmatpush1.bf16.msra.mxu0 %v2228
    %2896 = vmatprep.subr.bf16.mxu0 %v2223
    %2897 = vmatpush1.bf16.msra.mxu0 %v2222
    %2898 = vmatprep.subr.bf16.mxu0 %v2217
    %2899 = vmatpush1.bf16.msra.mxu0 %v2216
    %2900 = vmatprep.subr.bf16.mxu0 %v2211
    %2901 = vmatpush1.bf16.msra.mxu0 %v2210
    %2902 = vmatprep.subr.bf16.mxu0 %v2205
    %2903 = vmatpush1.bf16.msra.mxu0 %v2204
    %2904 = vmatprep.subr.bf16.mxu0 %v2199
    %2905 = vmatpush1.bf16.msra.mxu0 %v2198
    %2906 = vmatprep.subr.bf16.mxu0 %v2193
    %2907 = vmatpush1.bf16.msra.mxu0 %v2192
    %2908 = vmatprep.subr.bf16.mxu0 %v2187
    %2909 = vmatpush1.bf16.msra.mxu0 %v2186
    %2910 = vmatprep.subr.bf16.mxu0 %v2277
    %2911 = vmatpush2.bf16.msra.mxu0 %v2276
    %2912 = vmatprep.subr.bf16.mxu0 %v2271
    %2913 = vmatpush2.bf16.msra.mxu0 %v2270
    %2914 = vmatprep.subr.bf16.mxu0 %v2265
    %2915 = vmatpush2.bf16.msra.mxu0 %v2264
    %2916 = vmatprep.subr.bf16.mxu0 %v2259
    %2917 = vmatpush2.bf16.msra.mxu0 %v2258
    %2918 = vmatprep.subr.bf16.mxu0 %v2253
    %2919 = vmatpush2.bf16.msra.mxu0 %v2252
    %2920 = vmatprep.subr.bf16.mxu0 %v2247
    %2921 = vmatpush2.bf16.msra.mxu0 %v2246
    %2922 = vmatprep.subr.bf16.mxu0 %v2241
    %2923 = vmatpush2.bf16.msra.mxu0 %v2240
    %2924 = vmatprep.subr.bf16.mxu0 %v2235
    %2925 = vmatpush2.bf16.msra.mxu0 %v2234
    %2926 = vmatprep.mubr.bf16.mxu0 %v179
    %2927 = vmatmul.mubr.bf16.gmra.mxu0 %v178
    %v2928 = vpop.f32.mrf.mxu0
    %v2929 = vadd.f32 %v2888, %v2928
    %v2930 = vpop.f32.mrf.mxu0
    %v2931 = vadd.f32 %v2890, %v2930
    %v2932 = vpop.f32.mrf.mxu0
    %v2933 = vpop.f32.mrf.mxu0
    %2934 = vdwg.mxu0
    %v2935 = vld [vmem:[#allocation8] sm:$0xff]
    %v2936 = vld [vmem:[#allocation8 + $0x8] sm:$0xff]
    %v2937 = vld [vmem:[#allocation8 + $0x10] sm:$0xff]
    %v2938 = vld [vmem:[#allocation8 + $0x18] sm:$0xff]
    %v2939 = vld [vmem:[#allocation8 + $0x20] sm:$0xff]
    %v2940 = vld [vmem:[#allocation8 + $0x28] sm:$0xff]
    %v2941 = vld [vmem:[#allocation8 + $0x30] sm:$0xff]
    %v2942 = vld [vmem:[#allocation8 + $0x38] sm:$0xff]
    %v2943 = vld [vmem:[#allocation8 + $0x40] sm:$0xff]
    %v2944 = vld [vmem:[#allocation8 + $0x48] sm:$0xff]
    %v2945 = vld [vmem:[#allocation8 + $0x50] sm:$0xff]
    %v2946 = vld [vmem:[#allocation8 + $0x58] sm:$0xff]
    %v2947 = vld [vmem:[#allocation8 + $0x60] sm:$0xff]
    %v2948 = vld [vmem:[#allocation8 + $0x68] sm:$0xff]
    %v2949 = vld [vmem:[#allocation8 + $0x70] sm:$0xff]
    %v2950 = vld [vmem:[#allocation8 + $0x78] sm:$0xff]
    %v2951 = vld [vmem:[#allocation8 + $0x80] sm:$0xff]
    %v2952 = vld [vmem:[#allocation8 + $0x88] sm:$0xff]
    %v2953 = vld [vmem:[#allocation8 + $0x90] sm:$0xff]
    %v2954 = vld [vmem:[#allocation8 + $0x98] sm:$0xff]
    %v2955 = vld [vmem:[#allocation8 + $0xa0] sm:$0xff]
    %v2956 = vld [vmem:[#allocation8 + $0xa8] sm:$0xff]
    %v2957 = vld [vmem:[#allocation8 + $0xb0] sm:$0xff]
    %v2958 = vld [vmem:[#allocation8 + $0xb8] sm:$0xff]
    %v2959 = vld [vmem:[#allocation8 + $0xc0] sm:$0xff]
    %v2960 = vld [vmem:[#allocation8 + $0xc8] sm:$0xff]
    %v2961 = vld [vmem:[#allocation8 + $0xd0] sm:$0xff]
    %v2962 = vld [vmem:[#allocation8 + $0xd8] sm:$0xff]
    %v2963 = vld [vmem:[#allocation8 + $0xe0] sm:$0xff]
    %v2964 = vld [vmem:[#allocation8 + $0xe8] sm:$0xff]
    %v2965 = vld [vmem:[#allocation8 + $0xf0] sm:$0xff]
    %v2966 = vld [vmem:[#allocation8 + $0xf8] sm:$0xff]
    %v2967 = vld [vmem:[#allocation8 + $0x100] sm:$0xff]
    %v2968 = vld [vmem:[#allocation8 + $0x108] sm:$0xff]
    %v2969 = vld [vmem:[#allocation8 + $0x110] sm:$0xff]
    %v2970 = vld [vmem:[#allocation8 + $0x118] sm:$0xff]
    %v2971 = vld [vmem:[#allocation8 + $0x120] sm:$0xff]
    %v2972 = vld [vmem:[#allocation8 + $0x128] sm:$0xff]
    %v2973 = vld [vmem:[#allocation8 + $0x130] sm:$0xff]
    %v2974 = vld [vmem:[#allocation8 + $0x138] sm:$0xff]
    %v2975 = vld [vmem:[#allocation8 + $0x140] sm:$0xff]
    %v2976 = vld [vmem:[#allocation8 + $0x148] sm:$0xff]
    %v2977 = vld [vmem:[#allocation8 + $0x150] sm:$0xff]
    %v2978 = vld [vmem:[#allocation8 + $0x158] sm:$0xff]
    %v2979 = vld [vmem:[#allocation8 + $0x160] sm:$0xff]
    %v2980 = vld [vmem:[#allocation8 + $0x168] sm:$0xff]
    %v2981 = vld [vmem:[#allocation8 + $0x170] sm:$0xff]
    %v2982 = vld [vmem:[#allocation8 + $0x178] sm:$0xff]
    %v2983 = vld [vmem:[#allocation8 + $0x180] sm:$0xff]
    %v2984 = vld [vmem:[#allocation8 + $0x188] sm:$0xff]
    %v2985 = vld [vmem:[#allocation8 + $0x190] sm:$0xff]
    %v2986 = vld [vmem:[#allocation8 + $0x198] sm:$0xff]
    %v2987 = vld [vmem:[#allocation8 + $0x1a0] sm:$0xff]
    %v2988 = vld [vmem:[#allocation8 + $0x1a8] sm:$0xff]
    %v2989 = vld [vmem:[#allocation8 + $0x1b0] sm:$0xff]
    %v2990 = vld [vmem:[#allocation8 + $0x1b8] sm:$0xff]
    %v2991 = vld [vmem:[#allocation8 + $0x1c0] sm:$0xff]
    %v2992 = vld [vmem:[#allocation8 + $0x1c8] sm:$0xff]
    %v2993 = vld [vmem:[#allocation8 + $0x1d0] sm:$0xff]
    %v2994 = vld [vmem:[#allocation8 + $0x1d8] sm:$0xff]
    %v2995 = vld [vmem:[#allocation8 + $0x1e0] sm:$0xff]
    %v2996 = vld [vmem:[#allocation8 + $0x1e8] sm:$0xff]
    %v2997 = vld [vmem:[#allocation8 + $0x1f0] sm:$0xff]
    %v2998 = vld [vmem:[#allocation8 + $0x1f8] sm:$0xff]
    %v2999 = vld [vmem:[#allocation8 + $0x200] sm:$0xff]
    %v3000 = vld [vmem:[#allocation8 + $0x208] sm:$0xff]
    %v3001 = vld [vmem:[#allocation8 + $0x210] sm:$0xff]
    %v3002 = vld [vmem:[#allocation8 + $0x218] sm:$0xff]
    %v3003 = vld [vmem:[#allocation8 + $0x220] sm:$0xff]
    %v3004 = vld [vmem:[#allocation8 + $0x228] sm:$0xff]
    %v3005 = vld [vmem:[#allocation8 + $0x230] sm:$0xff]
    %v3006 = vld [vmem:[#allocation8 + $0x238] sm:$0xff]
    %v3007 = vld [vmem:[#allocation8 + $0x240] sm:$0xff]
    %v3008 = vld [vmem:[#allocation8 + $0x248] sm:$0xff]
    %v3009 = vld [vmem:[#allocation8 + $0x250] sm:$0xff]
    %v3010 = vld [vmem:[#allocation8 + $0x258] sm:$0xff]
    %v3011 = vld [vmem:[#allocation8 + $0x260] sm:$0xff]
    %v3012 = vld [vmem:[#allocation8 + $0x268] sm:$0xff]
    %v3013 = vld [vmem:[#allocation8 + $0x270] sm:$0xff]
    %v3014 = vld [vmem:[#allocation8 + $0x278] sm:$0xff]
    %v3015 = vld [vmem:[#allocation8 + $0x280] sm:$0xff]
    %v3016 = vld [vmem:[#allocation8 + $0x288] sm:$0xff]
    %v3017 = vld [vmem:[#allocation8 + $0x290] sm:$0xff]
    %v3018 = vld [vmem:[#allocation8 + $0x298] sm:$0xff]
    %v3019 = vld [vmem:[#allocation8 + $0x2a0] sm:$0xff]
    %v3020 = vld [vmem:[#allocation8 + $0x2a8] sm:$0xff]
    %v3021 = vld [vmem:[#allocation8 + $0x2b0] sm:$0xff]
    %v3022 = vld [vmem:[#allocation8 + $0x2b8] sm:$0xff]
    %v3023 = vld [vmem:[#allocation8 + $0x2c0] sm:$0xff]
    %v3024 = vld [vmem:[#allocation8 + $0x2c8] sm:$0xff]
    %v3025 = vld [vmem:[#allocation8 + $0x2d0] sm:$0xff]
    %v3026 = vld [vmem:[#allocation8 + $0x2d8] sm:$0xff]
    %v3027 = vld [vmem:[#allocation8 + $0x2e0] sm:$0xff]
    %v3028 = vld [vmem:[#allocation8 + $0x2e8] sm:$0xff]
    %v3029 = vld [vmem:[#allocation8 + $0x2f0] sm:$0xff]
    %v3030 = vld [vmem:[#allocation8 + $0x2f8] sm:$0xff]
    %v3031 = vld [vmem:[#allocation8 + $0x300] sm:$0xff]
    %v3032 = vld [vmem:[#allocation8 + $0x308] sm:$0xff]
    %v3033 = vld [vmem:[#allocation8 + $0x310] sm:$0xff]
    %v3034 = vld [vmem:[#allocation8 + $0x318] sm:$0xff]
    %v3035 = vld [vmem:[#allocation8 + $0x320] sm:$0xff]
    %v3036 = vld [vmem:[#allocation8 + $0x328] sm:$0xff]
    %v3037 = vld [vmem:[#allocation8 + $0x330] sm:$0xff]
    %v3038 = vld [vmem:[#allocation8 + $0x338] sm:$0xff]
    %v3039 = vld [vmem:[#allocation8 + $0x340] sm:$0xff]
    %v3040 = vld [vmem:[#allocation8 + $0x348] sm:$0xff]
    %v3041 = vld [vmem:[#allocation8 + $0x350] sm:$0xff]
    %v3042 = vld [vmem:[#allocation8 + $0x358] sm:$0xff]
    %v3043 = vld [vmem:[#allocation8 + $0x360] sm:$0xff]
    %v3044 = vld [vmem:[#allocation8 + $0x368] sm:$0xff]
    %v3045 = vld [vmem:[#allocation8 + $0x370] sm:$0xff]
    %v3046 = vld [vmem:[#allocation8 + $0x378] sm:$0xff]
    %v3047 = vld [vmem:[#allocation8 + $0x380] sm:$0xff]
    %v3048 = vld [vmem:[#allocation8 + $0x388] sm:$0xff]
    %v3049 = vld [vmem:[#allocation8 + $0x390] sm:$0xff]
    %v3050 = vld [vmem:[#allocation8 + $0x398] sm:$0xff]
    %v3051 = vld [vmem:[#allocation8 + $0x3a0] sm:$0xff]
    %v3052 = vld [vmem:[#allocation8 + $0x3a8] sm:$0xff]
    %v3053 = vld [vmem:[#allocation8 + $0x3b0] sm:$0xff]
    %v3054 = vld [vmem:[#allocation8 + $0x3b8] sm:$0xff]
    %v3055 = vld [vmem:[#allocation8 + $0x3c0] sm:$0xff]
    %v3056 = vld [vmem:[#allocation8 + $0x3c8] sm:$0xff]
    %v3057 = vld [vmem:[#allocation8 + $0x3d0] sm:$0xff]
    %v3058 = vld [vmem:[#allocation8 + $0x3d8] sm:$0xff]
    %v3059 = vld [vmem:[#allocation8 + $0x3e0] sm:$0xff]
    %v3060 = vld [vmem:[#allocation8 + $0x3e8] sm:$0xff]
    %v3061 = vld [vmem:[#allocation8 + $0x3f0] sm:$0xff]
    %v3062 = vld [vmem:[#allocation8 + $0x3f8] sm:$0xff]
    %v3063 = vld [vmem:[#allocation8 + $0x400] sm:$0xff]
    %v3064 = vld [vmem:[#allocation8 + $0x408] sm:$0xff]
    %v3065 = vld [vmem:[#allocation8 + $0x410] sm:$0xff]
    %v3066 = vld [vmem:[#allocation8 + $0x418] sm:$0xff]
    %v3067 = vld [vmem:[#allocation8 + $0x420] sm:$0xff]
    %v3068 = vld [vmem:[#allocation8 + $0x428] sm:$0xff]
    %v3069 = vld [vmem:[#allocation8 + $0x430] sm:$0xff]
    %v3070 = vld [vmem:[#allocation8 + $0x438] sm:$0xff]
    %v3071 = vld [vmem:[#allocation8 + $0x440] sm:$0xff]
    %v3072 = vld [vmem:[#allocation8 + $0x448] sm:$0xff]
    %v3073 = vld [vmem:[#allocation8 + $0x450] sm:$0xff]
    %v3074 = vld [vmem:[#allocation8 + $0x458] sm:$0xff]
    %v3075 = vld [vmem:[#allocation8 + $0x460] sm:$0xff]
    %v3076 = vld [vmem:[#allocation8 + $0x468] sm:$0xff]
    %v3077 = vld [vmem:[#allocation8 + $0x470] sm:$0xff]
    %v3078 = vld [vmem:[#allocation8 + $0x478] sm:$0xff]
    %v3079 = vld [vmem:[#allocation8 + $0x480] sm:$0xff]
    %v3080 = vld [vmem:[#allocation8 + $0x488] sm:$0xff]
    %v3081 = vld [vmem:[#allocation8 + $0x490] sm:$0xff]
    %v3082 = vld [vmem:[#allocation8 + $0x498] sm:$0xff]
    %v3083 = vld [vmem:[#allocation8 + $0x4a0] sm:$0xff]
    %v3084 = vld [vmem:[#allocation8 + $0x4a8] sm:$0xff]
    %v3085 = vld [vmem:[#allocation8 + $0x4b0] sm:$0xff]
    %v3086 = vld [vmem:[#allocation8 + $0x4b8] sm:$0xff]
    %v3087 = vld [vmem:[#allocation8 + $0x4c0] sm:$0xff]
    %v3088 = vld [vmem:[#allocation8 + $0x4c8] sm:$0xff]
    %v3089 = vld [vmem:[#allocation8 + $0x4d0] sm:$0xff]
    %v3090 = vld [vmem:[#allocation8 + $0x4d8] sm:$0xff]
    %v3091 = vld [vmem:[#allocation8 + $0x4e0] sm:$0xff]
    %v3092 = vld [vmem:[#allocation8 + $0x4e8] sm:$0xff]
    %v3093 = vld [vmem:[#allocation8 + $0x4f0] sm:$0xff]
    %v3094 = vld [vmem:[#allocation8 + $0x4f8] sm:$0xff]
    %v3095 = vld [vmem:[#allocation8 + $0x500] sm:$0xff]
    %v3096 = vld [vmem:[#allocation8 + $0x508] sm:$0xff]
    %v3097 = vld [vmem:[#allocation8 + $0x510] sm:$0xff]
    %v3098 = vld [vmem:[#allocation8 + $0x518] sm:$0xff]
    %v3099 = vld [vmem:[#allocation8 + $0x520] sm:$0xff]
    %v3100 = vld [vmem:[#allocation8 + $0x528] sm:$0xff]
    %v3101 = vld [vmem:[#allocation8 + $0x530] sm:$0xff]
    %v3102 = vld [vmem:[#allocation8 + $0x538] sm:$0xff]
    %v3103 = vld [vmem:[#allocation8 + $0x540] sm:$0xff]
    %v3104 = vld [vmem:[#allocation8 + $0x548] sm:$0xff]
    %v3105 = vld [vmem:[#allocation8 + $0x550] sm:$0xff]
    %v3106 = vld [vmem:[#allocation8 + $0x558] sm:$0xff]
    %v3107 = vld [vmem:[#allocation8 + $0x560] sm:$0xff]
    %v3108 = vld [vmem:[#allocation8 + $0x568] sm:$0xff]
    %v3109 = vld [vmem:[#allocation8 + $0x570] sm:$0xff]
    %v3110 = vld [vmem:[#allocation8 + $0x578] sm:$0xff]
    %v3111 = vld [vmem:[#allocation8 + $0x580] sm:$0xff]
    %v3112 = vld [vmem:[#allocation8 + $0x588] sm:$0xff]
    %v3113 = vld [vmem:[#allocation8 + $0x590] sm:$0xff]
    %v3114 = vld [vmem:[#allocation8 + $0x598] sm:$0xff]
    %v3115 = vld [vmem:[#allocation8 + $0x5a0] sm:$0xff]
    %v3116 = vld [vmem:[#allocation8 + $0x5a8] sm:$0xff]
    %v3117 = vld [vmem:[#allocation8 + $0x5b0] sm:$0xff]
    %v3118 = vld [vmem:[#allocation8 + $0x5b8] sm:$0xff]
    %v3119 = vld [vmem:[#allocation8 + $0x5c0] sm:$0xff]
    %v3120 = vld [vmem:[#allocation8 + $0x5c8] sm:$0xff]
    %v3121 = vld [vmem:[#allocation8 + $0x5d0] sm:$0xff]
    %v3122 = vld [vmem:[#allocation8 + $0x5d8] sm:$0xff]
    %v3123 = vld [vmem:[#allocation8 + $0x5e0] sm:$0xff]
    %v3124 = vld [vmem:[#allocation8 + $0x5e8] sm:$0xff]
    %v3125 = vld [vmem:[#allocation8 + $0x5f0] sm:$0xff]
    %v3126 = vld [vmem:[#allocation8 + $0x5f8] sm:$0xff]
    %v3127 = vld [vmem:[#allocation8 + $0x600] sm:$0xff]
    %v3128 = vld [vmem:[#allocation8 + $0x608] sm:$0xff]
    %v3129 = vld [vmem:[#allocation8 + $0x610] sm:$0xff]
    %v3130 = vld [vmem:[#allocation8 + $0x618] sm:$0xff]
    %v3131 = vld [vmem:[#allocation8 + $0x620] sm:$0xff]
    %v3132 = vld [vmem:[#allocation8 + $0x628] sm:$0xff]
    %v3133 = vld [vmem:[#allocation8 + $0x630] sm:$0xff]
    %v3134 = vld [vmem:[#allocation8 + $0x638] sm:$0xff]
    %v3135 = vld [vmem:[#allocation8 + $0x640] sm:$0xff]
    %v3136 = vld [vmem:[#allocation8 + $0x648] sm:$0xff]
    %v3137 = vld [vmem:[#allocation8 + $0x650] sm:$0xff]
    %v3138 = vld [vmem:[#allocation8 + $0x658] sm:$0xff]
    %v3139 = vld [vmem:[#allocation8 + $0x660] sm:$0xff]
    %v3140 = vld [vmem:[#allocation8 + $0x668] sm:$0xff]
    %v3141 = vld [vmem:[#allocation8 + $0x670] sm:$0xff]
    %v3142 = vld [vmem:[#allocation8 + $0x678] sm:$0xff]
    %v3143 = vld [vmem:[#allocation8 + $0x680] sm:$0xff]
    %v3144 = vld [vmem:[#allocation8 + $0x688] sm:$0xff]
    %v3145 = vld [vmem:[#allocation8 + $0x690] sm:$0xff]
    %v3146 = vld [vmem:[#allocation8 + $0x698] sm:$0xff]
    %v3147 = vld [vmem:[#allocation8 + $0x6a0] sm:$0xff]
    %v3148 = vld [vmem:[#allocation8 + $0x6a8] sm:$0xff]
    %v3149 = vld [vmem:[#allocation8 + $0x6b0] sm:$0xff]
    %v3150 = vld [vmem:[#allocation8 + $0x6b8] sm:$0xff]
    %v3151 = vld [vmem:[#allocation8 + $0x6c0] sm:$0xff]
    %v3152 = vld [vmem:[#allocation8 + $0x6c8] sm:$0xff]
    %v3153 = vld [vmem:[#allocation8 + $0x6d0] sm:$0xff]
    %v3154 = vld [vmem:[#allocation8 + $0x6d8] sm:$0xff]
    %v3155 = vld [vmem:[#allocation8 + $0x6e0] sm:$0xff]
    %v3156 = vld [vmem:[#allocation8 + $0x6e8] sm:$0xff]
    %v3157 = vld [vmem:[#allocation8 + $0x6f0] sm:$0xff]
    %v3158 = vld [vmem:[#allocation8 + $0x6f8] sm:$0xff]
    %v3159 = vld [vmem:[#allocation8 + $0x700] sm:$0xff]
    %v3160 = vld [vmem:[#allocation8 + $0x708] sm:$0xff]
    %v3161 = vld [vmem:[#allocation8 + $0x710] sm:$0xff]
    %v3162 = vld [vmem:[#allocation8 + $0x718] sm:$0xff]
    %v3163 = vld [vmem:[#allocation8 + $0x720] sm:$0xff]
    %v3164 = vld [vmem:[#allocation8 + $0x728] sm:$0xff]
    %v3165 = vld [vmem:[#allocation8 + $0x730] sm:$0xff]
    %v3166 = vld [vmem:[#allocation8 + $0x738] sm:$0xff]
    %v3167 = vld [vmem:[#allocation8 + $0x740] sm:$0xff]
    %v3168 = vld [vmem:[#allocation8 + $0x748] sm:$0xff]
    %v3169 = vld [vmem:[#allocation8 + $0x750] sm:$0xff]
    %v3170 = vld [vmem:[#allocation8 + $0x758] sm:$0xff]
    %v3171 = vld [vmem:[#allocation8 + $0x760] sm:$0xff]
    %v3172 = vld [vmem:[#allocation8 + $0x768] sm:$0xff]
    %v3173 = vld [vmem:[#allocation8 + $0x770] sm:$0xff]
    %v3174 = vld [vmem:[#allocation8 + $0x778] sm:$0xff]
    %v3175 = vld [vmem:[#allocation8 + $0x780] sm:$0xff]
    %v3176 = vld [vmem:[#allocation8 + $0x788] sm:$0xff]
    %v3177 = vld [vmem:[#allocation8 + $0x790] sm:$0xff]
    %v3178 = vld [vmem:[#allocation8 + $0x798] sm:$0xff]
    %v3179 = vld [vmem:[#allocation8 + $0x7a0] sm:$0xff]
    %v3180 = vld [vmem:[#allocation8 + $0x7a8] sm:$0xff]
    %v3181 = vld [vmem:[#allocation8 + $0x7b0] sm:$0xff]
    %v3182 = vld [vmem:[#allocation8 + $0x7b8] sm:$0xff]
    %v3183 = vld [vmem:[#allocation8 + $0x7c0] sm:$0xff]
    %v3184 = vld [vmem:[#allocation8 + $0x7c8] sm:$0xff]
    %v3185 = vld [vmem:[#allocation8 + $0x7d0] sm:$0xff]
    %v3186 = vld [vmem:[#allocation8 + $0x7d8] sm:$0xff]
    %v3187 = vld [vmem:[#allocation8 + $0x7e0] sm:$0xff]
    %v3188 = vld [vmem:[#allocation8 + $0x7e8] sm:$0xff]
    %v3189 = vld [vmem:[#allocation8 + $0x7f0] sm:$0xff]
    %v3190 = vld [vmem:[#allocation8 + $0x7f8] sm:$0xff]
    %v3191 = vld [vmem:[#allocation8 + $0x800] sm:$0xff]
    %v3192 = vld [vmem:[#allocation8 + $0x808] sm:$0xff]
    %v3193 = vld [vmem:[#allocation8 + $0x810] sm:$0xff]
    %v3194 = vld [vmem:[#allocation8 + $0x818] sm:$0xff]
    %v3195 = vld [vmem:[#allocation8 + $0x820] sm:$0xff]
    %v3196 = vld [vmem:[#allocation8 + $0x828] sm:$0xff]
    %v3197 = vld [vmem:[#allocation8 + $0x830] sm:$0xff]
    %v3198 = vld [vmem:[#allocation8 + $0x838] sm:$0xff]
    %v3199 = vld [vmem:[#allocation8 + $0x840] sm:$0xff]
    %v3200 = vld [vmem:[#allocation8 + $0x848] sm:$0xff]
    %v3201 = vld [vmem:[#allocation8 + $0x850] sm:$0xff]
    %v3202 = vld [vmem:[#allocation8 + $0x858] sm:$0xff]
    %v3203 = vld [vmem:[#allocation8 + $0x860] sm:$0xff]
    %v3204 = vld [vmem:[#allocation8 + $0x868] sm:$0xff]
    %v3205 = vld [vmem:[#allocation8 + $0x870] sm:$0xff]
    %v3206 = vld [vmem:[#allocation8 + $0x878] sm:$0xff]
    %v3207 = vld [vmem:[#allocation8 + $0x880] sm:$0xff]
    %v3208 = vld [vmem:[#allocation8 + $0x888] sm:$0xff]
    %v3209 = vld [vmem:[#allocation8 + $0x890] sm:$0xff]
    %v3210 = vld [vmem:[#allocation8 + $0x898] sm:$0xff]
    %v3211 = vld [vmem:[#allocation8 + $0x8a0] sm:$0xff]
    %v3212 = vld [vmem:[#allocation8 + $0x8a8] sm:$0xff]
    %v3213 = vld [vmem:[#allocation8 + $0x8b0] sm:$0xff]
    %v3214 = vld [vmem:[#allocation8 + $0x8b8] sm:$0xff]
    %v3215 = vld [vmem:[#allocation8 + $0x8c0] sm:$0xff]
    %v3216 = vld [vmem:[#allocation8 + $0x8c8] sm:$0xff]
    %v3217 = vld [vmem:[#allocation8 + $0x8d0] sm:$0xff]
    %v3218 = vld [vmem:[#allocation8 + $0x8d8] sm:$0xff]
    %v3219 = vld [vmem:[#allocation8 + $0x8e0] sm:$0xff]
    %v3220 = vld [vmem:[#allocation8 + $0x8e8] sm:$0xff]
    %v3221 = vld [vmem:[#allocation8 + $0x8f0] sm:$0xff]
    %v3222 = vld [vmem:[#allocation8 + $0x8f8] sm:$0xff]
    %v3223 = vld [vmem:[#allocation8 + $0x900] sm:$0xff]
    %v3224 = vld [vmem:[#allocation8 + $0x908] sm:$0xff]
    %v3225 = vld [vmem:[#allocation8 + $0x910] sm:$0xff]
    %v3226 = vld [vmem:[#allocation8 + $0x918] sm:$0xff]
    %v3227 = vld [vmem:[#allocation8 + $0x920] sm:$0xff]
    %v3228 = vld [vmem:[#allocation8 + $0x928] sm:$0xff]
    %v3229 = vld [vmem:[#allocation8 + $0x930] sm:$0xff]
    %v3230 = vld [vmem:[#allocation8 + $0x938] sm:$0xff]
    %v3231 = vld [vmem:[#allocation8 + $0x940] sm:$0xff]
    %v3232 = vld [vmem:[#allocation8 + $0x948] sm:$0xff]
    %v3233 = vld [vmem:[#allocation8 + $0x950] sm:$0xff]
    %v3234 = vld [vmem:[#allocation8 + $0x958] sm:$0xff]
    %v3235 = vld [vmem:[#allocation8 + $0x960] sm:$0xff]
    %v3236 = vld [vmem:[#allocation8 + $0x968] sm:$0xff]
    %v3237 = vld [vmem:[#allocation8 + $0x970] sm:$0xff]
    %v3238 = vld [vmem:[#allocation8 + $0x978] sm:$0xff]
    %v3239 = vld [vmem:[#allocation8 + $0x980] sm:$0xff]
    %v3240 = vld [vmem:[#allocation8 + $0x988] sm:$0xff]
    %v3241 = vld [vmem:[#allocation8 + $0x990] sm:$0xff]
    %v3242 = vld [vmem:[#allocation8 + $0x998] sm:$0xff]
    %v3243 = vld [vmem:[#allocation8 + $0x9a0] sm:$0xff]
    %v3244 = vld [vmem:[#allocation8 + $0x9a8] sm:$0xff]
    %v3245 = vld [vmem:[#allocation8 + $0x9b0] sm:$0xff]
    %v3246 = vld [vmem:[#allocation8 + $0x9b8] sm:$0xff]
    %v3247 = vld [vmem:[#allocation8 + $0x9c0] sm:$0xff]
    %v3248 = vld [vmem:[#allocation8 + $0x9c8] sm:$0xff]
    %v3249 = vld [vmem:[#allocation8 + $0x9d0] sm:$0xff]
    %v3250 = vld [vmem:[#allocation8 + $0x9d8] sm:$0xff]
    %v3251 = vld [vmem:[#allocation8 + $0x9e0] sm:$0xff]
    %v3252 = vld [vmem:[#allocation8 + $0x9e8] sm:$0xff]
    %v3253 = vld [vmem:[#allocation8 + $0x9f0] sm:$0xff]
    %v3254 = vld [vmem:[#allocation8 + $0x9f8] sm:$0xff]
    %v3255 = vld [vmem:[#allocation8 + $0xa00] sm:$0xff]
    %v3256 = vld [vmem:[#allocation8 + $0xa08] sm:$0xff]
    %v3257 = vld [vmem:[#allocation8 + $0xa10] sm:$0xff]
    %v3258 = vld [vmem:[#allocation8 + $0xa18] sm:$0xff]
    %v3259 = vld [vmem:[#allocation8 + $0xa20] sm:$0xff]
    %v3260 = vld [vmem:[#allocation8 + $0xa28] sm:$0xff]
    %v3261 = vld [vmem:[#allocation8 + $0xa30] sm:$0xff]
    %v3262 = vld [vmem:[#allocation8 + $0xa38] sm:$0xff]
    %v3263 = vld [vmem:[#allocation8 + $0xa40] sm:$0xff]
    %v3264 = vld [vmem:[#allocation8 + $0xa48] sm:$0xff]
    %v3265 = vld [vmem:[#allocation8 + $0xa50] sm:$0xff]
    %v3266 = vld [vmem:[#allocation8 + $0xa58] sm:$0xff]
    %v3267 = vld [vmem:[#allocation8 + $0xa60] sm:$0xff]
    %v3268 = vld [vmem:[#allocation8 + $0xa68] sm:$0xff]
    %v3269 = vld [vmem:[#allocation8 + $0xa70] sm:$0xff]
    %v3270 = vld [vmem:[#allocation8 + $0xa78] sm:$0xff]
    %v3271 = vld [vmem:[#allocation8 + $0xa80] sm:$0xff]
    %v3272 = vld [vmem:[#allocation8 + $0xa88] sm:$0xff]
    %v3273 = vld [vmem:[#allocation8 + $0xa90] sm:$0xff]
    %v3274 = vld [vmem:[#allocation8 + $0xa98] sm:$0xff]
    %v3275 = vld [vmem:[#allocation8 + $0xaa0] sm:$0xff]
    %v3276 = vld [vmem:[#allocation8 + $0xaa8] sm:$0xff]
    %v3277 = vld [vmem:[#allocation8 + $0xab0] sm:$0xff]
    %v3278 = vld [vmem:[#allocation8 + $0xab8] sm:$0xff]
    %v3279 = vld [vmem:[#allocation8 + $0xac0] sm:$0xff]
    %v3280 = vld [vmem:[#allocation8 + $0xac8] sm:$0xff]
    %v3281 = vld [vmem:[#allocation8 + $0xad0] sm:$0xff]
    %v3282 = vld [vmem:[#allocation8 + $0xad8] sm:$0xff]
    %v3283 = vld [vmem:[#allocation8 + $0xae0] sm:$0xff]
    %v3284 = vld [vmem:[#allocation8 + $0xae8] sm:$0xff]
    %v3285 = vld [vmem:[#allocation8 + $0xaf0] sm:$0xff]
    %v3286 = vld [vmem:[#allocation8 + $0xaf8] sm:$0xff]
    %v3287 = vld [vmem:[#allocation8 + $0xb00] sm:$0xff]
    %v3288 = vld [vmem:[#allocation8 + $0xb08] sm:$0xff]
    %v3289 = vld [vmem:[#allocation8 + $0xb10] sm:$0xff]
    %v3290 = vld [vmem:[#allocation8 + $0xb18] sm:$0xff]
    %v3291 = vld [vmem:[#allocation8 + $0xb20] sm:$0xff]
    %v3292 = vld [vmem:[#allocation8 + $0xb28] sm:$0xff]
    %v3293 = vld [vmem:[#allocation8 + $0xb30] sm:$0xff]
    %v3294 = vld [vmem:[#allocation8 + $0xb38] sm:$0xff]
    %v3295 = vld [vmem:[#allocation8 + $0xb40] sm:$0xff]
    %v3296 = vld [vmem:[#allocation8 + $0xb48] sm:$0xff]
    %v3297 = vld [vmem:[#allocation8 + $0xb50] sm:$0xff]
    %v3298 = vld [vmem:[#allocation8 + $0xb58] sm:$0xff]
    %v3299 = vld [vmem:[#allocation8 + $0xb60] sm:$0xff]
    %v3300 = vld [vmem:[#allocation8 + $0xb68] sm:$0xff]
    %v3301 = vld [vmem:[#allocation8 + $0xb70] sm:$0xff]
    %v3302 = vld [vmem:[#allocation8 + $0xb78] sm:$0xff]
    %v3303 = vld [vmem:[#allocation8 + $0xb80] sm:$0xff]
    %v3304 = vld [vmem:[#allocation8 + $0xb88] sm:$0xff]
    %v3305 = vld [vmem:[#allocation8 + $0xb90] sm:$0xff]
    %v3306 = vld [vmem:[#allocation8 + $0xb98] sm:$0xff]
    %v3307 = vld [vmem:[#allocation8 + $0xba0] sm:$0xff]
    %v3308 = vld [vmem:[#allocation8 + $0xba8] sm:$0xff]
    %v3309 = vld [vmem:[#allocation8 + $0xbb0] sm:$0xff]
    %v3310 = vld [vmem:[#allocation8 + $0xbb8] sm:$0xff]
    %v3311 = vld [vmem:[#allocation8 + $0xbc0] sm:$0xff]
    %v3312 = vld [vmem:[#allocation8 + $0xbc8] sm:$0xff]
    %v3313 = vld [vmem:[#allocation8 + $0xbd0] sm:$0xff]
    %v3314 = vld [vmem:[#allocation8 + $0xbd8] sm:$0xff]
    %v3315 = vld [vmem:[#allocation8 + $0xbe0] sm:$0xff]
    %v3316 = vld [vmem:[#allocation8 + $0xbe8] sm:$0xff]
    %v3317 = vld [vmem:[#allocation8 + $0xbf0] sm:$0xff]
    %v3318 = vld [vmem:[#allocation8 + $0xbf8] sm:$0xff]
    %v3319 = vld [vmem:[#allocation8 + $0xc00] sm:$0xff]
    %v3320 = vld [vmem:[#allocation8 + $0xc08] sm:$0xff]
    %v3321 = vld [vmem:[#allocation8 + $0xc10] sm:$0xff]
    %v3322 = vld [vmem:[#allocation8 + $0xc18] sm:$0xff]
    %v3323 = vld [vmem:[#allocation8 + $0xc20] sm:$0xff]
    %v3324 = vld [vmem:[#allocation8 + $0xc28] sm:$0xff]
    %v3325 = vld [vmem:[#allocation8 + $0xc30] sm:$0xff]
    %v3326 = vld [vmem:[#allocation8 + $0xc38] sm:$0xff]
    %v3327 = vld [vmem:[#allocation8 + $0xc40] sm:$0xff]
    %v3328 = vld [vmem:[#allocation8 + $0xc48] sm:$0xff]
    %v3329 = vld [vmem:[#allocation8 + $0xc50] sm:$0xff]
    %v3330 = vld [vmem:[#allocation8 + $0xc58] sm:$0xff]
    %v3331 = vld [vmem:[#allocation8 + $0xc60] sm:$0xff]
    %v3332 = vld [vmem:[#allocation8 + $0xc68] sm:$0xff]
    %v3333 = vld [vmem:[#allocation8 + $0xc70] sm:$0xff]
    %v3334 = vld [vmem:[#allocation8 + $0xc78] sm:$0xff]
    %v3335 = vld [vmem:[#allocation8 + $0xc80] sm:$0xff]
    %v3336 = vld [vmem:[#allocation8 + $0xc88] sm:$0xff]
    %v3337 = vld [vmem:[#allocation8 + $0xc90] sm:$0xff]
    %v3338 = vld [vmem:[#allocation8 + $0xc98] sm:$0xff]
    %v3339 = vld [vmem:[#allocation8 + $0xca0] sm:$0xff]
    %v3340 = vld [vmem:[#allocation8 + $0xca8] sm:$0xff]
    %v3341 = vld [vmem:[#allocation8 + $0xcb0] sm:$0xff]
    %v3342 = vld [vmem:[#allocation8 + $0xcb8] sm:$0xff]
    %v3343 = vld [vmem:[#allocation8 + $0xcc0] sm:$0xff]
    %v3344 = vld [vmem:[#allocation8 + $0xcc8] sm:$0xff]
    %v3345 = vld [vmem:[#allocation8 + $0xcd0] sm:$0xff]
    %v3346 = vld [vmem:[#allocation8 + $0xcd8] sm:$0xff]
    %v3347 = vld [vmem:[#allocation8 + $0xce0] sm:$0xff]
    %v3348 = vld [vmem:[#allocation8 + $0xce8] sm:$0xff]
    %v3349 = vld [vmem:[#allocation8 + $0xcf0] sm:$0xff]
    %v3350 = vld [vmem:[#allocation8 + $0xcf8] sm:$0xff]
    %v3351 = vld [vmem:[#allocation8 + $0xd00] sm:$0xff]
    %v3352 = vld [vmem:[#allocation8 + $0xd08] sm:$0xff]
    %v3353 = vld [vmem:[#allocation8 + $0xd10] sm:$0xff]
    %v3354 = vld [vmem:[#allocation8 + $0xd18] sm:$0xff]
    %v3355 = vld [vmem:[#allocation8 + $0xd20] sm:$0xff]
    %v3356 = vld [vmem:[#allocation8 + $0xd28] sm:$0xff]
    %v3357 = vld [vmem:[#allocation8 + $0xd30] sm:$0xff]
    %v3358 = vld [vmem:[#allocation8 + $0xd38] sm:$0xff]
    %v3359 = vld [vmem:[#allocation8 + $0xd40] sm:$0xff]
    %v3360 = vld [vmem:[#allocation8 + $0xd48] sm:$0xff]
    %v3361 = vld [vmem:[#allocation8 + $0xd50] sm:$0xff]
    %v3362 = vld [vmem:[#allocation8 + $0xd58] sm:$0xff]
    %v3363 = vld [vmem:[#allocation8 + $0xd60] sm:$0xff]
    %v3364 = vld [vmem:[#allocation8 + $0xd68] sm:$0xff]
    %v3365 = vld [vmem:[#allocation8 + $0xd70] sm:$0xff]
    %v3366 = vld [vmem:[#allocation8 + $0xd78] sm:$0xff]
    %v3367 = vld [vmem:[#allocation8 + $0xd80] sm:$0xff]
    %v3368 = vld [vmem:[#allocation8 + $0xd88] sm:$0xff]
    %v3369 = vld [vmem:[#allocation8 + $0xd90] sm:$0xff]
    %v3370 = vld [vmem:[#allocation8 + $0xd98] sm:$0xff]
    %v3371 = vld [vmem:[#allocation8 + $0xda0] sm:$0xff]
    %v3372 = vld [vmem:[#allocation8 + $0xda8] sm:$0xff]
    %v3373 = vld [vmem:[#allocation8 + $0xdb0] sm:$0xff]
    %v3374 = vld [vmem:[#allocation8 + $0xdb8] sm:$0xff]
    %v3375 = vld [vmem:[#allocation8 + $0xdc0] sm:$0xff]
    %v3376 = vld [vmem:[#allocation8 + $0xdc8] sm:$0xff]
    %v3377 = vld [vmem:[#allocation8 + $0xdd0] sm:$0xff]
    %v3378 = vld [vmem:[#allocation8 + $0xdd8] sm:$0xff]
    %v3379 = vld [vmem:[#allocation8 + $0xde0] sm:$0xff]
    %v3380 = vld [vmem:[#allocation8 + $0xde8] sm:$0xff]
    %v3381 = vld [vmem:[#allocation8 + $0xdf0] sm:$0xff]
    %v3382 = vld [vmem:[#allocation8 + $0xdf8] sm:$0xff]
    %v3383 = vld [vmem:[#allocation8 + $0xe00] sm:$0xff]
    %v3384 = vld [vmem:[#allocation8 + $0xe08] sm:$0xff]
    %v3385 = vld [vmem:[#allocation8 + $0xe10] sm:$0xff]
    %v3386 = vld [vmem:[#allocation8 + $0xe18] sm:$0xff]
    %v3387 = vld [vmem:[#allocation8 + $0xe20] sm:$0xff]
    %v3388 = vld [vmem:[#allocation8 + $0xe28] sm:$0xff]
    %v3389 = vld [vmem:[#allocation8 + $0xe30] sm:$0xff]
    %v3390 = vld [vmem:[#allocation8 + $0xe38] sm:$0xff]
    %v3391 = vld [vmem:[#allocation8 + $0xe40] sm:$0xff]
    %v3392 = vld [vmem:[#allocation8 + $0xe48] sm:$0xff]
    %v3393 = vld [vmem:[#allocation8 + $0xe50] sm:$0xff]
    %v3394 = vld [vmem:[#allocation8 + $0xe58] sm:$0xff]
    %v3395 = vld [vmem:[#allocation8 + $0xe60] sm:$0xff]
    %v3396 = vld [vmem:[#allocation8 + $0xe68] sm:$0xff]
    %v3397 = vld [vmem:[#allocation8 + $0xe70] sm:$0xff]
    %v3398 = vld [vmem:[#allocation8 + $0xe78] sm:$0xff]
    %v3399 = vld [vmem:[#allocation8 + $0xe80] sm:$0xff]
    %v3400 = vld [vmem:[#allocation8 + $0xe88] sm:$0xff]
    %v3401 = vld [vmem:[#allocation8 + $0xe90] sm:$0xff]
    %v3402 = vld [vmem:[#allocation8 + $0xe98] sm:$0xff]
    %v3403 = vld [vmem:[#allocation8 + $0xea0] sm:$0xff]
    %v3404 = vld [vmem:[#allocation8 + $0xea8] sm:$0xff]
    %v3405 = vld [vmem:[#allocation8 + $0xeb0] sm:$0xff]
    %v3406 = vld [vmem:[#allocation8 + $0xeb8] sm:$0xff]
    %v3407 = vld [vmem:[#allocation8 + $0xec0] sm:$0xff]
    %v3408 = vld [vmem:[#allocation8 + $0xec8] sm:$0xff]
    %v3409 = vld [vmem:[#allocation8 + $0xed0] sm:$0xff]
    %v3410 = vld [vmem:[#allocation8 + $0xed8] sm:$0xff]
    %v3411 = vld [vmem:[#allocation8 + $0xee0] sm:$0xff]
    %v3412 = vld [vmem:[#allocation8 + $0xee8] sm:$0xff]
    %v3413 = vld [vmem:[#allocation8 + $0xef0] sm:$0xff]
    %v3414 = vld [vmem:[#allocation8 + $0xef8] sm:$0xff]
    %v3415 = vld [vmem:[#allocation8 + $0xf00] sm:$0xff]
    %v3416 = vld [vmem:[#allocation8 + $0xf08] sm:$0xff]
    %v3417 = vld [vmem:[#allocation8 + $0xf10] sm:$0xff]
    %v3418 = vld [vmem:[#allocation8 + $0xf18] sm:$0xff]
    %v3419 = vld [vmem:[#allocation8 + $0xf20] sm:$0xff]
    %v3420 = vld [vmem:[#allocation8 + $0xf28] sm:$0xff]
    %v3421 = vld [vmem:[#allocation8 + $0xf30] sm:$0xff]
    %v3422 = vld [vmem:[#allocation8 + $0xf38] sm:$0xff]
    %v3423 = vld [vmem:[#allocation8 + $0xf40] sm:$0xff]
    %v3424 = vld [vmem:[#allocation8 + $0xf48] sm:$0xff]
    %v3425 = vld [vmem:[#allocation8 + $0xf50] sm:$0xff]
    %v3426 = vld [vmem:[#allocation8 + $0xf58] sm:$0xff]
    %v3427 = vld [vmem:[#allocation8 + $0xf60] sm:$0xff]
    %v3428 = vld [vmem:[#allocation8 + $0xf68] sm:$0xff]
    %v3429 = vld [vmem:[#allocation8 + $0xf70] sm:$0xff]
    %v3430 = vld [vmem:[#allocation8 + $0xf78] sm:$0xff]
    %v3431 = vld [vmem:[#allocation8 + $0xf80] sm:$0xff]
    %v3432 = vld [vmem:[#allocation8 + $0xf88] sm:$0xff]
    %v3433 = vld [vmem:[#allocation8 + $0xf90] sm:$0xff]
    %v3434 = vld [vmem:[#allocation8 + $0xf98] sm:$0xff]
    %v3435 = vld [vmem:[#allocation8 + $0xfa0] sm:$0xff]
    %v3436 = vld [vmem:[#allocation8 + $0xfa8] sm:$0xff]
    %v3437 = vld [vmem:[#allocation8 + $0xfb0] sm:$0xff]
    %v3438 = vld [vmem:[#allocation8 + $0xfb8] sm:$0xff]
    %v3439 = vld [vmem:[#allocation8 + $0xfc0] sm:$0xff]
    %v3440 = vld [vmem:[#allocation8 + $0xfc8] sm:$0xff]
    %v3441 = vld [vmem:[#allocation8 + $0xfd0] sm:$0xff]
    %v3442 = vld [vmem:[#allocation8 + $0xfd8] sm:$0xff]
    %v3443 = vld [vmem:[#allocation8 + $0xfe0] sm:$0xff]
    %v3444 = vld [vmem:[#allocation8 + $0xfe8] sm:$0xff]
    %v3445 = vld [vmem:[#allocation8 + $0xff0] sm:$0xff]
    %v3446 = vld [vmem:[#allocation8 + $0xff8] sm:$0xff]
    %v3447 = vld [vmem:[#allocation8 + $0x1000] sm:$0xff]
    %v3448 = vld [vmem:[#allocation8 + $0x1008] sm:$0xff]
    %v3449 = vld [vmem:[#allocation8 + $0x1010] sm:$0xff]
    %v3450 = vld [vmem:[#allocation8 + $0x1018] sm:$0xff]
    %v3451 = vld [vmem:[#allocation8 + $0x1020] sm:$0xff]
    %v3452 = vld [vmem:[#allocation8 + $0x1028] sm:$0xff]
    %v3453 = vld [vmem:[#allocation8 + $0x1030] sm:$0xff]
    %v3454 = vld [vmem:[#allocation8 + $0x1038] sm:$0xff]
    %v3455 = vld [vmem:[#allocation8 + $0x1040] sm:$0xff]
    %v3456 = vld [vmem:[#allocation8 + $0x1048] sm:$0xff]
    %v3457 = vld [vmem:[#allocation8 + $0x1050] sm:$0xff]
    %v3458 = vld [vmem:[#allocation8 + $0x1058] sm:$0xff]
    %v3459 = vld [vmem:[#allocation8 + $0x1060] sm:$0xff]
    %v3460 = vld [vmem:[#allocation8 + $0x1068] sm:$0xff]
    %v3461 = vld [vmem:[#allocation8 + $0x1070] sm:$0xff]
    %v3462 = vld [vmem:[#allocation8 + $0x1078] sm:$0xff]
    %v3463 = vld [vmem:[#allocation8 + $0x1080] sm:$0xff]
    %v3464 = vld [vmem:[#allocation8 + $0x1088] sm:$0xff]
    %v3465 = vld [vmem:[#allocation8 + $0x1090] sm:$0xff]
    %v3466 = vld [vmem:[#allocation8 + $0x1098] sm:$0xff]
    %v3467 = vld [vmem:[#allocation8 + $0x10a0] sm:$0xff]
    %v3468 = vld [vmem:[#allocation8 + $0x10a8] sm:$0xff]
    %v3469 = vld [vmem:[#allocation8 + $0x10b0] sm:$0xff]
    %v3470 = vld [vmem:[#allocation8 + $0x10b8] sm:$0xff]
    %v3471 = vld [vmem:[#allocation8 + $0x10c0] sm:$0xff]
    %v3472 = vld [vmem:[#allocation8 + $0x10c8] sm:$0xff]
    %v3473 = vld [vmem:[#allocation8 + $0x10d0] sm:$0xff]
    %v3474 = vld [vmem:[#allocation8 + $0x10d8] sm:$0xff]
    %v3475 = vld [vmem:[#allocation8 + $0x10e0] sm:$0xff]
    %v3476 = vld [vmem:[#allocation8 + $0x10e8] sm:$0xff]
    %v3477 = vld [vmem:[#allocation8 + $0x10f0] sm:$0xff]
    %v3478 = vld [vmem:[#allocation8 + $0x10f8] sm:$0xff]
    %v3479 = vld [vmem:[#allocation8 + $0x1100] sm:$0xff]
    %v3480 = vld [vmem:[#allocation8 + $0x1108] sm:$0xff]
    %v3481 = vld [vmem:[#allocation8 + $0x1110] sm:$0xff]
    %v3482 = vld [vmem:[#allocation8 + $0x1118] sm:$0xff]
    %v3483 = vld [vmem:[#allocation8 + $0x1120] sm:$0xff]
    %v3484 = vld [vmem:[#allocation8 + $0x1128] sm:$0xff]
    %v3485 = vld [vmem:[#allocation8 + $0x1130] sm:$0xff]
    %v3486 = vld [vmem:[#allocation8 + $0x1138] sm:$0xff]
    %v3487 = vld [vmem:[#allocation8 + $0x1140] sm:$0xff]
    %v3488 = vld [vmem:[#allocation8 + $0x1148] sm:$0xff]
    %v3489 = vld [vmem:[#allocation8 + $0x1150] sm:$0xff]
    %v3490 = vld [vmem:[#allocation8 + $0x1158] sm:$0xff]
    %v3491 = vld [vmem:[#allocation8 + $0x1160] sm:$0xff]
    %v3492 = vld [vmem:[#allocation8 + $0x1168] sm:$0xff]
    %v3493 = vld [vmem:[#allocation8 + $0x1170] sm:$0xff]
    %v3494 = vld [vmem:[#allocation8 + $0x1178] sm:$0xff]
    %v3495 = vld [vmem:[#allocation8 + $0x1180] sm:$0xff]
    %v3496 = vld [vmem:[#allocation8 + $0x1188] sm:$0xff]
    %v3497 = vld [vmem:[#allocation8 + $0x1190] sm:$0xff]
    %v3498 = vld [vmem:[#allocation8 + $0x1198] sm:$0xff]
    %v3499 = vld [vmem:[#allocation8 + $0x11a0] sm:$0xff]
    %v3500 = vld [vmem:[#allocation8 + $0x11a8] sm:$0xff]
    %v3501 = vld [vmem:[#allocation8 + $0x11b0] sm:$0xff]
    %v3502 = vld [vmem:[#allocation8 + $0x11b8] sm:$0xff]
    %v3503 = vld [vmem:[#allocation8 + $0x11c0] sm:$0xff]
    %v3504 = vld [vmem:[#allocation8 + $0x11c8] sm:$0xff]
    %v3505 = vld [vmem:[#allocation8 + $0x11d0] sm:$0xff]
    %v3506 = vld [vmem:[#allocation8 + $0x11d8] sm:$0xff]
    %v3507 = vld [vmem:[#allocation8 + $0x11e0] sm:$0xff]
    %v3508 = vld [vmem:[#allocation8 + $0x11e8] sm:$0xff]
    %v3509 = vld [vmem:[#allocation8 + $0x11f0] sm:$0xff]
    %v3510 = vld [vmem:[#allocation8 + $0x11f8] sm:$0xff]
    %v3511 = vld [vmem:[#allocation14] sm:$0xff]
    %v3512 = vld [vmem:[#allocation14 + $0x8] sm:$0xf]
    %v3515 = vlaneseq
    %v3516 = vshrl.u32 %v3515, 7
    %v3517 = vsub.s32 0, %v3516
    %v3518 = vrot.slane %v3511, %v3517
    %v3519 = vlaneseq
    %v3520 = vshrl.u32 %v3519, 7
    %v3521 = vsub.s32 1, %v3520
    %v3522 = vrot.slane %v3511, %v3521
    %v3523 = vlaneseq
    %v3524 = vshrl.u32 %v3523, 7
    %v3525 = vsub.s32 2, %v3524
    %v3526 = vrot.slane %v3511, %v3525
    %v3527 = vlaneseq
    %v3528 = vshrl.u32 %v3527, 7
    %v3529 = vsub.s32 3, %v3528
    %v3530 = vrot.slane %v3511, %v3529
    %v3531 = vlaneseq
    %v3532 = vshrl.u32 %v3531, 7
    %v3533 = vsub.s32 4, %v3532
    %v3534 = vrot.slane %v3511, %v3533
    %v3535 = vlaneseq
    %v3536 = vshrl.u32 %v3535, 7
    %v3537 = vsub.s32 5, %v3536
    %v3538 = vrot.slane %v3511, %v3537
    %v3539 = vlaneseq
    %v3540 = vshrl.u32 %v3539, 7
    %v3541 = vsub.s32 6, %v3540
    %v3542 = vrot.slane %v3511, %v3541
    %v3543 = vlaneseq
    %v3544 = vshrl.u32 %v3543, 7
    %v3545 = vsub.s32 7, %v3544
    %v3546 = vrot.slane %v3511, %v3545
    %v3547 = vlaneseq
    %v3548 = vshrl.u32 %v3547, 7
    %v3549 = vsub.s32 0, %v3548
    %v3550 = vrot.slane %v3512, %v3549
    %v3551 = vlaneseq
    %v3552 = vshrl.u32 %v3551, 7
    %v3553 = vsub.s32 1, %v3552
    %v3554 = vrot.slane %v3512, %v3553
    %v3555 = vlaneseq
    %v3556 = vshrl.u32 %v3555, 7
    %v3557 = vsub.s32 2, %v3556
    %v3558 = vrot.slane %v3512, %v3557
    %v3559 = vlaneseq
    %v3560 = vshrl.u32 %v3559, 7
    %v3561 = vsub.s32 3, %v3560
    %v3562 = vrot.slane %v3512, %v3561
    %v4151 = vunpack.c.l.b16 %v2935
    %v4152 = vunpack.c.h.b16 %v2935
    %v4153 = vunpack.c.l.b16 %v2936
    %v4154 = vunpack.c.h.b16 %v2936
    %v4155 = vunpack.c.l.b16 %v2937
    %v4156 = vunpack.c.h.b16 %v2937
    %v4157 = vunpack.c.l.b16 %v2938
    %v4158 = vunpack.c.h.b16 %v2938
    %v4159 = vunpack.c.l.b16 %v2939
    %v4160 = vunpack.c.h.b16 %v2939
    %v4161 = vunpack.c.l.b16 %v2940
    %v4162 = vunpack.c.h.b16 %v2940
    %v4163 = vunpack.c.l.b16 %v2941
    %v4164 = vunpack.c.h.b16 %v2941
    %v4165 = vunpack.c.l.b16 %v2942
    %v4166 = vunpack.c.h.b16 %v2942
    %v4167 = vunpack.c.l.b16 %v2943
    %v4168 = vunpack.c.h.b16 %v2943
    %v4169 = vunpack.c.l.b16 %v2944
    %v4170 = vunpack.c.h.b16 %v2944
    %v4171 = vunpack.c.l.b16 %v2945
    %v4172 = vunpack.c.h.b16 %v2945
    %v4173 = vunpack.c.l.b16 %v2946
    %v4174 = vunpack.c.h.b16 %v2946
    %v4175 = vunpack.c.l.b16 %v2947
    %v4176 = vunpack.c.h.b16 %v2947
    %v4177 = vunpack.c.l.b16 %v2948
    %v4178 = vunpack.c.h.b16 %v2948
    %v4179 = vunpack.c.l.b16 %v2949
    %v4180 = vunpack.c.h.b16 %v2949
    %v4181 = vunpack.c.l.b16 %v2950
    %v4182 = vunpack.c.h.b16 %v2950
    %v4183 = vunpack.c.l.b16 %v2951
    %v4184 = vunpack.c.h.b16 %v2951
    %v4185 = vunpack.c.l.b16 %v2952
    %v4186 = vunpack.c.h.b16 %v2952
    %v4187 = vunpack.c.l.b16 %v2953
    %v4188 = vunpack.c.h.b16 %v2953
    %v4189 = vunpack.c.l.b16 %v2954
    %v4190 = vunpack.c.h.b16 %v2954
    %v4191 = vunpack.c.l.b16 %v2955
    %v4192 = vunpack.c.h.b16 %v2955
    %v4193 = vunpack.c.l.b16 %v2956
    %v4194 = vunpack.c.h.b16 %v2956
    %v4195 = vunpack.c.l.b16 %v2957
    %v4196 = vunpack.c.h.b16 %v2957
    %v4197 = vunpack.c.l.b16 %v2958
    %v4198 = vunpack.c.h.b16 %v2958
    %v4199 = vunpack.c.l.b16 %v2959
    %v4200 = vunpack.c.h.b16 %v2959
    %v4201 = vunpack.c.l.b16 %v2960
    %v4202 = vunpack.c.h.b16 %v2960
    %v4203 = vunpack.c.l.b16 %v2961
    %v4204 = vunpack.c.h.b16 %v2961
    %v4205 = vunpack.c.l.b16 %v2962
    %v4206 = vunpack.c.h.b16 %v2962
    %v4207 = vunpack.c.l.b16 %v2963
    %v4208 = vunpack.c.h.b16 %v2963
    %v4209 = vunpack.c.l.b16 %v2964
    %v4210 = vunpack.c.h.b16 %v2964
    %v4211 = vunpack.c.l.b16 %v2965
    %v4212 = vunpack.c.h.b16 %v2965
    %v4213 = vunpack.c.l.b16 %v2966
    %v4214 = vunpack.c.h.b16 %v2966
    %v4215 = vunpack.c.l.b16 %v2967
    %v4216 = vunpack.c.h.b16 %v2967
    %v4217 = vunpack.c.l.b16 %v2968
    %v4218 = vunpack.c.h.b16 %v2968
    %v4219 = vunpack.c.l.b16 %v2969
    %v4220 = vunpack.c.h.b16 %v2969
    %v4221 = vunpack.c.l.b16 %v2970
    %v4222 = vunpack.c.h.b16 %v2970
    %v4223 = vunpack.c.l.b16 %v2971
    %v4224 = vunpack.c.h.b16 %v2971
    %v4225 = vunpack.c.l.b16 %v2972
    %v4226 = vunpack.c.h.b16 %v2972
    %v4227 = vunpack.c.l.b16 %v2973
    %v4228 = vunpack.c.h.b16 %v2973
    %v4229 = vunpack.c.l.b16 %v2974
    %v4230 = vunpack.c.h.b16 %v2974
    %v4231 = vunpack.c.l.b16 %v2975
    %v4232 = vunpack.c.h.b16 %v2975
    %v4233 = vunpack.c.l.b16 %v2976
    %v4234 = vunpack.c.h.b16 %v2976
    %v4235 = vunpack.c.l.b16 %v2977
    %v4236 = vunpack.c.h.b16 %v2977
    %v4237 = vunpack.c.l.b16 %v2978
    %v4238 = vunpack.c.h.b16 %v2978
    %v4239 = vunpack.c.l.b16 %v2979
    %v4240 = vunpack.c.h.b16 %v2979
    %v4241 = vunpack.c.l.b16 %v2980
    %v4242 = vunpack.c.h.b16 %v2980
    %v4243 = vunpack.c.l.b16 %v2981
    %v4244 = vunpack.c.h.b16 %v2981
    %v4245 = vunpack.c.l.b16 %v2982
    %v4246 = vunpack.c.h.b16 %v2982
    %v4247 = vunpack.c.l.b16 %v2983
    %v4248 = vunpack.c.h.b16 %v2983
    %v4249 = vunpack.c.l.b16 %v2984
    %v4250 = vunpack.c.h.b16 %v2984
    %v4251 = vunpack.c.l.b16 %v2985
    %v4252 = vunpack.c.h.b16 %v2985
    %v4253 = vunpack.c.l.b16 %v2986
    %v4254 = vunpack.c.h.b16 %v2986
    %v4255 = vunpack.c.l.b16 %v2987
    %v4256 = vunpack.c.h.b16 %v2987
    %v4257 = vunpack.c.l.b16 %v2988
    %v4258 = vunpack.c.h.b16 %v2988
    %v4259 = vunpack.c.l.b16 %v2989
    %v4260 = vunpack.c.h.b16 %v2989
    %v4261 = vunpack.c.l.b16 %v2990
    %v4262 = vunpack.c.h.b16 %v2990
    %v4263 = vunpack.c.l.b16 %v2991
    %v4264 = vunpack.c.h.b16 %v2991
    %v4265 = vunpack.c.l.b16 %v2992
    %v4266 = vunpack.c.h.b16 %v2992
    %v4267 = vunpack.c.l.b16 %v2993
    %v4268 = vunpack.c.h.b16 %v2993
    %v4269 = vunpack.c.l.b16 %v2994
    %v4270 = vunpack.c.h.b16 %v2994
    %v4271 = vunpack.c.l.b16 %v2995
    %v4272 = vunpack.c.h.b16 %v2995
    %v4273 = vunpack.c.l.b16 %v2996
    %v4274 = vunpack.c.h.b16 %v2996
    %v4275 = vunpack.c.l.b16 %v2997
    %v4276 = vunpack.c.h.b16 %v2997
    %v4277 = vunpack.c.l.b16 %v2998
    %v4278 = vunpack.c.h.b16 %v2998
    %v4279 = vunpack.c.l.b16 %v2999
    %v4280 = vunpack.c.h.b16 %v2999
    %v4281 = vunpack.c.l.b16 %v3000
    %v4282 = vunpack.c.h.b16 %v3000
    %v4283 = vunpack.c.l.b16 %v3001
    %v4284 = vunpack.c.h.b16 %v3001
    %v4285 = vunpack.c.l.b16 %v3002
    %v4286 = vunpack.c.h.b16 %v3002
    %v4287 = vunpack.c.l.b16 %v3003
    %v4288 = vunpack.c.h.b16 %v3003
    %v4289 = vunpack.c.l.b16 %v3004
    %v4290 = vunpack.c.h.b16 %v3004
    %v4291 = vunpack.c.l.b16 %v3005
    %v4292 = vunpack.c.h.b16 %v3005
    %v4293 = vunpack.c.l.b16 %v3006
    %v4294 = vunpack.c.h.b16 %v3006
    %v4295 = vunpack.c.l.b16 %v3007
    %v4296 = vunpack.c.h.b16 %v3007
    %v4297 = vunpack.c.l.b16 %v3008
    %v4298 = vunpack.c.h.b16 %v3008
    %v4299 = vunpack.c.l.b16 %v3009
    %v4300 = vunpack.c.h.b16 %v3009
    %v4301 = vunpack.c.l.b16 %v3010
    %v4302 = vunpack.c.h.b16 %v3010
    %v4303 = vunpack.c.l.b16 %v3011
    %v4304 = vunpack.c.h.b16 %v3011
    %v4305 = vunpack.c.l.b16 %v3012
    %v4306 = vunpack.c.h.b16 %v3012
    %v4307 = vunpack.c.l.b16 %v3013
    %v4308 = vunpack.c.h.b16 %v3013
    %v4309 = vunpack.c.l.b16 %v3014
    %v4310 = vunpack.c.h.b16 %v3014
    %v4311 = vunpack.c.l.b16 %v3015
    %v4312 = vunpack.c.h.b16 %v3015
    %v4313 = vunpack.c.l.b16 %v3016
    %v4314 = vunpack.c.h.b16 %v3016
    %v4315 = vunpack.c.l.b16 %v3017
    %v4316 = vunpack.c.h.b16 %v3017
    %v4317 = vunpack.c.l.b16 %v3018
    %v4318 = vunpack.c.h.b16 %v3018
    %v4319 = vunpack.c.l.b16 %v3019
    %v4320 = vunpack.c.h.b16 %v3019
    %v4321 = vunpack.c.l.b16 %v3020
    %v4322 = vunpack.c.h.b16 %v3020
    %v4323 = vunpack.c.l.b16 %v3021
    %v4324 = vunpack.c.h.b16 %v3021
    %v4325 = vunpack.c.l.b16 %v3022
    %v4326 = vunpack.c.h.b16 %v3022
    %v4327 = vunpack.c.l.b16 %v3023
    %v4328 = vunpack.c.h.b16 %v3023
    %v4329 = vunpack.c.l.b16 %v3024
    %v4330 = vunpack.c.h.b16 %v3024
    %v4331 = vunpack.c.l.b16 %v3025
    %v4332 = vunpack.c.h.b16 %v3025
    %v4333 = vunpack.c.l.b16 %v3026
    %v4334 = vunpack.c.h.b16 %v3026
    %v4335 = vunpack.c.l.b16 %v3027
    %v4336 = vunpack.c.h.b16 %v3027
    %v4337 = vunpack.c.l.b16 %v3028
    %v4338 = vunpack.c.h.b16 %v3028
    %v4339 = vunpack.c.l.b16 %v3029
    %v4340 = vunpack.c.h.b16 %v3029
    %v4341 = vunpack.c.l.b16 %v3030
    %v4342 = vunpack.c.h.b16 %v3030
    %v4343 = vunpack.c.l.b16 %v3031
    %v4344 = vunpack.c.h.b16 %v3031
    %v4345 = vunpack.c.l.b16 %v3032
    %v4346 = vunpack.c.h.b16 %v3032
    %v4347 = vunpack.c.l.b16 %v3033
    %v4348 = vunpack.c.h.b16 %v3033
    %v4349 = vunpack.c.l.b16 %v3034
    %v4350 = vunpack.c.h.b16 %v3034
    %v4351 = vunpack.c.l.b16 %v3035
    %v4352 = vunpack.c.h.b16 %v3035
    %v4353 = vunpack.c.l.b16 %v3036
    %v4354 = vunpack.c.h.b16 %v3036
    %v4355 = vunpack.c.l.b16 %v3037
    %v4356 = vunpack.c.h.b16 %v3037
    %v4357 = vunpack.c.l.b16 %v3038
    %v4358 = vunpack.c.h.b16 %v3038
    %v4359 = vunpack.c.l.b16 %v3039
    %v4360 = vunpack.c.h.b16 %v3039
    %v4361 = vunpack.c.l.b16 %v3040
    %v4362 = vunpack.c.h.b16 %v3040
    %v4363 = vunpack.c.l.b16 %v3041
    %v4364 = vunpack.c.h.b16 %v3041
    %v4365 = vunpack.c.l.b16 %v3042
    %v4366 = vunpack.c.h.b16 %v3042
    %v4367 = vunpack.c.l.b16 %v3043
    %v4368 = vunpack.c.h.b16 %v3043
    %v4369 = vunpack.c.l.b16 %v3044
    %v4370 = vunpack.c.h.b16 %v3044
    %v4371 = vunpack.c.l.b16 %v3045
    %v4372 = vunpack.c.h.b16 %v3045
    %v4373 = vunpack.c.l.b16 %v3046
    %v4374 = vunpack.c.h.b16 %v3046
    %v4375 = vunpack.c.l.b16 %v3047
    %v4376 = vunpack.c.h.b16 %v3047
    %v4377 = vunpack.c.l.b16 %v3048
    %v4378 = vunpack.c.h.b16 %v3048
    %v4379 = vunpack.c.l.b16 %v3049
    %v4380 = vunpack.c.h.b16 %v3049
    %v4381 = vunpack.c.l.b16 %v3050
    %v4382 = vunpack.c.h.b16 %v3050
    %v4383 = vunpack.c.l.b16 %v3051
    %v4384 = vunpack.c.h.b16 %v3051
    %v4385 = vunpack.c.l.b16 %v3052
    %v4386 = vunpack.c.h.b16 %v3052
    %v4387 = vunpack.c.l.b16 %v3053
    %v4388 = vunpack.c.h.b16 %v3053
    %v4389 = vunpack.c.l.b16 %v3054
    %v4390 = vunpack.c.h.b16 %v3054
    %v4391 = vunpack.c.l.b16 %v3055
    %v4392 = vunpack.c.h.b16 %v3055
    %v4393 = vunpack.c.l.b16 %v3056
    %v4394 = vunpack.c.h.b16 %v3056
    %v4395 = vunpack.c.l.b16 %v3057
    %v4396 = vunpack.c.h.b16 %v3057
    %v4397 = vunpack.c.l.b16 %v3058
    %v4398 = vunpack.c.h.b16 %v3058
    %v4399 = vunpack.c.l.b16 %v3059
    %v4400 = vunpack.c.h.b16 %v3059
    %v4401 = vunpack.c.l.b16 %v3060
    %v4402 = vunpack.c.h.b16 %v3060
    %v4403 = vunpack.c.l.b16 %v3061
    %v4404 = vunpack.c.h.b16 %v3061
    %v4405 = vunpack.c.l.b16 %v3062
    %v4406 = vunpack.c.h.b16 %v3062
    %v4407 = vunpack.c.l.b16 %v3063
    %v4408 = vunpack.c.h.b16 %v3063
    %v4409 = vunpack.c.l.b16 %v3064
    %v4410 = vunpack.c.h.b16 %v3064
    %v4411 = vunpack.c.l.b16 %v3065
    %v4412 = vunpack.c.h.b16 %v3065
    %v4413 = vunpack.c.l.b16 %v3066
    %v4414 = vunpack.c.h.b16 %v3066
    %v4415 = vunpack.c.l.b16 %v3067
    %v4416 = vunpack.c.h.b16 %v3067
    %v4417 = vunpack.c.l.b16 %v3068
    %v4418 = vunpack.c.h.b16 %v3068
    %v4419 = vunpack.c.l.b16 %v3069
    %v4420 = vunpack.c.h.b16 %v3069
    %v4421 = vunpack.c.l.b16 %v3070
    %v4422 = vunpack.c.h.b16 %v3070
    %v4423 = vunpack.c.l.b16 %v3071
    %v4424 = vunpack.c.h.b16 %v3071
    %v4425 = vunpack.c.l.b16 %v3072
    %v4426 = vunpack.c.h.b16 %v3072
    %v4427 = vunpack.c.l.b16 %v3073
    %v4428 = vunpack.c.h.b16 %v3073
    %v4429 = vunpack.c.l.b16 %v3074
    %v4430 = vunpack.c.h.b16 %v3074
    %v4431 = vunpack.c.l.b16 %v3075
    %v4432 = vunpack.c.h.b16 %v3075
    %v4433 = vunpack.c.l.b16 %v3076
    %v4434 = vunpack.c.h.b16 %v3076
    %v4435 = vunpack.c.l.b16 %v3077
    %v4436 = vunpack.c.h.b16 %v3077
    %v4437 = vunpack.c.l.b16 %v3078
    %v4438 = vunpack.c.h.b16 %v3078
    %v4439 = vunpack.c.l.b16 %v3079
    %v4440 = vunpack.c.h.b16 %v3079
    %v4441 = vunpack.c.l.b16 %v3080
    %v4442 = vunpack.c.h.b16 %v3080
    %v4443 = vunpack.c.l.b16 %v3081
    %v4444 = vunpack.c.h.b16 %v3081
    %v4445 = vunpack.c.l.b16 %v3082
    %v4446 = vunpack.c.h.b16 %v3082
    %v4447 = vunpack.c.l.b16 %v3083
    %v4448 = vunpack.c.h.b16 %v3083
    %v4449 = vunpack.c.l.b16 %v3084
    %v4450 = vunpack.c.h.b16 %v3084
    %v4451 = vunpack.c.l.b16 %v3085
    %v4452 = vunpack.c.h.b16 %v3085
    %v4453 = vunpack.c.l.b16 %v3086
    %v4454 = vunpack.c.h.b16 %v3086
    %v4455 = vunpack.c.l.b16 %v3087
    %v4456 = vunpack.c.h.b16 %v3087
    %v4457 = vunpack.c.l.b16 %v3088
    %v4458 = vunpack.c.h.b16 %v3088
    %v4459 = vunpack.c.l.b16 %v3089
    %v4460 = vunpack.c.h.b16 %v3089
    %v4461 = vunpack.c.l.b16 %v3090
    %v4462 = vunpack.c.h.b16 %v3090
    %v4463 = vunpack.c.l.b16 %v3091
    %v4464 = vunpack.c.h.b16 %v3091
    %v4465 = vunpack.c.l.b16 %v3092
    %v4466 = vunpack.c.h.b16 %v3092
    %v4467 = vunpack.c.l.b16 %v3093
    %v4468 = vunpack.c.h.b16 %v3093
    %v4469 = vunpack.c.l.b16 %v3094
    %v4470 = vunpack.c.h.b16 %v3094
    %v4471 = vunpack.c.l.b16 %v3095
    %v4472 = vunpack.c.h.b16 %v3095
    %v4473 = vunpack.c.l.b16 %v3096
    %v4474 = vunpack.c.h.b16 %v3096
    %v4475 = vunpack.c.l.b16 %v3097
    %v4476 = vunpack.c.h.b16 %v3097
    %v4477 = vunpack.c.l.b16 %v3098
    %v4478 = vunpack.c.h.b16 %v3098
    %v4479 = vunpack.c.l.b16 %v3099
    %v4480 = vunpack.c.h.b16 %v3099
    %v4481 = vunpack.c.l.b16 %v3100
    %v4482 = vunpack.c.h.b16 %v3100
    %v4483 = vunpack.c.l.b16 %v3101
    %v4484 = vunpack.c.h.b16 %v3101
    %v4485 = vunpack.c.l.b16 %v3102
    %v4486 = vunpack.c.h.b16 %v3102
    %v4487 = vunpack.c.l.b16 %v3103
    %v4488 = vunpack.c.h.b16 %v3103
    %v4489 = vunpack.c.l.b16 %v3104
    %v4490 = vunpack.c.h.b16 %v3104
    %v4491 = vunpack.c.l.b16 %v3105
    %v4492 = vunpack.c.h.b16 %v3105
    %v4493 = vunpack.c.l.b16 %v3106
    %v4494 = vunpack.c.h.b16 %v3106
    %v4495 = vunpack.c.l.b16 %v3107
    %v4496 = vunpack.c.h.b16 %v3107
    %v4497 = vunpack.c.l.b16 %v3108
    %v4498 = vunpack.c.h.b16 %v3108
    %v4499 = vunpack.c.l.b16 %v3109
    %v4500 = vunpack.c.h.b16 %v3109
    %v4501 = vunpack.c.l.b16 %v3110
    %v4502 = vunpack.c.h.b16 %v3110
    %v4503 = vunpack.c.l.b16 %v3111
    %v4504 = vunpack.c.h.b16 %v3111
    %v4505 = vunpack.c.l.b16 %v3112
    %v4506 = vunpack.c.h.b16 %v3112
    %v4507 = vunpack.c.l.b16 %v3113
    %v4508 = vunpack.c.h.b16 %v3113
    %v4509 = vunpack.c.l.b16 %v3114
    %v4510 = vunpack.c.h.b16 %v3114
    %v4511 = vunpack.c.l.b16 %v3115
    %v4512 = vunpack.c.h.b16 %v3115
    %v4513 = vunpack.c.l.b16 %v3116
    %v4514 = vunpack.c.h.b16 %v3116
    %v4515 = vunpack.c.l.b16 %v3117
    %v4516 = vunpack.c.h.b16 %v3117
    %v4517 = vunpack.c.l.b16 %v3118
    %v4518 = vunpack.c.h.b16 %v3118
    %v4519 = vunpack.c.l.b16 %v3119
    %v4520 = vunpack.c.h.b16 %v3119
    %v4521 = vunpack.c.l.b16 %v3120
    %v4522 = vunpack.c.h.b16 %v3120
    %v4523 = vunpack.c.l.b16 %v3121
    %v4524 = vunpack.c.h.b16 %v3121
    %v4525 = vunpack.c.l.b16 %v3122
    %v4526 = vunpack.c.h.b16 %v3122
    %v4527 = vunpack.c.l.b16 %v3123
    %v4528 = vunpack.c.h.b16 %v3123
    %v4529 = vunpack.c.l.b16 %v3124
    %v4530 = vunpack.c.h.b16 %v3124
    %v4531 = vunpack.c.l.b16 %v3125
    %v4532 = vunpack.c.h.b16 %v3125
    %v4533 = vunpack.c.l.b16 %v3126
    %v4534 = vunpack.c.h.b16 %v3126
    %v4535 = vunpack.c.l.b16 %v3127
    %v4536 = vunpack.c.h.b16 %v3127
    %v4537 = vunpack.c.l.b16 %v3128
    %v4538 = vunpack.c.h.b16 %v3128
    %v4539 = vunpack.c.l.b16 %v3129
    %v4540 = vunpack.c.h.b16 %v3129
    %v4541 = vunpack.c.l.b16 %v3130
    %v4542 = vunpack.c.h.b16 %v3130
    %v4543 = vunpack.c.l.b16 %v3131
    %v4544 = vunpack.c.h.b16 %v3131
    %v4545 = vunpack.c.l.b16 %v3132
    %v4546 = vunpack.c.h.b16 %v3132
    %v4547 = vunpack.c.l.b16 %v3133
    %v4548 = vunpack.c.h.b16 %v3133
    %v4549 = vunpack.c.l.b16 %v3134
    %v4550 = vunpack.c.h.b16 %v3134
    %v4551 = vunpack.c.l.b16 %v3135
    %v4552 = vunpack.c.h.b16 %v3135
    %v4553 = vunpack.c.l.b16 %v3136
    %v4554 = vunpack.c.h.b16 %v3136
    %v4555 = vunpack.c.l.b16 %v3137
    %v4556 = vunpack.c.h.b16 %v3137
    %v4557 = vunpack.c.l.b16 %v3138
    %v4558 = vunpack.c.h.b16 %v3138
    %v4559 = vunpack.c.l.b16 %v3139
    %v4560 = vunpack.c.h.b16 %v3139
    %v4561 = vunpack.c.l.b16 %v3140
    %v4562 = vunpack.c.h.b16 %v3140
    %v4563 = vunpack.c.l.b16 %v3141
    %v4564 = vunpack.c.h.b16 %v3141
    %v4565 = vunpack.c.l.b16 %v3142
    %v4566 = vunpack.c.h.b16 %v3142
    %v4567 = vunpack.c.l.b16 %v3143
    %v4568 = vunpack.c.h.b16 %v3143
    %v4569 = vunpack.c.l.b16 %v3144
    %v4570 = vunpack.c.h.b16 %v3144
    %v4571 = vunpack.c.l.b16 %v3145
    %v4572 = vunpack.c.h.b16 %v3145
    %v4573 = vunpack.c.l.b16 %v3146
    %v4574 = vunpack.c.h.b16 %v3146
    %v4575 = vunpack.c.l.b16 %v3147
    %v4576 = vunpack.c.h.b16 %v3147
    %v4577 = vunpack.c.l.b16 %v3148
    %v4578 = vunpack.c.h.b16 %v3148
    %v4579 = vunpack.c.l.b16 %v3149
    %v4580 = vunpack.c.h.b16 %v3149
    %v4581 = vunpack.c.l.b16 %v3150
    %v4582 = vunpack.c.h.b16 %v3150
    %v4583 = vunpack.c.l.b16 %v3151
    %v4584 = vunpack.c.h.b16 %v3151
    %v4585 = vunpack.c.l.b16 %v3152
    %v4586 = vunpack.c.h.b16 %v3152
    %v4587 = vunpack.c.l.b16 %v3153
    %v4588 = vunpack.c.h.b16 %v3153
    %v4589 = vunpack.c.l.b16 %v3154
    %v4590 = vunpack.c.h.b16 %v3154
    %v4591 = vunpack.c.l.b16 %v3155
    %v4592 = vunpack.c.h.b16 %v3155
    %v4593 = vunpack.c.l.b16 %v3156
    %v4594 = vunpack.c.h.b16 %v3156
    %v4595 = vunpack.c.l.b16 %v3157
    %v4596 = vunpack.c.h.b16 %v3157
    %v4597 = vunpack.c.l.b16 %v3158
    %v4598 = vunpack.c.h.b16 %v3158
    %v4599 = vunpack.c.l.b16 %v3159
    %v4600 = vunpack.c.h.b16 %v3159
    %v4601 = vunpack.c.l.b16 %v3160
    %v4602 = vunpack.c.h.b16 %v3160
    %v4603 = vunpack.c.l.b16 %v3161
    %v4604 = vunpack.c.h.b16 %v3161
    %v4605 = vunpack.c.l.b16 %v3162
    %v4606 = vunpack.c.h.b16 %v3162
    %v4607 = vunpack.c.l.b16 %v3163
    %v4608 = vunpack.c.h.b16 %v3163
    %v4609 = vunpack.c.l.b16 %v3164
    %v4610 = vunpack.c.h.b16 %v3164
    %v4611 = vunpack.c.l.b16 %v3165
    %v4612 = vunpack.c.h.b16 %v3165
    %v4613 = vunpack.c.l.b16 %v3166
    %v4614 = vunpack.c.h.b16 %v3166
    %v4615 = vunpack.c.l.b16 %v3167
    %v4616 = vunpack.c.h.b16 %v3167
    %v4617 = vunpack.c.l.b16 %v3168
    %v4618 = vunpack.c.h.b16 %v3168
    %v4619 = vunpack.c.l.b16 %v3169
    %v4620 = vunpack.c.h.b16 %v3169
    %v4621 = vunpack.c.l.b16 %v3170
    %v4622 = vunpack.c.h.b16 %v3170
    %v4623 = vunpack.c.l.b16 %v3171
    %v4624 = vunpack.c.h.b16 %v3171
    %v4625 = vunpack.c.l.b16 %v3172
    %v4626 = vunpack.c.h.b16 %v3172
    %v4627 = vunpack.c.l.b16 %v3173
    %v4628 = vunpack.c.h.b16 %v3173
    %v4629 = vunpack.c.l.b16 %v3174
    %v4630 = vunpack.c.h.b16 %v3174
    %v4631 = vunpack.c.l.b16 %v3175
    %v4632 = vunpack.c.h.b16 %v3175
    %v4633 = vunpack.c.l.b16 %v3176
    %v4634 = vunpack.c.h.b16 %v3176
    %v4635 = vunpack.c.l.b16 %v3177
    %v4636 = vunpack.c.h.b16 %v3177
    %v4637 = vunpack.c.l.b16 %v3178
    %v4638 = vunpack.c.h.b16 %v3178
    %v4639 = vunpack.c.l.b16 %v3179
    %v4640 = vunpack.c.h.b16 %v3179
    %v4641 = vunpack.c.l.b16 %v3180
    %v4642 = vunpack.c.h.b16 %v3180
    %v4643 = vunpack.c.l.b16 %v3181
    %v4644 = vunpack.c.h.b16 %v3181
    %v4645 = vunpack.c.l.b16 %v3182
    %v4646 = vunpack.c.h.b16 %v3182
    %v4647 = vunpack.c.l.b16 %v3183
    %v4648 = vunpack.c.h.b16 %v3183
    %v4649 = vunpack.c.l.b16 %v3184
    %v4650 = vunpack.c.h.b16 %v3184
    %v4651 = vunpack.c.l.b16 %v3185
    %v4652 = vunpack.c.h.b16 %v3185
    %v4653 = vunpack.c.l.b16 %v3186
    %v4654 = vunpack.c.h.b16 %v3186
    %v4655 = vunpack.c.l.b16 %v3187
    %v4656 = vunpack.c.h.b16 %v3187
    %v4657 = vunpack.c.l.b16 %v3188
    %v4658 = vunpack.c.h.b16 %v3188
    %v4659 = vunpack.c.l.b16 %v3189
    %v4660 = vunpack.c.h.b16 %v3189
    %v4661 = vunpack.c.l.b16 %v3190
    %v4662 = vunpack.c.h.b16 %v3190
    %v4663 = vunpack.c.l.b16 %v3191
    %v4664 = vunpack.c.h.b16 %v3191
    %v4665 = vunpack.c.l.b16 %v3192
    %v4666 = vunpack.c.h.b16 %v3192
    %v4667 = vunpack.c.l.b16 %v3193
    %v4668 = vunpack.c.h.b16 %v3193
    %v4669 = vunpack.c.l.b16 %v3194
    %v4670 = vunpack.c.h.b16 %v3194
    %v4671 = vunpack.c.l.b16 %v3195
    %v4672 = vunpack.c.h.b16 %v3195
    %v4673 = vunpack.c.l.b16 %v3196
    %v4674 = vunpack.c.h.b16 %v3196
    %v4675 = vunpack.c.l.b16 %v3197
    %v4676 = vunpack.c.h.b16 %v3197
    %v4677 = vunpack.c.l.b16 %v3198
    %v4678 = vunpack.c.h.b16 %v3198
    %v4679 = vunpack.c.l.b16 %v3199
    %v4680 = vunpack.c.h.b16 %v3199
    %v4681 = vunpack.c.l.b16 %v3200
    %v4682 = vunpack.c.h.b16 %v3200
    %v4683 = vunpack.c.l.b16 %v3201
    %v4684 = vunpack.c.h.b16 %v3201
    %v4685 = vunpack.c.l.b16 %v3202
    %v4686 = vunpack.c.h.b16 %v3202
    %v4687 = vunpack.c.l.b16 %v3203
    %v4688 = vunpack.c.h.b16 %v3203
    %v4689 = vunpack.c.l.b16 %v3204
    %v4690 = vunpack.c.h.b16 %v3204
    %v4691 = vunpack.c.l.b16 %v3205
    %v4692 = vunpack.c.h.b16 %v3205
    %v4693 = vunpack.c.l.b16 %v3206
    %v4694 = vunpack.c.h.b16 %v3206
    %v4695 = vunpack.c.l.b16 %v3207
    %v4696 = vunpack.c.h.b16 %v3207
    %v4697 = vunpack.c.l.b16 %v3208
    %v4698 = vunpack.c.h.b16 %v3208
    %v4699 = vunpack.c.l.b16 %v3209
    %v4700 = vunpack.c.h.b16 %v3209
    %v4701 = vunpack.c.l.b16 %v3210
    %v4702 = vunpack.c.h.b16 %v3210
    %v4703 = vunpack.c.l.b16 %v3211
    %v4704 = vunpack.c.h.b16 %v3211
    %v4705 = vunpack.c.l.b16 %v3212
    %v4706 = vunpack.c.h.b16 %v3212
    %v4707 = vunpack.c.l.b16 %v3213
    %v4708 = vunpack.c.h.b16 %v3213
    %v4709 = vunpack.c.l.b16 %v3214
    %v4710 = vunpack.c.h.b16 %v3214
    %v4711 = vunpack.c.l.b16 %v3215
    %v4712 = vunpack.c.h.b16 %v3215
    %v4713 = vunpack.c.l.b16 %v3216
    %v4714 = vunpack.c.h.b16 %v3216
    %v4715 = vunpack.c.l.b16 %v3217
    %v4716 = vunpack.c.h.b16 %v3217
    %v4717 = vunpack.c.l.b16 %v3218
    %v4718 = vunpack.c.h.b16 %v3218
    %v4719 = vunpack.c.l.b16 %v3219
    %v4720 = vunpack.c.h.b16 %v3219
    %v4721 = vunpack.c.l.b16 %v3220
    %v4722 = vunpack.c.h.b16 %v3220
    %v4723 = vunpack.c.l.b16 %v3221
    %v4724 = vunpack.c.h.b16 %v3221
    %v4725 = vunpack.c.l.b16 %v3222
    %v4726 = vunpack.c.h.b16 %v3222
    %v4727 = vunpack.c.l.b16 %v3223
    %v4728 = vunpack.c.h.b16 %v3223
    %v4729 = vunpack.c.l.b16 %v3224
    %v4730 = vunpack.c.h.b16 %v3224
    %v4731 = vunpack.c.l.b16 %v3225
    %v4732 = vunpack.c.h.b16 %v3225
    %v4733 = vunpack.c.l.b16 %v3226
    %v4734 = vunpack.c.h.b16 %v3226
    %v4735 = vunpack.c.l.b16 %v3227
    %v4736 = vunpack.c.h.b16 %v3227
    %v4737 = vunpack.c.l.b16 %v3228
    %v4738 = vunpack.c.h.b16 %v3228
    %v4739 = vunpack.c.l.b16 %v3229
    %v4740 = vunpack.c.h.b16 %v3229
    %v4741 = vunpack.c.l.b16 %v3230
    %v4742 = vunpack.c.h.b16 %v3230
    %v4743 = vunpack.c.l.b16 %v3231
    %v4744 = vunpack.c.h.b16 %v3231
    %v4745 = vunpack.c.l.b16 %v3232
    %v4746 = vunpack.c.h.b16 %v3232
    %v4747 = vunpack.c.l.b16 %v3233
    %v4748 = vunpack.c.h.b16 %v3233
    %v4749 = vunpack.c.l.b16 %v3234
    %v4750 = vunpack.c.h.b16 %v3234
    %v4751 = vunpack.c.l.b16 %v3235
    %v4752 = vunpack.c.h.b16 %v3235
    %v4753 = vunpack.c.l.b16 %v3236
    %v4754 = vunpack.c.h.b16 %v3236
    %v4755 = vunpack.c.l.b16 %v3237
    %v4756 = vunpack.c.h.b16 %v3237
    %v4757 = vunpack.c.l.b16 %v3238
    %v4758 = vunpack.c.h.b16 %v3238
    %v4759 = vunpack.c.l.b16 %v3239
    %v4760 = vunpack.c.h.b16 %v3239
    %v4761 = vunpack.c.l.b16 %v3240
    %v4762 = vunpack.c.h.b16 %v3240
    %v4763 = vunpack.c.l.b16 %v3241
    %v4764 = vunpack.c.h.b16 %v3241
    %v4765 = vunpack.c.l.b16 %v3242
    %v4766 = vunpack.c.h.b16 %v3242
    %v4767 = vunpack.c.l.b16 %v3243
    %v4768 = vunpack.c.h.b16 %v3243
    %v4769 = vunpack.c.l.b16 %v3244
    %v4770 = vunpack.c.h.b16 %v3244
    %v4771 = vunpack.c.l.b16 %v3245
    %v4772 = vunpack.c.h.b16 %v3245
    %v4773 = vunpack.c.l.b16 %v3246
    %v4774 = vunpack.c.h.b16 %v3246
    %v4775 = vunpack.c.l.b16 %v3247
    %v4776 = vunpack.c.h.b16 %v3247
    %v4777 = vunpack.c.l.b16 %v3248
    %v4778 = vunpack.c.h.b16 %v3248
    %v4779 = vunpack.c.l.b16 %v3249
    %v4780 = vunpack.c.h.b16 %v3249
    %v4781 = vunpack.c.l.b16 %v3250
    %v4782 = vunpack.c.h.b16 %v3250
    %v4783 = vunpack.c.l.b16 %v3251
    %v4784 = vunpack.c.h.b16 %v3251
    %v4785 = vunpack.c.l.b16 %v3252
    %v4786 = vunpack.c.h.b16 %v3252
    %v4787 = vunpack.c.l.b16 %v3253
    %v4788 = vunpack.c.h.b16 %v3253
    %v4789 = vunpack.c.l.b16 %v3254
    %v4790 = vunpack.c.h.b16 %v3254
    %v4791 = vunpack.c.l.b16 %v3255
    %v4792 = vunpack.c.h.b16 %v3255
    %v4793 = vunpack.c.l.b16 %v3256
    %v4794 = vunpack.c.h.b16 %v3256
    %v4795 = vunpack.c.l.b16 %v3257
    %v4796 = vunpack.c.h.b16 %v3257
    %v4797 = vunpack.c.l.b16 %v3258
    %v4798 = vunpack.c.h.b16 %v3258
    %v4799 = vunpack.c.l.b16 %v3259
    %v4800 = vunpack.c.h.b16 %v3259
    %v4801 = vunpack.c.l.b16 %v3260
    %v4802 = vunpack.c.h.b16 %v3260
    %v4803 = vunpack.c.l.b16 %v3261
    %v4804 = vunpack.c.h.b16 %v3261
    %v4805 = vunpack.c.l.b16 %v3262
    %v4806 = vunpack.c.h.b16 %v3262
    %v4807 = vunpack.c.l.b16 %v3263
    %v4808 = vunpack.c.h.b16 %v3263
    %v4809 = vunpack.c.l.b16 %v3264
    %v4810 = vunpack.c.h.b16 %v3264
    %v4811 = vunpack.c.l.b16 %v3265
    %v4812 = vunpack.c.h.b16 %v3265
    %v4813 = vunpack.c.l.b16 %v3266
    %v4814 = vunpack.c.h.b16 %v3266
    %v4815 = vunpack.c.l.b16 %v3267
    %v4816 = vunpack.c.h.b16 %v3267
    %v4817 = vunpack.c.l.b16 %v3268
    %v4818 = vunpack.c.h.b16 %v3268
    %v4819 = vunpack.c.l.b16 %v3269
    %v4820 = vunpack.c.h.b16 %v3269
    %v4821 = vunpack.c.l.b16 %v3270
    %v4822 = vunpack.c.h.b16 %v3270
    %v4823 = vunpack.c.l.b16 %v3271
    %v4824 = vunpack.c.h.b16 %v3271
    %v4825 = vunpack.c.l.b16 %v3272
    %v4826 = vunpack.c.h.b16 %v3272
    %v4827 = vunpack.c.l.b16 %v3273
    %v4828 = vunpack.c.h.b16 %v3273
    %v4829 = vunpack.c.l.b16 %v3274
    %v4830 = vunpack.c.h.b16 %v3274
    %v4831 = vunpack.c.l.b16 %v3275
    %v4832 = vunpack.c.h.b16 %v3275
    %v4833 = vunpack.c.l.b16 %v3276
    %v4834 = vunpack.c.h.b16 %v3276
    %v4835 = vunpack.c.l.b16 %v3277
    %v4836 = vunpack.c.h.b16 %v3277
    %v4837 = vunpack.c.l.b16 %v3278
    %v4838 = vunpack.c.h.b16 %v3278
    %v4839 = vunpack.c.l.b16 %v3279
    %v4840 = vunpack.c.h.b16 %v3279
    %v4841 = vunpack.c.l.b16 %v3280
    %v4842 = vunpack.c.h.b16 %v3280
    %v4843 = vunpack.c.l.b16 %v3281
    %v4844 = vunpack.c.h.b16 %v3281
    %v4845 = vunpack.c.l.b16 %v3282
    %v4846 = vunpack.c.h.b16 %v3282
    %v4847 = vunpack.c.l.b16 %v3283
    %v4848 = vunpack.c.h.b16 %v3283
    %v4849 = vunpack.c.l.b16 %v3284
    %v4850 = vunpack.c.h.b16 %v3284
    %v4851 = vunpack.c.l.b16 %v3285
    %v4852 = vunpack.c.h.b16 %v3285
    %v4853 = vunpack.c.l.b16 %v3286
    %v4854 = vunpack.c.h.b16 %v3286
    %v4855 = vunpack.c.l.b16 %v3287
    %v4856 = vunpack.c.h.b16 %v3287
    %v4857 = vunpack.c.l.b16 %v3288
    %v4858 = vunpack.c.h.b16 %v3288
    %v4859 = vunpack.c.l.b16 %v3289
    %v4860 = vunpack.c.h.b16 %v3289
    %v4861 = vunpack.c.l.b16 %v3290
    %v4862 = vunpack.c.h.b16 %v3290
    %v4863 = vunpack.c.l.b16 %v3291
    %v4864 = vunpack.c.h.b16 %v3291
    %v4865 = vunpack.c.l.b16 %v3292
    %v4866 = vunpack.c.h.b16 %v3292
    %v4867 = vunpack.c.l.b16 %v3293
    %v4868 = vunpack.c.h.b16 %v3293
    %v4869 = vunpack.c.l.b16 %v3294
    %v4870 = vunpack.c.h.b16 %v3294
    %v4871 = vunpack.c.l.b16 %v3295
    %v4872 = vunpack.c.h.b16 %v3295
    %v4873 = vunpack.c.l.b16 %v3296
    %v4874 = vunpack.c.h.b16 %v3296
    %v4875 = vunpack.c.l.b16 %v3297
    %v4876 = vunpack.c.h.b16 %v3297
    %v4877 = vunpack.c.l.b16 %v3298
    %v4878 = vunpack.c.h.b16 %v3298
    %v4879 = vunpack.c.l.b16 %v3299
    %v4880 = vunpack.c.h.b16 %v3299
    %v4881 = vunpack.c.l.b16 %v3300
    %v4882 = vunpack.c.h.b16 %v3300
    %v4883 = vunpack.c.l.b16 %v3301
    %v4884 = vunpack.c.h.b16 %v3301
    %v4885 = vunpack.c.l.b16 %v3302
    %v4886 = vunpack.c.h.b16 %v3302
    %v4887 = vunpack.c.l.b16 %v3303
    %v4888 = vunpack.c.h.b16 %v3303
    %v4889 = vunpack.c.l.b16 %v3304
    %v4890 = vunpack.c.h.b16 %v3304
    %v4891 = vunpack.c.l.b16 %v3305
    %v4892 = vunpack.c.h.b16 %v3305
    %v4893 = vunpack.c.l.b16 %v3306
    %v4894 = vunpack.c.h.b16 %v3306
    %v4895 = vunpack.c.l.b16 %v3307
    %v4896 = vunpack.c.h.b16 %v3307
    %v4897 = vunpack.c.l.b16 %v3308
    %v4898 = vunpack.c.h.b16 %v3308
    %v4899 = vunpack.c.l.b16 %v3309
    %v4900 = vunpack.c.h.b16 %v3309
    %v4901 = vunpack.c.l.b16 %v3310
    %v4902 = vunpack.c.h.b16 %v3310
    %v4903 = vunpack.c.l.b16 %v3311
    %v4904 = vunpack.c.h.b16 %v3311
    %v4905 = vunpack.c.l.b16 %v3312
    %v4906 = vunpack.c.h.b16 %v3312
    %v4907 = vunpack.c.l.b16 %v3313
    %v4908 = vunpack.c.h.b16 %v3313
    %v4909 = vunpack.c.l.b16 %v3314
    %v4910 = vunpack.c.h.b16 %v3314
    %v4911 = vunpack.c.l.b16 %v3315
    %v4912 = vunpack.c.h.b16 %v3315
    %v4913 = vunpack.c.l.b16 %v3316
    %v4914 = vunpack.c.h.b16 %v3316
    %v4915 = vunpack.c.l.b16 %v3317
    %v4916 = vunpack.c.h.b16 %v3317
    %v4917 = vunpack.c.l.b16 %v3318
    %v4918 = vunpack.c.h.b16 %v3318
    %v4919 = vunpack.c.l.b16 %v3319
    %v4920 = vunpack.c.h.b16 %v3319
    %v4921 = vunpack.c.l.b16 %v3320
    %v4922 = vunpack.c.h.b16 %v3320
    %v4923 = vunpack.c.l.b16 %v3321
    %v4924 = vunpack.c.h.b16 %v3321
    %v4925 = vunpack.c.l.b16 %v3322
    %v4926 = vunpack.c.h.b16 %v3322
    %v4927 = vunpack.c.l.b16 %v3323
    %v4928 = vunpack.c.h.b16 %v3323
    %v4929 = vunpack.c.l.b16 %v3324
    %v4930 = vunpack.c.h.b16 %v3324
    %v4931 = vunpack.c.l.b16 %v3325
    %v4932 = vunpack.c.h.b16 %v3325
    %v4933 = vunpack.c.l.b16 %v3326
    %v4934 = vunpack.c.h.b16 %v3326
    %v4935 = vunpack.c.l.b16 %v3327
    %v4936 = vunpack.c.h.b16 %v3327
    %v4937 = vunpack.c.l.b16 %v3328
    %v4938 = vunpack.c.h.b16 %v3328
    %v4939 = vunpack.c.l.b16 %v3329
    %v4940 = vunpack.c.h.b16 %v3329
    %v4941 = vunpack.c.l.b16 %v3330
    %v4942 = vunpack.c.h.b16 %v3330
    %v4943 = vunpack.c.l.b16 %v3331
    %v4944 = vunpack.c.h.b16 %v3331
    %v4945 = vunpack.c.l.b16 %v3332
    %v4946 = vunpack.c.h.b16 %v3332
    %v4947 = vunpack.c.l.b16 %v3333
    %v4948 = vunpack.c.h.b16 %v3333
    %v4949 = vunpack.c.l.b16 %v3334
    %v4950 = vunpack.c.h.b16 %v3334
    %v4951 = vunpack.c.l.b16 %v3335
    %v4952 = vunpack.c.h.b16 %v3335
    %v4953 = vunpack.c.l.b16 %v3336
    %v4954 = vunpack.c.h.b16 %v3336
    %v4955 = vunpack.c.l.b16 %v3337
    %v4956 = vunpack.c.h.b16 %v3337
    %v4957 = vunpack.c.l.b16 %v3338
    %v4958 = vunpack.c.h.b16 %v3338
    %v4959 = vunpack.c.l.b16 %v3339
    %v4960 = vunpack.c.h.b16 %v3339
    %v4961 = vunpack.c.l.b16 %v3340
    %v4962 = vunpack.c.h.b16 %v3340
    %v4963 = vunpack.c.l.b16 %v3341
    %v4964 = vunpack.c.h.b16 %v3341
    %v4965 = vunpack.c.l.b16 %v3342
    %v4966 = vunpack.c.h.b16 %v3342
    %v4967 = vunpack.c.l.b16 %v3343
    %v4968 = vunpack.c.h.b16 %v3343
    %v4969 = vunpack.c.l.b16 %v3344
    %v4970 = vunpack.c.h.b16 %v3344
    %v4971 = vunpack.c.l.b16 %v3345
    %v4972 = vunpack.c.h.b16 %v3345
    %v4973 = vunpack.c.l.b16 %v3346
    %v4974 = vunpack.c.h.b16 %v3346
    %v4975 = vunpack.c.l.b16 %v3347
    %v4976 = vunpack.c.h.b16 %v3347
    %v4977 = vunpack.c.l.b16 %v3348
    %v4978 = vunpack.c.h.b16 %v3348
    %v4979 = vunpack.c.l.b16 %v3349
    %v4980 = vunpack.c.h.b16 %v3349
    %v4981 = vunpack.c.l.b16 %v3350
    %v4982 = vunpack.c.h.b16 %v3350
    %v4983 = vunpack.c.l.b16 %v3351
    %v4984 = vunpack.c.h.b16 %v3351
    %v4985 = vunpack.c.l.b16 %v3352
    %v4986 = vunpack.c.h.b16 %v3352
    %v4987 = vunpack.c.l.b16 %v3353
    %v4988 = vunpack.c.h.b16 %v3353
    %v4989 = vunpack.c.l.b16 %v3354
    %v4990 = vunpack.c.h.b16 %v3354
    %v4991 = vunpack.c.l.b16 %v3355
    %v4992 = vunpack.c.h.b16 %v3355
    %v4993 = vunpack.c.l.b16 %v3356
    %v4994 = vunpack.c.h.b16 %v3356
    %v4995 = vunpack.c.l.b16 %v3357
    %v4996 = vunpack.c.h.b16 %v3357
    %v4997 = vunpack.c.l.b16 %v3358
    %v4998 = vunpack.c.h.b16 %v3358
    %v4999 = vunpack.c.l.b16 %v3359
    %v5000 = vunpack.c.h.b16 %v3359
    %v5001 = vunpack.c.l.b16 %v3360
    %v5002 = vunpack.c.h.b16 %v3360
    %v5003 = vunpack.c.l.b16 %v3361
    %v5004 = vunpack.c.h.b16 %v3361
    %v5005 = vunpack.c.l.b16 %v3362
    %v5006 = vunpack.c.h.b16 %v3362
    %v5007 = vunpack.c.l.b16 %v3363
    %v5008 = vunpack.c.h.b16 %v3363
    %v5009 = vunpack.c.l.b16 %v3364
    %v5010 = vunpack.c.h.b16 %v3364
    %v5011 = vunpack.c.l.b16 %v3365
    %v5012 = vunpack.c.h.b16 %v3365
    %v5013 = vunpack.c.l.b16 %v3366
    %v5014 = vunpack.c.h.b16 %v3366
    %v5015 = vunpack.c.l.b16 %v3367
    %v5016 = vunpack.c.h.b16 %v3367
    %v5017 = vunpack.c.l.b16 %v3368
    %v5018 = vunpack.c.h.b16 %v3368
    %v5019 = vunpack.c.l.b16 %v3369
    %v5020 = vunpack.c.h.b16 %v3369
    %v5021 = vunpack.c.l.b16 %v3370
    %v5022 = vunpack.c.h.b16 %v3370
    %v5023 = vunpack.c.l.b16 %v3371
    %v5024 = vunpack.c.h.b16 %v3371
    %v5025 = vunpack.c.l.b16 %v3372
    %v5026 = vunpack.c.h.b16 %v3372
    %v5027 = vunpack.c.l.b16 %v3373
    %v5028 = vunpack.c.h.b16 %v3373
    %v5029 = vunpack.c.l.b16 %v3374
    %v5030 = vunpack.c.h.b16 %v3374
    %v5031 = vunpack.c.l.b16 %v3375
    %v5032 = vunpack.c.h.b16 %v3375
    %v5033 = vunpack.c.l.b16 %v3376
    %v5034 = vunpack.c.h.b16 %v3376
    %v5035 = vunpack.c.l.b16 %v3377
    %v5036 = vunpack.c.h.b16 %v3377
    %v5037 = vunpack.c.l.b16 %v3378
    %v5038 = vunpack.c.h.b16 %v3378
    %v5039 = vunpack.c.l.b16 %v3379
    %v5040 = vunpack.c.h.b16 %v3379
    %v5041 = vunpack.c.l.b16 %v3380
    %v5042 = vunpack.c.h.b16 %v3380
    %v5043 = vunpack.c.l.b16 %v3381
    %v5044 = vunpack.c.h.b16 %v3381
    %v5045 = vunpack.c.l.b16 %v3382
    %v5046 = vunpack.c.h.b16 %v3382
    %v5047 = vunpack.c.l.b16 %v3383
    %v5048 = vunpack.c.h.b16 %v3383
    %v5049 = vunpack.c.l.b16 %v3384
    %v5050 = vunpack.c.h.b16 %v3384
    %v5051 = vunpack.c.l.b16 %v3385
    %v5052 = vunpack.c.h.b16 %v3385
    %v5053 = vunpack.c.l.b16 %v3386
    %v5054 = vunpack.c.h.b16 %v3386
    %v5055 = vunpack.c.l.b16 %v3387
    %v5056 = vunpack.c.h.b16 %v3387
    %v5057 = vunpack.c.l.b16 %v3388
    %v5058 = vunpack.c.h.b16 %v3388
    %v5059 = vunpack.c.l.b16 %v3389
    %v5060 = vunpack.c.h.b16 %v3389
    %v5061 = vunpack.c.l.b16 %v3390
    %v5062 = vunpack.c.h.b16 %v3390
    %v5063 = vunpack.c.l.b16 %v3391
    %v5064 = vunpack.c.h.b16 %v3391
    %v5065 = vunpack.c.l.b16 %v3392
    %v5066 = vunpack.c.h.b16 %v3392
    %v5067 = vunpack.c.l.b16 %v3393
    %v5068 = vunpack.c.h.b16 %v3393
    %v5069 = vunpack.c.l.b16 %v3394
    %v5070 = vunpack.c.h.b16 %v3394
    %v5071 = vunpack.c.l.b16 %v3395
    %v5072 = vunpack.c.h.b16 %v3395
    %v5073 = vunpack.c.l.b16 %v3396
    %v5074 = vunpack.c.h.b16 %v3396
    %v5075 = vunpack.c.l.b16 %v3397
    %v5076 = vunpack.c.h.b16 %v3397
    %v5077 = vunpack.c.l.b16 %v3398
    %v5078 = vunpack.c.h.b16 %v3398
    %v5079 = vunpack.c.l.b16 %v3399
    %v5080 = vunpack.c.h.b16 %v3399
    %v5081 = vunpack.c.l.b16 %v3400
    %v5082 = vunpack.c.h.b16 %v3400
    %v5083 = vunpack.c.l.b16 %v3401
    %v5084 = vunpack.c.h.b16 %v3401
    %v5085 = vunpack.c.l.b16 %v3402
    %v5086 = vunpack.c.h.b16 %v3402
    %v5087 = vunpack.c.l.b16 %v3403
    %v5088 = vunpack.c.h.b16 %v3403
    %v5089 = vunpack.c.l.b16 %v3404
    %v5090 = vunpack.c.h.b16 %v3404
    %v5091 = vunpack.c.l.b16 %v3405
    %v5092 = vunpack.c.h.b16 %v3405
    %v5093 = vunpack.c.l.b16 %v3406
    %v5094 = vunpack.c.h.b16 %v3406
    %v5095 = vunpack.c.l.b16 %v3407
    %v5096 = vunpack.c.h.b16 %v3407
    %v5097 = vunpack.c.l.b16 %v3408
    %v5098 = vunpack.c.h.b16 %v3408
    %v5099 = vunpack.c.l.b16 %v3409
    %v5100 = vunpack.c.h.b16 %v3409
    %v5101 = vunpack.c.l.b16 %v3410
    %v5102 = vunpack.c.h.b16 %v3410
    %v5103 = vunpack.c.l.b16 %v3411
    %v5104 = vunpack.c.h.b16 %v3411
    %v5105 = vunpack.c.l.b16 %v3412
    %v5106 = vunpack.c.h.b16 %v3412
    %v5107 = vunpack.c.l.b16 %v3413
    %v5108 = vunpack.c.h.b16 %v3413
    %v5109 = vunpack.c.l.b16 %v3414
    %v5110 = vunpack.c.h.b16 %v3414
    %v5111 = vunpack.c.l.b16 %v3415
    %v5112 = vunpack.c.h.b16 %v3415
    %v5113 = vunpack.c.l.b16 %v3416
    %v5114 = vunpack.c.h.b16 %v3416
    %v5115 = vunpack.c.l.b16 %v3417
    %v5116 = vunpack.c.h.b16 %v3417
    %v5117 = vunpack.c.l.b16 %v3418
    %v5118 = vunpack.c.h.b16 %v3418
    %v5119 = vunpack.c.l.b16 %v3419
    %v5120 = vunpack.c.h.b16 %v3419
    %v5121 = vunpack.c.l.b16 %v3420
    %v5122 = vunpack.c.h.b16 %v3420
    %v5123 = vunpack.c.l.b16 %v3421
    %v5124 = vunpack.c.h.b16 %v3421
    %v5125 = vunpack.c.l.b16 %v3422
    %v5126 = vunpack.c.h.b16 %v3422
    %v5127 = vunpack.c.l.b16 %v3423
    %v5128 = vunpack.c.h.b16 %v3423
    %v5129 = vunpack.c.l.b16 %v3424
    %v5130 = vunpack.c.h.b16 %v3424
    %v5131 = vunpack.c.l.b16 %v3425
    %v5132 = vunpack.c.h.b16 %v3425
    %v5133 = vunpack.c.l.b16 %v3426
    %v5134 = vunpack.c.h.b16 %v3426
    %v5135 = vunpack.c.l.b16 %v3427
    %v5136 = vunpack.c.h.b16 %v3427
    %v5137 = vunpack.c.l.b16 %v3428
    %v5138 = vunpack.c.h.b16 %v3428
    %v5139 = vunpack.c.l.b16 %v3429
    %v5140 = vunpack.c.h.b16 %v3429
    %v5141 = vunpack.c.l.b16 %v3430
    %v5142 = vunpack.c.h.b16 %v3430
    %v5143 = vunpack.c.l.b16 %v3431
    %v5144 = vunpack.c.h.b16 %v3431
    %v5145 = vunpack.c.l.b16 %v3432
    %v5146 = vunpack.c.h.b16 %v3432
    %v5147 = vunpack.c.l.b16 %v3433
    %v5148 = vunpack.c.h.b16 %v3433
    %v5149 = vunpack.c.l.b16 %v3434
    %v5150 = vunpack.c.h.b16 %v3434
    %v5151 = vunpack.c.l.b16 %v3435
    %v5152 = vunpack.c.h.b16 %v3435
    %v5153 = vunpack.c.l.b16 %v3436
    %v5154 = vunpack.c.h.b16 %v3436
    %v5155 = vunpack.c.l.b16 %v3437
    %v5156 = vunpack.c.h.b16 %v3437
    %v5157 = vunpack.c.l.b16 %v3438
    %v5158 = vunpack.c.h.b16 %v3438
    %v5159 = vunpack.c.l.b16 %v3439
    %v5160 = vunpack.c.h.b16 %v3439
    %v5161 = vunpack.c.l.b16 %v3440
    %v5162 = vunpack.c.h.b16 %v3440
    %v5163 = vunpack.c.l.b16 %v3441
    %v5164 = vunpack.c.h.b16 %v3441
    %v5165 = vunpack.c.l.b16 %v3442
    %v5166 = vunpack.c.h.b16 %v3442
    %v5167 = vunpack.c.l.b16 %v3443
    %v5168 = vunpack.c.h.b16 %v3443
    %v5169 = vunpack.c.l.b16 %v3444
    %v5170 = vunpack.c.h.b16 %v3444
    %v5171 = vunpack.c.l.b16 %v3445
    %v5172 = vunpack.c.h.b16 %v3445
    %v5173 = vunpack.c.l.b16 %v3446
    %v5174 = vunpack.c.h.b16 %v3446
    %v5175 = vunpack.c.l.b16 %v3447
    %v5176 = vunpack.c.h.b16 %v3447
    %v5177 = vunpack.c.l.b16 %v3448
    %v5178 = vunpack.c.h.b16 %v3448
    %v5179 = vunpack.c.l.b16 %v3449
    %v5180 = vunpack.c.h.b16 %v3449
    %v5181 = vunpack.c.l.b16 %v3450
    %v5182 = vunpack.c.h.b16 %v3450
    %v5183 = vunpack.c.l.b16 %v3451
    %v5184 = vunpack.c.h.b16 %v3451
    %v5185 = vunpack.c.l.b16 %v3452
    %v5186 = vunpack.c.h.b16 %v3452
    %v5187 = vunpack.c.l.b16 %v3453
    %v5188 = vunpack.c.h.b16 %v3453
    %v5189 = vunpack.c.l.b16 %v3454
    %v5190 = vunpack.c.h.b16 %v3454
    %v5191 = vunpack.c.l.b16 %v3455
    %v5192 = vunpack.c.h.b16 %v3455
    %v5193 = vunpack.c.l.b16 %v3456
    %v5194 = vunpack.c.h.b16 %v3456
    %v5195 = vunpack.c.l.b16 %v3457
    %v5196 = vunpack.c.h.b16 %v3457
    %v5197 = vunpack.c.l.b16 %v3458
    %v5198 = vunpack.c.h.b16 %v3458
    %v5199 = vunpack.c.l.b16 %v3459
    %v5200 = vunpack.c.h.b16 %v3459
    %v5201 = vunpack.c.l.b16 %v3460
    %v5202 = vunpack.c.h.b16 %v3460
    %v5203 = vunpack.c.l.b16 %v3461
    %v5204 = vunpack.c.h.b16 %v3461
    %v5205 = vunpack.c.l.b16 %v3462
    %v5206 = vunpack.c.h.b16 %v3462
    %v5207 = vunpack.c.l.b16 %v3463
    %v5208 = vunpack.c.h.b16 %v3463
    %v5209 = vunpack.c.l.b16 %v3464
    %v5210 = vunpack.c.h.b16 %v3464
    %v5211 = vunpack.c.l.b16 %v3465
    %v5212 = vunpack.c.h.b16 %v3465
    %v5213 = vunpack.c.l.b16 %v3466
    %v5214 = vunpack.c.h.b16 %v3466
    %v5215 = vunpack.c.l.b16 %v3467
    %v5216 = vunpack.c.h.b16 %v3467
    %v5217 = vunpack.c.l.b16 %v3468
    %v5218 = vunpack.c.h.b16 %v3468
    %v5219 = vunpack.c.l.b16 %v3469
    %v5220 = vunpack.c.h.b16 %v3469
    %v5221 = vunpack.c.l.b16 %v3470
    %v5222 = vunpack.c.h.b16 %v3470
    %v5223 = vunpack.c.l.b16 %v3471
    %v5224 = vunpack.c.h.b16 %v3471
    %v5225 = vunpack.c.l.b16 %v3472
    %v5226 = vunpack.c.h.b16 %v3472
    %v5227 = vunpack.c.l.b16 %v3473
    %v5228 = vunpack.c.h.b16 %v3473
    %v5229 = vunpack.c.l.b16 %v3474
    %v5230 = vunpack.c.h.b16 %v3474
    %v5231 = vunpack.c.l.b16 %v3475
    %v5232 = vunpack.c.h.b16 %v3475
    %v5233 = vunpack.c.l.b16 %v3476
    %v5234 = vunpack.c.h.b16 %v3476
    %v5235 = vunpack.c.l.b16 %v3477
    %v5236 = vunpack.c.h.b16 %v3477
    %v5237 = vunpack.c.l.b16 %v3478
    %v5238 = vunpack.c.h.b16 %v3478
    %v5239 = vunpack.c.l.b16 %v3479
    %v5240 = vunpack.c.h.b16 %v3479
    %v5241 = vunpack.c.l.b16 %v3480
    %v5242 = vunpack.c.h.b16 %v3480
    %v5243 = vunpack.c.l.b16 %v3481
    %v5244 = vunpack.c.h.b16 %v3481
    %v5245 = vunpack.c.l.b16 %v3482
    %v5246 = vunpack.c.h.b16 %v3482
    %v5247 = vunpack.c.l.b16 %v3483
    %v5248 = vunpack.c.h.b16 %v3483
    %v5249 = vunpack.c.l.b16 %v3484
    %v5250 = vunpack.c.h.b16 %v3484
    %v5251 = vunpack.c.l.b16 %v3485
    %v5252 = vunpack.c.h.b16 %v3485
    %v5253 = vunpack.c.l.b16 %v3486
    %v5254 = vunpack.c.h.b16 %v3486
    %v5255 = vunpack.c.l.b16 %v3487
    %v5256 = vunpack.c.h.b16 %v3487
    %v5257 = vunpack.c.l.b16 %v3488
    %v5258 = vunpack.c.h.b16 %v3488
    %v5259 = vunpack.c.l.b16 %v3489
    %v5260 = vunpack.c.h.b16 %v3489
    %v5261 = vunpack.c.l.b16 %v3490
    %v5262 = vunpack.c.h.b16 %v3490
    %v5263 = vunpack.c.l.b16 %v3491
    %v5264 = vunpack.c.h.b16 %v3491
    %v5265 = vunpack.c.l.b16 %v3492
    %v5266 = vunpack.c.h.b16 %v3492
    %v5267 = vunpack.c.l.b16 %v3493
    %v5268 = vunpack.c.h.b16 %v3493
    %v5269 = vunpack.c.l.b16 %v3494
    %v5270 = vunpack.c.h.b16 %v3494
    %v5271 = vunpack.c.l.b16 %v3495
    %v5272 = vunpack.c.h.b16 %v3495
    %v5273 = vunpack.c.l.b16 %v3496
    %v5274 = vunpack.c.h.b16 %v3496
    %v5275 = vunpack.c.l.b16 %v3497
    %v5276 = vunpack.c.h.b16 %v3497
    %v5277 = vunpack.c.l.b16 %v3498
    %v5278 = vunpack.c.h.b16 %v3498
    %v5279 = vunpack.c.l.b16 %v3499
    %v5280 = vunpack.c.h.b16 %v3499
    %v5281 = vunpack.c.l.b16 %v3500
    %v5282 = vunpack.c.h.b16 %v3500
    %v5283 = vunpack.c.l.b16 %v3501
    %v5284 = vunpack.c.h.b16 %v3501
    %v5285 = vunpack.c.l.b16 %v3502
    %v5286 = vunpack.c.h.b16 %v3502
    %v5287 = vunpack.c.l.b16 %v3503
    %v5288 = vunpack.c.h.b16 %v3503
    %v5289 = vunpack.c.l.b16 %v3504
    %v5290 = vunpack.c.h.b16 %v3504
    %v5291 = vunpack.c.l.b16 %v3505
    %v5292 = vunpack.c.h.b16 %v3505
    %v5293 = vunpack.c.l.b16 %v3506
    %v5294 = vunpack.c.h.b16 %v3506
    %v5295 = vunpack.c.l.b16 %v3507
    %v5296 = vunpack.c.h.b16 %v3507
    %v5297 = vunpack.c.l.b16 %v3508
    %v5298 = vunpack.c.h.b16 %v3508
    %v5299 = vunpack.c.l.b16 %v3509
    %v5300 = vunpack.c.h.b16 %v3509
    %v5301 = vunpack.c.l.b16 %v3510
    %v5302 = vunpack.c.h.b16 %v3510
    %v5303 = vpack.c.b16 %v4163, %v4151
    %v5304 = vpack.c.b16 %v4164, %v4152
    %v5305 = vpack.c.b16 %v4165, %v4153
    %v5306 = vpack.c.b16 %v4166, %v4154
    %v5307 = vpack.c.b16 %v4167, %v4155
    %v5308 = vpack.c.b16 %v4168, %v4156
    %v5309 = vpack.c.b16 %v4169, %v4157
    %v5310 = vpack.c.b16 %v4170, %v4158
    %v5311 = vpack.c.b16 %v4171, %v4159
    %v5312 = vpack.c.b16 %v4172, %v4160
    %v5313 = vpack.c.b16 %v4173, %v4161
    %v5314 = vpack.c.b16 %v4174, %v4162
    %v5315 = vpack.c.b16 %v4187, %v4175
    %v5316 = vpack.c.b16 %v4188, %v4176
    %v5317 = vpack.c.b16 %v4189, %v4177
    %v5318 = vpack.c.b16 %v4190, %v4178
    %v5319 = vpack.c.b16 %v4191, %v4179
    %v5320 = vpack.c.b16 %v4192, %v4180
    %v5321 = vpack.c.b16 %v4193, %v4181
    %v5322 = vpack.c.b16 %v4194, %v4182
    %v5323 = vpack.c.b16 %v4195, %v4183
    %v5324 = vpack.c.b16 %v4196, %v4184
    %v5325 = vpack.c.b16 %v4197, %v4185
    %v5326 = vpack.c.b16 %v4198, %v4186
    %v5327 = vpack.c.b16 %v4211, %v4199
    %v5328 = vpack.c.b16 %v4212, %v4200
    %v5329 = vpack.c.b16 %v4213, %v4201
    %v5330 = vpack.c.b16 %v4214, %v4202
    %v5331 = vpack.c.b16 %v4215, %v4203
    %v5332 = vpack.c.b16 %v4216, %v4204
    %v5333 = vpack.c.b16 %v4217, %v4205
    %v5334 = vpack.c.b16 %v4218, %v4206
    %v5335 = vpack.c.b16 %v4219, %v4207
    %v5336 = vpack.c.b16 %v4220, %v4208
    %v5337 = vpack.c.b16 %v4221, %v4209
    %v5338 = vpack.c.b16 %v4222, %v4210
    %v5339 = vpack.c.b16 %v4235, %v4223
    %v5340 = vpack.c.b16 %v4236, %v4224
    %v5341 = vpack.c.b16 %v4237, %v4225
    %v5342 = vpack.c.b16 %v4238, %v4226
    %v5343 = vpack.c.b16 %v4239, %v4227
    %v5344 = vpack.c.b16 %v4240, %v4228
    %v5345 = vpack.c.b16 %v4241, %v4229
    %v5346 = vpack.c.b16 %v4242, %v4230
    %v5347 = vpack.c.b16 %v4243, %v4231
    %v5348 = vpack.c.b16 %v4244, %v4232
    %v5349 = vpack.c.b16 %v4245, %v4233
    %v5350 = vpack.c.b16 %v4246, %v4234
    %v5351 = vpack.c.b16 %v4259, %v4247
    %v5352 = vpack.c.b16 %v4260, %v4248
    %v5353 = vpack.c.b16 %v4261, %v4249
    %v5354 = vpack.c.b16 %v4262, %v4250
    %v5355 = vpack.c.b16 %v4263, %v4251
    %v5356 = vpack.c.b16 %v4264, %v4252
    %v5357 = vpack.c.b16 %v4265, %v4253
    %v5358 = vpack.c.b16 %v4266, %v4254
    %v5359 = vpack.c.b16 %v4267, %v4255
    %v5360 = vpack.c.b16 %v4268, %v4256
    %v5361 = vpack.c.b16 %v4269, %v4257
    %v5362 = vpack.c.b16 %v4270, %v4258
    %v5363 = vpack.c.b16 %v4283, %v4271
    %v5364 = vpack.c.b16 %v4284, %v4272
    %v5365 = vpack.c.b16 %v4285, %v4273
    %v5366 = vpack.c.b16 %v4286, %v4274
    %v5367 = vpack.c.b16 %v4287, %v4275
    %v5368 = vpack.c.b16 %v4288, %v4276
    %v5369 = vpack.c.b16 %v4289, %v4277
    %v5370 = vpack.c.b16 %v4290, %v4278
    %v5371 = vpack.c.b16 %v4291, %v4279
    %v5372 = vpack.c.b16 %v4292, %v4280
    %v5373 = vpack.c.b16 %v4293, %v4281
    %v5374 = vpack.c.b16 %v4294, %v4282
    %v5375 = vpack.c.b16 %v4307, %v4295
    %v5376 = vpack.c.b16 %v4308, %v4296
    %v5377 = vpack.c.b16 %v4309, %v4297
    %v5378 = vpack.c.b16 %v4310, %v4298
    %v5379 = vpack.c.b16 %v4311, %v4299
    %v5380 = vpack.c.b16 %v4312, %v4300
    %v5381 = vpack.c.b16 %v4313, %v4301
    %v5382 = vpack.c.b16 %v4314, %v4302
    %v5383 = vpack.c.b16 %v4315, %v4303
    %v5384 = vpack.c.b16 %v4316, %v4304
    %v5385 = vpack.c.b16 %v4317, %v4305
    %v5386 = vpack.c.b16 %v4318, %v4306
    %v5387 = vpack.c.b16 %v4331, %v4319
    %v5388 = vpack.c.b16 %v4332, %v4320
    %v5389 = vpack.c.b16 %v4333, %v4321
    %v5390 = vpack.c.b16 %v4334, %v4322
    %v5391 = vpack.c.b16 %v4335, %v4323
    %v5392 = vpack.c.b16 %v4336, %v4324
    %v5393 = vpack.c.b16 %v4337, %v4325
    %v5394 = vpack.c.b16 %v4338, %v4326
    %v5395 = vpack.c.b16 %v4339, %v4327
    %v5396 = vpack.c.b16 %v4340, %v4328
    %v5397 = vpack.c.b16 %v4341, %v4329
    %v5398 = vpack.c.b16 %v4342, %v4330
    %v5399 = vpack.c.b16 %v4355, %v4343
    %v5400 = vpack.c.b16 %v4356, %v4344
    %v5401 = vpack.c.b16 %v4357, %v4345
    %v5402 = vpack.c.b16 %v4358, %v4346
    %v5403 = vpack.c.b16 %v4359, %v4347
    %v5404 = vpack.c.b16 %v4360, %v4348
    %v5405 = vpack.c.b16 %v4361, %v4349
    %v5406 = vpack.c.b16 %v4362, %v4350
    %v5407 = vpack.c.b16 %v4363, %v4351
    %v5408 = vpack.c.b16 %v4364, %v4352
    %v5409 = vpack.c.b16 %v4365, %v4353
    %v5410 = vpack.c.b16 %v4366, %v4354
    %v5411 = vpack.c.b16 %v4379, %v4367
    %v5412 = vpack.c.b16 %v4380, %v4368
    %v5413 = vpack.c.b16 %v4381, %v4369
    %v5414 = vpack.c.b16 %v4382, %v4370
    %v5415 = vpack.c.b16 %v4383, %v4371
    %v5416 = vpack.c.b16 %v4384, %v4372
    %v5417 = vpack.c.b16 %v4385, %v4373
    %v5418 = vpack.c.b16 %v4386, %v4374
    %v5419 = vpack.c.b16 %v4387, %v4375
    %v5420 = vpack.c.b16 %v4388, %v4376
    %v5421 = vpack.c.b16 %v4389, %v4377
    %v5422 = vpack.c.b16 %v4390, %v4378
    %v5423 = vpack.c.b16 %v4403, %v4391
    %v5424 = vpack.c.b16 %v4404, %v4392
    %v5425 = vpack.c.b16 %v4405, %v4393
    %v5426 = vpack.c.b16 %v4406, %v4394
    %v5427 = vpack.c.b16 %v4407, %v4395
    %v5428 = vpack.c.b16 %v4408, %v4396
    %v5429 = vpack.c.b16 %v4409, %v4397
    %v5430 = vpack.c.b16 %v4410, %v4398
    %v5431 = vpack.c.b16 %v4411, %v4399
    %v5432 = vpack.c.b16 %v4412, %v4400
    %v5433 = vpack.c.b16 %v4413, %v4401
    %v5434 = vpack.c.b16 %v4414, %v4402
    %v5435 = vpack.c.b16 %v4427, %v4415
    %v5436 = vpack.c.b16 %v4428, %v4416
    %v5437 = vpack.c.b16 %v4429, %v4417
    %v5438 = vpack.c.b16 %v4430, %v4418
    %v5439 = vpack.c.b16 %v4431, %v4419
    %v5440 = vpack.c.b16 %v4432, %v4420
    %v5441 = vpack.c.b16 %v4433, %v4421
    %v5442 = vpack.c.b16 %v4434, %v4422
    %v5443 = vpack.c.b16 %v4435, %v4423
    %v5444 = vpack.c.b16 %v4436, %v4424
    %v5445 = vpack.c.b16 %v4437, %v4425
    %v5446 = vpack.c.b16 %v4438, %v4426
    %v5447 = vpack.c.b16 %v4451, %v4439
    %v5448 = vpack.c.b16 %v4452, %v4440
    %v5449 = vpack.c.b16 %v4453, %v4441
    %v5450 = vpack.c.b16 %v4454, %v4442
    %v5451 = vpack.c.b16 %v4455, %v4443
    %v5452 = vpack.c.b16 %v4456, %v4444
    %v5453 = vpack.c.b16 %v4457, %v4445
    %v5454 = vpack.c.b16 %v4458, %v4446
    %v5455 = vpack.c.b16 %v4459, %v4447
    %v5456 = vpack.c.b16 %v4460, %v4448
    %v5457 = vpack.c.b16 %v4461, %v4449
    %v5458 = vpack.c.b16 %v4462, %v4450
    %v5459 = vpack.c.b16 %v4475, %v4463
    %v5460 = vpack.c.b16 %v4476, %v4464
    %v5461 = vpack.c.b16 %v4477, %v4465
    %v5462 = vpack.c.b16 %v4478, %v4466
    %v5463 = vpack.c.b16 %v4479, %v4467
    %v5464 = vpack.c.b16 %v4480, %v4468
    %v5465 = vpack.c.b16 %v4481, %v4469
    %v5466 = vpack.c.b16 %v4482, %v4470
    %v5467 = vpack.c.b16 %v4483, %v4471
    %v5468 = vpack.c.b16 %v4484, %v4472
    %v5469 = vpack.c.b16 %v4485, %v4473
    %v5470 = vpack.c.b16 %v4486, %v4474
    %v5471 = vpack.c.b16 %v4499, %v4487
    %v5472 = vpack.c.b16 %v4500, %v4488
    %v5473 = vpack.c.b16 %v4501, %v4489
    %v5474 = vpack.c.b16 %v4502, %v4490
    %v5475 = vpack.c.b16 %v4503, %v4491
    %v5476 = vpack.c.b16 %v4504, %v4492
    %v5477 = vpack.c.b16 %v4505, %v4493
    %v5478 = vpack.c.b16 %v4506, %v4494
    %v5479 = vpack.c.b16 %v4507, %v4495
    %v5480 = vpack.c.b16 %v4508, %v4496
    %v5481 = vpack.c.b16 %v4509, %v4497
    %v5482 = vpack.c.b16 %v4510, %v4498
    %v5483 = vpack.c.b16 %v4523, %v4511
    %v5484 = vpack.c.b16 %v4524, %v4512
    %v5485 = vpack.c.b16 %v4525, %v4513
    %v5486 = vpack.c.b16 %v4526, %v4514
    %v5487 = vpack.c.b16 %v4527, %v4515
    %v5488 = vpack.c.b16 %v4528, %v4516
    %v5489 = vpack.c.b16 %v4529, %v4517
    %v5490 = vpack.c.b16 %v4530, %v4518
    %v5491 = vpack.c.b16 %v4531, %v4519
    %v5492 = vpack.c.b16 %v4532, %v4520
    %v5493 = vpack.c.b16 %v4533, %v4521
    %v5494 = vpack.c.b16 %v4534, %v4522
    %v5495 = vpack.c.b16 %v4547, %v4535
    %v5496 = vpack.c.b16 %v4548, %v4536
    %v5497 = vpack.c.b16 %v4549, %v4537
    %v5498 = vpack.c.b16 %v4550, %v4538
    %v5499 = vpack.c.b16 %v4551, %v4539
    %v5500 = vpack.c.b16 %v4552, %v4540
    %v5501 = vpack.c.b16 %v4553, %v4541
    %v5502 = vpack.c.b16 %v4554, %v4542
    %v5503 = vpack.c.b16 %v4555, %v4543
    %v5504 = vpack.c.b16 %v4556, %v4544
    %v5505 = vpack.c.b16 %v4557, %v4545
    %v5506 = vpack.c.b16 %v4558, %v4546
    %v5507 = vpack.c.b16 %v4571, %v4559
    %v5508 = vpack.c.b16 %v4572, %v4560
    %v5509 = vpack.c.b16 %v4573, %v4561
    %v5510 = vpack.c.b16 %v4574, %v4562
    %v5511 = vpack.c.b16 %v4575, %v4563
    %v5512 = vpack.c.b16 %v4576, %v4564
    %v5513 = vpack.c.b16 %v4577, %v4565
    %v5514 = vpack.c.b16 %v4578, %v4566
    %v5515 = vpack.c.b16 %v4579, %v4567
    %v5516 = vpack.c.b16 %v4580, %v4568
    %v5517 = vpack.c.b16 %v4581, %v4569
    %v5518 = vpack.c.b16 %v4582, %v4570
    %v5519 = vpack.c.b16 %v4595, %v4583
    %v5520 = vpack.c.b16 %v4596, %v4584
    %v5521 = vpack.c.b16 %v4597, %v4585
    %v5522 = vpack.c.b16 %v4598, %v4586
    %v5523 = vpack.c.b16 %v4599, %v4587
    %v5524 = vpack.c.b16 %v4600, %v4588
    %v5525 = vpack.c.b16 %v4601, %v4589
    %v5526 = vpack.c.b16 %v4602, %v4590
    %v5527 = vpack.c.b16 %v4603, %v4591
    %v5528 = vpack.c.b16 %v4604, %v4592
    %v5529 = vpack.c.b16 %v4605, %v4593
    %v5530 = vpack.c.b16 %v4606, %v4594
    %v5531 = vpack.c.b16 %v4619, %v4607
    %v5532 = vpack.c.b16 %v4620, %v4608
    %v5533 = vpack.c.b16 %v4621, %v4609
    %v5534 = vpack.c.b16 %v4622, %v4610
    %v5535 = vpack.c.b16 %v4623, %v4611
    %v5536 = vpack.c.b16 %v4624, %v4612
    %v5537 = vpack.c.b16 %v4625, %v4613
    %v5538 = vpack.c.b16 %v4626, %v4614
    %v5539 = vpack.c.b16 %v4627, %v4615
    %v5540 = vpack.c.b16 %v4628, %v4616
    %v5541 = vpack.c.b16 %v4629, %v4617
    %v5542 = vpack.c.b16 %v4630, %v4618
    %v5543 = vpack.c.b16 %v4643, %v4631
    %v5544 = vpack.c.b16 %v4644, %v4632
    %v5545 = vpack.c.b16 %v4645, %v4633
    %v5546 = vpack.c.b16 %v4646, %v4634
    %v5547 = vpack.c.b16 %v4647, %v4635
    %v5548 = vpack.c.b16 %v4648, %v4636
    %v5549 = vpack.c.b16 %v4649, %v4637
    %v5550 = vpack.c.b16 %v4650, %v4638
    %v5551 = vpack.c.b16 %v4651, %v4639
    %v5552 = vpack.c.b16 %v4652, %v4640
    %v5553 = vpack.c.b16 %v4653, %v4641
    %v5554 = vpack.c.b16 %v4654, %v4642
    %v5555 = vpack.c.b16 %v4667, %v4655
    %v5556 = vpack.c.b16 %v4668, %v4656
    %v5557 = vpack.c.b16 %v4669, %v4657
    %v5558 = vpack.c.b16 %v4670, %v4658
    %v5559 = vpack.c.b16 %v4671, %v4659
    %v5560 = vpack.c.b16 %v4672, %v4660
    %v5561 = vpack.c.b16 %v4673, %v4661
    %v5562 = vpack.c.b16 %v4674, %v4662
    %v5563 = vpack.c.b16 %v4675, %v4663
    %v5564 = vpack.c.b16 %v4676, %v4664
    %v5565 = vpack.c.b16 %v4677, %v4665
    %v5566 = vpack.c.b16 %v4678, %v4666
    %v5567 = vpack.c.b16 %v4691, %v4679
    %v5568 = vpack.c.b16 %v4692, %v4680
    %v5569 = vpack.c.b16 %v4693, %v4681
    %v5570 = vpack.c.b16 %v4694, %v4682
    %v5571 = vpack.c.b16 %v4695, %v4683
    %v5572 = vpack.c.b16 %v4696, %v4684
    %v5573 = vpack.c.b16 %v4697, %v4685
    %v5574 = vpack.c.b16 %v4698, %v4686
    %v5575 = vpack.c.b16 %v4699, %v4687
    %v5576 = vpack.c.b16 %v4700, %v4688
    %v5577 = vpack.c.b16 %v4701, %v4689
    %v5578 = vpack.c.b16 %v4702, %v4690
    %v5579 = vpack.c.b16 %v4715, %v4703
    %v5580 = vpack.c.b16 %v4716, %v4704
    %v5581 = vpack.c.b16 %v4717, %v4705
    %v5582 = vpack.c.b16 %v4718, %v4706
    %v5583 = vpack.c.b16 %v4719, %v4707
    %v5584 = vpack.c.b16 %v4720, %v4708
    %v5585 = vpack.c.b16 %v4721, %v4709
    %v5586 = vpack.c.b16 %v4722, %v4710
    %v5587 = vpack.c.b16 %v4723, %v4711
    %v5588 = vpack.c.b16 %v4724, %v4712
    %v5589 = vpack.c.b16 %v4725, %v4713
    %v5590 = vpack.c.b16 %v4726, %v4714
    %v5591 = vpack.c.b16 %v4739, %v4727
    %v5592 = vpack.c.b16 %v4740, %v4728
    %v5593 = vpack.c.b16 %v4741, %v4729
    %v5594 = vpack.c.b16 %v4742, %v4730
    %v5595 = vpack.c.b16 %v4743, %v4731
    %v5596 = vpack.c.b16 %v4744, %v4732
    %v5597 = vpack.c.b16 %v4745, %v4733
    %v5598 = vpack.c.b16 %v4746, %v4734
    %v5599 = vpack.c.b16 %v4747, %v4735
    %v5600 = vpack.c.b16 %v4748, %v4736
    %v5601 = vpack.c.b16 %v4749, %v4737
    %v5602 = vpack.c.b16 %v4750, %v4738
    %v5603 = vpack.c.b16 %v4763, %v4751
    %v5604 = vpack.c.b16 %v4764, %v4752
    %v5605 = vpack.c.b16 %v4765, %v4753
    %v5606 = vpack.c.b16 %v4766, %v4754
    %v5607 = vpack.c.b16 %v4767, %v4755
    %v5608 = vpack.c.b16 %v4768, %v4756
    %v5609 = vpack.c.b16 %v4769, %v4757
    %v5610 = vpack.c.b16 %v4770, %v4758
    %v5611 = vpack.c.b16 %v4771, %v4759
    %v5612 = vpack.c.b16 %v4772, %v4760
    %v5613 = vpack.c.b16 %v4773, %v4761
    %v5614 = vpack.c.b16 %v4774, %v4762
    %v5615 = vpack.c.b16 %v4787, %v4775
    %v5616 = vpack.c.b16 %v4788, %v4776
    %v5617 = vpack.c.b16 %v4789, %v4777
    %v5618 = vpack.c.b16 %v4790, %v4778
    %v5619 = vpack.c.b16 %v4791, %v4779
    %v5620 = vpack.c.b16 %v4792, %v4780
    %v5621 = vpack.c.b16 %v4793, %v4781
    %v5622 = vpack.c.b16 %v4794, %v4782
    %v5623 = vpack.c.b16 %v4795, %v4783
    %v5624 = vpack.c.b16 %v4796, %v4784
    %v5625 = vpack.c.b16 %v4797, %v4785
    %v5626 = vpack.c.b16 %v4798, %v4786
    %v5627 = vpack.c.b16 %v4811, %v4799
    %v5628 = vpack.c.b16 %v4812, %v4800
    %v5629 = vpack.c.b16 %v4813, %v4801
    %v5630 = vpack.c.b16 %v4814, %v4802
    %v5631 = vpack.c.b16 %v4815, %v4803
    %v5632 = vpack.c.b16 %v4816, %v4804
    %v5633 = vpack.c.b16 %v4817, %v4805
    %v5634 = vpack.c.b16 %v4818, %v4806
    %v5635 = vpack.c.b16 %v4819, %v4807
    %v5636 = vpack.c.b16 %v4820, %v4808
    %v5637 = vpack.c.b16 %v4821, %v4809
    %v5638 = vpack.c.b16 %v4822, %v4810
    %v5639 = vpack.c.b16 %v4835, %v4823
    %v5640 = vpack.c.b16 %v4836, %v4824
    %v5641 = vpack.c.b16 %v4837, %v4825
    %v5642 = vpack.c.b16 %v4838, %v4826
    %v5643 = vpack.c.b16 %v4839, %v4827
    %v5644 = vpack.c.b16 %v4840, %v4828
    %v5645 = vpack.c.b16 %v4841, %v4829
    %v5646 = vpack.c.b16 %v4842, %v4830
    %v5647 = vpack.c.b16 %v4843, %v4831
    %v5648 = vpack.c.b16 %v4844, %v4832
    %v5649 = vpack.c.b16 %v4845, %v4833
    %v5650 = vpack.c.b16 %v4846, %v4834
    %v5651 = vpack.c.b16 %v4859, %v4847
    %v5652 = vpack.c.b16 %v4860, %v4848
    %v5653 = vpack.c.b16 %v4861, %v4849
    %v5654 = vpack.c.b16 %v4862, %v4850
    %v5655 = vpack.c.b16 %v4863, %v4851
    %v5656 = vpack.c.b16 %v4864, %v4852
    %v5657 = vpack.c.b16 %v4865, %v4853
    %v5658 = vpack.c.b16 %v4866, %v4854
    %v5659 = vpack.c.b16 %v4867, %v4855
    %v5660 = vpack.c.b16 %v4868, %v4856
    %v5661 = vpack.c.b16 %v4869, %v4857
    %v5662 = vpack.c.b16 %v4870, %v4858
    %v5663 = vpack.c.b16 %v4883, %v4871
    %v5664 = vpack.c.b16 %v4884, %v4872
    %v5665 = vpack.c.b16 %v4885, %v4873
    %v5666 = vpack.c.b16 %v4886, %v4874
    %v5667 = vpack.c.b16 %v4887, %v4875
    %v5668 = vpack.c.b16 %v4888, %v4876
    %v5669 = vpack.c.b16 %v4889, %v4877
    %v5670 = vpack.c.b16 %v4890, %v4878
    %v5671 = vpack.c.b16 %v4891, %v4879
    %v5672 = vpack.c.b16 %v4892, %v4880
    %v5673 = vpack.c.b16 %v4893, %v4881
    %v5674 = vpack.c.b16 %v4894, %v4882
    %v5675 = vpack.c.b16 %v4907, %v4895
    %v5676 = vpack.c.b16 %v4908, %v4896
    %v5677 = vpack.c.b16 %v4909, %v4897
    %v5678 = vpack.c.b16 %v4910, %v4898
    %v5679 = vpack.c.b16 %v4911, %v4899
    %v5680 = vpack.c.b16 %v4912, %v4900
    %v5681 = vpack.c.b16 %v4913, %v4901
    %v5682 = vpack.c.b16 %v4914, %v4902
    %v5683 = vpack.c.b16 %v4915, %v4903
    %v5684 = vpack.c.b16 %v4916, %v4904
    %v5685 = vpack.c.b16 %v4917, %v4905
    %v5686 = vpack.c.b16 %v4918, %v4906
    %v5687 = vpack.c.b16 %v4931, %v4919
    %v5688 = vpack.c.b16 %v4932, %v4920
    %v5689 = vpack.c.b16 %v4933, %v4921
    %v5690 = vpack.c.b16 %v4934, %v4922
    %v5691 = vpack.c.b16 %v4935, %v4923
    %v5692 = vpack.c.b16 %v4936, %v4924
    %v5693 = vpack.c.b16 %v4937, %v4925
    %v5694 = vpack.c.b16 %v4938, %v4926
    %v5695 = vpack.c.b16 %v4939, %v4927
    %v5696 = vpack.c.b16 %v4940, %v4928
    %v5697 = vpack.c.b16 %v4941, %v4929
    %v5698 = vpack.c.b16 %v4942, %v4930
    %v5699 = vpack.c.b16 %v4955, %v4943
    %v5700 = vpack.c.b16 %v4956, %v4944
    %v5701 = vpack.c.b16 %v4957, %v4945
    %v5702 = vpack.c.b16 %v4958, %v4946
    %v5703 = vpack.c.b16 %v4959, %v4947
    %v5704 = vpack.c.b16 %v4960, %v4948
    %v5705 = vpack.c.b16 %v4961, %v4949
    %v5706 = vpack.c.b16 %v4962, %v4950
    %v5707 = vpack.c.b16 %v4963, %v4951
    %v5708 = vpack.c.b16 %v4964, %v4952
    %v5709 = vpack.c.b16 %v4965, %v4953
    %v5710 = vpack.c.b16 %v4966, %v4954
    %v5711 = vpack.c.b16 %v4979, %v4967
    %v5712 = vpack.c.b16 %v4980, %v4968
    %v5713 = vpack.c.b16 %v4981, %v4969
    %v5714 = vpack.c.b16 %v4982, %v4970
    %v5715 = vpack.c.b16 %v4983, %v4971
    %v5716 = vpack.c.b16 %v4984, %v4972
    %v5717 = vpack.c.b16 %v4985, %v4973
    %v5718 = vpack.c.b16 %v4986, %v4974
    %v5719 = vpack.c.b16 %v4987, %v4975
    %v5720 = vpack.c.b16 %v4988, %v4976
    %v5721 = vpack.c.b16 %v4989, %v4977
    %v5722 = vpack.c.b16 %v4990, %v4978
    %v5723 = vpack.c.b16 %v5003, %v4991
    %v5724 = vpack.c.b16 %v5004, %v4992
    %v5725 = vpack.c.b16 %v5005, %v4993
    %v5726 = vpack.c.b16 %v5006, %v4994
    %v5727 = vpack.c.b16 %v5007, %v4995
    %v5728 = vpack.c.b16 %v5008, %v4996
    %v5729 = vpack.c.b16 %v5009, %v4997
    %v5730 = vpack.c.b16 %v5010, %v4998
    %v5731 = vpack.c.b16 %v5011, %v4999
    %v5732 = vpack.c.b16 %v5012, %v5000
    %v5733 = vpack.c.b16 %v5013, %v5001
    %v5734 = vpack.c.b16 %v5014, %v5002
    %v5735 = vpack.c.b16 %v5027, %v5015
    %v5736 = vpack.c.b16 %v5028, %v5016
    %v5737 = vpack.c.b16 %v5029, %v5017
    %v5738 = vpack.c.b16 %v5030, %v5018
    %v5739 = vpack.c.b16 %v5031, %v5019
    %v5740 = vpack.c.b16 %v5032, %v5020
    %v5741 = vpack.c.b16 %v5033, %v5021
    %v5742 = vpack.c.b16 %v5034, %v5022
    %v5743 = vpack.c.b16 %v5035, %v5023
    %v5744 = vpack.c.b16 %v5036, %v5024
    %v5745 = vpack.c.b16 %v5037, %v5025
    %v5746 = vpack.c.b16 %v5038, %v5026
    %v5747 = vpack.c.b16 %v5051, %v5039
    %v5748 = vpack.c.b16 %v5052, %v5040
    %v5749 = vpack.c.b16 %v5053, %v5041
    %v5750 = vpack.c.b16 %v5054, %v5042
    %v5751 = vpack.c.b16 %v5055, %v5043
    %v5752 = vpack.c.b16 %v5056, %v5044
    %v5753 = vpack.c.b16 %v5057, %v5045
    %v5754 = vpack.c.b16 %v5058, %v5046
    %v5755 = vpack.c.b16 %v5059, %v5047
    %v5756 = vpack.c.b16 %v5060, %v5048
    %v5757 = vpack.c.b16 %v5061, %v5049
    %v5758 = vpack.c.b16 %v5062, %v5050
    %v5759 = vpack.c.b16 %v5075, %v5063
    %v5760 = vpack.c.b16 %v5076, %v5064
    %v5761 = vpack.c.b16 %v5077, %v5065
    %v5762 = vpack.c.b16 %v5078, %v5066
    %v5763 = vpack.c.b16 %v5079, %v5067
    %v5764 = vpack.c.b16 %v5080, %v5068
    %v5765 = vpack.c.b16 %v5081, %v5069
    %v5766 = vpack.c.b16 %v5082, %v5070
    %v5767 = vpack.c.b16 %v5083, %v5071
    %v5768 = vpack.c.b16 %v5084, %v5072
    %v5769 = vpack.c.b16 %v5085, %v5073
    %v5770 = vpack.c.b16 %v5086, %v5074
    %v5771 = vpack.c.b16 %v5099, %v5087
    %v5772 = vpack.c.b16 %v5100, %v5088
    %v5773 = vpack.c.b16 %v5101, %v5089
    %v5774 = vpack.c.b16 %v5102, %v5090
    %v5775 = vpack.c.b16 %v5103, %v5091
    %v5776 = vpack.c.b16 %v5104, %v5092
    %v5777 = vpack.c.b16 %v5105, %v5093
    %v5778 = vpack.c.b16 %v5106, %v5094
    %v5779 = vpack.c.b16 %v5107, %v5095
    %v5780 = vpack.c.b16 %v5108, %v5096
    %v5781 = vpack.c.b16 %v5109, %v5097
    %v5782 = vpack.c.b16 %v5110, %v5098
    %v5783 = vpack.c.b16 %v5123, %v5111
    %v5784 = vpack.c.b16 %v5124, %v5112
    %v5785 = vpack.c.b16 %v5125, %v5113
    %v5786 = vpack.c.b16 %v5126, %v5114
    %v5787 = vpack.c.b16 %v5127, %v5115
    %v5788 = vpack.c.b16 %v5128, %v5116
    %v5789 = vpack.c.b16 %v5129, %v5117
    %v5790 = vpack.c.b16 %v5130, %v5118
    %v5791 = vpack.c.b16 %v5131, %v5119
    %v5792 = vpack.c.b16 %v5132, %v5120
    %v5793 = vpack.c.b16 %v5133, %v5121
    %v5794 = vpack.c.b16 %v5134, %v5122
    %v5795 = vpack.c.b16 %v5147, %v5135
    %v5796 = vpack.c.b16 %v5148, %v5136
    %v5797 = vpack.c.b16 %v5149, %v5137
    %v5798 = vpack.c.b16 %v5150, %v5138
    %v5799 = vpack.c.b16 %v5151, %v5139
    %v5800 = vpack.c.b16 %v5152, %v5140
    %v5801 = vpack.c.b16 %v5153, %v5141
    %v5802 = vpack.c.b16 %v5154, %v5142
    %v5803 = vpack.c.b16 %v5155, %v5143
    %v5804 = vpack.c.b16 %v5156, %v5144
    %v5805 = vpack.c.b16 %v5157, %v5145
    %v5806 = vpack.c.b16 %v5158, %v5146
    %v5807 = vpack.c.b16 %v5171, %v5159
    %v5808 = vpack.c.b16 %v5172, %v5160
    %v5809 = vpack.c.b16 %v5173, %v5161
    %v5810 = vpack.c.b16 %v5174, %v5162
    %v5811 = vpack.c.b16 %v5175, %v5163
    %v5812 = vpack.c.b16 %v5176, %v5164
    %v5813 = vpack.c.b16 %v5177, %v5165
    %v5814 = vpack.c.b16 %v5178, %v5166
    %v5815 = vpack.c.b16 %v5179, %v5167
    %v5816 = vpack.c.b16 %v5180, %v5168
    %v5817 = vpack.c.b16 %v5181, %v5169
    %v5818 = vpack.c.b16 %v5182, %v5170
    %v5819 = vpack.c.b16 %v5195, %v5183
    %v5820 = vpack.c.b16 %v5196, %v5184
    %v5821 = vpack.c.b16 %v5197, %v5185
    %v5822 = vpack.c.b16 %v5198, %v5186
    %v5823 = vpack.c.b16 %v5199, %v5187
    %v5824 = vpack.c.b16 %v5200, %v5188
    %v5825 = vpack.c.b16 %v5201, %v5189
    %v5826 = vpack.c.b16 %v5202, %v5190
    %v5827 = vpack.c.b16 %v5203, %v5191
    %v5828 = vpack.c.b16 %v5204, %v5192
    %v5829 = vpack.c.b16 %v5205, %v5193
    %v5830 = vpack.c.b16 %v5206, %v5194
    %v5831 = vpack.c.b16 %v5219, %v5207
    %v5832 = vpack.c.b16 %v5220, %v5208
    %v5833 = vpack.c.b16 %v5221, %v5209
    %v5834 = vpack.c.b16 %v5222, %v5210
    %v5835 = vpack.c.b16 %v5223, %v5211
    %v5836 = vpack.c.b16 %v5224, %v5212
    %v5837 = vpack.c.b16 %v5225, %v5213
    %v5838 = vpack.c.b16 %v5226, %v5214
    %v5839 = vpack.c.b16 %v5227, %v5215
    %v5840 = vpack.c.b16 %v5228, %v5216
    %v5841 = vpack.c.b16 %v5229, %v5217
    %v5842 = vpack.c.b16 %v5230, %v5218
    %v5843 = vpack.c.b16 %v5243, %v5231
    %v5844 = vpack.c.b16 %v5244, %v5232
    %v5845 = vpack.c.b16 %v5245, %v5233
    %v5846 = vpack.c.b16 %v5246, %v5234
    %v5847 = vpack.c.b16 %v5247, %v5235
    %v5848 = vpack.c.b16 %v5248, %v5236
    %v5849 = vpack.c.b16 %v5249, %v5237
    %v5850 = vpack.c.b16 %v5250, %v5238
    %v5851 = vpack.c.b16 %v5251, %v5239
    %v5852 = vpack.c.b16 %v5252, %v5240
    %v5853 = vpack.c.b16 %v5253, %v5241
    %v5854 = vpack.c.b16 %v5254, %v5242
    %v5855 = vpack.c.b16 %v5267, %v5255
    %v5856 = vpack.c.b16 %v5268, %v5256
    %v5857 = vpack.c.b16 %v5269, %v5257
    %v5858 = vpack.c.b16 %v5270, %v5258
    %v5859 = vpack.c.b16 %v5271, %v5259
    %v5860 = vpack.c.b16 %v5272, %v5260
    %v5861 = vpack.c.b16 %v5273, %v5261
    %v5862 = vpack.c.b16 %v5274, %v5262
    %v5863 = vpack.c.b16 %v5275, %v5263
    %v5864 = vpack.c.b16 %v5276, %v5264
    %v5865 = vpack.c.b16 %v5277, %v5265
    %v5866 = vpack.c.b16 %v5278, %v5266
    %v5867 = vpack.c.b16 %v5291, %v5279
    %v5868 = vpack.c.b16 %v5292, %v5280
    %v5869 = vpack.c.b16 %v5293, %v5281
    %v5870 = vpack.c.b16 %v5294, %v5282
    %v5871 = vpack.c.b16 %v5295, %v5283
    %v5872 = vpack.c.b16 %v5296, %v5284
    %v5873 = vpack.c.b16 %v5297, %v5285
    %v5874 = vpack.c.b16 %v5298, %v5286
    %v5875 = vpack.c.b16 %v5299, %v5287
    %v5876 = vpack.c.b16 %v5300, %v5288
    %v5877 = vpack.c.b16 %v5301, %v5289
    %v5878 = vpack.c.b16 %v5302, %v5290
    %6455 = vmatprep.subr.bf16.mxu0 %v5388
    %6456 = vmatpush1.bf16.msra.mxu0 %v5387
    %6457 = vmatprep.subr.bf16.mxu0 %v5376
    %6458 = vmatpush1.bf16.msra.mxu0 %v5375
    %6459 = vmatprep.subr.bf16.mxu0 %v5364
    %6460 = vmatpush1.bf16.msra.mxu0 %v5363
    %6461 = vmatprep.subr.bf16.mxu0 %v5352
    %6462 = vmatpush1.bf16.msra.mxu0 %v5351
    %6463 = vmatprep.subr.bf16.mxu0 %v5340
    %6464 = vmatpush1.bf16.msra.mxu0 %v5339
    %6465 = vmatprep.subr.bf16.mxu0 %v5328
    %6466 = vmatpush1.bf16.msra.mxu0 %v5327
    %6467 = vmatprep.subr.bf16.mxu0 %v5316
    %6468 = vmatpush1.bf16.msra.mxu0 %v5315
    %6469 = vmatprep.subr.bf16.mxu0 %v5304
    %6470 = vmatpush1.bf16.msra.mxu0 %v5303
    %6471 = vmatprep.subr.bf16.mxu0 %v5484
    %6472 = vmatpush2.bf16.msra.mxu0 %v5483
    %6473 = vmatprep.subr.bf16.mxu0 %v5472
    %6474 = vmatpush2.bf16.msra.mxu0 %v5471
    %6475 = vmatprep.subr.bf16.mxu0 %v5460
    %6476 = vmatpush2.bf16.msra.mxu0 %v5459
    %6477 = vmatprep.subr.bf16.mxu0 %v5448
    %6478 = vmatpush2.bf16.msra.mxu0 %v5447
    %6479 = vmatprep.subr.bf16.mxu0 %v5436
    %6480 = vmatpush2.bf16.msra.mxu0 %v5435
    %6481 = vmatprep.subr.bf16.mxu0 %v5424
    %6482 = vmatpush2.bf16.msra.mxu0 %v5423
    %6483 = vmatprep.subr.bf16.mxu0 %v5412
    %6484 = vmatpush2.bf16.msra.mxu0 %v5411
    %6485 = vmatprep.subr.bf16.mxu0 %v5400
    %6486 = vmatpush2.bf16.msra.mxu0 %v5399
    %6487 = vmatprep.mubr.bf16.mxu0 %v157
    %6488 = vmatmul.mubr.bf16.gmra.mxu0 %v156
    %v6489 = vpop.f32.mrf.mxu0
    %v6490 = vadd.f32 %v3518, %v6489
    %v6491 = vpop.f32.mrf.mxu0
    %v6492 = vadd.f32 %v3522, %v6491
    %v6493 = vpop.f32.mrf.mxu0
    %v6494 = vpop.f32.mrf.mxu0
    %6495 = vdwg.mxu0
    %6496 = vmatprep.subr.bf16.mxu0 %v5580
    %6497 = vmatpush1.bf16.msra.mxu0 %v5579
    %6498 = vmatprep.subr.bf16.mxu0 %v5568
    %6499 = vmatpush1.bf16.msra.mxu0 %v5567
    %6500 = vmatprep.subr.bf16.mxu0 %v5556
    %6501 = vmatpush1.bf16.msra.mxu0 %v5555
    %6502 = vmatprep.subr.bf16.mxu0 %v5544
    %6503 = vmatpush1.bf16.msra.mxu0 %v5543
    %6504 = vmatprep.subr.bf16.mxu0 %v5532
    %6505 = vmatpush1.bf16.msra.mxu0 %v5531
    %6506 = vmatprep.subr.bf16.mxu0 %v5520
    %6507 = vmatpush1.bf16.msra.mxu0 %v5519
    %6508 = vmatprep.subr.bf16.mxu0 %v5508
    %6509 = vmatpush1.bf16.msra.mxu0 %v5507
    %6510 = vmatprep.subr.bf16.mxu0 %v5496
    %6511 = vmatpush1.bf16.msra.mxu0 %v5495
    %6512 = vmatprep.subr.bf16.mxu0 %v5676
    %6513 = vmatpush2.bf16.msra.mxu0 %v5675
    %6514 = vmatprep.subr.bf16.mxu0 %v5664
    %6515 = vmatpush2.bf16.msra.mxu0 %v5663
    %6516 = vmatprep.subr.bf16.mxu0 %v5652
    %6517 = vmatpush2.bf16.msra.mxu0 %v5651
    %6518 = vmatprep.subr.bf16.mxu0 %v5640
    %6519 = vmatpush2.bf16.msra.mxu0 %v5639
    %6520 = vmatprep.subr.bf16.mxu0 %v5628
    %6521 = vmatpush2.bf16.msra.mxu0 %v5627
    %6522 = vmatprep.subr.bf16.mxu0 %v5616
    %6523 = vmatpush2.bf16.msra.mxu0 %v5615
    %6524 = vmatprep.subr.bf16.mxu0 %v5604
    %6525 = vmatpush2.bf16.msra.mxu0 %v5603
    %6526 = vmatprep.subr.bf16.mxu0 %v5592
    %6527 = vmatpush2.bf16.msra.mxu0 %v5591
    %6528 = vmatprep.mubr.bf16.mxu0 %v159
    %6529 = vmatmul.mubr.bf16.gmra.mxu0 %v158
    %v6530 = vpop.f32.mrf.mxu0
    %v6531 = vadd.f32 %v6490, %v6530
    %v6532 = vpop.f32.mrf.mxu0
    %v6533 = vadd.f32 %v6492, %v6532
    %v6534 = vpop.f32.mrf.mxu0
    %v6535 = vpop.f32.mrf.mxu0
    %6536 = vdwg.mxu0
    %6537 = vmatprep.subr.bf16.mxu0 %v5772
    %6538 = vmatpush1.bf16.msra.mxu0 %v5771
    %6539 = vmatprep.subr.bf16.mxu0 %v5760
    %6540 = vmatpush1.bf16.msra.mxu0 %v5759
    %6541 = vmatprep.subr.bf16.mxu0 %v5748
    %6542 = vmatpush1.bf16.msra.mxu0 %v5747
    %6543 = vmatprep.subr.bf16.mxu0 %v5736
    %6544 = vmatpush1.bf16.msra.mxu0 %v5735
    %6545 = vmatprep.subr.bf16.mxu0 %v5724
    %6546 = vmatpush1.bf16.msra.mxu0 %v5723
    %6547 = vmatprep.subr.bf16.mxu0 %v5712
    %6548 = vmatpush1.bf16.msra.mxu0 %v5711
    %6549 = vmatprep.subr.bf16.mxu0 %v5700
    %6550 = vmatpush1.bf16.msra.mxu0 %v5699
    %6551 = vmatprep.subr.bf16.mxu0 %v5688
    %6552 = vmatpush1.bf16.msra.mxu0 %v5687
    %6553 = vmatprep.subr.bf16.mxu0 %v5868
    %6554 = vmatpush2.bf16.msra.mxu0 %v5867
    %6555 = vmatprep.subr.bf16.mxu0 %v5856
    %6556 = vmatpush2.bf16.msra.mxu0 %v5855
    %6557 = vmatprep.subr.bf16.mxu0 %v5844
    %6558 = vmatpush2.bf16.msra.mxu0 %v5843
    %6559 = vmatprep.subr.bf16.mxu0 %v5832
    %6560 = vmatpush2.bf16.msra.mxu0 %v5831
    %6561 = vmatprep.subr.bf16.mxu0 %v5820
    %6562 = vmatpush2.bf16.msra.mxu0 %v5819
    %6563 = vmatprep.subr.bf16.mxu0 %v5808
    %6564 = vmatpush2.bf16.msra.mxu0 %v5807
    %6565 = vmatprep.subr.bf16.mxu0 %v5796
    %6566 = vmatpush2.bf16.msra.mxu0 %v5795
    %6567 = vmatprep.subr.bf16.mxu0 %v5784
    %6568 = vmatpush2.bf16.msra.mxu0 %v5783
    %6569 = vmatprep.mubr.bf16.mxu0 %v161
    %6570 = vmatmul.mubr.bf16.gmra.mxu0 %v160
    %v6571 = vpop.f32.mrf.mxu0
    %v6572 = vadd.f32 %v6531, %v6571
    %v6573 = vpop.f32.mrf.mxu0
    %v6574 = vadd.f32 %v6533, %v6573
    %v6575 = vpop.f32.mrf.mxu0
    %v6576 = vpop.f32.mrf.mxu0
    %6577 = vdwg.mxu0
    %6578 = vmatprep.subr.bf16.mxu0 %v5390
    %6579 = vmatpush1.bf16.msra.mxu0 %v5389
    %6580 = vmatprep.subr.bf16.mxu0 %v5378
    %6581 = vmatpush1.bf16.msra.mxu0 %v5377
    %6582 = vmatprep.subr.bf16.mxu0 %v5366
    %6583 = vmatpush1.bf16.msra.mxu0 %v5365
    %6584 = vmatprep.subr.bf16.mxu0 %v5354
    %6585 = vmatpush1.bf16.msra.mxu0 %v5353
    %6586 = vmatprep.subr.bf16.mxu0 %v5342
    %6587 = vmatpush1.bf16.msra.mxu0 %v5341
    %6588 = vmatprep.subr.bf16.mxu0 %v5330
    %6589 = vmatpush1.bf16.msra.mxu0 %v5329
    %6590 = vmatprep.subr.bf16.mxu0 %v5318
    %6591 = vmatpush1.bf16.msra.mxu0 %v5317
    %6592 = vmatprep.subr.bf16.mxu0 %v5306
    %6593 = vmatpush1.bf16.msra.mxu0 %v5305
    %6594 = vmatprep.subr.bf16.mxu0 %v5486
    %6595 = vmatpush2.bf16.msra.mxu0 %v5485
    %6596 = vmatprep.subr.bf16.mxu0 %v5474
    %6597 = vmatpush2.bf16.msra.mxu0 %v5473
    %6598 = vmatprep.subr.bf16.mxu0 %v5462
    %6599 = vmatpush2.bf16.msra.mxu0 %v5461
    %6600 = vmatprep.subr.bf16.mxu0 %v5450
    %6601 = vmatpush2.bf16.msra.mxu0 %v5449
    %6602 = vmatprep.subr.bf16.mxu0 %v5438
    %6603 = vmatpush2.bf16.msra.mxu0 %v5437
    %6604 = vmatprep.subr.bf16.mxu0 %v5426
    %6605 = vmatpush2.bf16.msra.mxu0 %v5425
    %6606 = vmatprep.subr.bf16.mxu0 %v5414
    %6607 = vmatpush2.bf16.msra.mxu0 %v5413
    %6608 = vmatprep.subr.bf16.mxu0 %v5402
    %6609 = vmatpush2.bf16.msra.mxu0 %v5401
    %6610 = vmatprep.mubr.bf16.mxu0 %v157
    %6611 = vmatmul.mubr.bf16.gmra.mxu0 %v156
    %v6612 = vpop.f32.mrf.mxu0
    %v6613 = vadd.f32 %v3526, %v6612
    %v6614 = vpop.f32.mrf.mxu0
    %v6615 = vadd.f32 %v3530, %v6614
    %v6616 = vpop.f32.mrf.mxu0
    %v6617 = vpop.f32.mrf.mxu0
    %6618 = vdwg.mxu0
    %6619 = vmatprep.subr.bf16.mxu0 %v5582
    %6620 = vmatpush1.bf16.msra.mxu0 %v5581
    %6621 = vmatprep.subr.bf16.mxu0 %v5570
    %6622 = vmatpush1.bf16.msra.mxu0 %v5569
    %6623 = vmatprep.subr.bf16.mxu0 %v5558
    %6624 = vmatpush1.bf16.msra.mxu0 %v5557
    %6625 = vmatprep.subr.bf16.mxu0 %v5546
    %6626 = vmatpush1.bf16.msra.mxu0 %v5545
    %6627 = vmatprep.subr.bf16.mxu0 %v5534
    %6628 = vmatpush1.bf16.msra.mxu0 %v5533
    %6629 = vmatprep.subr.bf16.mxu0 %v5522
    %6630 = vmatpush1.bf16.msra.mxu0 %v5521
    %6631 = vmatprep.subr.bf16.mxu0 %v5510
    %6632 = vmatpush1.bf16.msra.mxu0 %v5509
    %6633 = vmatprep.subr.bf16.mxu0 %v5498
    %6634 = vmatpush1.bf16.msra.mxu0 %v5497
    %6635 = vmatprep.subr.bf16.mxu0 %v5678
    %6636 = vmatpush2.bf16.msra.mxu0 %v5677
    %6637 = vmatprep.subr.bf16.mxu0 %v5666
    %6638 = vmatpush2.bf16.msra.mxu0 %v5665
    %6639 = vmatprep.subr.bf16.mxu0 %v5654
    %6640 = vmatpush2.bf16.msra.mxu0 %v5653
    %6641 = vmatprep.subr.bf16.mxu0 %v5642
    %6642 = vmatpush2.bf16.msra.mxu0 %v5641
    %6643 = vmatprep.subr.bf16.mxu0 %v5630
    %6644 = vmatpush2.bf16.msra.mxu0 %v5629
    %6645 = vmatprep.subr.bf16.mxu0 %v5618
    %6646 = vmatpush2.bf16.msra.mxu0 %v5617
    %6647 = vmatprep.subr.bf16.mxu0 %v5606
    %6648 = vmatpush2.bf16.msra.mxu0 %v5605
    %6649 = vmatprep.subr.bf16.mxu0 %v5594
    %6650 = vmatpush2.bf16.msra.mxu0 %v5593
    %6651 = vmatprep.mubr.bf16.mxu0 %v159
    %6652 = vmatmul.mubr.bf16.gmra.mxu0 %v158
    %v6653 = vpop.f32.mrf.mxu0
    %v6654 = vadd.f32 %v6613, %v6653
    %v6655 = vpop.f32.mrf.mxu0
    %v6656 = vadd.f32 %v6615, %v6655
    %v6657 = vpop.f32.mrf.mxu0
    %v6658 = vpop.f32.mrf.mxu0
    %6659 = vdwg.mxu0
    %6660 = vmatprep.subr.bf16.mxu0 %v5774
    %6661 = vmatpush1.bf16.msra.mxu0 %v5773
    %6662 = vmatprep.subr.bf16.mxu0 %v5762
    %6663 = vmatpush1.bf16.msra.mxu0 %v5761
    %6664 = vmatprep.subr.bf16.mxu0 %v5750
    %6665 = vmatpush1.bf16.msra.mxu0 %v5749
    %6666 = vmatprep.subr.bf16.mxu0 %v5738
    %6667 = vmatpush1.bf16.msra.mxu0 %v5737
    %6668 = vmatprep.subr.bf16.mxu0 %v5726
    %6669 = vmatpush1.bf16.msra.mxu0 %v5725
    %6670 = vmatprep.subr.bf16.mxu0 %v5714
    %6671 = vmatpush1.bf16.msra.mxu0 %v5713
    %6672 = vmatprep.subr.bf16.mxu0 %v5702
    %6673 = vmatpush1.bf16.msra.mxu0 %v5701
    %6674 = vmatprep.subr.bf16.mxu0 %v5690
    %6675 = vmatpush1.bf16.msra.mxu0 %v5689
    %6676 = vmatprep.subr.bf16.mxu0 %v5870
    %6677 = vmatpush2.bf16.msra.mxu0 %v5869
    %6678 = vmatprep.subr.bf16.mxu0 %v5858
    %6679 = vmatpush2.bf16.msra.mxu0 %v5857
    %6680 = vmatprep.subr.bf16.mxu0 %v5846
    %6681 = vmatpush2.bf16.msra.mxu0 %v5845
    %6682 = vmatprep.subr.bf16.mxu0 %v5834
    %6683 = vmatpush2.bf16.msra.mxu0 %v5833
    %6684 = vmatprep.subr.bf16.mxu0 %v5822
    %6685 = vmatpush2.bf16.msra.mxu0 %v5821
    %6686 = vmatprep.subr.bf16.mxu0 %v5810
    %6687 = vmatpush2.bf16.msra.mxu0 %v5809
    %6688 = vmatprep.subr.bf16.mxu0 %v5798
    %6689 = vmatpush2.bf16.msra.mxu0 %v5797
    %6690 = vmatprep.subr.bf16.mxu0 %v5786
    %6691 = vmatpush2.bf16.msra.mxu0 %v5785
    %6692 = vmatprep.mubr.bf16.mxu0 %v161
    %6693 = vmatmul.mubr.bf16.gmra.mxu0 %v160
    %v6694 = vpop.f32.mrf.mxu0
    %v6695 = vadd.f32 %v6654, %v6694
    %v6696 = vpop.f32.mrf.mxu0
    %v6697 = vadd.f32 %v6656, %v6696
    %v6698 = vpop.f32.mrf.mxu0
    %v6699 = vpop.f32.mrf.mxu0
    %6700 = vdwg.mxu0
    %6701 = vmatprep.subr.bf16.mxu0 %v5392
    %6702 = vmatpush1.bf16.msra.mxu0 %v5391
    %6703 = vmatprep.subr.bf16.mxu0 %v5380
    %6704 = vmatpush1.bf16.msra.mxu0 %v5379
    %6705 = vmatprep.subr.bf16.mxu0 %v5368
    %6706 = vmatpush1.bf16.msra.mxu0 %v5367
    %6707 = vmatprep.subr.bf16.mxu0 %v5356
    %6708 = vmatpush1.bf16.msra.mxu0 %v5355
    %6709 = vmatprep.subr.bf16.mxu0 %v5344
    %6710 = vmatpush1.bf16.msra.mxu0 %v5343
    %6711 = vmatprep.subr.bf16.mxu0 %v5332
    %6712 = vmatpush1.bf16.msra.mxu0 %v5331
    %6713 = vmatprep.subr.bf16.mxu0 %v5320
    %6714 = vmatpush1.bf16.msra.mxu0 %v5319
    %6715 = vmatprep.subr.bf16.mxu0 %v5308
    %6716 = vmatpush1.bf16.msra.mxu0 %v5307
    %6717 = vmatprep.subr.bf16.mxu0 %v5488
    %6718 = vmatpush2.bf16.msra.mxu0 %v5487
    %6719 = vmatprep.subr.bf16.mxu0 %v5476
    %6720 = vmatpush2.bf16.msra.mxu0 %v5475
    %6721 = vmatprep.subr.bf16.mxu0 %v5464
    %6722 = vmatpush2.bf16.msra.mxu0 %v5463
    %6723 = vmatprep.subr.bf16.mxu0 %v5452
    %6724 = vmatpush2.bf16.msra.mxu0 %v5451
    %6725 = vmatprep.subr.bf16.mxu0 %v5440
    %6726 = vmatpush2.bf16.msra.mxu0 %v5439
    %6727 = vmatprep.subr.bf16.mxu0 %v5428
    %6728 = vmatpush2.bf16.msra.mxu0 %v5427
    %6729 = vmatprep.subr.bf16.mxu0 %v5416
    %6730 = vmatpush2.bf16.msra.mxu0 %v5415
    %6731 = vmatprep.subr.bf16.mxu0 %v5404
    %6732 = vmatpush2.bf16.msra.mxu0 %v5403
    %6733 = vmatprep.mubr.bf16.mxu0 %v157
    %6734 = vmatmul.mubr.bf16.gmra.mxu0 %v156
    %v6735 = vpop.f32.mrf.mxu0
    %v6736 = vadd.f32 %v3534, %v6735
    %v6737 = vpop.f32.mrf.mxu0
    %v6738 = vadd.f32 %v3538, %v6737
    %v6739 = vpop.f32.mrf.mxu0
    %v6740 = vpop.f32.mrf.mxu0
    %6741 = vdwg.mxu0
    %6742 = vmatprep.subr.bf16.mxu0 %v5584
    %6743 = vmatpush1.bf16.msra.mxu0 %v5583
    %6744 = vmatprep.subr.bf16.mxu0 %v5572
    %6745 = vmatpush1.bf16.msra.mxu0 %v5571
    %6746 = vmatprep.subr.bf16.mxu0 %v5560
    %6747 = vmatpush1.bf16.msra.mxu0 %v5559
    %6748 = vmatprep.subr.bf16.mxu0 %v5548
    %6749 = vmatpush1.bf16.msra.mxu0 %v5547
    %6750 = vmatprep.subr.bf16.mxu0 %v5536
    %6751 = vmatpush1.bf16.msra.mxu0 %v5535
    %6752 = vmatprep.subr.bf16.mxu0 %v5524
    %6753 = vmatpush1.bf16.msra.mxu0 %v5523
    %6754 = vmatprep.subr.bf16.mxu0 %v5512
    %6755 = vmatpush1.bf16.msra.mxu0 %v5511
    %6756 = vmatprep.subr.bf16.mxu0 %v5500
    %6757 = vmatpush1.bf16.msra.mxu0 %v5499
    %6758 = vmatprep.subr.bf16.mxu0 %v5680
    %6759 = vmatpush2.bf16.msra.mxu0 %v5679
    %6760 = vmatprep.subr.bf16.mxu0 %v5668
    %6761 = vmatpush2.bf16.msra.mxu0 %v5667
    %6762 = vmatprep.subr.bf16.mxu0 %v5656
    %6763 = vmatpush2.bf16.msra.mxu0 %v5655
    %6764 = vmatprep.subr.bf16.mxu0 %v5644
    %6765 = vmatpush2.bf16.msra.mxu0 %v5643
    %6766 = vmatprep.subr.bf16.mxu0 %v5632
    %6767 = vmatpush2.bf16.msra.mxu0 %v5631
    %6768 = vmatprep.subr.bf16.mxu0 %v5620
    %6769 = vmatpush2.bf16.msra.mxu0 %v5619
    %6770 = vmatprep.subr.bf16.mxu0 %v5608
    %6771 = vmatpush2.bf16.msra.mxu0 %v5607
    %6772 = vmatprep.subr.bf16.mxu0 %v5596
    %6773 = vmatpush2.bf16.msra.mxu0 %v5595
    %6774 = vmatprep.mubr.bf16.mxu0 %v159
    %6775 = vmatmul.mubr.bf16.gmra.mxu0 %v158
    %v6776 = vpop.f32.mrf.mxu0
    %v6777 = vadd.f32 %v6736, %v6776
    %v6778 = vpop.f32.mrf.mxu0
    %v6779 = vadd.f32 %v6738, %v6778
    %v6780 = vpop.f32.mrf.mxu0
    %v6781 = vpop.f32.mrf.mxu0
    %6782 = vdwg.mxu0
    %6783 = vmatprep.subr.bf16.mxu0 %v5776
    %6784 = vmatpush1.bf16.msra.mxu0 %v5775
    %6785 = vmatprep.subr.bf16.mxu0 %v5764
    %6786 = vmatpush1.bf16.msra.mxu0 %v5763
    %6787 = vmatprep.subr.bf16.mxu0 %v5752
    %6788 = vmatpush1.bf16.msra.mxu0 %v5751
    %6789 = vmatprep.subr.bf16.mxu0 %v5740
    %6790 = vmatpush1.bf16.msra.mxu0 %v5739
    %6791 = vmatprep.subr.bf16.mxu0 %v5728
    %6792 = vmatpush1.bf16.msra.mxu0 %v5727
    %6793 = vmatprep.subr.bf16.mxu0 %v5716
    %6794 = vmatpush1.bf16.msra.mxu0 %v5715
    %6795 = vmatprep.subr.bf16.mxu0 %v5704
    %6796 = vmatpush1.bf16.msra.mxu0 %v5703
    %6797 = vmatprep.subr.bf16.mxu0 %v5692
    %6798 = vmatpush1.bf16.msra.mxu0 %v5691
    %6799 = vmatprep.subr.bf16.mxu0 %v5872
    %6800 = vmatpush2.bf16.msra.mxu0 %v5871
    %6801 = vmatprep.subr.bf16.mxu0 %v5860
    %6802 = vmatpush2.bf16.msra.mxu0 %v5859
    %6803 = vmatprep.subr.bf16.mxu0 %v5848
    %6804 = vmatpush2.bf16.msra.mxu0 %v5847
    %6805 = vmatprep.subr.bf16.mxu0 %v5836
    %6806 = vmatpush2.bf16.msra.mxu0 %v5835
    %6807 = vmatprep.subr.bf16.mxu0 %v5824
    %6808 = vmatpush2.bf16.msra.mxu0 %v5823
    %6809 = vmatprep.subr.bf16.mxu0 %v5812
    %6810 = vmatpush2.bf16.msra.mxu0 %v5811
    %6811 = vmatprep.subr.bf16.mxu0 %v5800
    %6812 = vmatpush2.bf16.msra.mxu0 %v5799
    %6813 = vmatprep.subr.bf16.mxu0 %v5788
    %6814 = vmatpush2.bf16.msra.mxu0 %v5787
    %6815 = vmatprep.mubr.bf16.mxu0 %v161
    %6816 = vmatmul.mubr.bf16.gmra.mxu0 %v160
    %v6817 = vpop.f32.mrf.mxu0
    %v6818 = vadd.f32 %v6777, %v6817
    %v6819 = vpop.f32.mrf.mxu0
    %v6820 = vadd.f32 %v6779, %v6819
    %v6821 = vpop.f32.mrf.mxu0
    %v6822 = vpop.f32.mrf.mxu0
    %6823 = vdwg.mxu0
    %6824 = vmatprep.subr.bf16.mxu0 %v5394
    %6825 = vmatpush1.bf16.msra.mxu0 %v5393
    %6826 = vmatprep.subr.bf16.mxu0 %v5382
    %6827 = vmatpush1.bf16.msra.mxu0 %v5381
    %6828 = vmatprep.subr.bf16.mxu0 %v5370
    %6829 = vmatpush1.bf16.msra.mxu0 %v5369
    %6830 = vmatprep.subr.bf16.mxu0 %v5358
    %6831 = vmatpush1.bf16.msra.mxu0 %v5357
    %6832 = vmatprep.subr.bf16.mxu0 %v5346
    %6833 = vmatpush1.bf16.msra.mxu0 %v5345
    %6834 = vmatprep.subr.bf16.mxu0 %v5334
    %6835 = vmatpush1.bf16.msra.mxu0 %v5333
    %6836 = vmatprep.subr.bf16.mxu0 %v5322
    %6837 = vmatpush1.bf16.msra.mxu0 %v5321
    %6838 = vmatprep.subr.bf16.mxu0 %v5310
    %6839 = vmatpush1.bf16.msra.mxu0 %v5309
    %6840 = vmatprep.subr.bf16.mxu0 %v5490
    %6841 = vmatpush2.bf16.msra.mxu0 %v5489
    %6842 = vmatprep.subr.bf16.mxu0 %v5478
    %6843 = vmatpush2.bf16.msra.mxu0 %v5477
    %6844 = vmatprep.subr.bf16.mxu0 %v5466
    %6845 = vmatpush2.bf16.msra.mxu0 %v5465
    %6846 = vmatprep.subr.bf16.mxu0 %v5454
    %6847 = vmatpush2.bf16.msra.mxu0 %v5453
    %6848 = vmatprep.subr.bf16.mxu0 %v5442
    %6849 = vmatpush2.bf16.msra.mxu0 %v5441
    %6850 = vmatprep.subr.bf16.mxu0 %v5430
    %6851 = vmatpush2.bf16.msra.mxu0 %v5429
    %6852 = vmatprep.subr.bf16.mxu0 %v5418
    %6853 = vmatpush2.bf16.msra.mxu0 %v5417
    %6854 = vmatprep.subr.bf16.mxu0 %v5406
    %6855 = vmatpush2.bf16.msra.mxu0 %v5405
    %6856 = vmatprep.mubr.bf16.mxu0 %v157
    %6857 = vmatmul.mubr.bf16.gmra.mxu0 %v156
    %v6858 = vpop.f32.mrf.mxu0
    %v6859 = vadd.f32 %v3542, %v6858
    %v6860 = vpop.f32.mrf.mxu0
    %v6861 = vadd.f32 %v3546, %v6860
    %v6862 = vpop.f32.mrf.mxu0
    %v6863 = vpop.f32.mrf.mxu0
    %6864 = vdwg.mxu0
    %6865 = vmatprep.subr.bf16.mxu0 %v5586
    %6866 = vmatpush1.bf16.msra.mxu0 %v5585
    %6867 = vmatprep.subr.bf16.mxu0 %v5574
    %6868 = vmatpush1.bf16.msra.mxu0 %v5573
    %6869 = vmatprep.subr.bf16.mxu0 %v5562
    %6870 = vmatpush1.bf16.msra.mxu0 %v5561
    %6871 = vmatprep.subr.bf16.mxu0 %v5550
    %6872 = vmatpush1.bf16.msra.mxu0 %v5549
    %6873 = vmatprep.subr.bf16.mxu0 %v5538
    %6874 = vmatpush1.bf16.msra.mxu0 %v5537
    %6875 = vmatprep.subr.bf16.mxu0 %v5526
    %6876 = vmatpush1.bf16.msra.mxu0 %v5525
    %6877 = vmatprep.subr.bf16.mxu0 %v5514
    %6878 = vmatpush1.bf16.msra.mxu0 %v5513
    %6879 = vmatprep.subr.bf16.mxu0 %v5502
    %6880 = vmatpush1.bf16.msra.mxu0 %v5501
    %6881 = vmatprep.subr.bf16.mxu0 %v5682
    %6882 = vmatpush2.bf16.msra.mxu0 %v5681
    %6883 = vmatprep.subr.bf16.mxu0 %v5670
    %6884 = vmatpush2.bf16.msra.mxu0 %v5669
    %6885 = vmatprep.subr.bf16.mxu0 %v5658
    %6886 = vmatpush2.bf16.msra.mxu0 %v5657
    %6887 = vmatprep.subr.bf16.mxu0 %v5646
    %6888 = vmatpush2.bf16.msra.mxu0 %v5645
    %6889 = vmatprep.subr.bf16.mxu0 %v5634
    %6890 = vmatpush2.bf16.msra.mxu0 %v5633
    %6891 = vmatprep.subr.bf16.mxu0 %v5622
    %6892 = vmatpush2.bf16.msra.mxu0 %v5621
    %6893 = vmatprep.subr.bf16.mxu0 %v5610
    %6894 = vmatpush2.bf16.msra.mxu0 %v5609
    %6895 = vmatprep.subr.bf16.mxu0 %v5598
    %6896 = vmatpush2.bf16.msra.mxu0 %v5597
    %6897 = vmatprep.mubr.bf16.mxu0 %v159
    %6898 = vmatmul.mubr.bf16.gmra.mxu0 %v158
    %v6899 = vpop.f32.mrf.mxu0
    %v6900 = vadd.f32 %v6859, %v6899
    %v6901 = vpop.f32.mrf.mxu0
    %v6902 = vadd.f32 %v6861, %v6901
    %v6903 = vpop.f32.mrf.mxu0
    %v6904 = vpop.f32.mrf.mxu0
    %6905 = vdwg.mxu0
    %6906 = vmatprep.subr.bf16.mxu0 %v5778
    %6907 = vmatpush1.bf16.msra.mxu0 %v5777
    %6908 = vmatprep.subr.bf16.mxu0 %v5766
    %6909 = vmatpush1.bf16.msra.mxu0 %v5765
    %6910 = vmatprep.subr.bf16.mxu0 %v5754
    %6911 = vmatpush1.bf16.msra.mxu0 %v5753
    %6912 = vmatprep.subr.bf16.mxu0 %v5742
    %6913 = vmatpush1.bf16.msra.mxu0 %v5741
    %6914 = vmatprep.subr.bf16.mxu0 %v5730
    %6915 = vmatpush1.bf16.msra.mxu0 %v5729
    %6916 = vmatprep.subr.bf16.mxu0 %v5718
    %6917 = vmatpush1.bf16.msra.mxu0 %v5717
    %6918 = vmatprep.subr.bf16.mxu0 %v5706
    %6919 = vmatpush1.bf16.msra.mxu0 %v5705
    %6920 = vmatprep.subr.bf16.mxu0 %v5694
    %6921 = vmatpush1.bf16.msra.mxu0 %v5693
    %6922 = vmatprep.subr.bf16.mxu0 %v5874
    %6923 = vmatpush2.bf16.msra.mxu0 %v5873
    %6924 = vmatprep.subr.bf16.mxu0 %v5862
    %6925 = vmatpush2.bf16.msra.mxu0 %v5861
    %6926 = vmatprep.subr.bf16.mxu0 %v5850
    %6927 = vmatpush2.bf16.msra.mxu0 %v5849
    %6928 = vmatprep.subr.bf16.mxu0 %v5838
    %6929 = vmatpush2.bf16.msra.mxu0 %v5837
    %6930 = vmatprep.subr.bf16.mxu0 %v5826
    %6931 = vmatpush2.bf16.msra.mxu0 %v5825
    %6932 = vmatprep.subr.bf16.mxu0 %v5814
    %6933 = vmatpush2.bf16.msra.mxu0 %v5813
    %6934 = vmatprep.subr.bf16.mxu0 %v5802
    %6935 = vmatpush2.bf16.msra.mxu0 %v5801
    %6936 = vmatprep.subr.bf16.mxu0 %v5790
    %6937 = vmatpush2.bf16.msra.mxu0 %v5789
    %6938 = vmatprep.mubr.bf16.mxu0 %v161
    %6939 = vmatmul.mubr.bf16.gmra.mxu0 %v160
    %v6940 = vpop.f32.mrf.mxu0
    %v6941 = vadd.f32 %v6900, %v6940
    %v6942 = vpop.f32.mrf.mxu0
    %v6943 = vadd.f32 %v6902, %v6942
    %v6944 = vpop.f32.mrf.mxu0
    %v6945 = vpop.f32.mrf.mxu0
    %6946 = vdwg.mxu0
    %6947 = vmatprep.subr.bf16.mxu0 %v5396
    %6948 = vmatpush1.bf16.msra.mxu0 %v5395
    %6949 = vmatprep.subr.bf16.mxu0 %v5384
    %6950 = vmatpush1.bf16.msra.mxu0 %v5383
    %6951 = vmatprep.subr.bf16.mxu0 %v5372
    %6952 = vmatpush1.bf16.msra.mxu0 %v5371
    %6953 = vmatprep.subr.bf16.mxu0 %v5360
    %6954 = vmatpush1.bf16.msra.mxu0 %v5359
    %6955 = vmatprep.subr.bf16.mxu0 %v5348
    %6956 = vmatpush1.bf16.msra.mxu0 %v5347
    %6957 = vmatprep.subr.bf16.mxu0 %v5336
    %6958 = vmatpush1.bf16.msra.mxu0 %v5335
    %6959 = vmatprep.subr.bf16.mxu0 %v5324
    %6960 = vmatpush1.bf16.msra.mxu0 %v5323
    %6961 = vmatprep.subr.bf16.mxu0 %v5312
    %6962 = vmatpush1.bf16.msra.mxu0 %v5311
    %6963 = vmatprep.subr.bf16.mxu0 %v5492
    %6964 = vmatpush2.bf16.msra.mxu0 %v5491
    %6965 = vmatprep.subr.bf16.mxu0 %v5480
    %6966 = vmatpush2.bf16.msra.mxu0 %v5479
    %6967 = vmatprep.subr.bf16.mxu0 %v5468
    %6968 = vmatpush2.bf16.msra.mxu0 %v5467
    %6969 = vmatprep.subr.bf16.mxu0 %v5456
    %6970 = vmatpush2.bf16.msra.mxu0 %v5455
    %6971 = vmatprep.subr.bf16.mxu0 %v5444
    %6972 = vmatpush2.bf16.msra.mxu0 %v5443
    %6973 = vmatprep.subr.bf16.mxu0 %v5432
    %6974 = vmatpush2.bf16.msra.mxu0 %v5431
    %6975 = vmatprep.subr.bf16.mxu0 %v5420
    %6976 = vmatpush2.bf16.msra.mxu0 %v5419
    %6977 = vmatprep.subr.bf16.mxu0 %v5408
    %6978 = vmatpush2.bf16.msra.mxu0 %v5407
    %6979 = vmatprep.mubr.bf16.mxu0 %v157
    %6980 = vmatmul.mubr.bf16.gmra.mxu0 %v156
    %v6981 = vpop.f32.mrf.mxu0
    %v6982 = vadd.f32 %v3550, %v6981
    %v6983 = vpop.f32.mrf.mxu0
    %v6984 = vadd.f32 %v3554, %v6983
    %v6985 = vpop.f32.mrf.mxu0
    %v6986 = vpop.f32.mrf.mxu0
    %6987 = vdwg.mxu0
    %6988 = vmatprep.subr.bf16.mxu0 %v5588
    %6989 = vmatpush1.bf16.msra.mxu0 %v5587
    %6990 = vmatprep.subr.bf16.mxu0 %v5576
    %6991 = vmatpush1.bf16.msra.mxu0 %v5575
    %6992 = vmatprep.subr.bf16.mxu0 %v5564
    %6993 = vmatpush1.bf16.msra.mxu0 %v5563
    %6994 = vmatprep.subr.bf16.mxu0 %v5552
    %6995 = vmatpush1.bf16.msra.mxu0 %v5551
    %6996 = vmatprep.subr.bf16.mxu0 %v5540
    %6997 = vmatpush1.bf16.msra.mxu0 %v5539
    %6998 = vmatprep.subr.bf16.mxu0 %v5528
    %6999 = vmatpush1.bf16.msra.mxu0 %v5527
    %7000 = vmatprep.subr.bf16.mxu0 %v5516
    %7001 = vmatpush1.bf16.msra.mxu0 %v5515
    %7002 = vmatprep.subr.bf16.mxu0 %v5504
    %7003 = vmatpush1.bf16.msra.mxu0 %v5503
    %7004 = vmatprep.subr.bf16.mxu0 %v5684
    %7005 = vmatpush2.bf16.msra.mxu0 %v5683
    %7006 = vmatprep.subr.bf16.mxu0 %v5672
    %7007 = vmatpush2.bf16.msra.mxu0 %v5671
    %7008 = vmatprep.subr.bf16.mxu0 %v5660
    %7009 = vmatpush2.bf16.msra.mxu0 %v5659
    %7010 = vmatprep.subr.bf16.mxu0 %v5648
    %7011 = vmatpush2.bf16.msra.mxu0 %v5647
    %7012 = vmatprep.subr.bf16.mxu0 %v5636
    %7013 = vmatpush2.bf16.msra.mxu0 %v5635
    %7014 = vmatprep.subr.bf16.mxu0 %v5624
    %7015 = vmatpush2.bf16.msra.mxu0 %v5623
    %7016 = vmatprep.subr.bf16.mxu0 %v5612
    %7017 = vmatpush2.bf16.msra.mxu0 %v5611
    %7018 = vmatprep.subr.bf16.mxu0 %v5600
    %7019 = vmatpush2.bf16.msra.mxu0 %v5599
    %7020 = vmatprep.mubr.bf16.mxu0 %v159
    %7021 = vmatmul.mubr.bf16.gmra.mxu0 %v158
    %v7022 = vpop.f32.mrf.mxu0
    %v7023 = vadd.f32 %v6982, %v7022
    %v7024 = vpop.f32.mrf.mxu0
    %v7025 = vadd.f32 %v6984, %v7024
    %v7026 = vpop.f32.mrf.mxu0
    %v7027 = vpop.f32.mrf.mxu0
    %7028 = vdwg.mxu0
    %7029 = vmatprep.subr.bf16.mxu0 %v5780
    %7030 = vmatpush1.bf16.msra.mxu0 %v5779
    %7031 = vmatprep.subr.bf16.mxu0 %v5768
    %7032 = vmatpush1.bf16.msra.mxu0 %v5767
    %7033 = vmatprep.subr.bf16.mxu0 %v5756
    %7034 = vmatpush1.bf16.msra.mxu0 %v5755
    %7035 = vmatprep.subr.bf16.mxu0 %v5744
    %7036 = vmatpush1.bf16.msra.mxu0 %v5743
    %7037 = vmatprep.subr.bf16.mxu0 %v5732
    %7038 = vmatpush1.bf16.msra.mxu0 %v5731
    %7039 = vmatprep.subr.bf16.mxu0 %v5720
    %7040 = vmatpush1.bf16.msra.mxu0 %v5719
    %7041 = vmatprep.subr.bf16.mxu0 %v5708
    %7042 = vmatpush1.bf16.msra.mxu0 %v5707
    %7043 = vmatprep.subr.bf16.mxu0 %v5696
    %7044 = vmatpush1.bf16.msra.mxu0 %v5695
    %7045 = vmatprep.subr.bf16.mxu0 %v5876
    %7046 = vmatpush2.bf16.msra.mxu0 %v5875
    %7047 = vmatprep.subr.bf16.mxu0 %v5864
    %7048 = vmatpush2.bf16.msra.mxu0 %v5863
    %7049 = vmatprep.subr.bf16.mxu0 %v5852
    %7050 = vmatpush2.bf16.msra.mxu0 %v5851
    %7051 = vmatprep.subr.bf16.mxu0 %v5840
    %7052 = vmatpush2.bf16.msra.mxu0 %v5839
    %7053 = vmatprep.subr.bf16.mxu0 %v5828
    %7054 = vmatpush2.bf16.msra.mxu0 %v5827
    %7055 = vmatprep.subr.bf16.mxu0 %v5816
    %7056 = vmatpush2.bf16.msra.mxu0 %v5815
    %7057 = vmatprep.subr.bf16.mxu0 %v5804
    %7058 = vmatpush2.bf16.msra.mxu0 %v5803
    %7059 = vmatprep.subr.bf16.mxu0 %v5792
    %7060 = vmatpush2.bf16.msra.mxu0 %v5791
    %7061 = vmatprep.mubr.bf16.mxu0 %v161
    %7062 = vmatmul.mubr.bf16.gmra.mxu0 %v160
    %v7063 = vpop.f32.mrf.mxu0
    %v7064 = vadd.f32 %v7023, %v7063
    %v7065 = vpop.f32.mrf.mxu0
    %v7066 = vadd.f32 %v7025, %v7065
    %v7067 = vpop.f32.mrf.mxu0
    %v7068 = vpop.f32.mrf.mxu0
    %7069 = vdwg.mxu0
    %7070 = vmatprep.subr.bf16.mxu0 %v5398
    %7071 = vmatpush1.bf16.msra.mxu0 %v5397
    %7072 = vmatprep.subr.bf16.mxu0 %v5386
    %7073 = vmatpush1.bf16.msra.mxu0 %v5385
    %7074 = vmatprep.subr.bf16.mxu0 %v5374
    %7075 = vmatpush1.bf16.msra.mxu0 %v5373
    %7076 = vmatprep.subr.bf16.mxu0 %v5362
    %7077 = vmatpush1.bf16.msra.mxu0 %v5361
    %7078 = vmatprep.subr.bf16.mxu0 %v5350
    %7079 = vmatpush1.bf16.msra.mxu0 %v5349
    %7080 = vmatprep.subr.bf16.mxu0 %v5338
    %7081 = vmatpush1.bf16.msra.mxu0 %v5337
    %7082 = vmatprep.subr.bf16.mxu0 %v5326
    %7083 = vmatpush1.bf16.msra.mxu0 %v5325
    %7084 = vmatprep.subr.bf16.mxu0 %v5314
    %7085 = vmatpush1.bf16.msra.mxu0 %v5313
    %7086 = vmatprep.subr.bf16.mxu0 %v5494
    %7087 = vmatpush2.bf16.msra.mxu0 %v5493
    %7088 = vmatprep.subr.bf16.mxu0 %v5482
    %7089 = vmatpush2.bf16.msra.mxu0 %v5481
    %7090 = vmatprep.subr.bf16.mxu0 %v5470
    %7091 = vmatpush2.bf16.msra.mxu0 %v5469
    %7092 = vmatprep.subr.bf16.mxu0 %v5458
    %7093 = vmatpush2.bf16.msra.mxu0 %v5457
    %7094 = vmatprep.subr.bf16.mxu0 %v5446
    %7095 = vmatpush2.bf16.msra.mxu0 %v5445
    %7096 = vmatprep.subr.bf16.mxu0 %v5434
    %7097 = vmatpush2.bf16.msra.mxu0 %v5433
    %7098 = vmatprep.subr.bf16.mxu0 %v5422
    %7099 = vmatpush2.bf16.msra.mxu0 %v5421
    %7100 = vmatprep.subr.bf16.mxu0 %v5410
    %7101 = vmatpush2.bf16.msra.mxu0 %v5409
    %7102 = vmatprep.mubr.bf16.mxu0 %v157
    %7103 = vmatmul.mubr.bf16.gmra.mxu0 %v156
    %v7104 = vpop.f32.mrf.mxu0
    %v7105 = vadd.f32 %v3558, %v7104
    %v7106 = vpop.f32.mrf.mxu0
    %v7107 = vadd.f32 %v3562, %v7106
    %v7108 = vpop.f32.mrf.mxu0
    %v7109 = vpop.f32.mrf.mxu0
    %7110 = vdwg.mxu0
    %7111 = vmatprep.subr.bf16.mxu0 %v5590
    %7112 = vmatpush1.bf16.msra.mxu0 %v5589
    %7113 = vmatprep.subr.bf16.mxu0 %v5578
    %7114 = vmatpush1.bf16.msra.mxu0 %v5577
    %7115 = vmatprep.subr.bf16.mxu0 %v5566
    %7116 = vmatpush1.bf16.msra.mxu0 %v5565
    %7117 = vmatprep.subr.bf16.mxu0 %v5554
    %7118 = vmatpush1.bf16.msra.mxu0 %v5553
    %7119 = vmatprep.subr.bf16.mxu0 %v5542
    %7120 = vmatpush1.bf16.msra.mxu0 %v5541
    %7121 = vmatprep.subr.bf16.mxu0 %v5530
    %7122 = vmatpush1.bf16.msra.mxu0 %v5529
    %7123 = vmatprep.subr.bf16.mxu0 %v5518
    %7124 = vmatpush1.bf16.msra.mxu0 %v5517
    %7125 = vmatprep.subr.bf16.mxu0 %v5506
    %7126 = vmatpush1.bf16.msra.mxu0 %v5505
    %7127 = vmatprep.subr.bf16.mxu0 %v5686
    %7128 = vmatpush2.bf16.msra.mxu0 %v5685
    %7129 = vmatprep.subr.bf16.mxu0 %v5674
    %7130 = vmatpush2.bf16.msra.mxu0 %v5673
    %7131 = vmatprep.subr.bf16.mxu0 %v5662
    %7132 = vmatpush2.bf16.msra.mxu0 %v5661
    %7133 = vmatprep.subr.bf16.mxu0 %v5650
    %7134 = vmatpush2.bf16.msra.mxu0 %v5649
    %7135 = vmatprep.subr.bf16.mxu0 %v5638
    %7136 = vmatpush2.bf16.msra.mxu0 %v5637
    %7137 = vmatprep.subr.bf16.mxu0 %v5626
    %7138 = vmatpush2.bf16.msra.mxu0 %v5625
    %7139 = vmatprep.subr.bf16.mxu0 %v5614
    %7140 = vmatpush2.bf16.msra.mxu0 %v5613
    %7141 = vmatprep.subr.bf16.mxu0 %v5602
    %7142 = vmatpush2.bf16.msra.mxu0 %v5601
    %7143 = vmatprep.mubr.bf16.mxu0 %v159
    %7144 = vmatmul.mubr.bf16.gmra.mxu0 %v158
    %v7145 = vpop.f32.mrf.mxu0
    %v7146 = vadd.f32 %v7105, %v7145
    %v7147 = vpop.f32.mrf.mxu0
    %v7148 = vadd.f32 %v7107, %v7147
    %v7149 = vpop.f32.mrf.mxu0
    %v7150 = vpop.f32.mrf.mxu0
    %7151 = vdwg.mxu0
    %7152 = vmatprep.subr.bf16.mxu0 %v5782
    %7153 = vmatpush1.bf16.msra.mxu0 %v5781
    %7154 = vmatprep.subr.bf16.mxu0 %v5770
    %7155 = vmatpush1.bf16.msra.mxu0 %v5769
    %7156 = vmatprep.subr.bf16.mxu0 %v5758
    %7157 = vmatpush1.bf16.msra.mxu0 %v5757
    %7158 = vmatprep.subr.bf16.mxu0 %v5746
    %7159 = vmatpush1.bf16.msra.mxu0 %v5745
    %7160 = vmatprep.subr.bf16.mxu0 %v5734
    %7161 = vmatpush1.bf16.msra.mxu0 %v5733
    %7162 = vmatprep.subr.bf16.mxu0 %v5722
    %7163 = vmatpush1.bf16.msra.mxu0 %v5721
    %7164 = vmatprep.subr.bf16.mxu0 %v5710
    %7165 = vmatpush1.bf16.msra.mxu0 %v5709
    %7166 = vmatprep.subr.bf16.mxu0 %v5698
    %7167 = vmatpush1.bf16.msra.mxu0 %v5697
    %7168 = vmatprep.subr.bf16.mxu0 %v5878
    %7169 = vmatpush2.bf16.msra.mxu0 %v5877
    %7170 = vmatprep.subr.bf16.mxu0 %v5866
    %7171 = vmatpush2.bf16.msra.mxu0 %v5865
    %7172 = vmatprep.subr.bf16.mxu0 %v5854
    %7173 = vmatpush2.bf16.msra.mxu0 %v5853
    %7174 = vmatprep.subr.bf16.mxu0 %v5842
    %7175 = vmatpush2.bf16.msra.mxu0 %v5841
    %7176 = vmatprep.subr.bf16.mxu0 %v5830
    %7177 = vmatpush2.bf16.msra.mxu0 %v5829
    %7178 = vmatprep.subr.bf16.mxu0 %v5818
    %7179 = vmatpush2.bf16.msra.mxu0 %v5817
    %7180 = vmatprep.subr.bf16.mxu0 %v5806
    %7181 = vmatpush2.bf16.msra.mxu0 %v5805
    %7182 = vmatprep.subr.bf16.mxu0 %v5794
    %7183 = vmatpush2.bf16.msra.mxu0 %v5793
    %7184 = vmatprep.mubr.bf16.mxu0 %v161
    %7185 = vmatmul.mubr.bf16.gmra.mxu0 %v160
    %v7186 = vpop.f32.mrf.mxu0
    %v7187 = vadd.f32 %v7146, %v7186
    %v7188 = vpop.f32.mrf.mxu0
    %v7189 = vadd.f32 %v7148, %v7188
    %v7190 = vpop.f32.mrf.mxu0
    %v7191 = vpop.f32.mrf.mxu0
    %7192 = vdwg.mxu0
    %v7193 = vlaneseq
    %v7194 = vshrl.u32 %v7193, 7
    %vm7195 = vcmp.lt.s32.totalorder %v7194, 0
    %v7196 = vsub.s32 0, %v7194
    %v7197 = vsel %vm7195, %v7196, %v7194
    %v7198 = vshrl.u32 %v7197, 1
    %v7199 = vand.u32 %v7197, 1
    %v7200 = vsub.s32 0, %v7199
    %v7201 = vsel %vm7195, %v7200, %v7199
    %vm7202 = vcmp.ne.s32.totalorder %v7201, 0
    %vm7203 = vcmp.lt.s32.totalorder %v7201, 0
    %vm7204 = vmand %vm7203, %vm7202
    %v7205 = vadd.s32 %v7201, 2
    %v7206 = vsel %vm7204, %v7205, %v7201
    %v7207 = vlaneseq
    %v7208 = vand.u32 %v7207, 127
    %vm7209 = vcmp.lt.s32.totalorder %v7208, 0
    %v7210 = vsub.s32 0, %v7208
    %v7211 = vsel %vm7209, %v7210, %v7208
    %v7212 = vshrl.u32 %v7211, 1
    %v7213 = vand.u32 %v7211, 1
    %v7214 = vsub.s32 0, %v7213
    %v7215 = vsel %vm7209, %v7214, %v7213
    %vm7216 = vcmp.ne.s32.totalorder %v7215, 0
    %vm7217 = vcmp.lt.s32.totalorder %v7215, 0
    %vm7218 = vmand %vm7217, %vm7216
    %v7219 = vadd.s32 %v7215, 2
    %v7220 = vsel %vm7218, %v7219, %v7215
    %vm7221 = vcmp.eq.s32.totalorder %v7206, %v7220
    %vm7222 = vcmp.eq.s32.totalorder %v7194, %v7220
    %v7223 = vsel %vm7222, 0.5, 0.0
    %v7224 = vld [vmem:[#allocation11] sm:$0xf]
    %v7225 = vld [vmem:[#allocation11 + $0x4] sm:$0xf]
    %v7226 = vld [vmem:[#allocation11 + $0x8] sm:$0xf]
    %v7227 = vld [vmem:[#allocation11 + $0xc] sm:$0xf]
    %v7228 = vld [vmem:[#allocation11 + $0x10] sm:$0xf]
    %v7229 = vld [vmem:[#allocation11 + $0x14] sm:$0xf]
    %v7230 = vld [vmem:[#allocation11 + $0x18] sm:$0xf]
    %v7231 = vld [vmem:[#allocation11 + $0x1c] sm:$0xf]
    %v7232 = vld [vmem:[#allocation11 + $0x20] sm:$0xf]
    %v7233 = vld [vmem:[#allocation11 + $0x24] sm:$0xf]
    %v7234 = vld [vmem:[#allocation11 + $0x28] sm:$0xf]
    %v7235 = vld [vmem:[#allocation11 + $0x2c] sm:$0xf]
    %v7236 = vld [vmem:[#allocation11 + $0x30] sm:$0xf]
    %v7237 = vld [vmem:[#allocation11 + $0x34] sm:$0xf]
    %v7238 = vld [vmem:[#allocation11 + $0x38] sm:$0xf]
    %v7239 = vld [vmem:[#allocation11 + $0x3c] sm:$0xf]
    %v7240 = vld [vmem:[#allocation11 + $0x40] sm:$0xf]
    %v7241 = vld [vmem:[#allocation11 + $0x44] sm:$0xf]
    %v7242 = vld [vmem:[#allocation11 + $0x48] sm:$0xf]
    %v7243 = vld [vmem:[#allocation11 + $0x4c] sm:$0xf]
    %v7244 = vld [vmem:[#allocation11 + $0x50] sm:$0xf]
    %v7245 = vld [vmem:[#allocation11 + $0x54] sm:$0xf]
    %v7246 = vld [vmem:[#allocation11 + $0x58] sm:$0xf]
    %v7247 = vld [vmem:[#allocation11 + $0x5c] sm:$0xf]
    %v7248 = vld [vmem:[#allocation11 + $0x60] sm:$0xf]
    %v7249 = vld [vmem:[#allocation11 + $0x64] sm:$0xf]
    %v7250 = vld [vmem:[#allocation11 + $0x68] sm:$0xf]
    %v7251 = vld [vmem:[#allocation11 + $0x6c] sm:$0xf]
    %v7252 = vld [vmem:[#allocation11 + $0x70] sm:$0xf]
    %v7253 = vld [vmem:[#allocation11 + $0x74] sm:$0xf]
    %v7254 = vld [vmem:[#allocation11 + $0x78] sm:$0xf]
    %v7255 = vld [vmem:[#allocation11 + $0x7c] sm:$0xf]
    %v7256 = vld [vmem:[#allocation11 + $0x80] sm:$0xf]
    %v7257 = vld [vmem:[#allocation11 + $0x84] sm:$0xf]
    %v7258 = vld [vmem:[#allocation11 + $0x88] sm:$0xf]
    %v7259 = vld [vmem:[#allocation11 + $0x8c] sm:$0xf]
    %v7260 = vld [vmem:[#allocation11 + $0x90] sm:$0xf]
    %v7261 = vld [vmem:[#allocation11 + $0x94] sm:$0xf]
    %v7262 = vld [vmem:[#allocation11 + $0x98] sm:$0xf]
    %v7263 = vld [vmem:[#allocation11 + $0x9c] sm:$0xf]
    %v7264 = vld [vmem:[#allocation11 + $0xa0] sm:$0xf]
    %v7265 = vld [vmem:[#allocation11 + $0xa4] sm:$0xf]
    %v7266 = vld [vmem:[#allocation11 + $0xa8] sm:$0xf]
    %v7267 = vld [vmem:[#allocation11 + $0xac] sm:$0xf]
    %v7268 = vld [vmem:[#allocation11 + $0xb0] sm:$0xf]
    %v7269 = vld [vmem:[#allocation11 + $0xb4] sm:$0xf]
    %v7270 = vld [vmem:[#allocation11 + $0xb8] sm:$0xf]
    %v7271 = vld [vmem:[#allocation11 + $0xbc] sm:$0xf]
    %v7272 = vld [vmem:[#allocation11 + $0xc0] sm:$0xf]
    %v7273 = vld [vmem:[#allocation11 + $0xc4] sm:$0xf]
    %v7274 = vld [vmem:[#allocation11 + $0xc8] sm:$0xf]
    %v7275 = vld [vmem:[#allocation11 + $0xcc] sm:$0xf]
    %v7276 = vld [vmem:[#allocation11 + $0xd0] sm:$0xf]
    %v7277 = vld [vmem:[#allocation11 + $0xd4] sm:$0xf]
    %v7278 = vld [vmem:[#allocation11 + $0xd8] sm:$0xf]
    %v7279 = vld [vmem:[#allocation11 + $0xdc] sm:$0xf]
    %v7280 = vld [vmem:[#allocation11 + $0xe0] sm:$0xf]
    %v7281 = vld [vmem:[#allocation11 + $0xe4] sm:$0xf]
    %v7282 = vld [vmem:[#allocation11 + $0xe8] sm:$0xf]
    %v7283 = vld [vmem:[#allocation11 + $0xec] sm:$0xf]
    %v7284 = vld [vmem:[#allocation11 + $0xf0] sm:$0xf]
    %v7285 = vld [vmem:[#allocation11 + $0xf4] sm:$0xf]
    %v7286 = vld [vmem:[#allocation11 + $0xf8] sm:$0xf]
    %v7287 = vld [vmem:[#allocation11 + $0xfc] sm:$0xf]
    %v7288 = vld [vmem:[#allocation11 + $0x100] sm:$0xf]
    %v7289 = vld [vmem:[#allocation11 + $0x104] sm:$0xf]
    %v7290 = vld [vmem:[#allocation11 + $0x108] sm:$0xf]
    %v7291 = vld [vmem:[#allocation11 + $0x10c] sm:$0xf]
    %v7292 = vld [vmem:[#allocation11 + $0x110] sm:$0xf]
    %v7293 = vld [vmem:[#allocation11 + $0x114] sm:$0xf]
    %v7294 = vld [vmem:[#allocation11 + $0x118] sm:$0xf]
    %v7295 = vld [vmem:[#allocation11 + $0x11c] sm:$0xf]
    %v7296 = vld [vmem:[#allocation11 + $0x120] sm:$0xf]
    %v7297 = vld [vmem:[#allocation11 + $0x124] sm:$0xf]
    %v7298 = vld [vmem:[#allocation11 + $0x128] sm:$0xf]
    %v7299 = vld [vmem:[#allocation11 + $0x12c] sm:$0xf]
    %v7300 = vld [vmem:[#allocation11 + $0x130] sm:$0xf]
    %v7301 = vld [vmem:[#allocation11 + $0x134] sm:$0xf]
    %v7302 = vld [vmem:[#allocation11 + $0x138] sm:$0xf]
    %v7303 = vld [vmem:[#allocation11 + $0x13c] sm:$0xf]
    %v7304 = vld [vmem:[#allocation11 + $0x140] sm:$0xf]
    %v7305 = vld [vmem:[#allocation11 + $0x144] sm:$0xf]
    %v7306 = vld [vmem:[#allocation11 + $0x148] sm:$0xf]
    %v7307 = vld [vmem:[#allocation11 + $0x14c] sm:$0xf]
    %v7308 = vld [vmem:[#allocation11 + $0x150] sm:$0xf]
    %v7309 = vld [vmem:[#allocation11 + $0x154] sm:$0xf]
    %v7310 = vld [vmem:[#allocation11 + $0x158] sm:$0xf]
    %v7311 = vld [vmem:[#allocation11 + $0x15c] sm:$0xf]
    %v7312 = vld [vmem:[#allocation11 + $0x160] sm:$0xf]
    %v7313 = vld [vmem:[#allocation11 + $0x164] sm:$0xf]
    %v7314 = vld [vmem:[#allocation11 + $0x168] sm:$0xf]
    %v7315 = vld [vmem:[#allocation11 + $0x16c] sm:$0xf]
    %v7316 = vld [vmem:[#allocation11 + $0x170] sm:$0xf]
    %v7317 = vld [vmem:[#allocation11 + $0x174] sm:$0xf]
    %v7318 = vld [vmem:[#allocation11 + $0x178] sm:$0xf]
    %v7319 = vld [vmem:[#allocation11 + $0x17c] sm:$0xf]
    %v7320 = vld [vmem:[#allocation16] sm:$0x1]
    %v7322 = vlaneseq
    %v7323 = vshrl.u32 %v7322, 7
    %v7324 = vsub.s32 0, %v7323
    %v7325 = vrot.slane %v7320, %v7324
    %v7327 = vadd.f32 %v7325, 0.0
    %7328 = vmatprep.subr.mxu0 0.0
    %7329 = vmatpush1.xpose.msra.mxu0 0.0
    %7330 = vmatprep.subr.mxu0 0.0
    %7331 = vmatpush1.xpose.msra.mxu0 0.0
    %7332 = vmatprep.subr.mxu0 0.0
    %7333 = vmatpush1.xpose.msra.mxu0 0.0
    %7334 = vmatprep.subr.mxu0 0.0
    %7335 = vmatpush1.xpose.msra.mxu0 0.0
    %7336 = vmatprep.subr.mxu0 0.0
    %7337 = vmatpush1.xpose.msra.mxu0 0.0
    %7338 = vmatprep.subr.mxu0 0.0
    %7339 = vmatpush1.xpose.msra.mxu0 0.0
    %7340 = vmatprep.subr.mxu0 0.0
    %7341 = vmatpush1.xpose.msra.mxu0 0.0
    %7342 = vmatprep.subr.mxu0 0.0
    %7343 = vmatpush1.xpose.msra.mxu0 0.0
    %7344 = vmatprep.subr.mxu0 0.0
    %7345 = vmatpush1.xpose.msra.mxu0 0.0
    %7346 = vmatprep.subr.mxu0 0.0
    %7347 = vmatpush1.xpose.msra.mxu0 0.0
    %7348 = vmatprep.subr.mxu0 0.0
    %7349 = vmatpush1.xpose.msra.mxu0 0.0
    %7350 = vmatprep.subr.mxu0 0.0
    %7351 = vmatpush1.xpose.msra.mxu0 0.0
    %7352 = vmatprep.subr.mxu0 0.0
    %7353 = vmatpush1.xpose.msra.mxu0 0.0
    %7354 = vmatprep.subr.mxu0 0.0
    %7355 = vmatpush1.xpose.msra.mxu0 0.0
    %7356 = vmatprep.subr.mxu0 0.0
    %7357 = vmatpush1.xpose.msra.mxu0 0.0
    %7358 = vmatprep.subr.mxu0 0.0
    %7359 = vmatpush1.xpose.msra.mxu0 %v6572
    %7360 = vmatprep.subr.mxu0 0.0
    %7361 = vmatpush2.xpose.msra.mxu0 0.0
    %7362 = vmatprep.subr.mxu0 0.0
    %7363 = vmatpush2.xpose.msra.mxu0 0.0
    %7364 = vmatprep.subr.mxu0 0.0
    %7365 = vmatpush2.xpose.msra.mxu0 0.0
    %7366 = vmatprep.subr.mxu0 0.0
    %7367 = vmatpush2.xpose.msra.mxu0 0.0
    %7368 = vmatprep.subr.mxu0 0.0
    %7369 = vmatpush2.xpose.msra.mxu0 0.0
    %7370 = vmatprep.subr.mxu0 0.0
    %7371 = vmatpush2.xpose.msra.mxu0 0.0
    %7372 = vmatprep.subr.mxu0 0.0
    %7373 = vmatpush2.xpose.msra.mxu0 0.0
    %7374 = vmatprep.subr.mxu0 0.0
    %7375 = vmatpush2.xpose.msra.mxu0 0.0
    %7376 = vmatprep.subr.mxu0 0.0
    %7377 = vmatpush2.xpose.msra.mxu0 0.0
    %7378 = vmatprep.subr.mxu0 0.0
    %7379 = vmatpush2.xpose.msra.mxu0 0.0
    %7380 = vmatprep.subr.mxu0 0.0
    %7381 = vmatpush2.xpose.msra.mxu0 0.0
    %7382 = vmatprep.subr.mxu0 0.0
    %7383 = vmatpush2.xpose.msra.mxu0 0.0
    %7384 = vmatprep.subr.mxu0 0.0
    %7385 = vmatpush2.xpose.msra.mxu0 0.0
    %7386 = vmatprep.subr.mxu0 0.0
    %7387 = vmatpush2.xpose.msra.mxu0 0.0
    %7388 = vmatprep.subr.mxu0 0.0
    %7389 = vmatpush2.xpose.msra.mxu0 0.0
    %7390 = vmatprep.subr.mxu0 0.0
    %7391 = vmatpush2.xpose.msra.mxu0 0.0
    %7392 = vmatprep.mubr.f32.mxu0 0.0
    %7393 = vmatmul.mubr.f32.gmra.mxu0 %v2683
    %v7394 = vpop.f32.mrf.mxu0
    %v7395 = vadd.f32 0.0, %v7394
    %v7396 = vpop.f32.mrf.mxu0
    %7397 = vdwg.mxu0
    %v7398 = vmul.f32 %v7395, 0.088388346
    %v7399 = vsel %vm7221, %v7398, -1e+30
    %vm7400 = vcmask 44032
    %v7401 = vsel %vm7400, %v7399, -inf
    %7402 = vmax.xlane.f32.xlu0 %v7401
    %v7403 = vpop.xlane.xlu0 %7402
    %v7404 = vsub.f32 %v7399, %v7403
    %v7405 = vmul.f32 %v7404, 1.442695
    %v7406 = vpow.pop %v7405
    %v7407 = vsel %vm7400, %v7406, 0.0
    %7408 = vadd.xlane.f32.xlu0 %v7407
    %v7409 = vpop.xlane.xlu0 %7408
    %v7410 = vrcp.pop %v7409
    %v7411 = vmul.f32 %v7406, %v7410
    %vm7412 = vcmask 48128
    %v7414 = vsel %vm7412, %v7411, 0
    %vm7416 = vcmask 1045504
    %v7418 = vsel %vm7416, %v6941, 0
    %7420 = vmatprep.subr.mxu0 0.0
    %7421 = vmatpush1.msra.mxu0 0.0
    %7422 = vmatprep.subr.mxu0 0.0
    %7423 = vmatpush1.msra.mxu0 0.0
    %7424 = vmatprep.subr.mxu0 0.0
    %7425 = vmatpush1.msra.mxu0 0.0
    %7426 = vmatprep.subr.mxu0 0.0
    %7427 = vmatpush1.msra.mxu0 0.0
    %7428 = vmatprep.subr.mxu0 0.0
    %7429 = vmatpush1.msra.mxu0 0.0
    %7430 = vmatprep.subr.mxu0 0.0
    %7431 = vmatpush1.msra.mxu0 0.0
    %7432 = vmatprep.subr.mxu0 0.0
    %7433 = vmatpush1.msra.mxu0 0.0
    %7434 = vmatprep.subr.mxu0 0.0
    %7435 = vmatpush1.msra.mxu0 0.0
    %7436 = vmatprep.subr.mxu0 0.0
    %7437 = vmatpush1.msra.mxu0 0.0
    %7438 = vmatprep.subr.mxu0 0.0
    %7439 = vmatpush1.msra.mxu0 0.0
    %7440 = vmatprep.subr.mxu0 0.0
    %7441 = vmatpush1.msra.mxu0 0.0
    %7442 = vmatprep.subr.mxu0 0.0
    %7443 = vmatpush1.msra.mxu0 0.0
    %7444 = vmatprep.subr.mxu0 0.0
    %7445 = vmatpush1.msra.mxu0 0.0
    %7446 = vmatprep.subr.mxu0 0.0
    %7447 = vmatpush1.msra.mxu0 0.0
    %7448 = vmatprep.subr.mxu0 0.0
    %7449 = vmatpush1.msra.mxu0 0.0
    %7450 = vmatprep.subr.mxu0 0.0
    %7451 = vmatpush1.msra.mxu0 %v7418
    %7452 = vmatprep.subr.mxu0 0.0
    %7453 = vmatpush2.msra.mxu0 0.0
    %7454 = vmatprep.subr.mxu0 0.0
    %7455 = vmatpush2.msra.mxu0 0.0
    %7456 = vmatprep.subr.mxu0 0.0
    %7457 = vmatpush2.msra.mxu0 0.0
    %7458 = vmatprep.subr.mxu0 0.0
    %7459 = vmatpush2.msra.mxu0 0.0
    %7460 = vmatprep.subr.mxu0 0.0
    %7461 = vmatpush2.msra.mxu0 0.0
    %7462 = vmatprep.subr.mxu0 0.0
    %7463 = vmatpush2.msra.mxu0 0.0
    %7464 = vmatprep.subr.mxu0 0.0
    %7465 = vmatpush2.msra.mxu0 0.0
    %7466 = vmatprep.subr.mxu0 0.0
    %7467 = vmatpush2.msra.mxu0 0.0
    %7468 = vmatprep.subr.mxu0 0.0
    %7469 = vmatpush2.msra.mxu0 0.0
    %7470 = vmatprep.subr.mxu0 0.0
    %7471 = vmatpush2.msra.mxu0 0.0
    %7472 = vmatprep.subr.mxu0 0.0
    %7473 = vmatpush2.msra.mxu0 0.0
    %7474 = vmatprep.subr.mxu0 0.0
    %7475 = vmatpush2.msra.mxu0 0.0
    %7476 = vmatprep.subr.mxu0 0.0
    %7477 = vmatpush2.msra.mxu0 0.0
    %7478 = vmatprep.subr.mxu0 0.0
    %7479 = vmatpush2.msra.mxu0 0.0
    %7480 = vmatprep.subr.mxu0 0.0
    %7481 = vmatpush2.msra.mxu0 0.0
    %7482 = vmatprep.subr.mxu0 0.0
    %7483 = vmatpush2.msra.mxu0 0.0
    %7484 = vmatprep.mubr.f32.mxu0 0.0
    %7485 = vmatmul.mubr.f32.gmra.mxu0 %v7414
    %v7486 = vpop.f32.mrf.mxu0
    %v7487 = vadd.f32 0.0, %v7486
    %v7488 = vpop.f32.mrf.mxu0
    %7489 = vdwg.mxu0
    %vm7490 = vcmask 31744
    %v7492 = vsel %vm7490, %v7223, 0
    %vm7494 = vcmask 1043456
    %v7496 = vsel %vm7494, %v7487, 0
    %7498 = vmatprep.subr.mxu0 0.0
    %7499 = vmatpush1.msra.mxu0 0.0
    %7500 = vmatprep.subr.mxu0 0.0
    %7501 = vmatpush1.msra.mxu0 0.0
    %7502 = vmatprep.subr.mxu0 0.0
    %7503 = vmatpush1.msra.mxu0 0.0
    %7504 = vmatprep.subr.mxu0 0.0
    %7505 = vmatpush1.msra.mxu0 0.0
    %7506 = vmatprep.subr.mxu0 0.0
    %7507 = vmatpush1.msra.mxu0 0.0
    %7508 = vmatprep.subr.mxu0 0.0
    %7509 = vmatpush1.msra.mxu0 0.0
    %7510 = vmatprep.subr.mxu0 0.0
    %7511 = vmatpush1.msra.mxu0 0.0
    %7512 = vmatprep.subr.mxu0 0.0
    %7513 = vmatpush1.msra.mxu0 0.0
    %7514 = vmatprep.subr.mxu0 0.0
    %7515 = vmatpush1.msra.mxu0 0.0
    %7516 = vmatprep.subr.mxu0 0.0
    %7517 = vmatpush1.msra.mxu0 0.0
    %7518 = vmatprep.subr.mxu0 0.0
    %7519 = vmatpush1.msra.mxu0 0.0
    %7520 = vmatprep.subr.mxu0 0.0
    %7521 = vmatpush1.msra.mxu0 0.0
    %7522 = vmatprep.subr.mxu0 0.0
    %7523 = vmatpush1.msra.mxu0 0.0
    %7524 = vmatprep.subr.mxu0 0.0
    %7525 = vmatpush1.msra.mxu0 0.0
    %7526 = vmatprep.subr.mxu0 0.0
    %7527 = vmatpush1.msra.mxu0 0.0
    %7528 = vmatprep.subr.mxu0 0.0
    %7529 = vmatpush1.msra.mxu0 %v7496
    %7530 = vmatprep.subr.mxu0 0.0
    %7531 = vmatpush2.msra.mxu0 0.0
    %7532 = vmatprep.subr.mxu0 0.0
    %7533 = vmatpush2.msra.mxu0 0.0
    %7534 = vmatprep.subr.mxu0 0.0
    %7535 = vmatpush2.msra.mxu0 0.0
    %7536 = vmatprep.subr.mxu0 0.0
    %7537 = vmatpush2.msra.mxu0 0.0
    %7538 = vmatprep.subr.mxu0 0.0
    %7539 = vmatpush2.msra.mxu0 0.0
    %7540 = vmatprep.subr.mxu0 0.0
    %7541 = vmatpush2.msra.mxu0 0.0
    %7542 = vmatprep.subr.mxu0 0.0
    %7543 = vmatpush2.msra.mxu0 0.0
    %7544 = vmatprep.subr.mxu0 0.0
    %7545 = vmatpush2.msra.mxu0 0.0
    %7546 = vmatprep.subr.mxu0 0.0
    %7547 = vmatpush2.msra.mxu0 0.0
    %7548 = vmatprep.subr.mxu0 0.0
    %7549 = vmatpush2.msra.mxu0 0.0
    %7550 = vmatprep.subr.mxu0 0.0
    %7551 = vmatpush2.msra.mxu0 0.0
    %7552 = vmatprep.subr.mxu0 0.0
    %7553 = vmatpush2.msra.mxu0 0.0
    %7554 = vmatprep.subr.mxu0 0.0
    %7555 = vmatpush2.msra.mxu0 0.0
    %7556 = vmatprep.subr.mxu0 0.0
    %7557 = vmatpush2.msra.mxu0 0.0
    %7558 = vmatprep.subr.mxu0 0.0
    %7559 = vmatpush2.msra.mxu0 0.0
    %7560 = vmatprep.subr.mxu0 0.0
    %7561 = vmatpush2.msra.mxu0 0.0
    %7562 = vmatprep.mubr.f32.mxu0 0.0
    %7563 = vmatmul.mubr.f32.gmra.mxu0 %v7492
    %v7564 = vpop.f32.mrf.mxu0
    %v7565 = vadd.f32 0.0, %v7564
    %v7566 = vpop.f32.mrf.mxu0
    %7567 = vdwg.mxu0
    %v7568 = vpack.c.bf16 %v7565, %v7565
    %v7585 = vunpack.c.l.b16 %v7224
    %v7586 = vunpack.c.l.b16 %v7225
    %v7587 = vunpack.c.l.b16 %v7226
    %v7588 = vunpack.c.l.b16 %v7227
    %v7589 = vunpack.c.l.b16 %v7228
    %v7590 = vunpack.c.l.b16 %v7229
    %v7591 = vunpack.c.l.b16 %v7230
    %v7592 = vunpack.c.l.b16 %v7231
    %v7593 = vunpack.c.l.b16 %v7232
    %v7594 = vunpack.c.l.b16 %v7233
    %v7595 = vunpack.c.l.b16 %v7234
    %v7596 = vunpack.c.l.b16 %v7235
    %v7597 = vunpack.c.l.b16 %v7236
    %v7598 = vunpack.c.l.b16 %v7237
    %v7599 = vunpack.c.l.b16 %v7238
    %v7600 = vunpack.c.l.b16 %v7239
    %v7601 = vpack.c.b16 %v7586, %v7585
    %v7602 = vpack.c.b16 %v7588, %v7587
    %v7603 = vpack.c.b16 %v7590, %v7589
    %v7604 = vpack.c.b16 %v7592, %v7591
    %v7605 = vpack.c.b16 %v7594, %v7593
    %v7606 = vpack.c.b16 %v7596, %v7595
    %v7607 = vpack.c.b16 %v7598, %v7597
    %v7608 = vpack.c.b16 %v7600, %v7599
    %7617 = vmatprep.subr.bf16.mxu0 0
    %7618 = vmatpush1.bf16.msra.mxu0 %v7608
    %7619 = vmatprep.subr.bf16.mxu0 0
    %7620 = vmatpush1.bf16.msra.mxu0 %v7607
    %7621 = vmatprep.subr.bf16.mxu0 0
    %7622 = vmatpush1.bf16.msra.mxu0 %v7606
    %7623 = vmatprep.subr.bf16.mxu0 0
    %7624 = vmatpush1.bf16.msra.mxu0 %v7605
    %7625 = vmatprep.subr.bf16.mxu0 0
    %7626 = vmatpush1.bf16.msra.mxu0 %v7604
    %7627 = vmatprep.subr.bf16.mxu0 0
    %7628 = vmatpush1.bf16.msra.mxu0 %v7603
    %7629 = vmatprep.subr.bf16.mxu0 0
    %7630 = vmatpush1.bf16.msra.mxu0 %v7602
    %7631 = vmatprep.subr.bf16.mxu0 0
    %7632 = vmatpush1.bf16.msra.mxu0 %v7601
    %7633 = vmatprep.subr.bf16.mxu0 0
    %7634 = vmatpush2.bf16.msra.mxu0 0
    %7635 = vmatprep.subr.bf16.mxu0 0
    %7636 = vmatpush2.bf16.msra.mxu0 0
    %7637 = vmatprep.subr.bf16.mxu0 0
    %7638 = vmatpush2.bf16.msra.mxu0 0
    %7639 = vmatprep.subr.bf16.mxu0 0
    %7640 = vmatpush2.bf16.msra.mxu0 0
    %7641 = vmatprep.subr.bf16.mxu0 0
    %7642 = vmatpush2.bf16.msra.mxu0 0
    %7643 = vmatprep.subr.bf16.mxu0 0
    %7644 = vmatpush2.bf16.msra.mxu0 0
    %7645 = vmatprep.subr.bf16.mxu0 0
    %7646 = vmatpush2.bf16.msra.mxu0 0
    %7647 = vmatprep.subr.bf16.mxu0 0
    %7648 = vmatpush2.bf16.msra.mxu0 0
    %7649 = vmatprep.mubr.bf16.mxu0 0
    %7650 = vmatmul.mubr.bf16.gmra.mxu0 %v7568
    %v7651 = vpop.f32.mrf.mxu0
    %v7652 = vadd.f32 0.0, %v7651
    %v7653 = vpop.f32.mrf.mxu0
    %v7654 = vpop.f32.mrf.mxu0
    %v7655 = vpop.f32.mrf.mxu0
    %7656 = vdwg.mxu0
    %v7657 = vadd.f32 %v7327, %v7652
    %7658 = vmatprep.subr.mxu0 0.0
    %7659 = vmatpush1.xpose.msra.mxu0 0.0
    %7660 = vmatprep.subr.mxu0 0.0
    %7661 = vmatpush1.xpose.msra.mxu0 0.0
    %7662 = vmatprep.subr.mxu0 0.0
    %7663 = vmatpush1.xpose.msra.mxu0 0.0
    %7664 = vmatprep.subr.mxu0 0.0
    %7665 = vmatpush1.xpose.msra.mxu0 0.0
    %7666 = vmatprep.subr.mxu0 0.0
    %7667 = vmatpush1.xpose.msra.mxu0 0.0
    %7668 = vmatprep.subr.mxu0 0.0
    %7669 = vmatpush1.xpose.msra.mxu0 0.0
    %7670 = vmatprep.subr.mxu0 0.0
    %7671 = vmatpush1.xpose.msra.mxu0 0.0
    %7672 = vmatprep.subr.mxu0 0.0
    %7673 = vmatpush1.xpose.msra.mxu0 0.0
    %7674 = vmatprep.subr.mxu0 0.0
    %7675 = vmatpush1.xpose.msra.mxu0 0.0
    %7676 = vmatprep.subr.mxu0 0.0
    %7677 = vmatpush1.xpose.msra.mxu0 0.0
    %7678 = vmatprep.subr.mxu0 0.0
    %7679 = vmatpush1.xpose.msra.mxu0 0.0
    %7680 = vmatprep.subr.mxu0 0.0
    %7681 = vmatpush1.xpose.msra.mxu0 0.0
    %7682 = vmatprep.subr.mxu0 0.0
    %7683 = vmatpush1.xpose.msra.mxu0 0.0
    %7684 = vmatprep.subr.mxu0 0.0
    %7685 = vmatpush1.xpose.msra.mxu0 0.0
    %7686 = vmatprep.subr.mxu0 0.0
    %7687 = vmatpush1.xpose.msra.mxu0 0.0
    %7688 = vmatprep.subr.mxu0 0.0
    %7689 = vmatpush1.xpose.msra.mxu0 %v6574
    %7690 = vmatprep.subr.mxu0 0.0
    %7691 = vmatpush2.xpose.msra.mxu0 0.0
    %7692 = vmatprep.subr.mxu0 0.0
    %7693 = vmatpush2.xpose.msra.mxu0 0.0
    %7694 = vmatprep.subr.mxu0 0.0
    %7695 = vmatpush2.xpose.msra.mxu0 0.0
    %7696 = vmatprep.subr.mxu0 0.0
    %7697 = vmatpush2.xpose.msra.mxu0 0.0
    %7698 = vmatprep.subr.mxu0 0.0
    %7699 = vmatpush2.xpose.msra.mxu0 0.0
    %7700 = vmatprep.subr.mxu0 0.0
    %7701 = vmatpush2.xpose.msra.mxu0 0.0
    %7702 = vmatprep.subr.mxu0 0.0
    %7703 = vmatpush2.xpose.msra.mxu0 0.0
    %7704 = vmatprep.subr.mxu0 0.0
    %7705 = vmatpush2.xpose.msra.mxu0 0.0
    %7706 = vmatprep.subr.mxu0 0.0
    %7707 = vmatpush2.xpose.msra.mxu0 0.0
    %7708 = vmatprep.subr.mxu0 0.0
    %7709 = vmatpush2.xpose.msra.mxu0 0.0
    %7710 = vmatprep.subr.mxu0 0.0
    %7711 = vmatpush2.xpose.msra.mxu0 0.0
    %7712 = vmatprep.subr.mxu0 0.0
    %7713 = vmatpush2.xpose.msra.mxu0 0.0
    %7714 = vmatprep.subr.mxu0 0.0
    %7715 = vmatpush2.xpose.msra.mxu0 0.0
    %7716 = vmatprep.subr.mxu0 0.0
    %7717 = vmatpush2.xpose.msra.mxu0 0.0
    %7718 = vmatprep.subr.mxu0 0.0
    %7719 = vmatpush2.xpose.msra.mxu0 0.0
    %7720 = vmatprep.subr.mxu0 0.0
    %7721 = vmatpush2.xpose.msra.mxu0 0.0
    %7722 = vmatprep.mubr.f32.mxu0 0.0
    %7723 = vmatmul.mubr.f32.gmra.mxu0 %v2685
    %v7724 = vpop.f32.mrf.mxu0
    %v7725 = vadd.f32 0.0, %v7724
    %v7726 = vpop.f32.mrf.mxu0
    %7727 = vdwg.mxu0
    %v7728 = vmul.f32 %v7725, 0.088388346
    %v7729 = vsel %vm7221, %v7728, -1e+30
    %v7730 = vsel %vm7400, %v7729, -inf
    %7731 = vmax.xlane.f32.xlu0 %v7730
    %v7732 = vpop.xlane.xlu0 %7731
    %v7733 = vsub.f32 %v7729, %v7732
    %v7734 = vmul.f32 %v7733, 1.442695
    %v7735 = vpow.pop %v7734
    %v7736 = vsel %vm7400, %v7735, 0.0
    %7737 = vadd.xlane.f32.xlu0 %v7736
    %v7738 = vpop.xlane.xlu0 %7737
    %v7739 = vrcp.pop %v7738
    %v7740 = vmul.f32 %v7735, %v7739
    %v7742 = vsel %vm7412, %v7740, 0
    %v7745 = vsel %vm7416, %v6943, 0
    %7747 = vmatprep.subr.mxu0 0.0
    %7748 = vmatpush1.msra.mxu0 0.0
    %7749 = vmatprep.subr.mxu0 0.0
    %7750 = vmatpush1.msra.mxu0 0.0
    %7751 = vmatprep.subr.mxu0 0.0
    %7752 = vmatpush1.msra.mxu0 0.0
    %7753 = vmatprep.subr.mxu0 0.0
    %7754 = vmatpush1.msra.mxu0 0.0
    %7755 = vmatprep.subr.mxu0 0.0
    %7756 = vmatpush1.msra.mxu0 0.0
    %7757 = vmatprep.subr.mxu0 0.0
    %7758 = vmatpush1.msra.mxu0 0.0
    %7759 = vmatprep.subr.mxu0 0.0
    %7760 = vmatpush1.msra.mxu0 0.0
    %7761 = vmatprep.subr.mxu0 0.0
    %7762 = vmatpush1.msra.mxu0 0.0
    %7763 = vmatprep.subr.mxu0 0.0
    %7764 = vmatpush1.msra.mxu0 0.0
    %7765 = vmatprep.subr.mxu0 0.0
    %7766 = vmatpush1.msra.mxu0 0.0
    %7767 = vmatprep.subr.mxu0 0.0
    %7768 = vmatpush1.msra.mxu0 0.0
    %7769 = vmatprep.subr.mxu0 0.0
    %7770 = vmatpush1.msra.mxu0 0.0
    %7771 = vmatprep.subr.mxu0 0.0
    %7772 = vmatpush1.msra.mxu0 0.0
    %7773 = vmatprep.subr.mxu0 0.0
    %7774 = vmatpush1.msra.mxu0 0.0
    %7775 = vmatprep.subr.mxu0 0.0
    %7776 = vmatpush1.msra.mxu0 0.0
    %7777 = vmatprep.subr.mxu0 0.0
    %7778 = vmatpush1.msra.mxu0 %v7745
    %7779 = vmatprep.subr.mxu0 0.0
    %7780 = vmatpush2.msra.mxu0 0.0
    %7781 = vmatprep.subr.mxu0 0.0
    %7782 = vmatpush2.msra.mxu0 0.0
    %7783 = vmatprep.subr.mxu0 0.0
    %7784 = vmatpush2.msra.mxu0 0.0
    %7785 = vmatprep.subr.mxu0 0.0
    %7786 = vmatpush2.msra.mxu0 0.0
    %7787 = vmatprep.subr.mxu0 0.0
    %7788 = vmatpush2.msra.mxu0 0.0
    %7789 = vmatprep.subr.mxu0 0.0
    %7790 = vmatpush2.msra.mxu0 0.0
    %7791 = vmatprep.subr.mxu0 0.0
    %7792 = vmatpush2.msra.mxu0 0.0
    %7793 = vmatprep.subr.mxu0 0.0
    %7794 = vmatpush2.msra.mxu0 0.0
    %7795 = vmatprep.subr.mxu0 0.0
    %7796 = vmatpush2.msra.mxu0 0.0
    %7797 = vmatprep.subr.mxu0 0.0
    %7798 = vmatpush2.msra.mxu0 0.0
    %7799 = vmatprep.subr.mxu0 0.0
    %7800 = vmatpush2.msra.mxu0 0.0
    %7801 = vmatprep.subr.mxu0 0.0
    %7802 = vmatpush2.msra.mxu0 0.0
    %7803 = vmatprep.subr.mxu0 0.0
    %7804 = vmatpush2.msra.mxu0 0.0
    %7805 = vmatprep.subr.mxu0 0.0
    %7806 = vmatpush2.msra.mxu0 0.0
    %7807 = vmatprep.subr.mxu0 0.0
    %7808 = vmatpush2.msra.mxu0 0.0
    %7809 = vmatprep.subr.mxu0 0.0
    %7810 = vmatpush2.msra.mxu0 0.0
    %7811 = vmatprep.mubr.f32.mxu0 0.0
    %7812 = vmatmul.mubr.f32.gmra.mxu0 %v7742
    %v7813 = vpop.f32.mrf.mxu0
    %v7814 = vadd.f32 0.0, %v7813
    %v7815 = vpop.f32.mrf.mxu0
    %7816 = vdwg.mxu0
    %v7818 = vsel %vm7494, %v7814, 0
    %7820 = vmatprep.subr.mxu0 0.0
    %7821 = vmatpush1.msra.mxu0 0.0
    %7822 = vmatprep.subr.mxu0 0.0
    %7823 = vmatpush1.msra.mxu0 0.0
    %7824 = vmatprep.subr.mxu0 0.0
    %7825 = vmatpush1.msra.mxu0 0.0
    %7826 = vmatprep.subr.mxu0 0.0
    %7827 = vmatpush1.msra.mxu0 0.0
    %7828 = vmatprep.subr.mxu0 0.0
    %7829 = vmatpush1.msra.mxu0 0.0
    %7830 = vmatprep.subr.mxu0 0.0
    %7831 = vmatpush1.msra.mxu0 0.0
    %7832 = vmatprep.subr.mxu0 0.0
    %7833 = vmatpush1.msra.mxu0 0.0
    %7834 = vmatprep.subr.mxu0 0.0
    %7835 = vmatpush1.msra.mxu0 0.0
    %7836 = vmatprep.subr.mxu0 0.0
    %7837 = vmatpush1.msra.mxu0 0.0
    %7838 = vmatprep.subr.mxu0 0.0
    %7839 = vmatpush1.msra.mxu0 0.0
    %7840 = vmatprep.subr.mxu0 0.0
    %7841 = vmatpush1.msra.mxu0 0.0
    %7842 = vmatprep.subr.mxu0 0.0
    %7843 = vmatpush1.msra.mxu0 0.0
    %7844 = vmatprep.subr.mxu0 0.0
    %7845 = vmatpush1.msra.mxu0 0.0
    %7846 = vmatprep.subr.mxu0 0.0
    %7847 = vmatpush1.msra.mxu0 0.0
    %7848 = vmatprep.subr.mxu0 0.0
    %7849 = vmatpush1.msra.mxu0 0.0
    %7850 = vmatprep.subr.mxu0 0.0
    %7851 = vmatpush1.msra.mxu0 %v7818
    %7852 = vmatprep.subr.mxu0 0.0
    %7853 = vmatpush2.msra.mxu0 0.0
    %7854 = vmatprep.subr.mxu0 0.0
    %7855 = vmatpush2.msra.mxu0 0.0
    %7856 = vmatprep.subr.mxu0 0.0
    %7857 = vmatpush2.msra.mxu0 0.0
    %7858 = vmatprep.subr.mxu0 0.0
    %7859 = vmatpush2.msra.mxu0 0.0
    %7860 = vmatprep.subr.mxu0 0.0
    %7861 = vmatpush2.msra.mxu0 0.0
    %7862 = vmatprep.subr.mxu0 0.0
    %7863 = vmatpush2.msra.mxu0 0.0
    %7864 = vmatprep.subr.mxu0 0.0
    %7865 = vmatpush2.msra.mxu0 0.0
    %7866 = vmatprep.subr.mxu0 0.0
    %7867 = vmatpush2.msra.mxu0 0.0
    %7868 = vmatprep.subr.mxu0 0.0
    %7869 = vmatpush2.msra.mxu0 0.0
    %7870 = vmatprep.subr.mxu0 0.0
    %7871 = vmatpush2.msra.mxu0 0.0
    %7872 = vmatprep.subr.mxu0 0.0
    %7873 = vmatpush2.msra.mxu0 0.0
    %7874 = vmatprep.subr.mxu0 0.0
    %7875 = vmatpush2.msra.mxu0 0.0
    %7876 = vmatprep.subr.mxu0 0.0
    %7877 = vmatpush2.msra.mxu0 0.0
    %7878 = vmatprep.subr.mxu0 0.0
    %7879 = vmatpush2.msra.mxu0 0.0
    %7880 = vmatprep.subr.mxu0 0.0
    %7881 = vmatpush2.msra.mxu0 0.0
    %7882 = vmatprep.subr.mxu0 0.0
    %7883 = vmatpush2.msra.mxu0 0.0
    %7884 = vmatprep.mubr.f32.mxu0 0.0
    %7885 = vmatmul.mubr.f32.gmra.mxu0 %v7492
    %v7886 = vpop.f32.mrf.mxu0
    %v7887 = vadd.f32 0.0, %v7886
    %v7888 = vpop.f32.mrf.mxu0
    %7889 = vdwg.mxu0
    %v7890 = vpack.c.bf16 %v7887, %v7887
    %v7907 = vunpack.c.l.b16 %v7240
    %v7908 = vunpack.c.l.b16 %v7241
    %v7909 = vunpack.c.l.b16 %v7242
    %v7910 = vunpack.c.l.b16 %v7243
    %v7911 = vunpack.c.l.b16 %v7244
    %v7912 = vunpack.c.l.b16 %v7245
    %v7913 = vunpack.c.l.b16 %v7246
    %v7914 = vunpack.c.l.b16 %v7247
    %v7915 = vunpack.c.l.b16 %v7248
    %v7916 = vunpack.c.l.b16 %v7249
    %v7917 = vunpack.c.l.b16 %v7250
    %v7918 = vunpack.c.l.b16 %v7251
    %v7919 = vunpack.c.l.b16 %v7252
    %v7920 = vunpack.c.l.b16 %v7253
    %v7921 = vunpack.c.l.b16 %v7254
    %v7922 = vunpack.c.l.b16 %v7255
    %v7923 = vpack.c.b16 %v7908, %v7907
    %v7924 = vpack.c.b16 %v7910, %v7909
    %v7925 = vpack.c.b16 %v7912, %v7911
    %v7926 = vpack.c.b16 %v7914, %v7913
    %v7927 = vpack.c.b16 %v7916, %v7915
    %v7928 = vpack.c.b16 %v7918, %v7917
    %v7929 = vpack.c.b16 %v7920, %v7919
    %v7930 = vpack.c.b16 %v7922, %v7921
    %7939 = vmatprep.subr.bf16.mxu0 0
    %7940 = vmatpush1.bf16.msra.mxu0 %v7930
    %7941 = vmatprep.subr.bf16.mxu0 0
    %7942 = vmatpush1.bf16.msra.mxu0 %v7929
    %7943 = vmatprep.subr.bf16.mxu0 0
    %7944 = vmatpush1.bf16.msra.mxu0 %v7928
    %7945 = vmatprep.subr.bf16.mxu0 0
    %7946 = vmatpush1.bf16.msra.mxu0 %v7927
    %7947 = vmatprep.subr.bf16.mxu0 0
    %7948 = vmatpush1.bf16.msra.mxu0 %v7926
    %7949 = vmatprep.subr.bf16.mxu0 0
    %7950 = vmatpush1.bf16.msra.mxu0 %v7925
    %7951 = vmatprep.subr.bf16.mxu0 0
    %7952 = vmatpush1.bf16.msra.mxu0 %v7924
    %7953 = vmatprep.subr.bf16.mxu0 0
    %7954 = vmatpush1.bf16.msra.mxu0 %v7923
    %7955 = vmatprep.subr.bf16.mxu0 0
    %7956 = vmatpush2.bf16.msra.mxu0 0
    %7957 = vmatprep.subr.bf16.mxu0 0
    %7958 = vmatpush2.bf16.msra.mxu0 0
    %7959 = vmatprep.subr.bf16.mxu0 0
    %7960 = vmatpush2.bf16.msra.mxu0 0
    %7961 = vmatprep.subr.bf16.mxu0 0
    %7962 = vmatpush2.bf16.msra.mxu0 0
    %7963 = vmatprep.subr.bf16.mxu0 0
    %7964 = vmatpush2.bf16.msra.mxu0 0
    %7965 = vmatprep.subr.bf16.mxu0 0
    %7966 = vmatpush2.bf16.msra.mxu0 0
    %7967 = vmatprep.subr.bf16.mxu0 0
    %7968 = vmatpush2.bf16.msra.mxu0 0
    %7969 = vmatprep.subr.bf16.mxu0 0
    %7970 = vmatpush2.bf16.msra.mxu0 0
    %7971 = vmatprep.mubr.bf16.mxu0 0
    %7972 = vmatmul.mubr.bf16.gmra.mxu0 %v7890
    %v7973 = vpop.f32.mrf.mxu0
    %v7974 = vadd.f32 0.0, %v7973
    %v7975 = vpop.f32.mrf.mxu0
    %v7976 = vpop.f32.mrf.mxu0
    %v7977 = vpop.f32.mrf.mxu0
    %7978 = vdwg.mxu0
    %v7979 = vadd.f32 %v7657, %v7974
    %7980 = vmatprep.subr.mxu0 0.0
    %7981 = vmatpush1.xpose.msra.mxu0 0.0
    %7982 = vmatprep.subr.mxu0 0.0
    %7983 = vmatpush1.xpose.msra.mxu0 0.0
    %7984 = vmatprep.subr.mxu0 0.0
    %7985 = vmatpush1.xpose.msra.mxu0 0.0
    %7986 = vmatprep.subr.mxu0 0.0
    %7987 = vmatpush1.xpose.msra.mxu0 0.0
    %7988 = vmatprep.subr.mxu0 0.0
    %7989 = vmatpush1.xpose.msra.mxu0 0.0
    %7990 = vmatprep.subr.mxu0 0.0
    %7991 = vmatpush1.xpose.msra.mxu0 0.0
    %7992 = vmatprep.subr.mxu0 0.0
    %7993 = vmatpush1.xpose.msra.mxu0 0.0
    %7994 = vmatprep.subr.mxu0 0.0
    %7995 = vmatpush1.xpose.msra.mxu0 0.0
    %7996 = vmatprep.subr.mxu0 0.0
    %7997 = vmatpush1.xpose.msra.mxu0 0.0
    %7998 = vmatprep.subr.mxu0 0.0
    %7999 = vmatpush1.xpose.msra.mxu0 0.0
    %8000 = vmatprep.subr.mxu0 0.0
    %8001 = vmatpush1.xpose.msra.mxu0 0.0
    %8002 = vmatprep.subr.mxu0 0.0
    %8003 = vmatpush1.xpose.msra.mxu0 0.0
    %8004 = vmatprep.subr.mxu0 0.0
    %8005 = vmatpush1.xpose.msra.mxu0 0.0
    %8006 = vmatprep.subr.mxu0 0.0
    %8007 = vmatpush1.xpose.msra.mxu0 0.0
    %8008 = vmatprep.subr.mxu0 0.0
    %8009 = vmatpush1.xpose.msra.mxu0 0.0
    %8010 = vmatprep.subr.mxu0 0.0
    %8011 = vmatpush1.xpose.msra.mxu0 %v6695
    %8012 = vmatprep.subr.mxu0 0.0
    %8013 = vmatpush2.xpose.msra.mxu0 0.0
    %8014 = vmatprep.subr.mxu0 0.0
    %8015 = vmatpush2.xpose.msra.mxu0 0.0
    %8016 = vmatprep.subr.mxu0 0.0
    %8017 = vmatpush2.xpose.msra.mxu0 0.0
    %8018 = vmatprep.subr.mxu0 0.0
    %8019 = vmatpush2.xpose.msra.mxu0 0.0
    %8020 = vmatprep.subr.mxu0 0.0
    %8021 = vmatpush2.xpose.msra.mxu0 0.0
    %8022 = vmatprep.subr.mxu0 0.0
    %8023 = vmatpush2.xpose.msra.mxu0 0.0
    %8024 = vmatprep.subr.mxu0 0.0
    %8025 = vmatpush2.xpose.msra.mxu0 0.0
    %8026 = vmatprep.subr.mxu0 0.0
    %8027 = vmatpush2.xpose.msra.mxu0 0.0
    %8028 = vmatprep.subr.mxu0 0.0
    %8029 = vmatpush2.xpose.msra.mxu0 0.0
    %8030 = vmatprep.subr.mxu0 0.0
    %8031 = vmatpush2.xpose.msra.mxu0 0.0
    %8032 = vmatprep.subr.mxu0 0.0
    %8033 = vmatpush2.xpose.msra.mxu0 0.0
    %8034 = vmatprep.subr.mxu0 0.0
    %8035 = vmatpush2.xpose.msra.mxu0 0.0
    %8036 = vmatprep.subr.mxu0 0.0
    %8037 = vmatpush2.xpose.msra.mxu0 0.0
    %8038 = vmatprep.subr.mxu0 0.0
    %8039 = vmatpush2.xpose.msra.mxu0 0.0
    %8040 = vmatprep.subr.mxu0 0.0
    %8041 = vmatpush2.xpose.msra.mxu0 0.0
    %8042 = vmatprep.subr.mxu0 0.0
    %8043 = vmatpush2.xpose.msra.mxu0 0.0
    %8044 = vmatprep.mubr.f32.mxu0 0.0
    %8045 = vmatmul.mubr.f32.gmra.mxu0 %v2806
    %v8046 = vpop.f32.mrf.mxu0
    %v8047 = vadd.f32 0.0, %v8046
    %v8048 = vpop.f32.mrf.mxu0
    %8049 = vdwg.mxu0
    %v8050 = vmul.f32 %v8047, 0.088388346
    %v8051 = vsel %vm7221, %v8050, -1e+30
    %v8052 = vsel %vm7400, %v8051, -inf
    %8053 = vmax.xlane.f32.xlu0 %v8052
    %v8054 = vpop.xlane.xlu0 %8053
    %v8055 = vsub.f32 %v8051, %v8054
    %v8056 = vmul.f32 %v8055, 1.442695
    %v8057 = vpow.pop %v8056
    %v8058 = vsel %vm7400, %v8057, 0.0
    %8059 = vadd.xlane.f32.xlu0 %v8058
    %v8060 = vpop.xlane.xlu0 %8059
    %v8061 = vrcp.pop %v8060
    %v8062 = vmul.f32 %v8057, %v8061
    %v8064 = vsel %vm7412, %v8062, 0
    %v8067 = vsel %vm7416, %v7064, 0
    %8069 = vmatprep.subr.mxu0 0.0
    %8070 = vmatpush1.msra.mxu0 0.0
    %8071 = vmatprep.subr.mxu0 0.0
    %8072 = vmatpush1.msra.mxu0 0.0
    %8073 = vmatprep.subr.mxu0 0.0
    %8074 = vmatpush1.msra.mxu0 0.0
    %8075 = vmatprep.subr.mxu0 0.0
    %8076 = vmatpush1.msra.mxu0 0.0
    %8077 = vmatprep.subr.mxu0 0.0
    %8078 = vmatpush1.msra.mxu0 0.0
    %8079 = vmatprep.subr.mxu0 0.0
    %8080 = vmatpush1.msra.mxu0 0.0
    %8081 = vmatprep.subr.mxu0 0.0
    %8082 = vmatpush1.msra.mxu0 0.0
    %8083 = vmatprep.subr.mxu0 0.0
    %8084 = vmatpush1.msra.mxu0 0.0
    %8085 = vmatprep.subr.mxu0 0.0
    %8086 = vmatpush1.msra.mxu0 0.0
    %8087 = vmatprep.subr.mxu0 0.0
    %8088 = vmatpush1.msra.mxu0 0.0
    %8089 = vmatprep.subr.mxu0 0.0
    %8090 = vmatpush1.msra.mxu0 0.0
    %8091 = vmatprep.subr.mxu0 0.0
    %8092 = vmatpush1.msra.mxu0 0.0
    %8093 = vmatprep.subr.mxu0 0.0
    %8094 = vmatpush1.msra.mxu0 0.0
    %8095 = vmatprep.subr.mxu0 0.0
    %8096 = vmatpush1.msra.mxu0 0.0
    %8097 = vmatprep.subr.mxu0 0.0
    %8098 = vmatpush1.msra.mxu0 0.0
    %8099 = vmatprep.subr.mxu0 0.0
    %8100 = vmatpush1.msra.mxu0 %v8067
    %8101 = vmatprep.subr.mxu0 0.0
    %8102 = vmatpush2.msra.mxu0 0.0
    %8103 = vmatprep.subr.mxu0 0.0
    %8104 = vmatpush2.msra.mxu0 0.0
    %8105 = vmatprep.subr.mxu0 0.0
    %8106 = vmatpush2.msra.mxu0 0.0
    %8107 = vmatprep.subr.mxu0 0.0
    %8108 = vmatpush2.msra.mxu0 0.0
    %8109 = vmatprep.subr.mxu0 0.0
    %8110 = vmatpush2.msra.mxu0 0.0
    %8111 = vmatprep.subr.mxu0 0.0
    %8112 = vmatpush2.msra.mxu0 0.0
    %8113 = vmatprep.subr.mxu0 0.0
    %8114 = vmatpush2.msra.mxu0 0.0
    %8115 = vmatprep.subr.mxu0 0.0
    %8116 = vmatpush2.msra.mxu0 0.0
    %8117 = vmatprep.subr.mxu0 0.0
    %8118 = vmatpush2.msra.mxu0 0.0
    %8119 = vmatprep.subr.mxu0 0.0
    %8120 = vmatpush2.msra.mxu0 0.0
    %8121 = vmatprep.subr.mxu0 0.0
    %8122 = vmatpush2.msra.mxu0 0.0
    %8123 = vmatprep.subr.mxu0 0.0
    %8124 = vmatpush2.msra.mxu0 0.0
    %8125 = vmatprep.subr.mxu0 0.0
    %8126 = vmatpush2.msra.mxu0 0.0
    %8127 = vmatprep.subr.mxu0 0.0
    %8128 = vmatpush2.msra.mxu0 0.0
    %8129 = vmatprep.subr.mxu0 0.0
    %8130 = vmatpush2.msra.mxu0 0.0
    %8131 = vmatprep.subr.mxu0 0.0
    %8132 = vmatpush2.msra.mxu0 0.0
    %8133 = vmatprep.mubr.f32.mxu0 0.0
    %8134 = vmatmul.mubr.f32.gmra.mxu0 %v8064
    %v8135 = vpop.f32.mrf.mxu0
    %v8136 = vadd.f32 0.0, %v8135
    %v8137 = vpop.f32.mrf.mxu0
    %8138 = vdwg.mxu0
    %v8140 = vsel %vm7494, %v8136, 0
    %8142 = vmatprep.subr.mxu0 0.0
    %8143 = vmatpush1.msra.mxu0 0.0
    %8144 = vmatprep.subr.mxu0 0.0
    %8145 = vmatpush1.msra.mxu0 0.0
    %8146 = vmatprep.subr.mxu0 0.0
    %8147 = vmatpush1.msra.mxu0 0.0
    %8148 = vmatprep.subr.mxu0 0.0
    %8149 = vmatpush1.msra.mxu0 0.0
    %8150 = vmatprep.subr.mxu0 0.0
    %8151 = vmatpush1.msra.mxu0 0.0
    %8152 = vmatprep.subr.mxu0 0.0
    %8153 = vmatpush1.msra.mxu0 0.0
    %8154 = vmatprep.subr.mxu0 0.0
    %8155 = vmatpush1.msra.mxu0 0.0
    %8156 = vmatprep.subr.mxu0 0.0
    %8157 = vmatpush1.msra.mxu0 0.0
    %8158 = vmatprep.subr.mxu0 0.0
    %8159 = vmatpush1.msra.mxu0 0.0
    %8160 = vmatprep.subr.mxu0 0.0
    %8161 = vmatpush1.msra.mxu0 0.0
    %8162 = vmatprep.subr.mxu0 0.0
    %8163 = vmatpush1.msra.mxu0 0.0
    %8164 = vmatprep.subr.mxu0 0.0
    %8165 = vmatpush1.msra.mxu0 0.0
    %8166 = vmatprep.subr.mxu0 0.0
    %8167 = vmatpush1.msra.mxu0 0.0
    %8168 = vmatprep.subr.mxu0 0.0
    %8169 = vmatpush1.msra.mxu0 0.0
    %8170 = vmatprep.subr.mxu0 0.0
    %8171 = vmatpush1.msra.mxu0 0.0
    %8172 = vmatprep.subr.mxu0 0.0
    %8173 = vmatpush1.msra.mxu0 %v8140
    %8174 = vmatprep.subr.mxu0 0.0
    %8175 = vmatpush2.msra.mxu0 0.0
    %8176 = vmatprep.subr.mxu0 0.0
    %8177 = vmatpush2.msra.mxu0 0.0
    %8178 = vmatprep.subr.mxu0 0.0
    %8179 = vmatpush2.msra.mxu0 0.0
    %8180 = vmatprep.subr.mxu0 0.0
    %8181 = vmatpush2.msra.mxu0 0.0
    %8182 = vmatprep.subr.mxu0 0.0
    %8183 = vmatpush2.msra.mxu0 0.0
    %8184 = vmatprep.subr.mxu0 0.0
    %8185 = vmatpush2.msra.mxu0 0.0
    %8186 = vmatprep.subr.mxu0 0.0
    %8187 = vmatpush2.msra.mxu0 0.0
    %8188 = vmatprep.subr.mxu0 0.0
    %8189 = vmatpush2.msra.mxu0 0.0
    %8190 = vmatprep.subr.mxu0 0.0
    %8191 = vmatpush2.msra.mxu0 0.0
    %8192 = vmatprep.subr.mxu0 0.0
    %8193 = vmatpush2.msra.mxu0 0.0
    %8194 = vmatprep.subr.mxu0 0.0
    %8195 = vmatpush2.msra.mxu0 0.0
    %8196 = vmatprep.subr.mxu0 0.0
    %8197 = vmatpush2.msra.mxu0 0.0
    %8198 = vmatprep.subr.mxu0 0.0
    %8199 = vmatpush2.msra.mxu0 0.0
    %8200 = vmatprep.subr.mxu0 0.0
    %8201 = vmatpush2.msra.mxu0 0.0
    %8202 = vmatprep.subr.mxu0 0.0
    %8203 = vmatpush2.msra.mxu0 0.0
    %8204 = vmatprep.subr.mxu0 0.0
    %8205 = vmatpush2.msra.mxu0 0.0
    %8206 = vmatprep.mubr.f32.mxu0 0.0
    %8207 = vmatmul.mubr.f32.gmra.mxu0 %v7492
    %v8208 = vpop.f32.mrf.mxu0
    %v8209 = vadd.f32 0.0, %v8208
    %v8210 = vpop.f32.mrf.mxu0
    %8211 = vdwg.mxu0
    %v8212 = vpack.c.bf16 %v8209, %v8209
    %v8229 = vunpack.c.l.b16 %v7256
    %v8230 = vunpack.c.l.b16 %v7257
    %v8231 = vunpack.c.l.b16 %v7258
    %v8232 = vunpack.c.l.b16 %v7259
    %v8233 = vunpack.c.l.b16 %v7260
    %v8234 = vunpack.c.l.b16 %v7261
    %v8235 = vunpack.c.l.b16 %v7262
    %v8236 = vunpack.c.l.b16 %v7263
    %v8237 = vunpack.c.l.b16 %v7264
    %v8238 = vunpack.c.l.b16 %v7265
    %v8239 = vunpack.c.l.b16 %v7266
    %v8240 = vunpack.c.l.b16 %v7267
    %v8241 = vunpack.c.l.b16 %v7268
    %v8242 = vunpack.c.l.b16 %v7269
    %v8243 = vunpack.c.l.b16 %v7270
    %v8244 = vunpack.c.l.b16 %v7271
    %v8245 = vpack.c.b16 %v8230, %v8229
    %v8246 = vpack.c.b16 %v8232, %v8231
    %v8247 = vpack.c.b16 %v8234, %v8233
    %v8248 = vpack.c.b16 %v8236, %v8235
    %v8249 = vpack.c.b16 %v8238, %v8237
    %v8250 = vpack.c.b16 %v8240, %v8239
    %v8251 = vpack.c.b16 %v8242, %v8241
    %v8252 = vpack.c.b16 %v8244, %v8243
    %8261 = vmatprep.subr.bf16.mxu0 0
    %8262 = vmatpush1.bf16.msra.mxu0 %v8252
    %8263 = vmatprep.subr.bf16.mxu0 0
    %8264 = vmatpush1.bf16.msra.mxu0 %v8251
    %8265 = vmatprep.subr.bf16.mxu0 0
    %8266 = vmatpush1.bf16.msra.mxu0 %v8250
    %8267 = vmatprep.subr.bf16.mxu0 0
    %8268 = vmatpush1.bf16.msra.mxu0 %v8249
    %8269 = vmatprep.subr.bf16.mxu0 0
    %8270 = vmatpush1.bf16.msra.mxu0 %v8248
    %8271 = vmatprep.subr.bf16.mxu0 0
    %8272 = vmatpush1.bf16.msra.mxu0 %v8247
    %8273 = vmatprep.subr.bf16.mxu0 0
    %8274 = vmatpush1.bf16.msra.mxu0 %v8246
    %8275 = vmatprep.subr.bf16.mxu0 0
    %8276 = vmatpush1.bf16.msra.mxu0 %v8245
    %8277 = vmatprep.subr.bf16.mxu0 0
    %8278 = vmatpush2.bf16.msra.mxu0 0
    %8279 = vmatprep.subr.bf16.mxu0 0
    %8280 = vmatpush2.bf16.msra.mxu0 0
    %8281 = vmatprep.subr.bf16.mxu0 0
    %8282 = vmatpush2.bf16.msra.mxu0 0
    %8283 = vmatprep.subr.bf16.mxu0 0
    %8284 = vmatpush2.bf16.msra.mxu0 0
    %8285 = vmatprep.subr.bf16.mxu0 0
    %8286 = vmatpush2.bf16.msra.mxu0 0
    %8287 = vmatprep.subr.bf16.mxu0 0
    %8288 = vmatpush2.bf16.msra.mxu0 0
    %8289 = vmatprep.subr.bf16.mxu0 0
    %8290 = vmatpush2.bf16.msra.mxu0 0
    %8291 = vmatprep.subr.bf16.mxu0 0
    %8292 = vmatpush2.bf16.msra.mxu0 0
    %8293 = vmatprep.mubr.bf16.mxu0 0
    %8294 = vmatmul.mubr.bf16.gmra.mxu0 %v8212
    %v8295 = vpop.f32.mrf.mxu0
    %v8296 = vadd.f32 0.0, %v8295
    %v8297 = vpop.f32.mrf.mxu0
    %v8298 = vpop.f32.mrf.mxu0
    %v8299 = vpop.f32.mrf.mxu0
    %8300 = vdwg.mxu0
    %v8301 = vadd.f32 %v7979, %v8296
    %8302 = vmatprep.subr.mxu0 0.0
    %8303 = vmatpush1.xpose.msra.mxu0 0.0
    %8304 = vmatprep.subr.mxu0 0.0
    %8305 = vmatpush1.xpose.msra.mxu0 0.0
    %8306 = vmatprep.subr.mxu0 0.0
    %8307 = vmatpush1.xpose.msra.mxu0 0.0
    %8308 = vmatprep.subr.mxu0 0.0
    %8309 = vmatpush1.xpose.msra.mxu0 0.0
    %8310 = vmatprep.subr.mxu0 0.0
    %8311 = vmatpush1.xpose.msra.mxu0 0.0
    %8312 = vmatprep.subr.mxu0 0.0
    %8313 = vmatpush1.xpose.msra.mxu0 0.0
    %8314 = vmatprep.subr.mxu0 0.0
    %8315 = vmatpush1.xpose.msra.mxu0 0.0
    %8316 = vmatprep.subr.mxu0 0.0
    %8317 = vmatpush1.xpose.msra.mxu0 0.0
    %8318 = vmatprep.subr.mxu0 0.0
    %8319 = vmatpush1.xpose.msra.mxu0 0.0
    %8320 = vmatprep.subr.mxu0 0.0
    %8321 = vmatpush1.xpose.msra.mxu0 0.0
    %8322 = vmatprep.subr.mxu0 0.0
    %8323 = vmatpush1.xpose.msra.mxu0 0.0
    %8324 = vmatprep.subr.mxu0 0.0
    %8325 = vmatpush1.xpose.msra.mxu0 0.0
    %8326 = vmatprep.subr.mxu0 0.0
    %8327 = vmatpush1.xpose.msra.mxu0 0.0
    %8328 = vmatprep.subr.mxu0 0.0
    %8329 = vmatpush1.xpose.msra.mxu0 0.0
    %8330 = vmatprep.subr.mxu0 0.0
    %8331 = vmatpush1.xpose.msra.mxu0 0.0
    %8332 = vmatprep.subr.mxu0 0.0
    %8333 = vmatpush1.xpose.msra.mxu0 %v6697
    %8334 = vmatprep.subr.mxu0 0.0
    %8335 = vmatpush2.xpose.msra.mxu0 0.0
    %8336 = vmatprep.subr.mxu0 0.0
    %8337 = vmatpush2.xpose.msra.mxu0 0.0
    %8338 = vmatprep.subr.mxu0 0.0
    %8339 = vmatpush2.xpose.msra.mxu0 0.0
    %8340 = vmatprep.subr.mxu0 0.0
    %8341 = vmatpush2.xpose.msra.mxu0 0.0
    %8342 = vmatprep.subr.mxu0 0.0
    %8343 = vmatpush2.xpose.msra.mxu0 0.0
    %8344 = vmatprep.subr.mxu0 0.0
    %8345 = vmatpush2.xpose.msra.mxu0 0.0
    %8346 = vmatprep.subr.mxu0 0.0
    %8347 = vmatpush2.xpose.msra.mxu0 0.0
    %8348 = vmatprep.subr.mxu0 0.0
    %8349 = vmatpush2.xpose.msra.mxu0 0.0
    %8350 = vmatprep.subr.mxu0 0.0
    %8351 = vmatpush2.xpose.msra.mxu0 0.0
    %8352 = vmatprep.subr.mxu0 0.0
    %8353 = vmatpush2.xpose.msra.mxu0 0.0
    %8354 = vmatprep.subr.mxu0 0.0
    %8355 = vmatpush2.xpose.msra.mxu0 0.0
    %8356 = vmatprep.subr.mxu0 0.0
    %8357 = vmatpush2.xpose.msra.mxu0 0.0
    %8358 = vmatprep.subr.mxu0 0.0
    %8359 = vmatpush2.xpose.msra.mxu0 0.0
    %8360 = vmatprep.subr.mxu0 0.0
    %8361 = vmatpush2.xpose.msra.mxu0 0.0
    %8362 = vmatprep.subr.mxu0 0.0
    %8363 = vmatpush2.xpose.msra.mxu0 0.0
    %8364 = vmatprep.subr.mxu0 0.0
    %8365 = vmatpush2.xpose.msra.mxu0 0.0
    %8366 = vmatprep.mubr.f32.mxu0 0.0
    %8367 = vmatmul.mubr.f32.gmra.mxu0 %v2808
    %v8368 = vpop.f32.mrf.mxu0
    %v8369 = vadd.f32 0.0, %v8368
    %v8370 = vpop.f32.mrf.mxu0
    %8371 = vdwg.mxu0
    %v8372 = vmul.f32 %v8369, 0.088388346
    %v8373 = vsel %vm7221, %v8372, -1e+30
    %v8374 = vsel %vm7400, %v8373, -inf
    %8375 = vmax.xlane.f32.xlu0 %v8374
    %v8376 = vpop.xlane.xlu0 %8375
    %v8377 = vsub.f32 %v8373, %v8376
    %v8378 = vmul.f32 %v8377, 1.442695
    %v8379 = vpow.pop %v8378
    %v8380 = vsel %vm7400, %v8379, 0.0
    %8381 = vadd.xlane.f32.xlu0 %v8380
    %v8382 = vpop.xlane.xlu0 %8381
    %v8383 = vrcp.pop %v8382
    %v8384 = vmul.f32 %v8379, %v8383
    %v8386 = vsel %vm7412, %v8384, 0
    %v8389 = vsel %vm7416, %v7066, 0
    %8391 = vmatprep.subr.mxu0 0.0
    %8392 = vmatpush1.msra.mxu0 0.0
    %8393 = vmatprep.subr.mxu0 0.0
    %8394 = vmatpush1.msra.mxu0 0.0
    %8395 = vmatprep.subr.mxu0 0.0
    %8396 = vmatpush1.msra.mxu0 0.0
    %8397 = vmatprep.subr.mxu0 0.0
    %8398 = vmatpush1.msra.mxu0 0.0
    %8399 = vmatprep.subr.mxu0 0.0
    %8400 = vmatpush1.msra.mxu0 0.0
    %8401 = vmatprep.subr.mxu0 0.0
    %8402 = vmatpush1.msra.mxu0 0.0
    %8403 = vmatprep.subr.mxu0 0.0
    %8404 = vmatpush1.msra.mxu0 0.0
    %8405 = vmatprep.subr.mxu0 0.0
    %8406 = vmatpush1.msra.mxu0 0.0
    %8407 = vmatprep.subr.mxu0 0.0
    %8408 = vmatpush1.msra.mxu0 0.0
    %8409 = vmatprep.subr.mxu0 0.0
    %8410 = vmatpush1.msra.mxu0 0.0
    %8411 = vmatprep.subr.mxu0 0.0
    %8412 = vmatpush1.msra.mxu0 0.0
    %8413 = vmatprep.subr.mxu0 0.0
    %8414 = vmatpush1.msra.mxu0 0.0
    %8415 = vmatprep.subr.mxu0 0.0
    %8416 = vmatpush1.msra.mxu0 0.0
    %8417 = vmatprep.subr.mxu0 0.0
    %8418 = vmatpush1.msra.mxu0 0.0
    %8419 = vmatprep.subr.mxu0 0.0
    %8420 = vmatpush1.msra.mxu0 0.0
    %8421 = vmatprep.subr.mxu0 0.0
    %8422 = vmatpush1.msra.mxu0 %v8389
    %8423 = vmatprep.subr.mxu0 0.0
    %8424 = vmatpush2.msra.mxu0 0.0
    %8425 = vmatprep.subr.mxu0 0.0
    %8426 = vmatpush2.msra.mxu0 0.0
    %8427 = vmatprep.subr.mxu0 0.0
    %8428 = vmatpush2.msra.mxu0 0.0
    %8429 = vmatprep.subr.mxu0 0.0
    %8430 = vmatpush2.msra.mxu0 0.0
    %8431 = vmatprep.subr.mxu0 0.0
    %8432 = vmatpush2.msra.mxu0 0.0
    %8433 = vmatprep.subr.mxu0 0.0
    %8434 = vmatpush2.msra.mxu0 0.0
    %8435 = vmatprep.subr.mxu0 0.0
    %8436 = vmatpush2.msra.mxu0 0.0
    %8437 = vmatprep.subr.mxu0 0.0
    %8438 = vmatpush2.msra.mxu0 0.0
    %8439 = vmatprep.subr.mxu0 0.0
    %8440 = vmatpush2.msra.mxu0 0.0
    %8441 = vmatprep.subr.mxu0 0.0
    %8442 = vmatpush2.msra.mxu0 0.0
    %8443 = vmatprep.subr.mxu0 0.0
    %8444 = vmatpush2.msra.mxu0 0.0
    %8445 = vmatprep.subr.mxu0 0.0
    %8446 = vmatpush2.msra.mxu0 0.0
    %8447 = vmatprep.subr.mxu0 0.0
    %8448 = vmatpush2.msra.mxu0 0.0
    %8449 = vmatprep.subr.mxu0 0.0
    %8450 = vmatpush2.msra.mxu0 0.0
    %8451 = vmatprep.subr.mxu0 0.0
    %8452 = vmatpush2.msra.mxu0 0.0
    %8453 = vmatprep.subr.mxu0 0.0
    %8454 = vmatpush2.msra.mxu0 0.0
    %8455 = vmatprep.mubr.f32.mxu0 0.0
    %8456 = vmatmul.mubr.f32.gmra.mxu0 %v8386
    %v8457 = vpop.f32.mrf.mxu0
    %v8458 = vadd.f32 0.0, %v8457
    %v8459 = vpop.f32.mrf.mxu0
    %8460 = vdwg.mxu0
    %v8462 = vsel %vm7494, %v8458, 0
    %8464 = vmatprep.subr.mxu0 0.0
    %8465 = vmatpush1.msra.mxu0 0.0
    %8466 = vmatprep.subr.mxu0 0.0
    %8467 = vmatpush1.msra.mxu0 0.0
    %8468 = vmatprep.subr.mxu0 0.0
    %8469 = vmatpush1.msra.mxu0 0.0
    %8470 = vmatprep.subr.mxu0 0.0
    %8471 = vmatpush1.msra.mxu0 0.0
    %8472 = vmatprep.subr.mxu0 0.0
    %8473 = vmatpush1.msra.mxu0 0.0
    %8474 = vmatprep.subr.mxu0 0.0
    %8475 = vmatpush1.msra.mxu0 0.0
    %8476 = vmatprep.subr.mxu0 0.0
    %8477 = vmatpush1.msra.mxu0 0.0
    %8478 = vmatprep.subr.mxu0 0.0
    %8479 = vmatpush1.msra.mxu0 0.0
    %8480 = vmatprep.subr.mxu0 0.0
    %8481 = vmatpush1.msra.mxu0 0.0
    %8482 = vmatprep.subr.mxu0 0.0
    %8483 = vmatpush1.msra.mxu0 0.0
    %8484 = vmatprep.subr.mxu0 0.0
    %8485 = vmatpush1.msra.mxu0 0.0
    %8486 = vmatprep.subr.mxu0 0.0
    %8487 = vmatpush1.msra.mxu0 0.0
    %8488 = vmatprep.subr.mxu0 0.0
    %8489 = vmatpush1.msra.mxu0 0.0
    %8490 = vmatprep.subr.mxu0 0.0
    %8491 = vmatpush1.msra.mxu0 0.0
    %8492 = vmatprep.subr.mxu0 0.0
    %8493 = vmatpush1.msra.mxu0 0.0
    %8494 = vmatprep.subr.mxu0 0.0
    %8495 = vmatpush1.msra.mxu0 %v8462
    %8496 = vmatprep.subr.mxu0 0.0
    %8497 = vmatpush2.msra.mxu0 0.0
    %8498 = vmatprep.subr.mxu0 0.0
    %8499 = vmatpush2.msra.mxu0 0.0
    %8500 = vmatprep.subr.mxu0 0.0
    %8501 = vmatpush2.msra.mxu0 0.0
    %8502 = vmatprep.subr.mxu0 0.0
    %8503 = vmatpush2.msra.mxu0 0.0
    %8504 = vmatprep.subr.mxu0 0.0
    %8505 = vmatpush2.msra.mxu0 0.0
    %8506 = vmatprep.subr.mxu0 0.0
    %8507 = vmatpush2.msra.mxu0 0.0
    %8508 = vmatprep.subr.mxu0 0.0
    %8509 = vmatpush2.msra.mxu0 0.0
    %8510 = vmatprep.subr.mxu0 0.0
    %8511 = vmatpush2.msra.mxu0 0.0
    %8512 = vmatprep.subr.mxu0 0.0
    %8513 = vmatpush2.msra.mxu0 0.0
    %8514 = vmatprep.subr.mxu0 0.0
    %8515 = vmatpush2.msra.mxu0 0.0
    %8516 = vmatprep.subr.mxu0 0.0
    %8517 = vmatpush2.msra.mxu0 0.0
    %8518 = vmatprep.subr.mxu0 0.0
    %8519 = vmatpush2.msra.mxu0 0.0
    %8520 = vmatprep.subr.mxu0 0.0
    %8521 = vmatpush2.msra.mxu0 0.0
    %8522 = vmatprep.subr.mxu0 0.0
    %8523 = vmatpush2.msra.mxu0 0.0
    %8524 = vmatprep.subr.mxu0 0.0
    %8525 = vmatpush2.msra.mxu0 0.0
    %8526 = vmatprep.subr.mxu0 0.0
    %8527 = vmatpush2.msra.mxu0 0.0
    %8528 = vmatprep.mubr.f32.mxu0 0.0
    %8529 = vmatmul.mubr.f32.gmra.mxu0 %v7492
    %v8530 = vpop.f32.mrf.mxu0
    %v8531 = vadd.f32 0.0, %v8530
    %v8532 = vpop.f32.mrf.mxu0
    %8533 = vdwg.mxu0
    %v8534 = vpack.c.bf16 %v8531, %v8531
    %v8551 = vunpack.c.l.b16 %v7272
    %v8552 = vunpack.c.l.b16 %v7273
    %v8553 = vunpack.c.l.b16 %v7274
    %v8554 = vunpack.c.l.b16 %v7275
    %v8555 = vunpack.c.l.b16 %v7276
    %v8556 = vunpack.c.l.b16 %v7277
    %v8557 = vunpack.c.l.b16 %v7278
    %v8558 = vunpack.c.l.b16 %v7279
    %v8559 = vunpack.c.l.b16 %v7280
    %v8560 = vunpack.c.l.b16 %v7281
    %v8561 = vunpack.c.l.b16 %v7282
    %v8562 = vunpack.c.l.b16 %v7283
    %v8563 = vunpack.c.l.b16 %v7284
    %v8564 = vunpack.c.l.b16 %v7285
    %v8565 = vunpack.c.l.b16 %v7286
    %v8566 = vunpack.c.l.b16 %v7287
    %v8567 = vpack.c.b16 %v8552, %v8551
    %v8568 = vpack.c.b16 %v8554, %v8553
    %v8569 = vpack.c.b16 %v8556, %v8555
    %v8570 = vpack.c.b16 %v8558, %v8557
    %v8571 = vpack.c.b16 %v8560, %v8559
    %v8572 = vpack.c.b16 %v8562, %v8561
    %v8573 = vpack.c.b16 %v8564, %v8563
    %v8574 = vpack.c.b16 %v8566, %v8565
    %8583 = vmatprep.subr.bf16.mxu0 0
    %8584 = vmatpush1.bf16.msra.mxu0 %v8574
    %8585 = vmatprep.subr.bf16.mxu0 0
    %8586 = vmatpush1.bf16.msra.mxu0 %v8573
    %8587 = vmatprep.subr.bf16.mxu0 0
    %8588 = vmatpush1.bf16.msra.mxu0 %v8572
    %8589 = vmatprep.subr.bf16.mxu0 0
    %8590 = vmatpush1.bf16.msra.mxu0 %v8571
    %8591 = vmatprep.subr.bf16.mxu0 0
    %8592 = vmatpush1.bf16.msra.mxu0 %v8570
    %8593 = vmatprep.subr.bf16.mxu0 0
    %8594 = vmatpush1.bf16.msra.mxu0 %v8569
    %8595 = vmatprep.subr.bf16.mxu0 0
    %8596 = vmatpush1.bf16.msra.mxu0 %v8568
    %8597 = vmatprep.subr.bf16.mxu0 0
    %8598 = vmatpush1.bf16.msra.mxu0 %v8567
    %8599 = vmatprep.subr.bf16.mxu0 0
    %8600 = vmatpush2.bf16.msra.mxu0 0
    %8601 = vmatprep.subr.bf16.mxu0 0
    %8602 = vmatpush2.bf16.msra.mxu0 0
    %8603 = vmatprep.subr.bf16.mxu0 0
    %8604 = vmatpush2.bf16.msra.mxu0 0
    %8605 = vmatprep.subr.bf16.mxu0 0
    %8606 = vmatpush2.bf16.msra.mxu0 0
    %8607 = vmatprep.subr.bf16.mxu0 0
    %8608 = vmatpush2.bf16.msra.mxu0 0
    %8609 = vmatprep.subr.bf16.mxu0 0
    %8610 = vmatpush2.bf16.msra.mxu0 0
    %8611 = vmatprep.subr.bf16.mxu0 0
    %8612 = vmatpush2.bf16.msra.mxu0 0
    %8613 = vmatprep.subr.bf16.mxu0 0
    %8614 = vmatpush2.bf16.msra.mxu0 0
    %8615 = vmatprep.mubr.bf16.mxu0 0
    %8616 = vmatmul.mubr.bf16.gmra.mxu0 %v8534
    %v8617 = vpop.f32.mrf.mxu0
    %v8618 = vadd.f32 0.0, %v8617
    %v8619 = vpop.f32.mrf.mxu0
    %v8620 = vpop.f32.mrf.mxu0
    %v8621 = vpop.f32.mrf.mxu0
    %8622 = vdwg.mxu0
    %v8623 = vadd.f32 %v8301, %v8618
    %8624 = vmatprep.subr.mxu0 0.0
    %8625 = vmatpush1.xpose.msra.mxu0 0.0
    %8626 = vmatprep.subr.mxu0 0.0
    %8627 = vmatpush1.xpose.msra.mxu0 0.0
    %8628 = vmatprep.subr.mxu0 0.0
    %8629 = vmatpush1.xpose.msra.mxu0 0.0
    %8630 = vmatprep.subr.mxu0 0.0
    %8631 = vmatpush1.xpose.msra.mxu0 0.0
    %8632 = vmatprep.subr.mxu0 0.0
    %8633 = vmatpush1.xpose.msra.mxu0 0.0
    %8634 = vmatprep.subr.mxu0 0.0
    %8635 = vmatpush1.xpose.msra.mxu0 0.0
    %8636 = vmatprep.subr.mxu0 0.0
    %8637 = vmatpush1.xpose.msra.mxu0 0.0
    %8638 = vmatprep.subr.mxu0 0.0
    %8639 = vmatpush1.xpose.msra.mxu0 0.0
    %8640 = vmatprep.subr.mxu0 0.0
    %8641 = vmatpush1.xpose.msra.mxu0 0.0
    %8642 = vmatprep.subr.mxu0 0.0
    %8643 = vmatpush1.xpose.msra.mxu0 0.0
    %8644 = vmatprep.subr.mxu0 0.0
    %8645 = vmatpush1.xpose.msra.mxu0 0.0
    %8646 = vmatprep.subr.mxu0 0.0
    %8647 = vmatpush1.xpose.msra.mxu0 0.0
    %8648 = vmatprep.subr.mxu0 0.0
    %8649 = vmatpush1.xpose.msra.mxu0 0.0
    %8650 = vmatprep.subr.mxu0 0.0
    %8651 = vmatpush1.xpose.msra.mxu0 0.0
    %8652 = vmatprep.subr.mxu0 0.0
    %8653 = vmatpush1.xpose.msra.mxu0 0.0
    %8654 = vmatprep.subr.mxu0 0.0
    %8655 = vmatpush1.xpose.msra.mxu0 %v6818
    %8656 = vmatprep.subr.mxu0 0.0
    %8657 = vmatpush2.xpose.msra.mxu0 0.0
    %8658 = vmatprep.subr.mxu0 0.0
    %8659 = vmatpush2.xpose.msra.mxu0 0.0
    %8660 = vmatprep.subr.mxu0 0.0
    %8661 = vmatpush2.xpose.msra.mxu0 0.0
    %8662 = vmatprep.subr.mxu0 0.0
    %8663 = vmatpush2.xpose.msra.mxu0 0.0
    %8664 = vmatprep.subr.mxu0 0.0
    %8665 = vmatpush2.xpose.msra.mxu0 0.0
    %8666 = vmatprep.subr.mxu0 0.0
    %8667 = vmatpush2.xpose.msra.mxu0 0.0
    %8668 = vmatprep.subr.mxu0 0.0
    %8669 = vmatpush2.xpose.msra.mxu0 0.0
    %8670 = vmatprep.subr.mxu0 0.0
    %8671 = vmatpush2.xpose.msra.mxu0 0.0
    %8672 = vmatprep.subr.mxu0 0.0
    %8673 = vmatpush2.xpose.msra.mxu0 0.0
    %8674 = vmatprep.subr.mxu0 0.0
    %8675 = vmatpush2.xpose.msra.mxu0 0.0
    %8676 = vmatprep.subr.mxu0 0.0
    %8677 = vmatpush2.xpose.msra.mxu0 0.0
    %8678 = vmatprep.subr.mxu0 0.0
    %8679 = vmatpush2.xpose.msra.mxu0 0.0
    %8680 = vmatprep.subr.mxu0 0.0
    %8681 = vmatpush2.xpose.msra.mxu0 0.0
    %8682 = vmatprep.subr.mxu0 0.0
    %8683 = vmatpush2.xpose.msra.mxu0 0.0
    %8684 = vmatprep.subr.mxu0 0.0
    %8685 = vmatpush2.xpose.msra.mxu0 0.0
    %8686 = vmatprep.subr.mxu0 0.0
    %8687 = vmatpush2.xpose.msra.mxu0 0.0
    %8688 = vmatprep.mubr.f32.mxu0 0.0
    %8689 = vmatmul.mubr.f32.gmra.mxu0 %v2929
    %v8690 = vpop.f32.mrf.mxu0
    %v8691 = vadd.f32 0.0, %v8690
    %v8692 = vpop.f32.mrf.mxu0
    %8693 = vdwg.mxu0
    %v8694 = vmul.f32 %v8691, 0.088388346
    %v8695 = vsel %vm7221, %v8694, -1e+30
    %v8696 = vsel %vm7400, %v8695, -inf
    %8697 = vmax.xlane.f32.xlu0 %v8696
    %v8698 = vpop.xlane.xlu0 %8697
    %v8699 = vsub.f32 %v8695, %v8698
    %v8700 = vmul.f32 %v8699, 1.442695
    %v8701 = vpow.pop %v8700
    %v8702 = vsel %vm7400, %v8701, 0.0
    %8703 = vadd.xlane.f32.xlu0 %v8702
    %v8704 = vpop.xlane.xlu0 %8703
    %v8705 = vrcp.pop %v8704
    %v8706 = vmul.f32 %v8701, %v8705
    %v8708 = vsel %vm7412, %v8706, 0
    %v8711 = vsel %vm7416, %v7187, 0
    %8713 = vmatprep.subr.mxu0 0.0
    %8714 = vmatpush1.msra.mxu0 0.0
    %8715 = vmatprep.subr.mxu0 0.0
    %8716 = vmatpush1.msra.mxu0 0.0
    %8717 = vmatprep.subr.mxu0 0.0
    %8718 = vmatpush1.msra.mxu0 0.0
    %8719 = vmatprep.subr.mxu0 0.0
    %8720 = vmatpush1.msra.mxu0 0.0
    %8721 = vmatprep.subr.mxu0 0.0
    %8722 = vmatpush1.msra.mxu0 0.0
    %8723 = vmatprep.subr.mxu0 0.0
    %8724 = vmatpush1.msra.mxu0 0.0
    %8725 = vmatprep.subr.mxu0 0.0
    %8726 = vmatpush1.msra.mxu0 0.0
    %8727 = vmatprep.subr.mxu0 0.0
    %8728 = vmatpush1.msra.mxu0 0.0
    %8729 = vmatprep.subr.mxu0 0.0
    %8730 = vmatpush1.msra.mxu0 0.0
    %8731 = vmatprep.subr.mxu0 0.0
    %8732 = vmatpush1.msra.mxu0 0.0
    %8733 = vmatprep.subr.mxu0 0.0
    %8734 = vmatpush1.msra.mxu0 0.0
    %8735 = vmatprep.subr.mxu0 0.0
    %8736 = vmatpush1.msra.mxu0 0.0
    %8737 = vmatprep.subr.mxu0 0.0
    %8738 = vmatpush1.msra.mxu0 0.0
    %8739 = vmatprep.subr.mxu0 0.0
    %8740 = vmatpush1.msra.mxu0 0.0
    %8741 = vmatprep.subr.mxu0 0.0
    %8742 = vmatpush1.msra.mxu0 0.0
    %8743 = vmatprep.subr.mxu0 0.0
    %8744 = vmatpush1.msra.mxu0 %v8711
    %8745 = vmatprep.subr.mxu0 0.0
    %8746 = vmatpush2.msra.mxu0 0.0
    %8747 = vmatprep.subr.mxu0 0.0
    %8748 = vmatpush2.msra.mxu0 0.0
    %8749 = vmatprep.subr.mxu0 0.0
    %8750 = vmatpush2.msra.mxu0 0.0
    %8751 = vmatprep.subr.mxu0 0.0
    %8752 = vmatpush2.msra.mxu0 0.0
    %8753 = vmatprep.subr.mxu0 0.0
    %8754 = vmatpush2.msra.mxu0 0.0
    %8755 = vmatprep.subr.mxu0 0.0
    %8756 = vmatpush2.msra.mxu0 0.0
    %8757 = vmatprep.subr.mxu0 0.0
    %8758 = vmatpush2.msra.mxu0 0.0
    %8759 = vmatprep.subr.mxu0 0.0
    %8760 = vmatpush2.msra.mxu0 0.0
    %8761 = vmatprep.subr.mxu0 0.0
    %8762 = vmatpush2.msra.mxu0 0.0
    %8763 = vmatprep.subr.mxu0 0.0
    %8764 = vmatpush2.msra.mxu0 0.0
    %8765 = vmatprep.subr.mxu0 0.0
    %8766 = vmatpush2.msra.mxu0 0.0
    %8767 = vmatprep.subr.mxu0 0.0
    %8768 = vmatpush2.msra.mxu0 0.0
    %8769 = vmatprep.subr.mxu0 0.0
    %8770 = vmatpush2.msra.mxu0 0.0
    %8771 = vmatprep.subr.mxu0 0.0
    %8772 = vmatpush2.msra.mxu0 0.0
    %8773 = vmatprep.subr.mxu0 0.0
    %8774 = vmatpush2.msra.mxu0 0.0
    %8775 = vmatprep.subr.mxu0 0.0
    %8776 = vmatpush2.msra.mxu0 0.0
    %8777 = vmatprep.mubr.f32.mxu0 0.0
    %8778 = vmatmul.mubr.f32.gmra.mxu0 %v8708
    %v8779 = vpop.f32.mrf.mxu0
    %v8780 = vadd.f32 0.0, %v8779
    %v8781 = vpop.f32.mrf.mxu0
    %8782 = vdwg.mxu0
    %v8784 = vsel %vm7494, %v8780, 0
    %8786 = vmatprep.subr.mxu0 0.0
    %8787 = vmatpush1.msra.mxu0 0.0
    %8788 = vmatprep.subr.mxu0 0.0
    %8789 = vmatpush1.msra.mxu0 0.0
    %8790 = vmatprep.subr.mxu0 0.0
    %8791 = vmatpush1.msra.mxu0 0.0
    %8792 = vmatprep.subr.mxu0 0.0
    %8793 = vmatpush1.msra.mxu0 0.0
    %8794 = vmatprep.subr.mxu0 0.0
    %8795 = vmatpush1.msra.mxu0 0.0
    %8796 = vmatprep.subr.mxu0 0.0
    %8797 = vmatpush1.msra.mxu0 0.0
    %8798 = vmatprep.subr.mxu0 0.0
    %8799 = vmatpush1.msra.mxu0 0.0
    %8800 = vmatprep.subr.mxu0 0.0
    %8801 = vmatpush1.msra.mxu0 0.0
    %8802 = vmatprep.subr.mxu0 0.0
    %8803 = vmatpush1.msra.mxu0 0.0
    %8804 = vmatprep.subr.mxu0 0.0
    %8805 = vmatpush1.msra.mxu0 0.0
    %8806 = vmatprep.subr.mxu0 0.0
    %8807 = vmatpush1.msra.mxu0 0.0
    %8808 = vmatprep.subr.mxu0 0.0
    %8809 = vmatpush1.msra.mxu0 0.0
    %8810 = vmatprep.subr.mxu0 0.0
    %8811 = vmatpush1.msra.mxu0 0.0
    %8812 = vmatprep.subr.mxu0 0.0
    %8813 = vmatpush1.msra.mxu0 0.0
    %8814 = vmatprep.subr.mxu0 0.0
    %8815 = vmatpush1.msra.mxu0 0.0
    %8816 = vmatprep.subr.mxu0 0.0
    %8817 = vmatpush1.msra.mxu0 %v8784
    %8818 = vmatprep.subr.mxu0 0.0
    %8819 = vmatpush2.msra.mxu0 0.0
    %8820 = vmatprep.subr.mxu0 0.0
    %8821 = vmatpush2.msra.mxu0 0.0
    %8822 = vmatprep.subr.mxu0 0.0
    %8823 = vmatpush2.msra.mxu0 0.0
    %8824 = vmatprep.subr.mxu0 0.0
    %8825 = vmatpush2.msra.mxu0 0.0
    %8826 = vmatprep.subr.mxu0 0.0
    %8827 = vmatpush2.msra.mxu0 0.0
    %8828 = vmatprep.subr.mxu0 0.0
    %8829 = vmatpush2.msra.mxu0 0.0
    %8830 = vmatprep.subr.mxu0 0.0
    %8831 = vmatpush2.msra.mxu0 0.0
    %8832 = vmatprep.subr.mxu0 0.0
    %8833 = vmatpush2.msra.mxu0 0.0
    %8834 = vmatprep.subr.mxu0 0.0
    %8835 = vmatpush2.msra.mxu0 0.0
    %8836 = vmatprep.subr.mxu0 0.0
    %8837 = vmatpush2.msra.mxu0 0.0
    %8838 = vmatprep.subr.mxu0 0.0
    %8839 = vmatpush2.msra.mxu0 0.0
    %8840 = vmatprep.subr.mxu0 0.0
    %8841 = vmatpush2.msra.mxu0 0.0
    %8842 = vmatprep.subr.mxu0 0.0
    %8843 = vmatpush2.msra.mxu0 0.0
    %8844 = vmatprep.subr.mxu0 0.0
    %8845 = vmatpush2.msra.mxu0 0.0
    %8846 = vmatprep.subr.mxu0 0.0
    %8847 = vmatpush2.msra.mxu0 0.0
    %8848 = vmatprep.subr.mxu0 0.0
    %8849 = vmatpush2.msra.mxu0 0.0
    %8850 = vmatprep.mubr.f32.mxu0 0.0
    %8851 = vmatmul.mubr.f32.gmra.mxu0 %v7492
    %v8852 = vpop.f32.mrf.mxu0
    %v8853 = vadd.f32 0.0, %v8852
    %v8854 = vpop.f32.mrf.mxu0
    %8855 = vdwg.mxu0
    %v8856 = vpack.c.bf16 %v8853, %v8853
    %v8873 = vunpack.c.l.b16 %v7288
    %v8874 = vunpack.c.l.b16 %v7289
    %v8875 = vunpack.c.l.b16 %v7290
    %v8876 = vunpack.c.l.b16 %v7291
    %v8877 = vunpack.c.l.b16 %v7292
    %v8878 = vunpack.c.l.b16 %v7293
    %v8879 = vunpack.c.l.b16 %v7294
    %v8880 = vunpack.c.l.b16 %v7295
    %v8881 = vunpack.c.l.b16 %v7296
    %v8882 = vunpack.c.l.b16 %v7297
    %v8883 = vunpack.c.l.b16 %v7298
    %v8884 = vunpack.c.l.b16 %v7299
    %v8885 = vunpack.c.l.b16 %v7300
    %v8886 = vunpack.c.l.b16 %v7301
    %v8887 = vunpack.c.l.b16 %v7302
    %v8888 = vunpack.c.l.b16 %v7303
    %v8889 = vpack.c.b16 %v8874, %v8873
    %v8890 = vpack.c.b16 %v8876, %v8875
    %v8891 = vpack.c.b16 %v8878, %v8877
    %v8892 = vpack.c.b16 %v8880, %v8879
    %v8893 = vpack.c.b16 %v8882, %v8881
    %v8894 = vpack.c.b16 %v8884, %v8883
    %v8895 = vpack.c.b16 %v8886, %v8885
    %v8896 = vpack.c.b16 %v8888, %v8887
    %8905 = vmatprep.subr.bf16.mxu0 0
    %8906 = vmatpush1.bf16.msra.mxu0 %v8896
    %8907 = vmatprep.subr.bf16.mxu0 0
    %8908 = vmatpush1.bf16.msra.mxu0 %v8895
    %8909 = vmatprep.subr.bf16.mxu0 0
    %8910 = vmatpush1.bf16.msra.mxu0 %v8894
    %8911 = vmatprep.subr.bf16.mxu0 0
    %8912 = vmatpush1.bf16.msra.mxu0 %v8893
    %8913 = vmatprep.subr.bf16.mxu0 0
    %8914 = vmatpush1.bf16.msra.mxu0 %v8892
    %8915 = vmatprep.subr.bf16.mxu0 0
    %8916 = vmatpush1.bf16.msra.mxu0 %v8891
    %8917 = vmatprep.subr.bf16.mxu0 0
    %8918 = vmatpush1.bf16.msra.mxu0 %v8890
    %8919 = vmatprep.subr.bf16.mxu0 0
    %8920 = vmatpush1.bf16.msra.mxu0 %v8889
    %8921 = vmatprep.subr.bf16.mxu0 0
    %8922 = vmatpush2.bf16.msra.mxu0 0
    %8923 = vmatprep.subr.bf16.mxu0 0
    %8924 = vmatpush2.bf16.msra.mxu0 0
    %8925 = vmatprep.subr.bf16.mxu0 0
    %8926 = vmatpush2.bf16.msra.mxu0 0
    %8927 = vmatprep.subr.bf16.mxu0 0
    %8928 = vmatpush2.bf16.msra.mxu0 0
    %8929 = vmatprep.subr.bf16.mxu0 0
    %8930 = vmatpush2.bf16.msra.mxu0 0
    %8931 = vmatprep.subr.bf16.mxu0 0
    %8932 = vmatpush2.bf16.msra.mxu0 0
    %8933 = vmatprep.subr.bf16.mxu0 0
    %8934 = vmatpush2.bf16.msra.mxu0 0
    %8935 = vmatprep.subr.bf16.mxu0 0
    %8936 = vmatpush2.bf16.msra.mxu0 0
    %8937 = vmatprep.mubr.bf16.mxu0 0
    %8938 = vmatmul.mubr.bf16.gmra.mxu0 %v8856
    %v8939 = vpop.f32.mrf.mxu0
    %v8940 = vadd.f32 0.0, %v8939
    %v8941 = vpop.f32.mrf.mxu0
    %v8942 = vpop.f32.mrf.mxu0
    %v8943 = vpop.f32.mrf.mxu0
    %8944 = vdwg.mxu0
    %v8945 = vadd.f32 %v8623, %v8940
    %8946 = vmatprep.subr.mxu0 0.0
    %8947 = vmatpush1.xpose.msra.mxu0 0.0
    %8948 = vmatprep.subr.mxu0 0.0
    %8949 = vmatpush1.xpose.msra.mxu0 0.0
    %8950 = vmatprep.subr.mxu0 0.0
    %8951 = vmatpush1.xpose.msra.mxu0 0.0
    %8952 = vmatprep.subr.mxu0 0.0
    %8953 = vmatpush1.xpose.msra.mxu0 0.0
    %8954 = vmatprep.subr.mxu0 0.0
    %8955 = vmatpush1.xpose.msra.mxu0 0.0
    %8956 = vmatprep.subr.mxu0 0.0
    %8957 = vmatpush1.xpose.msra.mxu0 0.0
    %8958 = vmatprep.subr.mxu0 0.0
    %8959 = vmatpush1.xpose.msra.mxu0 0.0
    %8960 = vmatprep.subr.mxu0 0.0
    %8961 = vmatpush1.xpose.msra.mxu0 0.0
    %8962 = vmatprep.subr.mxu0 0.0
    %8963 = vmatpush1.xpose.msra.mxu0 0.0
    %8964 = vmatprep.subr.mxu0 0.0
    %8965 = vmatpush1.xpose.msra.mxu0 0.0
    %8966 = vmatprep.subr.mxu0 0.0
    %8967 = vmatpush1.xpose.msra.mxu0 0.0
    %8968 = vmatprep.subr.mxu0 0.0
    %8969 = vmatpush1.xpose.msra.mxu0 0.0
    %8970 = vmatprep.subr.mxu0 0.0
    %8971 = vmatpush1.xpose.msra.mxu0 0.0
    %8972 = vmatprep.subr.mxu0 0.0
    %8973 = vmatpush1.xpose.msra.mxu0 0.0
    %8974 = vmatprep.subr.mxu0 0.0
    %8975 = vmatpush1.xpose.msra.mxu0 0.0
    %8976 = vmatprep.subr.mxu0 0.0
    %8977 = vmatpush1.xpose.msra.mxu0 %v6820
    %8978 = vmatprep.subr.mxu0 0.0
    %8979 = vmatpush2.xpose.msra.mxu0 0.0
    %8980 = vmatprep.subr.mxu0 0.0
    %8981 = vmatpush2.xpose.msra.mxu0 0.0
    %8982 = vmatprep.subr.mxu0 0.0
    %8983 = vmatpush2.xpose.msra.mxu0 0.0
    %8984 = vmatprep.subr.mxu0 0.0
    %8985 = vmatpush2.xpose.msra.mxu0 0.0
    %8986 = vmatprep.subr.mxu0 0.0
    %8987 = vmatpush2.xpose.msra.mxu0 0.0
    %8988 = vmatprep.subr.mxu0 0.0
    %8989 = vmatpush2.xpose.msra.mxu0 0.0
    %8990 = vmatprep.subr.mxu0 0.0
    %8991 = vmatpush2.xpose.msra.mxu0 0.0
    %8992 = vmatprep.subr.mxu0 0.0
    %8993 = vmatpush2.xpose.msra.mxu0 0.0
    %8994 = vmatprep.subr.mxu0 0.0
    %8995 = vmatpush2.xpose.msra.mxu0 0.0
    %8996 = vmatprep.subr.mxu0 0.0
    %8997 = vmatpush2.xpose.msra.mxu0 0.0
    %8998 = vmatprep.subr.mxu0 0.0
    %8999 = vmatpush2.xpose.msra.mxu0 0.0
    %9000 = vmatprep.subr.mxu0 0.0
    %9001 = vmatpush2.xpose.msra.mxu0 0.0
    %9002 = vmatprep.subr.mxu0 0.0
    %9003 = vmatpush2.xpose.msra.mxu0 0.0
    %9004 = vmatprep.subr.mxu0 0.0
    %9005 = vmatpush2.xpose.msra.mxu0 0.0
    %9006 = vmatprep.subr.mxu0 0.0
    %9007 = vmatpush2.xpose.msra.mxu0 0.0
    %9008 = vmatprep.subr.mxu0 0.0
    %9009 = vmatpush2.xpose.msra.mxu0 0.0
    %9010 = vmatprep.mubr.f32.mxu0 0.0
    %9011 = vmatmul.mubr.f32.gmra.mxu0 %v2931
    %v9012 = vpop.f32.mrf.mxu0
    %v9013 = vadd.f32 0.0, %v9012
    %v9014 = vpop.f32.mrf.mxu0
    %9015 = vdwg.mxu0
    %v9016 = vmul.f32 %v9013, 0.088388346
    %v9017 = vsel %vm7221, %v9016, -1e+30
    %v9018 = vsel %vm7400, %v9017, -inf
    %9019 = vmax.xlane.f32.xlu0 %v9018
    %v9020 = vpop.xlane.xlu0 %9019
    %v9021 = vsub.f32 %v9017, %v9020
    %v9022 = vmul.f32 %v9021, 1.442695
    %v9023 = vpow.pop %v9022
    %v9024 = vsel %vm7400, %v9023, 0.0
    %9025 = vadd.xlane.f32.xlu0 %v9024
    %v9026 = vpop.xlane.xlu0 %9025
    %v9027 = vrcp.pop %v9026
    %v9028 = vmul.f32 %v9023, %v9027
    %v9030 = vsel %vm7412, %v9028, 0
    %v9033 = vsel %vm7416, %v7189, 0
    %9035 = vmatprep.subr.mxu0 0.0
    %9036 = vmatpush1.msra.mxu0 0.0
    %9037 = vmatprep.subr.mxu0 0.0
    %9038 = vmatpush1.msra.mxu0 0.0
    %9039 = vmatprep.subr.mxu0 0.0
    %9040 = vmatpush1.msra.mxu0 0.0
    %9041 = vmatprep.subr.mxu0 0.0
    %9042 = vmatpush1.msra.mxu0 0.0
    %9043 = vmatprep.subr.mxu0 0.0
    %9044 = vmatpush1.msra.mxu0 0.0
    %9045 = vmatprep.subr.mxu0 0.0
    %9046 = vmatpush1.msra.mxu0 0.0
    %9047 = vmatprep.subr.mxu0 0.0
    %9048 = vmatpush1.msra.mxu0 0.0
    %9049 = vmatprep.subr.mxu0 0.0
    %9050 = vmatpush1.msra.mxu0 0.0
    %9051 = vmatprep.subr.mxu0 0.0
    %9052 = vmatpush1.msra.mxu0 0.0
    %9053 = vmatprep.subr.mxu0 0.0
    %9054 = vmatpush1.msra.mxu0 0.0
    %9055 = vmatprep.subr.mxu0 0.0
    %9056 = vmatpush1.msra.mxu0 0.0
    %9057 = vmatprep.subr.mxu0 0.0
    %9058 = vmatpush1.msra.mxu0 0.0
    %9059 = vmatprep.subr.mxu0 0.0
    %9060 = vmatpush1.msra.mxu0 0.0
    %9061 = vmatprep.subr.mxu0 0.0
    %9062 = vmatpush1.msra.mxu0 0.0
    %9063 = vmatprep.subr.mxu0 0.0
    %9064 = vmatpush1.msra.mxu0 0.0
    %9065 = vmatprep.subr.mxu0 0.0
    %9066 = vmatpush1.msra.mxu0 %v9033
    %9067 = vmatprep.subr.mxu0 0.0
    %9068 = vmatpush2.msra.mxu0 0.0
    %9069 = vmatprep.subr.mxu0 0.0
    %9070 = vmatpush2.msra.mxu0 0.0
    %9071 = vmatprep.subr.mxu0 0.0
    %9072 = vmatpush2.msra.mxu0 0.0
    %9073 = vmatprep.subr.mxu0 0.0
    %9074 = vmatpush2.msra.mxu0 0.0
    %9075 = vmatprep.subr.mxu0 0.0
    %9076 = vmatpush2.msra.mxu0 0.0
    %9077 = vmatprep.subr.mxu0 0.0
    %9078 = vmatpush2.msra.mxu0 0.0
    %9079 = vmatprep.subr.mxu0 0.0
    %9080 = vmatpush2.msra.mxu0 0.0
    %9081 = vmatprep.subr.mxu0 0.0
    %9082 = vmatpush2.msra.mxu0 0.0
    %9083 = vmatprep.subr.mxu0 0.0
    %9084 = vmatpush2.msra.mxu0 0.0
    %9085 = vmatprep.subr.mxu0 0.0
    %9086 = vmatpush2.msra.mxu0 0.0
    %9087 = vmatprep.subr.mxu0 0.0
    %9088 = vmatpush2.msra.mxu0 0.0
    %9089 = vmatprep.subr.mxu0 0.0
    %9090 = vmatpush2.msra.mxu0 0.0
    %9091 = vmatprep.subr.mxu0 0.0
    %9092 = vmatpush2.msra.mxu0 0.0
    %9093 = vmatprep.subr.mxu0 0.0
    %9094 = vmatpush2.msra.mxu0 0.0
    %9095 = vmatprep.subr.mxu0 0.0
    %9096 = vmatpush2.msra.mxu0 0.0
    %9097 = vmatprep.subr.mxu0 0.0
    %9098 = vmatpush2.msra.mxu0 0.0
    %9099 = vmatprep.mubr.f32.mxu0 0.0
    %9100 = vmatmul.mubr.f32.gmra.mxu0 %v9030
    %v9101 = vpop.f32.mrf.mxu0
    %v9102 = vadd.f32 0.0, %v9101
    %v9103 = vpop.f32.mrf.mxu0
    %9104 = vdwg.mxu0
    %v9106 = vsel %vm7494, %v9102, 0
    %9108 = vmatprep.subr.mxu0 0.0
    %9109 = vmatpush1.msra.mxu0 0.0
    %9110 = vmatprep.subr.mxu0 0.0
    %9111 = vmatpush1.msra.mxu0 0.0
    %9112 = vmatprep.subr.mxu0 0.0
    %9113 = vmatpush1.msra.mxu0 0.0
    %9114 = vmatprep.subr.mxu0 0.0
    %9115 = vmatpush1.msra.mxu0 0.0
    %9116 = vmatprep.subr.mxu0 0.0
    %9117 = vmatpush1.msra.mxu0 0.0
    %9118 = vmatprep.subr.mxu0 0.0
    %9119 = vmatpush1.msra.mxu0 0.0
    %9120 = vmatprep.subr.mxu0 0.0
    %9121 = vmatpush1.msra.mxu0 0.0
    %9122 = vmatprep.subr.mxu0 0.0
    %9123 = vmatpush1.msra.mxu0 0.0
    %9124 = vmatprep.subr.mxu0 0.0
    %9125 = vmatpush1.msra.mxu0 0.0
    %9126 = vmatprep.subr.mxu0 0.0
    %9127 = vmatpush1.msra.mxu0 0.0
    %9128 = vmatprep.subr.mxu0 0.0
    %9129 = vmatpush1.msra.mxu0 0.0
    %9130 = vmatprep.subr.mxu0 0.0
    %9131 = vmatpush1.msra.mxu0 0.0
    %9132 = vmatprep.subr.mxu0 0.0
    %9133 = vmatpush1.msra.mxu0 0.0
    %9134 = vmatprep.subr.mxu0 0.0
    %9135 = vmatpush1.msra.mxu0 0.0
    %9136 = vmatprep.subr.mxu0 0.0
    %9137 = vmatpush1.msra.mxu0 0.0
    %9138 = vmatprep.subr.mxu0 0.0
    %9139 = vmatpush1.msra.mxu0 %v9106
    %9140 = vmatprep.subr.mxu0 0.0
    %9141 = vmatpush2.msra.mxu0 0.0
    %9142 = vmatprep.subr.mxu0 0.0
    %9143 = vmatpush2.msra.mxu0 0.0
    %9144 = vmatprep.subr.mxu0 0.0
    %9145 = vmatpush2.msra.mxu0 0.0
    %9146 = vmatprep.subr.mxu0 0.0
    %9147 = vmatpush2.msra.mxu0 0.0
    %9148 = vmatprep.subr.mxu0 0.0
    %9149 = vmatpush2.msra.mxu0 0.0
    %9150 = vmatprep.subr.mxu0 0.0
    %9151 = vmatpush2.msra.mxu0 0.0
    %9152 = vmatprep.subr.mxu0 0.0
    %9153 = vmatpush2.msra.mxu0 0.0
    %9154 = vmatprep.subr.mxu0 0.0
    %9155 = vmatpush2.msra.mxu0 0.0
    %9156 = vmatprep.subr.mxu0 0.0
    %9157 = vmatpush2.msra.mxu0 0.0
    %9158 = vmatprep.subr.mxu0 0.0
    %9159 = vmatpush2.msra.mxu0 0.0
    %9160 = vmatprep.subr.mxu0 0.0
    %9161 = vmatpush2.msra.mxu0 0.0
    %9162 = vmatprep.subr.mxu0 0.0
    %9163 = vmatpush2.msra.mxu0 0.0
    %9164 = vmatprep.subr.mxu0 0.0
    %9165 = vmatpush2.msra.mxu0 0.0
    %9166 = vmatprep.subr.mxu0 0.0
    %9167 = vmatpush2.msra.mxu0 0.0
    %9168 = vmatprep.subr.mxu0 0.0
    %9169 = vmatpush2.msra.mxu0 0.0
    %9170 = vmatprep.subr.mxu0 0.0
    %9171 = vmatpush2.msra.mxu0 0.0
    %9172 = vmatprep.mubr.f32.mxu0 0.0
    %9173 = vmatmul.mubr.f32.gmra.mxu0 %v7492
    %v9174 = vpop.f32.mrf.mxu0
    %v9175 = vadd.f32 0.0, %v9174
    %v9176 = vpop.f32.mrf.mxu0
    %9177 = vdwg.mxu0
    %v9178 = vpack.c.bf16 %v9175, %v9175
    %v9195 = vunpack.c.l.b16 %v7304
    %v9196 = vunpack.c.l.b16 %v7305
    %v9197 = vunpack.c.l.b16 %v7306
    %v9198 = vunpack.c.l.b16 %v7307
    %v9199 = vunpack.c.l.b16 %v7308
    %v9200 = vunpack.c.l.b16 %v7309
    %v9201 = vunpack.c.l.b16 %v7310
    %v9202 = vunpack.c.l.b16 %v7311
    %v9203 = vunpack.c.l.b16 %v7312
    %v9204 = vunpack.c.l.b16 %v7313
    %v9205 = vunpack.c.l.b16 %v7314
    %v9206 = vunpack.c.l.b16 %v7315
    %v9207 = vunpack.c.l.b16 %v7316
    %v9208 = vunpack.c.l.b16 %v7317
    %v9209 = vunpack.c.l.b16 %v7318
    %v9210 = vunpack.c.l.b16 %v7319
    %v9211 = vpack.c.b16 %v9196, %v9195
    %v9212 = vpack.c.b16 %v9198, %v9197
    %v9213 = vpack.c.b16 %v9200, %v9199
    %v9214 = vpack.c.b16 %v9202, %v9201
    %v9215 = vpack.c.b16 %v9204, %v9203
    %v9216 = vpack.c.b16 %v9206, %v9205
    %v9217 = vpack.c.b16 %v9208, %v9207
    %v9218 = vpack.c.b16 %v9210, %v9209
    %9227 = vmatprep.subr.bf16.mxu0 0
    %9228 = vmatpush1.bf16.msra.mxu0 %v9218
    %9229 = vmatprep.subr.bf16.mxu0 0
    %9230 = vmatpush1.bf16.msra.mxu0 %v9217
    %9231 = vmatprep.subr.bf16.mxu0 0
    %9232 = vmatpush1.bf16.msra.mxu0 %v9216
    %9233 = vmatprep.subr.bf16.mxu0 0
    %9234 = vmatpush1.bf16.msra.mxu0 %v9215
    %9235 = vmatprep.subr.bf16.mxu0 0
    %9236 = vmatpush1.bf16.msra.mxu0 %v9214
    %9237 = vmatprep.subr.bf16.mxu0 0
    %9238 = vmatpush1.bf16.msra.mxu0 %v9213
    %9239 = vmatprep.subr.bf16.mxu0 0
    %9240 = vmatpush1.bf16.msra.mxu0 %v9212
    %9241 = vmatprep.subr.bf16.mxu0 0
    %9242 = vmatpush1.bf16.msra.mxu0 %v9211
    %9243 = vmatprep.subr.bf16.mxu0 0
    %9244 = vmatpush2.bf16.msra.mxu0 0
    %9245 = vmatprep.subr.bf16.mxu0 0
    %9246 = vmatpush2.bf16.msra.mxu0 0
    %9247 = vmatprep.subr.bf16.mxu0 0
    %9248 = vmatpush2.bf16.msra.mxu0 0
    %9249 = vmatprep.subr.bf16.mxu0 0
    %9250 = vmatpush2.bf16.msra.mxu0 0
    %9251 = vmatprep.subr.bf16.mxu0 0
    %9252 = vmatpush2.bf16.msra.mxu0 0
    %9253 = vmatprep.subr.bf16.mxu0 0
    %9254 = vmatpush2.bf16.msra.mxu0 0
    %9255 = vmatprep.subr.bf16.mxu0 0
    %9256 = vmatpush2.bf16.msra.mxu0 0
    %9257 = vmatprep.subr.bf16.mxu0 0
    %9258 = vmatpush2.bf16.msra.mxu0 0
    %9259 = vmatprep.mubr.bf16.mxu0 0
    %9260 = vmatmul.mubr.bf16.gmra.mxu0 %v9178
    %v9261 = vpop.f32.mrf.mxu0
    %v9262 = vadd.f32 0.0, %v9261
    %v9263 = vpop.f32.mrf.mxu0
    %v9264 = vpop.f32.mrf.mxu0
    %v9265 = vpop.f32.mrf.mxu0
    %9266 = vdwg.mxu0
    %v9267 = vadd.f32 %v8945, %v9262
    %9268 = vst [vmem:[#allocation17] sm:$0x3] %v9267
    // Predicated region
    $region74: #{tpu_custom_call.1} parent=1 // pred_check
      _
    $region75: #{tpu_custom_call.1} parent=1 // pred_check_branch
      %9270 = sbr.rel (0) target = $region77
    $region76: #{tpu_custom_call.1} parent=1 // pred_region
      %s9272 = ssub.s32 32, 32
      %9273 = vsyncadd [#allocation4], %s9272
      %s9275 = sshll.u32 [#allocation17], 4
      %s9276 = int_to_ptr.vmem [resolvable:$true] %s9275
      %9278 = dma.vmem_to_hbm [thread:$0]  %s9276, 32, %s9, [#allocation4]
    $region77: #{tpu_custom_call.1} parent=1 // pred_fallthru
      _
    // Predicated region
    $region78: #{tpu_custom_call.1} parent=1 // pred_check
      _
    $region79: #{tpu_custom_call.1} parent=1 // pred_check_branch
      %9280 = sbr.rel (0) target = $region81
    $region80: #{tpu_custom_call.1} parent=1 // pred_region
      %s9282 = ssub.s32 128, 128
      %9283 = vsyncadd [#allocation19], %s9282
      %s9285 = sshll.u32 [#allocation18], 4
      %s9286 = int_to_ptr.vmem [resolvable:$true] %s9285
      %9288 = dma.vmem_to_hbm [thread:$0]  %s9286, 128, %s10, [#allocation19]
    $region81: #{tpu_custom_call.1} parent=1 // pred_fallthru
      _
    // Predicated region
    $region82: #{tpu_custom_call.1} parent=1 // pred_check
      _
    $region83: #{tpu_custom_call.1} parent=1 // pred_check_branch
      %9290 = sbr.rel (0) target = $region85
    $region84: #{tpu_custom_call.1} parent=1 // pred_region
      %s9292 = ssub.s32 64, 64
      %9293 = vsyncadd [#allocation19], %s9292
      %s9295 = sshll.u32 [#allocation20], 4
      %s9296 = int_to_ptr.vmem [resolvable:$true] %s9295
      %9298 = dma.vmem_to_hbm [thread:$0]  %s9296, 64, %s11, [#allocation19]
    $region85: #{tpu_custom_call.1} parent=1 // pred_fallthru
      _
    // Predicated region
    $region86: #{tpu_custom_call.1} parent=1 // pred_check
      _
    $region87: #{tpu_custom_call.1} parent=1 // pred_check_branch
      %9300 = sbr.rel (0) target = $region89
    $region88: #{tpu_custom_call.1} parent=1 // pred_region
      %9301 = dma.done [#allocation4], 32
    $region89: #{tpu_custom_call.1} parent=1 // pred_fallthru
      _
    // Predicated region
    $region90: #{tpu_custom_call.1} parent=1 // pred_check
      _
    $region91: #{tpu_custom_call.1} parent=1 // pred_check_branch
      %9303 = sbr.rel (0) target = $region93
    $region92: #{tpu_custom_call.1} parent=1 // pred_region
      %9304 = dma.done [#allocation19], 128
    $region93: #{tpu_custom_call.1} parent=1 // pred_fallthru
      _
    // Predicated region
    $region94: #{tpu_custom_call.1} parent=1 // pred_check
      _
    $region95: #{tpu_custom_call.1} parent=1 // pred_check_branch
      %9306 = sbr.rel (0) target = $region97
    $region96: #{tpu_custom_call.1} parent=1 // pred_region
      %9307 = dma.done [#allocation19], 64
    $region97: #{tpu_custom_call.1} parent=1 // pred_fallthru
      _
    %9308 = vsyncpa [#allocation3], 1
    %9309 = vsyncpa [#allocation6], 1
    %9310 = vsyncpa [#allocation9], 1
    %9311 = vsyncpa [#allocation12], 1
    %9312 = vsyncpa [#allocation15], 1
    %9313 = vsyncpa [#allocation4], 1
    %9314 = vsyncpa [#allocation19], 1

</llo_original>
